<compile_context>
chip_gen: v7x
topology: tpu7x:2x2x1
jax: 0.10.0
libtpu: 0.0.40
codegen_flags: <defaults>
</compile_context>

<pallas_src>
import functools

import jax
import jax.numpy as jnp
from jax.experimental import pallas as pl
from jax.experimental.pallas import tpu as pltpu

# Keep the f32 path genuinely f32 (XLA's default TPU matmul precision demotes
# f32 operands to bf16, which would blow past a tight tolerance).
jax.config.update("jax_default_matmul_precision", "highest")


# ----------------------------------------------------------------------------
# Recurrent chunk kernel (both directions interleaved).
#
# grid = (num_chunks,), sequential ("arbitrary") over time chunks.
# Per direction d (d=0 forward, d=1 backward):
#   gx_d  : [Tc, Bp, 4H]  input pre-activations x @ W_ih^T + b  (gate order i|f|g|o)
#   whh_d : [H, 4H]       W_hh^T  (h @ whh_d == h @ W_hh^T, fused gates)
#   res_d : [Tc, Bp, H]   this direction's half of the residual
#   y_d   : [Tc, Bp, H]   output = h_t + residual_t
# Scratch: h_d, c_d : [Bp, H] f32, persistent across grid steps.
# The backward direction's BlockSpecs walk the chunks in reverse, and inside a
# chunk it walks local time in reverse, so it sees global time T_pad-1 .. 0.
# ----------------------------------------------------------------------------
def _lstm_chunk_kernel(*args, tc, hdim, n_dirs, t_valid, t_pad):
    n_in = 3 * n_dirs
    in_refs = args[:n_in]
    y_refs = args[n_in:n_in + n_dirs]
    scr = args[n_in + n_dirs:]

    gx_refs = in_refs[0:n_dirs]
    whh_refs = in_refs[n_dirs:2 * n_dirs]
    res_refs = in_refs[2 * n_dirs:3 * n_dirs]
    h_scr = scr[0:n_dirs]
    c_scr = scr[n_dirs:2 * n_dirs]

    ci = pl.program_id(0)
    nc = pl.num_programs(0)
    needs_mask = (t_pad != t_valid)  # static Python bool

    @pl.when(ci == 0)
    def _():
        for d in range(n_dirs):
            h_scr[d][...] = jnp.zeros_like(h_scr[d])
            c_scr[d][...] = jnp.zeros_like(c_scr[d])

    # Recurrent weights are resident in VMEM; hoist the loads out of the loop.
    whh = [whh_refs[d][...] for d in range(n_dirs)]

    def step(t, carry):
        hs, cs = carry
        new_hs, new_cs = [], []
        for d in range(n_dirs):
            reverse = (d == 1)
            tt = (tc - 1 - t) if reverse else t

            # One lane-dense [Bp, 4H] dot per direction per step (fused gates).
            g = gx_refs[d][tt] + jnp.dot(
                hs[d], whh[d], preferred_element_type=jnp.float32)

            i_g = jax.nn.sigmoid(g[:, 0 * hdim:1 * hdim])
            f_g = jax.nn.sigmoid(g[:, 1 * hdim:2 * hdim])
            g_g = jnp.tanh(g[:, 2 * hdim:3 * hdim])
            o_g = jax.nn.sigmoid(g[:, 3 * hdim:4 * hdim])

            c_new = f_g * cs[d] + i_g * g_g
            h_new = o_g * jnp.tanh(c_new)

            if reverse and needs_mask:
                # The backward direction processes the zero-padded tail
                # (global time >= T) FIRST; freeze its state there so padding
                # cannot contaminate the valid steps.
                g_time = (nc - 1 - ci) * tc + tt
                ok = g_time < t_valid
                c_new = jnp.where(ok, c_new, cs[d])
                h_new = jnp.where(ok, h_new, hs[d])

            # Fused residual add on the output write.
            y_refs[d][tt] = (h_new + res_refs[d][tt]).astype(y_refs[d].dtype)

            new_hs.append(h_new)
            new_cs.append(c_new)
        return tuple(new_hs), tuple(new_cs)

    init = (tuple(h_scr[d][...] for d in range(n_dirs)),
            tuple(c_scr[d][...] for d in range(n_dirs)))
    hs, cs = jax.lax.fori_loop(0, tc, step, init, unroll=min(8, tc))

    for d in range(n_dirs):
        h_scr[d][...] = hs[d]
        c_scr[d][...] = cs[d]


# ----------------------------------------------------------------------------
# Parameter construction + forward wrapper.
# ----------------------------------------------------------------------------
def init_params(key, input_dim, hidden_dim, bidirectional):
    """Deterministic PyTorch-style uniform(-1/sqrt(H), 1/sqrt(H)) init."""
    H = hidden_dim
    D = input_dim
    out_dim = 2 * H if bidirectional else H
    bound = 1.0 / jnp.sqrt(jnp.float32(H))
    n_dirs = 2 if bidirectional else 1
    keys = jax.random.split(key, 4 * n_dirs + 2)
    params = {"dirs": []}
    for d in range(n_dirs):
        k0, k1, k2, k3 = keys[4 * d:4 * d + 4]
        params["dirs"].append({
            "w_ih": jax.random.uniform(k0, (4 * H, D), jnp.float32, -bound, bound),
            "w_hh": jax.random.uniform(k1, (4 * H, H), jnp.float32, -bound, bound),
            "b_ih": jax.random.uniform(k2, (4 * H,), jnp.float32, -bound, bound),
            "b_hh": jax.random.uniform(k3, (4 * H,), jnp.float32, -bound, bound),
        })
    if D != out_dim:
        kb = 1.0 / jnp.sqrt(jnp.float32(D))
        params["w_res"] = jax.random.uniform(
            keys[-2], (out_dim, D), jnp.float32, -kb, kb)
        params["b_res"] = jax.random.uniform(
            keys[-1], (out_dim,), jnp.float32, -kb, kb)
    else:
        params["w_res"] = None
        params["b_res"] = None
    return params


def residual_lstm_block(x_btd, params, hidden_dim, bidirectional, time_chunk=64):
    """x_btd: [B, T, D] (batch_first, like PyTorch) -> [B, T, out_dim].

    Eval-mode forward (dropout is identity)."""
    B, T, D = x_btd.shape
    H = hidden_dim
    n_dirs = 2 if bidirectional else 1
    out_dim = n_dirs * H

    Bp = max(8, ((B + 7) // 8) * 8)            # pad batch to sublane width

    # Time-chunk selection: amortize per-grid-step overhead, but stay well
    # inside VMEM (double-buffered streamed bytes per step, all directions).
    tc = max(1, min(time_chunk, T))
    bytes_per_t = 2 * n_dirs * Bp * (4 * H + 2 * H) * 4
    tc = max(1, min(tc, int((24 * 1024 * 1024) // max(bytes_per_t, 1))))
    T_pad = ((T + tc - 1) // tc) * tc
    nc = T_pad // tc

    # Pad x ONCE (time + batch); all downstream matmuls produce the padded,
    # time-major layouts directly (no post-hoc pads of the big tensors).
    x_tb = jnp.transpose(x_btd.astype(jnp.float32), (1, 0, 2))      # [T, B, D]
    x_tb = jnp.pad(x_tb, ((0, T_pad - T), (0, Bp - B), (0, 0)))     # [T_pad, Bp, D]

    # Residual term (one dense matmul, or identity); the add itself is fused
    # into the recurrent kernel's output write.
    if params["w_res"] is not None:
        res = jnp.dot(x_tb, params["w_res"].T) + params["b_res"]    # [T_pad, Bp, O]
    else:
        res = x_tb                                                  # D == out_dim
    res_halves = [res[..., d * H:(d + 1) * H] for d in range(n_dirs)]

    # Input projection hoisted out of the recurrence: one big lane-dense
    # matmul per direction, time-major [T_pad, Bp, 4H] (gate order i|f|g|o).
    gx_list, whh_list = [], []
    for d in range(n_dirs):
        p = params["dirs"][d]
        b4 = (p["b_ih"] + p["b_hh"]).reshape(1, 1, 4 * H)
        gx_list.append(jnp.dot(x_tb, p["w_ih"].T) + b4)             # [T_pad, Bp, 4H]
        whh_list.append(p["w_hh"].T)                                # [H, 4H]

    fwd_idx = lambda ci: (ci, 0, 0)
    bwd_idx = lambda ci: (nc - 1 - ci, 0, 0)
    dir_idx = [fwd_idx, bwd_idx]

    in_specs = (
        [pl.BlockSpec((tc, Bp, 4 * H), dir_idx[d]) for d in range(n_dirs)]      # gx
        + [pl.BlockSpec((H, 4 * H), lambda ci: (0, 0)) for _ in range(n_dirs)]  # W_hh^T
        + [pl.BlockSpec((tc, Bp, H), dir_idx[d]) for d in range(n_dirs)]        # residual
    )
    out_specs = tuple(pl.BlockSpec((tc, Bp, H), dir_idx[d]) for d in range(n_dirs))
    scratch_shapes = [pltpu.VMEM((Bp, H), jnp.float32)
                      for _ in range(2 * n_dirs)]                    # h_d..., c_d...

    grid_spec = pltpu.PrefetchScalarGridSpec(
        num_scalar_prefetch=0,
        grid=(nc,),
        in_specs=in_specs,
        out_specs=out_specs,
        scratch_shapes=scratch_shapes,
    )

    kernel = functools.partial(
        _lstm_chunk_kernel, tc=tc, hdim=H, n_dirs=n_dirs, t_valid=T, t_pad=T_pad)

    ys = pl.pallas_call(
        kernel,
        out_shape=tuple(jax.ShapeDtypeStruct((T_pad, Bp, H), jnp.float32)
                        for _ in range(n_dirs)),
        grid_spec=grid_spec,
        compiler_params=pltpu.CompilerParams(
            dimension_semantics=("arbitrary",)),
    )(*gx_list, *whh_list, *res_halves)

    if not isinstance(ys, (tuple, list)):
        ys = (ys,)
    ys = [y[:T, :B, :] for y in ys]
    y = ys[0] if n_dirs == 1 else jnp.concatenate(ys, axis=-1)      # [T, B, O]

    # Dropout: identity in eval mode.
    return jnp.transpose(y, (1, 0, 2))                              # [B, T, O]


# ----------------------------------------------------------------------------
# Pure-JAX reference (for correctness check).
# ----------------------------------------------------------------------------
def _reference(x, params, hidden_dim, bidirectional):
    B, T, D = x.shape
    H = hidden_dim

    def run_dir(p, xs):
        h = jnp.zeros((B, H), jnp.float32)
        c = jnp.zeros((B, H), jnp.float32)
        w_ih_t, w_hh_t = p["w_ih"].T, p["w_hh"].T
        b = p["b_ih"] + p["b_hh"]
        outs = []
        for t in range(T):
            g = xs[:, t, :] @ w_ih_t + h @ w_hh_t + b
            i = jax.nn.sigmoid(g[:, :H])
            f = jax.nn.sigmoid(g[:, H:2 * H])
            gg = jnp.tanh(g[:, 2 * H:3 * H])
            o = jax.nn.sigmoid(g[:, 3 * H:])
            c = f * c + i * gg
            h = o * jnp.tanh(c)
            outs.append(h)
        return jnp.stack(outs, axis=1)

    y = run_dir(params["dirs"][0], x)
    if bidirectional:
        yb = run_dir(params["dirs"][1], x[:, ::-1, :])[:, ::-1, :]
        y = jnp.concatenate([y, yb], axis=-1)
    if params["w_res"] is not None:
        res = x @ params["w_res"].T + params["b_res"]
    else:
        res = x
    return y + res


if __name__ == "__main__":
    # Small, deterministic example consistent with the module:
    #   batch=2, seq=8, input_dim=16, hidden_dim=32, bidirectional=True
    B, T, D, H = 2, 8, 16, 32
    bidirectional = True

    key = jax.random.PRNGKey(0)
    k_x, k_p = jax.random.split(key)
    x = jax.random.normal(k_x, (B, T, D), dtype=jnp.float32)
    params = init_params(k_p, D, H, bidirectional)

    fwd = jax.jit(functools.partial(
        residual_lstm_block, hidden_dim=H, bidirectional=bidirectional,
        time_chunk=64))
    out = jax.block_until_ready(fwd(x, params))

    expected_out_dim = 2 * H if bidirectional else H
    assert out.shape == (B, T, expected_out_dim), out.shape
    assert bool(jnp.all(jnp.isfinite(out)))

    ref = _reference(x, params, H, bidirectional)
    max_err = float(jnp.max(jnp.abs(out - ref)))
    assert max_err < 1e-4, f"max abs error vs reference: {max_err}"

    # Second check: multi-chunk grid, reversed index maps, and padded-tail
    # masking (T=11 not a multiple of the chunk).
    B2, T2 = 3, 11
    x2 = jax.random.normal(jax.random.PRNGKey(1), (B2, T2, D), dtype=jnp.float32)
    fwd2 = jax.jit(functools.partial(
        residual_lstm_block, hidden_dim=H, bidirectional=bidirectional,
        time_chunk=4))
    out2 = jax.block_until_ready(fwd2(x2, params))
    ref2 = _reference(x2, params, H, bidirectional)
    max_err2 = float(jnp.max(jnp.abs(out2 - ref2)))
    assert out2.shape == (B2, T2, expected_out_dim), out2.shape
    assert max_err2 < 1e-4, f"max abs error vs reference (chunked): {max_err2}"

    print("KERNEL_OK")
</pallas_src>

<mosaic_0001>
module attributes {stable_mosaic.version = 11 : i64} {
  func.func @_lstm_chunk_kernel(%arg0: i32, %arg1: memref<8x8x128xf32, #tpu.memory_space<vmem>>, %arg2: memref<8x8x128xf32, #tpu.memory_space<vmem>>, %arg3: memref<32x128xf32, #tpu.memory_space<vmem>>, %arg4: memref<32x128xf32, #tpu.memory_space<vmem>>, %arg5: memref<8x8x32xf32, #tpu.memory_space<vmem>>, %arg6: memref<8x8x32xf32, #tpu.memory_space<vmem>>, %arg7: memref<8x8x32xf32, #tpu.memory_space<vmem>>, %arg8: memref<8x8x32xf32, #tpu.memory_space<vmem>>, %arg9: memref<8x32xf32, #tpu.memory_space<vmem>>, %arg10: memref<8x32xf32, #tpu.memory_space<vmem>>, %arg11: memref<8x32xf32, #tpu.memory_space<vmem>>, %arg12: memref<8x32xf32, #tpu.memory_space<vmem>>) attributes {dimension_semantics = [#tpu.dimension_semantics<arbitrary>], iteration_bounds = array<i64: 1>, scalar_prefetch = 0 : i64, scratch_operands = 4 : i64, tpu.core_type = #tpu.core_type<tc>, window_params = [{transform_indices = @transform_0, window_bounds = array<i64: 8, 8, 128>}, {transform_indices = @transform_1, window_bounds = array<i64: 8, 8, 128>}, {pipeline_mode = #tpu.pipeline_mode<synchronous>, transform_indices = @transform_2, window_bounds = array<i64: 32, 128>}, {pipeline_mode = #tpu.pipeline_mode<synchronous>, transform_indices = @transform_3, window_bounds = array<i64: 32, 128>}, {transform_indices = @transform_4, window_bounds = array<i64: 8, 8, 32>}, {transform_indices = @transform_5, window_bounds = array<i64: 8, 8, 32>}, {transform_indices = @transform_6, window_bounds = array<i64: 8, 8, 32>}, {transform_indices = @transform_7, window_bounds = array<i64: 8, 8, 32>}]} {
    %c0_i32 = arith.constant 0 : i32
    %0 = arith.cmpi eq, %arg0, %c0_i32 : i32
    %1 = arith.extui %0 : i1 to i32
    %c0_i32_0 = arith.constant 0 : i32
    %2 = arith.cmpi ne, %1, %c0_i32_0 : i32
    scf.if %2 {
      %cst_188 = arith.constant 0.000000e+00 : f32
      %629 = vector.broadcast %cst_188 : f32 to vector<8x32xf32>
      %c0_189 = arith.constant 0 : index
      %c0_190 = arith.constant 0 : index
      %630 = vector.load %arg9[%c0_189, %c0_190] : memref<8x32xf32, #tpu.memory_space<vmem>>, vector<8x32xf32>
      tpu.vector_store %arg9[%c0_189, %c0_190], %629 {strides = array<i32>} : memref<8x32xf32, #tpu.memory_space<vmem>>, vector<8x32xf32>,
      %cst_191 = arith.constant 0.000000e+00 : f32
      %631 = vector.broadcast %cst_191 : f32 to vector<8x32xf32>
      %c0_192 = arith.constant 0 : index
      %c0_193 = arith.constant 0 : index
      %632 = vector.load %arg11[%c0_192, %c0_193] : memref<8x32xf32, #tpu.memory_space<vmem>>, vector<8x32xf32>
      tpu.vector_store %arg11[%c0_192, %c0_193], %631 {strides = array<i32>} : memref<8x32xf32, #tpu.memory_space<vmem>>, vector<8x32xf32>,
      %cst_194 = arith.constant 0.000000e+00 : f32
      %633 = vector.broadcast %cst_194 : f32 to vector<8x32xf32>
      %c0_195 = arith.constant 0 : index
      %c0_196 = arith.constant 0 : index
      %634 = vector.load %arg10[%c0_195, %c0_196] : memref<8x32xf32, #tpu.memory_space<vmem>>, vector<8x32xf32>
      tpu.vector_store %arg10[%c0_195, %c0_196], %633 {strides = array<i32>} : memref<8x32xf32, #tpu.memory_space<vmem>>, vector<8x32xf32>,
      %cst_197 = arith.constant 0.000000e+00 : f32
      %635 = vector.broadcast %cst_197 : f32 to vector<8x32xf32>
      %c0_198 = arith.constant 0 : index
      %c0_199 = arith.constant 0 : index
      %636 = vector.load %arg12[%c0_198, %c0_199] : memref<8x32xf32, #tpu.memory_space<vmem>>, vector<8x32xf32>
      tpu.vector_store %arg12[%c0_198, %c0_199], %635 {strides = array<i32>} : memref<8x32xf32, #tpu.memory_space<vmem>>, vector<8x32xf32>,
    } else {
    }
    %c0 = arith.constant 0 : index
    %c0_1 = arith.constant 0 : index
    %3 = vector.load %arg3[%c0, %c0_1] : memref<32x128xf32, #tpu.memory_space<vmem>>, vector<32x128xf32>
    %c0_2 = arith.constant 0 : index
    %c0_3 = arith.constant 0 : index
    %4 = vector.load %arg4[%c0_2, %c0_3] : memref<32x128xf32, #tpu.memory_space<vmem>>, vector<32x128xf32>
    %c0_4 = arith.constant 0 : index
    %c0_5 = arith.constant 0 : index
    %5 = vector.load %arg9[%c0_4, %c0_5] : memref<8x32xf32, #tpu.memory_space<vmem>>, vector<8x32xf32>
    %c0_6 = arith.constant 0 : index
    %c0_7 = arith.constant 0 : index
    %6 = vector.load %arg10[%c0_6, %c0_7] : memref<8x32xf32, #tpu.memory_space<vmem>>, vector<8x32xf32>
    %c0_8 = arith.constant 0 : index
    %c0_9 = arith.constant 0 : index
    %7 = vector.load %arg11[%c0_8, %c0_9] : memref<8x32xf32, #tpu.memory_space<vmem>>, vector<8x32xf32>
    %c0_10 = arith.constant 0 : index
    %c0_11 = arith.constant 0 : index
    %8 = vector.load %arg12[%c0_10, %c0_11] : memref<8x32xf32, #tpu.memory_space<vmem>>, vector<8x32xf32>
    %c0_i32_12 = arith.constant 0 : i32
    %9 = arith.index_cast %c0_i32_12 : i32 to index
    %c0_13 = arith.constant 0 : index
    %c0_14 = arith.constant 0 : index
    %10 = vector.load %arg1[%9, %c0_13, %c0_14] : memref<8x8x128xf32, #tpu.memory_space<vmem>>, vector<1x8x128xf32>
    %11 = vector.shape_cast %10 : vector<1x8x128xf32> to vector<8x128xf32>
    %cst = arith.constant dense<0.000000e+00> : vector<8x128xf32>
    %12 = tpu.matmul %5, %3, %cst {dimension_numbers = #tpu.dot_dimension_numbers<[1], [0], [0], [1], [0, 0, 1, 1], [], []>, precision = #tpu.contract_precision<fp32>} : vector<8x32xf32>, vector<32x128xf32>, vector<8x128xf32> -> vector<8x128xf32>
    %13 = arith.addf %11, %12 : vector<8x128xf32>
    %14 = vector.extract_strided_slice %13 {offsets = [0, 0], sizes = [8, 32], strides = [1, 1]} : vector<8x128xf32> to vector<8x32xf32>
    %15 = arith.negf %14 : vector<8x32xf32>
    %16 = math.exp %15 : vector<8x32xf32>
    %cst_15 = arith.constant 1.000000e+00 : f32
    %17 = vector.broadcast %cst_15 : f32 to vector<8x32xf32>
    %18 = arith.addf %17, %16 : vector<8x32xf32>
    %19 = arith.divf %17, %18 : vector<8x32xf32>
    %20 = vector.extract_strided_slice %13 {offsets = [0, 32], sizes = [8, 32], strides = [1, 1]} : vector<8x128xf32> to vector<8x32xf32>
    %21 = arith.negf %20 : vector<8x32xf32>
    %22 = math.exp %21 : vector<8x32xf32>
    %cst_16 = arith.constant 1.000000e+00 : f32
    %23 = vector.broadcast %cst_16 : f32 to vector<8x32xf32>
    %24 = arith.addf %23, %22 : vector<8x32xf32>
    %25 = arith.divf %23, %24 : vector<8x32xf32>
    %26 = vector.extract_strided_slice %13 {offsets = [0, 64], sizes = [8, 32], strides = [1, 1]} : vector<8x128xf32> to vector<8x32xf32>
    %27 = math.tanh %26 : vector<8x32xf32>
    %28 = vector.extract_strided_slice %13 {offsets = [0, 96], sizes = [8, 32], strides = [1, 1]} : vector<8x128xf32> to vector<8x32xf32>
    %29 = arith.negf %28 : vector<8x32xf32>
    %30 = math.exp %29 : vector<8x32xf32>
    %cst_17 = arith.constant 1.000000e+00 : f32
    %31 = vector.broadcast %cst_17 : f32 to vector<8x32xf32>
    %32 = arith.addf %31, %30 : vector<8x32xf32>
    %33 = arith.divf %31, %32 : vector<8x32xf32>
    %34 = arith.mulf %25, %7 : vector<8x32xf32>
    %35 = arith.mulf %19, %27 : vector<8x32xf32>
    %36 = arith.addf %34, %35 : vector<8x32xf32>
    %37 = math.tanh %36 : vector<8x32xf32>
    %38 = arith.mulf %33, %37 : vector<8x32xf32>
    %39 = arith.index_cast %c0_i32_12 : i32 to index
    %c0_18 = arith.constant 0 : index
    %c0_19 = arith.constant 0 : index
    %40 = vector.load %arg5[%39, %c0_18, %c0_19] : memref<8x8x32xf32, #tpu.memory_space<vmem>>, vector<1x8x32xf32>
    %41 = vector.shape_cast %40 : vector<1x8x32xf32> to vector<8x32xf32>
    %42 = arith.addf %38, %41 : vector<8x32xf32>
    %43 = arith.index_cast %c0_i32_12 : i32 to index
    %c0_20 = arith.constant 0 : index
    %c0_21 = arith.constant 0 : index
    %44 = vector.load %arg7[%43, %c0_20, %c0_21] : memref<8x8x32xf32, #tpu.memory_space<vmem>>, vector<1x8x32xf32>
    %45 = vector.shape_cast %44 : vector<1x8x32xf32> to vector<8x32xf32>
    %46 = vector.shape_cast %42 : vector<8x32xf32> to vector<1x8x32xf32>
    tpu.vector_store %arg7[%43, %c0_20, %c0_21], %46 {strides = array<i32>} : memref<8x8x32xf32, #tpu.memory_space<vmem>>, vector<1x8x32xf32>,
    %c7_i32 = arith.constant 7 : i32
    %47 = arith.subi %c7_i32, %c0_i32_12 : i32
    %48 = arith.index_cast %47 : i32 to index
    %c0_22 = arith.constant 0 : index
    %c0_23 = arith.constant 0 : index
    %49 = vector.load %arg2[%48, %c0_22, %c0_23] : memref<8x8x128xf32, #tpu.memory_space<vmem>>, vector<1x8x128xf32>
    %50 = vector.shape_cast %49 : vector<1x8x128xf32> to vector<8x128xf32>
    %cst_24 = arith.constant dense<0.000000e+00> : vector<8x128xf32>
    %51 = tpu.matmul %6, %4, %cst_24 {dimension_numbers = #tpu.dot_dimension_numbers<[1], [0], [0], [1], [0, 0, 1, 1], [], []>, precision = #tpu.contract_precision<fp32>} : vector<8x32xf32>, vector<32x128xf32>, vector<8x128xf32> -> vector<8x128xf32>
    %52 = arith.addf %50, %51 : vector<8x128xf32>
    %53 = vector.extract_strided_slice %52 {offsets = [0, 0], sizes = [8, 32], strides = [1, 1]} : vector<8x128xf32> to vector<8x32xf32>
    %54 = arith.negf %53 : vector<8x32xf32>
    %55 = math.exp %54 : vector<8x32xf32>
    %cst_25 = arith.constant 1.000000e+00 : f32
    %56 = vector.broadcast %cst_25 : f32 to vector<8x32xf32>
    %57 = arith.addf %56, %55 : vector<8x32xf32>
    %58 = arith.divf %56, %57 : vector<8x32xf32>
    %59 = vector.extract_strided_slice %52 {offsets = [0, 32], sizes = [8, 32], strides = [1, 1]} : vector<8x128xf32> to vector<8x32xf32>
    %60 = arith.negf %59 : vector<8x32xf32>
    %61 = math.exp %60 : vector<8x32xf32>
    %cst_26 = arith.constant 1.000000e+00 : f32
    %62 = vector.broadcast %cst_26 : f32 to vector<8x32xf32>
    %63 = arith.addf %62, %61 : vector<8x32xf32>
    %64 = arith.divf %62, %63 : vector<8x32xf32>
    %65 = vector.extract_strided_slice %52 {offsets = [0, 64], sizes = [8, 32], strides = [1, 1]} : vector<8x128xf32> to vector<8x32xf32>
    %66 = math.tanh %65 : vector<8x32xf32>
    %67 = vector.extract_strided_slice %52 {offsets = [0, 96], sizes = [8, 32], strides = [1, 1]} : vector<8x128xf32> to vector<8x32xf32>
    %68 = arith.negf %67 : vector<8x32xf32>
    %69 = math.exp %68 : vector<8x32xf32>
    %cst_27 = arith.constant 1.000000e+00 : f32
    %70 = vector.broadcast %cst_27 : f32 to vector<8x32xf32>
    %71 = arith.addf %70, %69 : vector<8x32xf32>
    %72 = arith.divf %70, %71 : vector<8x32xf32>
    %73 = arith.mulf %64, %8 : vector<8x32xf32>
    %74 = arith.mulf %58, %66 : vector<8x32xf32>
    %75 = arith.addf %73, %74 : vector<8x32xf32>
    %76 = math.tanh %75 : vector<8x32xf32>
    %77 = arith.mulf %72, %76 : vector<8x32xf32>
    %78 = arith.index_cast %47 : i32 to index
    %c0_28 = arith.constant 0 : index
    %c0_29 = arith.constant 0 : index
    %79 = vector.load %arg6[%78, %c0_28, %c0_29] : memref<8x8x32xf32, #tpu.memory_space<vmem>>, vector<1x8x32xf32>
    %80 = vector.shape_cast %79 : vector<1x8x32xf32> to vector<8x32xf32>
    %81 = arith.addf %77, %80 : vector<8x32xf32>
    %82 = arith.index_cast %47 : i32 to index
    %c0_30 = arith.constant 0 : index
    %c0_31 = arith.constant 0 : index
    %83 = vector.load %arg8[%82, %c0_30, %c0_31] : memref<8x8x32xf32, #tpu.memory_space<vmem>>, vector<1x8x32xf32>
    %84 = vector.shape_cast %83 : vector<1x8x32xf32> to vector<8x32xf32>
    %85 = vector.shape_cast %81 : vector<8x32xf32> to vector<1x8x32xf32>
    tpu.vector_store %arg8[%82, %c0_30, %c0_31], %85 {strides = array<i32>} : memref<8x8x32xf32, #tpu.memory_space<vmem>>, vector<1x8x32xf32>,
    %c1_i32 = arith.constant 1 : i32
    %86 = arith.index_cast %c1_i32 : i32 to index
    %c0_32 = arith.constant 0 : index
    %c0_33 = arith.constant 0 : index
    %87 = vector.load %arg1[%86, %c0_32, %c0_33] : memref<8x8x128xf32, #tpu.memory_space<vmem>>, vector<1x8x128xf32>
    %88 = vector.shape_cast %87 : vector<1x8x128xf32> to vector<8x128xf32>
    %cst_34 = arith.constant dense<0.000000e+00> : vector<8x128xf32>
    %89 = tpu.matmul %38, %3, %cst_34 {dimension_numbers = #tpu.dot_dimension_numbers<[1], [0], [0], [1], [0, 0, 1, 1], [], []>, precision = #tpu.contract_precision<fp32>} : vector<8x32xf32>, vector<32x128xf32>, vector<8x128xf32> -> vector<8x128xf32>
    %90 = arith.addf %88, %89 : vector<8x128xf32>
    %91 = vector.extract_strided_slice %90 {offsets = [0, 0], sizes = [8, 32], strides = [1, 1]} : vector<8x128xf32> to vector<8x32xf32>
    %92 = arith.negf %91 : vector<8x32xf32>
    %93 = math.exp %92 : vector<8x32xf32>
    %cst_35 = arith.constant 1.000000e+00 : f32
    %94 = vector.broadcast %cst_35 : f32 to vector<8x32xf32>
    %95 = arith.addf %94, %93 : vector<8x32xf32>
    %96 = arith.divf %94, %95 : vector<8x32xf32>
    %97 = vector.extract_strided_slice %90 {offsets = [0, 32], sizes = [8, 32], strides = [1, 1]} : vector<8x128xf32> to vector<8x32xf32>
    %98 = arith.negf %97 : vector<8x32xf32>
    %99 = math.exp %98 : vector<8x32xf32>
    %cst_36 = arith.constant 1.000000e+00 : f32
    %100 = vector.broadcast %cst_36 : f32 to vector<8x32xf32>
    %101 = arith.addf %100, %99 : vector<8x32xf32>
    %102 = arith.divf %100, %101 : vector<8x32xf32>
    %103 = vector.extract_strided_slice %90 {offsets = [0, 64], sizes = [8, 32], strides = [1, 1]} : vector<8x128xf32> to vector<8x32xf32>
    %104 = math.tanh %103 : vector<8x32xf32>
    %105 = vector.extract_strided_slice %90 {offsets = [0, 96], sizes = [8, 32], strides = [1, 1]} : vector<8x128xf32> to vector<8x32xf32>
    %106 = arith.negf %105 : vector<8x32xf32>
    %107 = math.exp %106 : vector<8x32xf32>
    %cst_37 = arith.constant 1.000000e+00 : f32
    %108 = vector.broadcast %cst_37 : f32 to vector<8x32xf32>
    %109 = arith.addf %108, %107 : vector<8x32xf32>
    %110 = arith.divf %108, %109 : vector<8x32xf32>
    %111 = arith.mulf %102, %36 : vector<8x32xf32>
    %112 = arith.mulf %96, %104 : vector<8x32xf32>
    %113 = arith.addf %111, %112 : vector<8x32xf32>
    %114 = math.tanh %113 : vector<8x32xf32>
    %115 = arith.mulf %110, %114 : vector<8x32xf32>
    %116 = arith.index_cast %c1_i32 : i32 to index
    %c0_38 = arith.constant 0 : index
    %c0_39 = arith.constant 0 : index
    %117 = vector.load %arg5[%116, %c0_38, %c0_39] : memref<8x8x32xf32, #tpu.memory_space<vmem>>, vector<1x8x32xf32>
    %118 = vector.shape_cast %117 : vector<1x8x32xf32> to vector<8x32xf32>
    %119 = arith.addf %115, %118 : vector<8x32xf32>
    %120 = arith.index_cast %c1_i32 : i32 to index
    %c0_40 = arith.constant 0 : index
    %c0_41 = arith.constant 0 : index
    %121 = vector.load %arg7[%120, %c0_40, %c0_41] : memref<8x8x32xf32, #tpu.memory_space<vmem>>, vector<1x8x32xf32>
    %122 = vector.shape_cast %121 : vector<1x8x32xf32> to vector<8x32xf32>
    %123 = vector.shape_cast %119 : vector<8x32xf32> to vector<1x8x32xf32>
    tpu.vector_store %arg7[%120, %c0_40, %c0_41], %123 {strides = array<i32>} : memref<8x8x32xf32, #tpu.memory_space<vmem>>, vector<1x8x32xf32>,
    %c7_i32_42 = arith.constant 7 : i32
    %124 = arith.subi %c7_i32_42, %c1_i32 : i32
    %125 = arith.index_cast %124 : i32 to index
    %c0_43 = arith.constant 0 : index
    %c0_44 = arith.constant 0 : index
    %126 = vector.load %arg2[%125, %c0_43, %c0_44] : memref<8x8x128xf32, #tpu.memory_space<vmem>>, vector<1x8x128xf32>
    %127 = vector.shape_cast %126 : vector<1x8x128xf32> to vector<8x128xf32>
    %cst_45 = arith.constant dense<0.000000e+00> : vector<8x128xf32>
    %128 = tpu.matmul %77, %4, %cst_45 {dimension_numbers = #tpu.dot_dimension_numbers<[1], [0], [0], [1], [0, 0, 1, 1], [], []>, precision = #tpu.contract_precision<fp32>} : vector<8x32xf32>, vector<32x128xf32>, vector<8x128xf32> -> vector<8x128xf32>
    %129 = arith.addf %127, %128 : vector<8x128xf32>
    %130 = vector.extract_strided_slice %129 {offsets = [0, 0], sizes = [8, 32], strides = [1, 1]} : vector<8x128xf32> to vector<8x32xf32>
    %131 = arith.negf %130 : vector<8x32xf32>
    %132 = math.exp %131 : vector<8x32xf32>
    %cst_46 = arith.constant 1.000000e+00 : f32
    %133 = vector.broadcast %cst_46 : f32 to vector<8x32xf32>
    %134 = arith.addf %133, %132 : vector<8x32xf32>
    %135 = arith.divf %133, %134 : vector<8x32xf32>
    %136 = vector.extract_strided_slice %129 {offsets = [0, 32], sizes = [8, 32], strides = [1, 1]} : vector<8x128xf32> to vector<8x32xf32>
    %137 = arith.negf %136 : vector<8x32xf32>
    %138 = math.exp %137 : vector<8x32xf32>
    %cst_47 = arith.constant 1.000000e+00 : f32
    %139 = vector.broadcast %cst_47 : f32 to vector<8x32xf32>
    %140 = arith.addf %139, %138 : vector<8x32xf32>
    %141 = arith.divf %139, %140 : vector<8x32xf32>
    %142 = vector.extract_strided_slice %129 {offsets = [0, 64], sizes = [8, 32], strides = [1, 1]} : vector<8x128xf32> to vector<8x32xf32>
    %143 = math.tanh %142 : vector<8x32xf32>
    %144 = vector.extract_strided_slice %129 {offsets = [0, 96], sizes = [8, 32], strides = [1, 1]} : vector<8x128xf32> to vector<8x32xf32>
    %145 = arith.negf %144 : vector<8x32xf32>
    %146 = math.exp %145 : vector<8x32xf32>
    %cst_48 = arith.constant 1.000000e+00 : f32
    %147 = vector.broadcast %cst_48 : f32 to vector<8x32xf32>
    %148 = arith.addf %147, %146 : vector<8x32xf32>
    %149 = arith.divf %147, %148 : vector<8x32xf32>
    %150 = arith.mulf %141, %75 : vector<8x32xf32>
    %151 = arith.mulf %135, %143 : vector<8x32xf32>
    %152 = arith.addf %150, %151 : vector<8x32xf32>
    %153 = math.tanh %152 : vector<8x32xf32>
    %154 = arith.mulf %149, %153 : vector<8x32xf32>
    %155 = arith.index_cast %124 : i32 to index
    %c0_49 = arith.constant 0 : index
    %c0_50 = arith.constant 0 : index
    %156 = vector.load %arg6[%155, %c0_49, %c0_50] : memref<8x8x32xf32, #tpu.memory_space<vmem>>, vector<1x8x32xf32>
    %157 = vector.shape_cast %156 : vector<1x8x32xf32> to vector<8x32xf32>
    %158 = arith.addf %154, %157 : vector<8x32xf32>
    %159 = arith.index_cast %124 : i32 to index
    %c0_51 = arith.constant 0 : index
    %c0_52 = arith.constant 0 : index
    %160 = vector.load %arg8[%159, %c0_51, %c0_52] : memref<8x8x32xf32, #tpu.memory_space<vmem>>, vector<1x8x32xf32>
    %161 = vector.shape_cast %160 : vector<1x8x32xf32> to vector<8x32xf32>
    %162 = vector.shape_cast %158 : vector<8x32xf32> to vector<1x8x32xf32>
    tpu.vector_store %arg8[%159, %c0_51, %c0_52], %162 {strides = array<i32>} : memref<8x8x32xf32, #tpu.memory_space<vmem>>, vector<1x8x32xf32>,
    %c2_i32 = arith.constant 2 : i32
    %163 = arith.index_cast %c2_i32 : i32 to index
    %c0_53 = arith.constant 0 : index
    %c0_54 = arith.constant 0 : index
    %164 = vector.load %arg1[%163, %c0_53, %c0_54] : memref<8x8x128xf32, #tpu.memory_space<vmem>>, vector<1x8x128xf32>
    %165 = vector.shape_cast %164 : vector<1x8x128xf32> to vector<8x128xf32>
    %cst_55 = arith.constant dense<0.000000e+00> : vector<8x128xf32>
    %166 = tpu.matmul %115, %3, %cst_55 {dimension_numbers = #tpu.dot_dimension_numbers<[1], [0], [0], [1], [0, 0, 1, 1], [], []>, precision = #tpu.contract_precision<fp32>} : vector<8x32xf32>, vector<32x128xf32>, vector<8x128xf32> -> vector<8x128xf32>
    %167 = arith.addf %165, %166 : vector<8x128xf32>
    %168 = vector.extract_strided_slice %167 {offsets = [0, 0], sizes = [8, 32], strides = [1, 1]} : vector<8x128xf32> to vector<8x32xf32>
    %169 = arith.negf %168 : vector<8x32xf32>
    %170 = math.exp %169 : vector<8x32xf32>
    %cst_56 = arith.constant 1.000000e+00 : f32
    %171 = vector.broadcast %cst_56 : f32 to vector<8x32xf32>
    %172 = arith.addf %171, %170 : vector<8x32xf32>
    %173 = arith.divf %171, %172 : vector<8x32xf32>
    %174 = vector.extract_strided_slice %167 {offsets = [0, 32], sizes = [8, 32], strides = [1, 1]} : vector<8x128xf32> to vector<8x32xf32>
    %175 = arith.negf %174 : vector<8x32xf32>
    %176 = math.exp %175 : vector<8x32xf32>
    %cst_57 = arith.constant 1.000000e+00 : f32
    %177 = vector.broadcast %cst_57 : f32 to vector<8x32xf32>
    %178 = arith.addf %177, %176 : vector<8x32xf32>
    %179 = arith.divf %177, %178 : vector<8x32xf32>
    %180 = vector.extract_strided_slice %167 {offsets = [0, 64], sizes = [8, 32], strides = [1, 1]} : vector<8x128xf32> to vector<8x32xf32>
    %181 = math.tanh %180 : vector<8x32xf32>
    %182 = vector.extract_strided_slice %167 {offsets = [0, 96], sizes = [8, 32], strides = [1, 1]} : vector<8x128xf32> to vector<8x32xf32>
    %183 = arith.negf %182 : vector<8x32xf32>
    %184 = math.exp %183 : vector<8x32xf32>
    %cst_58 = arith.constant 1.000000e+00 : f32
    %185 = vector.broadcast %cst_58 : f32 to vector<8x32xf32>
    %186 = arith.addf %185, %184 : vector<8x32xf32>
    %187 = arith.divf %185, %186 : vector<8x32xf32>
    %188 = arith.mulf %179, %113 : vector<8x32xf32>
    %189 = arith.mulf %173, %181 : vector<8x32xf32>
    %190 = arith.addf %188, %189 : vector<8x32xf32>
    %191 = math.tanh %190 : vector<8x32xf32>
    %192 = arith.mulf %187, %191 : vector<8x32xf32>
    %193 = arith.index_cast %c2_i32 : i32 to index
    %c0_59 = arith.constant 0 : index
    %c0_60 = arith.constant 0 : index
    %194 = vector.load %arg5[%193, %c0_59, %c0_60] : memref<8x8x32xf32, #tpu.memory_space<vmem>>, vector<1x8x32xf32>
    %195 = vector.shape_cast %194 : vector<1x8x32xf32> to vector<8x32xf32>
    %196 = arith.addf %192, %195 : vector<8x32xf32>
    %197 = arith.index_cast %c2_i32 : i32 to index
    %c0_61 = arith.constant 0 : index
    %c0_62 = arith.constant 0 : index
    %198 = vector.load %arg7[%197, %c0_61, %c0_62] : memref<8x8x32xf32, #tpu.memory_space<vmem>>, vector<1x8x32xf32>
    %199 = vector.shape_cast %198 : vector<1x8x32xf32> to vector<8x32xf32>
    %200 = vector.shape_cast %196 : vector<8x32xf32> to vector<1x8x32xf32>
    tpu.vector_store %arg7[%197, %c0_61, %c0_62], %200 {strides = array<i32>} : memref<8x8x32xf32, #tpu.memory_space<vmem>>, vector<1x8x32xf32>,
    %c7_i32_63 = arith.constant 7 : i32
    %201 = arith.subi %c7_i32_63, %c2_i32 : i32
    %202 = arith.index_cast %201 : i32 to index
    %c0_64 = arith.constant 0 : index
    %c0_65 = arith.constant 0 : index
    %203 = vector.load %arg2[%202, %c0_64, %c0_65] : memref<8x8x128xf32, #tpu.memory_space<vmem>>, vector<1x8x128xf32>
    %204 = vector.shape_cast %203 : vector<1x8x128xf32> to vector<8x128xf32>
    %cst_66 = arith.constant dense<0.000000e+00> : vector<8x128xf32>
    %205 = tpu.matmul %154, %4, %cst_66 {dimension_numbers = #tpu.dot_dimension_numbers<[1], [0], [0], [1], [0, 0, 1, 1], [], []>, precision = #tpu.contract_precision<fp32>} : vector<8x32xf32>, vector<32x128xf32>, vector<8x128xf32> -> vector<8x128xf32>
    %206 = arith.addf %204, %205 : vector<8x128xf32>
    %207 = vector.extract_strided_slice %206 {offsets = [0, 0], sizes = [8, 32], strides = [1, 1]} : vector<8x128xf32> to vector<8x32xf32>
    %208 = arith.negf %207 : vector<8x32xf32>
    %209 = math.exp %208 : vector<8x32xf32>
    %cst_67 = arith.constant 1.000000e+00 : f32
    %210 = vector.broadcast %cst_67 : f32 to vector<8x32xf32>
    %211 = arith.addf %210, %209 : vector<8x32xf32>
    %212 = arith.divf %210, %211 : vector<8x32xf32>
    %213 = vector.extract_strided_slice %206 {offsets = [0, 32], sizes = [8, 32], strides = [1, 1]} : vector<8x128xf32> to vector<8x32xf32>
    %214 = arith.negf %213 : vector<8x32xf32>
    %215 = math.exp %214 : vector<8x32xf32>
    %cst_68 = arith.constant 1.000000e+00 : f32
    %216 = vector.broadcast %cst_68 : f32 to vector<8x32xf32>
    %217 = arith.addf %216, %215 : vector<8x32xf32>
    %218 = arith.divf %216, %217 : vector<8x32xf32>
    %219 = vector.extract_strided_slice %206 {offsets = [0, 64], sizes = [8, 32], strides = [1, 1]} : vector<8x128xf32> to vector<8x32xf32>
    %220 = math.tanh %219 : vector<8x32xf32>
    %221 = vector.extract_strided_slice %206 {offsets = [0, 96], sizes = [8, 32], strides = [1, 1]} : vector<8x128xf32> to vector<8x32xf32>
    %222 = arith.negf %221 : vector<8x32xf32>
    %223 = math.exp %222 : vector<8x32xf32>
    %cst_69 = arith.constant 1.000000e+00 : f32
    %224 = vector.broadcast %cst_69 : f32 to vector<8x32xf32>
    %225 = arith.addf %224, %223 : vector<8x32xf32>
    %226 = arith.divf %224, %225 : vector<8x32xf32>
    %227 = arith.mulf %218, %152 : vector<8x32xf32>
    %228 = arith.mulf %212, %220 : vector<8x32xf32>
    %229 = arith.addf %227, %228 : vector<8x32xf32>
    %230 = math.tanh %229 : vector<8x32xf32>
    %231 = arith.mulf %226, %230 : vector<8x32xf32>
    %232 = arith.index_cast %201 : i32 to index
    %c0_70 = arith.constant 0 : index
    %c0_71 = arith.constant 0 : index
    %233 = vector.load %arg6[%232, %c0_70, %c0_71] : memref<8x8x32xf32, #tpu.memory_space<vmem>>, vector<1x8x32xf32>
    %234 = vector.shape_cast %233 : vector<1x8x32xf32> to vector<8x32xf32>
    %235 = arith.addf %231, %234 : vector<8x32xf32>
    %236 = arith.index_cast %201 : i32 to index
    %c0_72 = arith.constant 0 : index
    %c0_73 = arith.constant 0 : index
    %237 = vector.load %arg8[%236, %c0_72, %c0_73] : memref<8x8x32xf32, #tpu.memory_space<vmem>>, vector<1x8x32xf32>
    %238 = vector.shape_cast %237 : vector<1x8x32xf32> to vector<8x32xf32>
    %239 = vector.shape_cast %235 : vector<8x32xf32> to vector<1x8x32xf32>
    tpu.vector_store %arg8[%236, %c0_72, %c0_73], %239 {strides = array<i32>} : memref<8x8x32xf32, #tpu.memory_space<vmem>>, vector<1x8x32xf32>,
    %c3_i32 = arith.constant 3 : i32
    %240 = arith.index_cast %c3_i32 : i32 to index
    %c0_74 = arith.constant 0 : index
    %c0_75 = arith.constant 0 : index
    %241 = vector.load %arg1[%240, %c0_74, %c0_75] : memref<8x8x128xf32, #tpu.memory_space<vmem>>, vector<1x8x128xf32>
    %242 = vector.shape_cast %241 : vector<1x8x128xf32> to vector<8x128xf32>
    %cst_76 = arith.constant dense<0.000000e+00> : vector<8x128xf32>
    %243 = tpu.matmul %192, %3, %cst_76 {dimension_numbers = #tpu.dot_dimension_numbers<[1], [0], [0], [1], [0, 0, 1, 1], [], []>, precision = #tpu.contract_precision<fp32>} : vector<8x32xf32>, vector<32x128xf32>, vector<8x128xf32> -> vector<8x128xf32>
    %244 = arith.addf %242, %243 : vector<8x128xf32>
    %245 = vector.extract_strided_slice %244 {offsets = [0, 0], sizes = [8, 32], strides = [1, 1]} : vector<8x128xf32> to vector<8x32xf32>
    %246 = arith.negf %245 : vector<8x32xf32>
    %247 = math.exp %246 : vector<8x32xf32>
    %cst_77 = arith.constant 1.000000e+00 : f32
    %248 = vector.broadcast %cst_77 : f32 to vector<8x32xf32>
    %249 = arith.addf %248, %247 : vector<8x32xf32>
    %250 = arith.divf %248, %249 : vector<8x32xf32>
    %251 = vector.extract_strided_slice %244 {offsets = [0, 32], sizes = [8, 32], strides = [1, 1]} : vector<8x128xf32> to vector<8x32xf32>
    %252 = arith.negf %251 : vector<8x32xf32>
    %253 = math.exp %252 : vector<8x32xf32>
    %cst_78 = arith.constant 1.000000e+00 : f32
    %254 = vector.broadcast %cst_78 : f32 to vector<8x32xf32>
    %255 = arith.addf %254, %253 : vector<8x32xf32>
    %256 = arith.divf %254, %255 : vector<8x32xf32>
    %257 = vector.extract_strided_slice %244 {offsets = [0, 64], sizes = [8, 32], strides = [1, 1]} : vector<8x128xf32> to vector<8x32xf32>
    %258 = math.tanh %257 : vector<8x32xf32>
    %259 = vector.extract_strided_slice %244 {offsets = [0, 96], sizes = [8, 32], strides = [1, 1]} : vector<8x128xf32> to vector<8x32xf32>
    %260 = arith.negf %259 : vector<8x32xf32>
    %261 = math.exp %260 : vector<8x32xf32>
    %cst_79 = arith.constant 1.000000e+00 : f32
    %262 = vector.broadcast %cst_79 : f32 to vector<8x32xf32>
    %263 = arith.addf %262, %261 : vector<8x32xf32>
    %264 = arith.divf %262, %263 : vector<8x32xf32>
    %265 = arith.mulf %256, %190 : vector<8x32xf32>
    %266 = arith.mulf %250, %258 : vector<8x32xf32>
    %267 = arith.addf %265, %266 : vector<8x32xf32>
    %268 = math.tanh %267 : vector<8x32xf32>
    %269 = arith.mulf %264, %268 : vector<8x32xf32>
    %270 = arith.index_cast %c3_i32 : i32 to index
    %c0_80 = arith.constant 0 : index
    %c0_81 = arith.constant 0 : index
    %271 = vector.load %arg5[%270, %c0_80, %c0_81] : memref<8x8x32xf32, #tpu.memory_space<vmem>>, vector<1x8x32xf32>
    %272 = vector.shape_cast %271 : vector<1x8x32xf32> to vector<8x32xf32>
    %273 = arith.addf %269, %272 : vector<8x32xf32>
    %274 = arith.index_cast %c3_i32 : i32 to index
    %c0_82 = arith.constant 0 : index
    %c0_83 = arith.constant 0 : index
    %275 = vector.load %arg7[%274, %c0_82, %c0_83] : memref<8x8x32xf32, #tpu.memory_space<vmem>>, vector<1x8x32xf32>
    %276 = vector.shape_cast %275 : vector<1x8x32xf32> to vector<8x32xf32>
    %277 = vector.shape_cast %273 : vector<8x32xf32> to vector<1x8x32xf32>
    tpu.vector_store %arg7[%274, %c0_82, %c0_83], %277 {strides = array<i32>} : memref<8x8x32xf32, #tpu.memory_space<vmem>>, vector<1x8x32xf32>,
    %c7_i32_84 = arith.constant 7 : i32
    %278 = arith.subi %c7_i32_84, %c3_i32 : i32
    %279 = arith.index_cast %278 : i32 to index
    %c0_85 = arith.constant 0 : index
    %c0_86 = arith.constant 0 : index
    %280 = vector.load %arg2[%279, %c0_85, %c0_86] : memref<8x8x128xf32, #tpu.memory_space<vmem>>, vector<1x8x128xf32>
    %281 = vector.shape_cast %280 : vector<1x8x128xf32> to vector<8x128xf32>
    %cst_87 = arith.constant dense<0.000000e+00> : vector<8x128xf32>
    %282 = tpu.matmul %231, %4, %cst_87 {dimension_numbers = #tpu.dot_dimension_numbers<[1], [0], [0], [1], [0, 0, 1, 1], [], []>, precision = #tpu.contract_precision<fp32>} : vector<8x32xf32>, vector<32x128xf32>, vector<8x128xf32> -> vector<8x128xf32>
    %283 = arith.addf %281, %282 : vector<8x128xf32>
    %284 = vector.extract_strided_slice %283 {offsets = [0, 0], sizes = [8, 32], strides = [1, 1]} : vector<8x128xf32> to vector<8x32xf32>
    %285 = arith.negf %284 : vector<8x32xf32>
    %286 = math.exp %285 : vector<8x32xf32>
    %cst_88 = arith.constant 1.000000e+00 : f32
    %287 = vector.broadcast %cst_88 : f32 to vector<8x32xf32>
    %288 = arith.addf %287, %286 : vector<8x32xf32>
    %289 = arith.divf %287, %288 : vector<8x32xf32>
    %290 = vector.extract_strided_slice %283 {offsets = [0, 32], sizes = [8, 32], strides = [1, 1]} : vector<8x128xf32> to vector<8x32xf32>
    %291 = arith.negf %290 : vector<8x32xf32>
    %292 = math.exp %291 : vector<8x32xf32>
    %cst_89 = arith.constant 1.000000e+00 : f32
    %293 = vector.broadcast %cst_89 : f32 to vector<8x32xf32>
    %294 = arith.addf %293, %292 : vector<8x32xf32>
    %295 = arith.divf %293, %294 : vector<8x32xf32>
    %296 = vector.extract_strided_slice %283 {offsets = [0, 64], sizes = [8, 32], strides = [1, 1]} : vector<8x128xf32> to vector<8x32xf32>
    %297 = math.tanh %296 : vector<8x32xf32>
    %298 = vector.extract_strided_slice %283 {offsets = [0, 96], sizes = [8, 32], strides = [1, 1]} : vector<8x128xf32> to vector<8x32xf32>
    %299 = arith.negf %298 : vector<8x32xf32>
    %300 = math.exp %299 : vector<8x32xf32>
    %cst_90 = arith.constant 1.000000e+00 : f32
    %301 = vector.broadcast %cst_90 : f32 to vector<8x32xf32>
    %302 = arith.addf %301, %300 : vector<8x32xf32>
    %303 = arith.divf %301, %302 : vector<8x32xf32>
    %304 = arith.mulf %295, %229 : vector<8x32xf32>
    %305 = arith.mulf %289, %297 : vector<8x32xf32>
    %306 = arith.addf %304, %305 : vector<8x32xf32>
    %307 = math.tanh %306 : vector<8x32xf32>
    %308 = arith.mulf %303, %307 : vector<8x32xf32>
    %309 = arith.index_cast %278 : i32 to index
    %c0_91 = arith.constant 0 : index
    %c0_92 = arith.constant 0 : index
    %310 = vector.load %arg6[%309, %c0_91, %c0_92] : memref<8x8x32xf32, #tpu.memory_space<vmem>>, vector<1x8x32xf32>
    %311 = vector.shape_cast %310 : vector<1x8x32xf32> to vector<8x32xf32>
    %312 = arith.addf %308, %311 : vector<8x32xf32>
    %313 = arith.index_cast %278 : i32 to index
    %c0_93 = arith.constant 0 : index
    %c0_94 = arith.constant 0 : index
    %314 = vector.load %arg8[%313, %c0_93, %c0_94] : memref<8x8x32xf32, #tpu.memory_space<vmem>>, vector<1x8x32xf32>
    %315 = vector.shape_cast %314 : vector<1x8x32xf32> to vector<8x32xf32>
    %316 = vector.shape_cast %312 : vector<8x32xf32> to vector<1x8x32xf32>
    tpu.vector_store %arg8[%313, %c0_93, %c0_94], %316 {strides = array<i32>} : memref<8x8x32xf32, #tpu.memory_space<vmem>>, vector<1x8x32xf32>,
    %c4_i32 = arith.constant 4 : i32
    %317 = arith.index_cast %c4_i32 : i32 to index
    %c0_95 = arith.constant 0 : index
    %c0_96 = arith.constant 0 : index
    %318 = vector.load %arg1[%317, %c0_95, %c0_96] : memref<8x8x128xf32, #tpu.memory_space<vmem>>, vector<1x8x128xf32>
    %319 = vector.shape_cast %318 : vector<1x8x128xf32> to vector<8x128xf32>
    %cst_97 = arith.constant dense<0.000000e+00> : vector<8x128xf32>
    %320 = tpu.matmul %269, %3, %cst_97 {dimension_numbers = #tpu.dot_dimension_numbers<[1], [0], [0], [1], [0, 0, 1, 1], [], []>, precision = #tpu.contract_precision<fp32>} : vector<8x32xf32>, vector<32x128xf32>, vector<8x128xf32> -> vector<8x128xf32>
    %321 = arith.addf %319, %320 : vector<8x128xf32>
    %322 = vector.extract_strided_slice %321 {offsets = [0, 0], sizes = [8, 32], strides = [1, 1]} : vector<8x128xf32> to vector<8x32xf32>
    %323 = arith.negf %322 : vector<8x32xf32>
    %324 = math.exp %323 : vector<8x32xf32>
    %cst_98 = arith.constant 1.000000e+00 : f32
    %325 = vector.broadcast %cst_98 : f32 to vector<8x32xf32>
    %326 = arith.addf %325, %324 : vector<8x32xf32>
    %327 = arith.divf %325, %326 : vector<8x32xf32>
    %328 = vector.extract_strided_slice %321 {offsets = [0, 32], sizes = [8, 32], strides = [1, 1]} : vector<8x128xf32> to vector<8x32xf32>
    %329 = arith.negf %328 : vector<8x32xf32>
    %330 = math.exp %329 : vector<8x32xf32>
    %cst_99 = arith.constant 1.000000e+00 : f32
    %331 = vector.broadcast %cst_99 : f32 to vector<8x32xf32>
    %332 = arith.addf %331, %330 : vector<8x32xf32>
    %333 = arith.divf %331, %332 : vector<8x32xf32>
    %334 = vector.extract_strided_slice %321 {offsets = [0, 64], sizes = [8, 32], strides = [1, 1]} : vector<8x128xf32> to vector<8x32xf32>
    %335 = math.tanh %334 : vector<8x32xf32>
    %336 = vector.extract_strided_slice %321 {offsets = [0, 96], sizes = [8, 32], strides = [1, 1]} : vector<8x128xf32> to vector<8x32xf32>
    %337 = arith.negf %336 : vector<8x32xf32>
    %338 = math.exp %337 : vector<8x32xf32>
    %cst_100 = arith.constant 1.000000e+00 : f32
    %339 = vector.broadcast %cst_100 : f32 to vector<8x32xf32>
    %340 = arith.addf %339, %338 : vector<8x32xf32>
    %341 = arith.divf %339, %340 : vector<8x32xf32>
    %342 = arith.mulf %333, %267 : vector<8x32xf32>
    %343 = arith.mulf %327, %335 : vector<8x32xf32>
    %344 = arith.addf %342, %343 : vector<8x32xf32>
    %345 = math.tanh %344 : vector<8x32xf32>
    %346 = arith.mulf %341, %345 : vector<8x32xf32>
    %347 = arith.index_cast %c4_i32 : i32 to index
    %c0_101 = arith.constant 0 : index
    %c0_102 = arith.constant 0 : index
    %348 = vector.load %arg5[%347, %c0_101, %c0_102] : memref<8x8x32xf32, #tpu.memory_space<vmem>>, vector<1x8x32xf32>
    %349 = vector.shape_cast %348 : vector<1x8x32xf32> to vector<8x32xf32>
    %350 = arith.addf %346, %349 : vector<8x32xf32>
    %351 = arith.index_cast %c4_i32 : i32 to index
    %c0_103 = arith.constant 0 : index
    %c0_104 = arith.constant 0 : index
    %352 = vector.load %arg7[%351, %c0_103, %c0_104] : memref<8x8x32xf32, #tpu.memory_space<vmem>>, vector<1x8x32xf32>
    %353 = vector.shape_cast %352 : vector<1x8x32xf32> to vector<8x32xf32>
    %354 = vector.shape_cast %350 : vector<8x32xf32> to vector<1x8x32xf32>
    tpu.vector_store %arg7[%351, %c0_103, %c0_104], %354 {strides = array<i32>} : memref<8x8x32xf32, #tpu.memory_space<vmem>>, vector<1x8x32xf32>,
    %c7_i32_105 = arith.constant 7 : i32
    %355 = arith.subi %c7_i32_105, %c4_i32 : i32
    %356 = arith.index_cast %355 : i32 to index
    %c0_106 = arith.constant 0 : index
    %c0_107 = arith.constant 0 : index
    %357 = vector.load %arg2[%356, %c0_106, %c0_107] : memref<8x8x128xf32, #tpu.memory_space<vmem>>, vector<1x8x128xf32>
    %358 = vector.shape_cast %357 : vector<1x8x128xf32> to vector<8x128xf32>
    %cst_108 = arith.constant dense<0.000000e+00> : vector<8x128xf32>
    %359 = tpu.matmul %308, %4, %cst_108 {dimension_numbers = #tpu.dot_dimension_numbers<[1], [0], [0], [1], [0, 0, 1, 1], [], []>, precision = #tpu.contract_precision<fp32>} : vector<8x32xf32>, vector<32x128xf32>, vector<8x128xf32> -> vector<8x128xf32>
    %360 = arith.addf %358, %359 : vector<8x128xf32>
    %361 = vector.extract_strided_slice %360 {offsets = [0, 0], sizes = [8, 32], strides = [1, 1]} : vector<8x128xf32> to vector<8x32xf32>
    %362 = arith.negf %361 : vector<8x32xf32>
    %363 = math.exp %362 : vector<8x32xf32>
    %cst_109 = arith.constant 1.000000e+00 : f32
    %364 = vector.broadcast %cst_109 : f32 to vector<8x32xf32>
    %365 = arith.addf %364, %363 : vector<8x32xf32>
    %366 = arith.divf %364, %365 : vector<8x32xf32>
    %367 = vector.extract_strided_slice %360 {offsets = [0, 32], sizes = [8, 32], strides = [1, 1]} : vector<8x128xf32> to vector<8x32xf32>
    %368 = arith.negf %367 : vector<8x32xf32>
    %369 = math.exp %368 : vector<8x32xf32>
    %cst_110 = arith.constant 1.000000e+00 : f32
    %370 = vector.broadcast %cst_110 : f32 to vector<8x32xf32>
    %371 = arith.addf %370, %369 : vector<8x32xf32>
    %372 = arith.divf %370, %371 : vector<8x32xf32>
    %373 = vector.extract_strided_slice %360 {offsets = [0, 64], sizes = [8, 32], strides = [1, 1]} : vector<8x128xf32> to vector<8x32xf32>
    %374 = math.tanh %373 : vector<8x32xf32>
    %375 = vector.extract_strided_slice %360 {offsets = [0, 96], sizes = [8, 32], strides = [1, 1]} : vector<8x128xf32> to vector<8x32xf32>
    %376 = arith.negf %375 : vector<8x32xf32>
    %377 = math.exp %376 : vector<8x32xf32>
    %cst_111 = arith.constant 1.000000e+00 : f32
    %378 = vector.broadcast %cst_111 : f32 to vector<8x32xf32>
    %379 = arith.addf %378, %377 : vector<8x32xf32>
    %380 = arith.divf %378, %379 : vector<8x32xf32>
    %381 = arith.mulf %372, %306 : vector<8x32xf32>
    %382 = arith.mulf %366, %374 : vector<8x32xf32>
    %383 = arith.addf %381, %382 : vector<8x32xf32>
    %384 = math.tanh %383 : vector<8x32xf32>
    %385 = arith.mulf %380, %384 : vector<8x32xf32>
    %386 = arith.index_cast %355 : i32 to index
    %c0_112 = arith.constant 0 : index
    %c0_113 = arith.constant 0 : index
    %387 = vector.load %arg6[%386, %c0_112, %c0_113] : memref<8x8x32xf32, #tpu.memory_space<vmem>>, vector<1x8x32xf32>
    %388 = vector.shape_cast %387 : vector<1x8x32xf32> to vector<8x32xf32>
    %389 = arith.addf %385, %388 : vector<8x32xf32>
    %390 = arith.index_cast %355 : i32 to index
    %c0_114 = arith.constant 0 : index
    %c0_115 = arith.constant 0 : index
    %391 = vector.load %arg8[%390, %c0_114, %c0_115] : memref<8x8x32xf32, #tpu.memory_space<vmem>>, vector<1x8x32xf32>
    %392 = vector.shape_cast %391 : vector<1x8x32xf32> to vector<8x32xf32>
    %393 = vector.shape_cast %389 : vector<8x32xf32> to vector<1x8x32xf32>
    tpu.vector_store %arg8[%390, %c0_114, %c0_115], %393 {strides = array<i32>} : memref<8x8x32xf32, #tpu.memory_space<vmem>>, vector<1x8x32xf32>,
    %c5_i32 = arith.constant 5 : i32
    %394 = arith.index_cast %c5_i32 : i32 to index
    %c0_116 = arith.constant 0 : index
    %c0_117 = arith.constant 0 : index
    %395 = vector.load %arg1[%394, %c0_116, %c0_117] : memref<8x8x128xf32, #tpu.memory_space<vmem>>, vector<1x8x128xf32>
    %396 = vector.shape_cast %395 : vector<1x8x128xf32> to vector<8x128xf32>
    %cst_118 = arith.constant dense<0.000000e+00> : vector<8x128xf32>
    %397 = tpu.matmul %346, %3, %cst_118 {dimension_numbers = #tpu.dot_dimension_numbers<[1], [0], [0], [1], [0, 0, 1, 1], [], []>, precision = #tpu.contract_precision<fp32>} : vector<8x32xf32>, vector<32x128xf32>, vector<8x128xf32> -> vector<8x128xf32>
    %398 = arith.addf %396, %397 : vector<8x128xf32>
    %399 = vector.extract_strided_slice %398 {offsets = [0, 0], sizes = [8, 32], strides = [1, 1]} : vector<8x128xf32> to vector<8x32xf32>
    %400 = arith.negf %399 : vector<8x32xf32>
    %401 = math.exp %400 : vector<8x32xf32>
    %cst_119 = arith.constant 1.000000e+00 : f32
    %402 = vector.broadcast %cst_119 : f32 to vector<8x32xf32>
    %403 = arith.addf %402, %401 : vector<8x32xf32>
    %404 = arith.divf %402, %403 : vector<8x32xf32>
    %405 = vector.extract_strided_slice %398 {offsets = [0, 32], sizes = [8, 32], strides = [1, 1]} : vector<8x128xf32> to vector<8x32xf32>
    %406 = arith.negf %405 : vector<8x32xf32>
    %407 = math.exp %406 : vector<8x32xf32>
    %cst_120 = arith.constant 1.000000e+00 : f32
    %408 = vector.broadcast %cst_120 : f32 to vector<8x32xf32>
    %409 = arith.addf %408, %407 : vector<8x32xf32>
    %410 = arith.divf %408, %409 : vector<8x32xf32>
    %411 = vector.extract_strided_slice %398 {offsets = [0, 64], sizes = [8, 32], strides = [1, 1]} : vector<8x128xf32> to vector<8x32xf32>
    %412 = math.tanh %411 : vector<8x32xf32>
    %413 = vector.extract_strided_slice %398 {offsets = [0, 96], sizes = [8, 32], strides = [1, 1]} : vector<8x128xf32> to vector<8x32xf32>
    %414 = arith.negf %413 : vector<8x32xf32>
    %415 = math.exp %414 : vector<8x32xf32>
    %cst_121 = arith.constant 1.000000e+00 : f32
    %416 = vector.broadcast %cst_121 : f32 to vector<8x32xf32>
    %417 = arith.addf %416, %415 : vector<8x32xf32>
    %418 = arith.divf %416, %417 : vector<8x32xf32>
    %419 = arith.mulf %410, %344 : vector<8x32xf32>
    %420 = arith.mulf %404, %412 : vector<8x32xf32>
    %421 = arith.addf %419, %420 : vector<8x32xf32>
    %422 = math.tanh %421 : vector<8x32xf32>
    %423 = arith.mulf %418, %422 : vector<8x32xf32>
    %424 = arith.index_cast %c5_i32 : i32 to index
    %c0_122 = arith.constant 0 : index
    %c0_123 = arith.constant 0 : index
    %425 = vector.load %arg5[%424, %c0_122, %c0_123] : memref<8x8x32xf32, #tpu.memory_space<vmem>>, vector<1x8x32xf32>
    %426 = vector.shape_cast %425 : vector<1x8x32xf32> to vector<8x32xf32>
    %427 = arith.addf %423, %426 : vector<8x32xf32>
    %428 = arith.index_cast %c5_i32 : i32 to index
    %c0_124 = arith.constant 0 : index
    %c0_125 = arith.constant 0 : index
    %429 = vector.load %arg7[%428, %c0_124, %c0_125] : memref<8x8x32xf32, #tpu.memory_space<vmem>>, vector<1x8x32xf32>
    %430 = vector.shape_cast %429 : vector<1x8x32xf32> to vector<8x32xf32>
    %431 = vector.shape_cast %427 : vector<8x32xf32> to vector<1x8x32xf32>
    tpu.vector_store %arg7[%428, %c0_124, %c0_125], %431 {strides = array<i32>} : memref<8x8x32xf32, #tpu.memory_space<vmem>>, vector<1x8x32xf32>,
    %c7_i32_126 = arith.constant 7 : i32
    %432 = arith.subi %c7_i32_126, %c5_i32 : i32
    %433 = arith.index_cast %432 : i32 to index
    %c0_127 = arith.constant 0 : index
    %c0_128 = arith.constant 0 : index
    %434 = vector.load %arg2[%433, %c0_127, %c0_128] : memref<8x8x128xf32, #tpu.memory_space<vmem>>, vector<1x8x128xf32>
    %435 = vector.shape_cast %434 : vector<1x8x128xf32> to vector<8x128xf32>
    %cst_129 = arith.constant dense<0.000000e+00> : vector<8x128xf32>
    %436 = tpu.matmul %385, %4, %cst_129 {dimension_numbers = #tpu.dot_dimension_numbers<[1], [0], [0], [1], [0, 0, 1, 1], [], []>, precision = #tpu.contract_precision<fp32>} : vector<8x32xf32>, vector<32x128xf32>, vector<8x128xf32> -> vector<8x128xf32>
    %437 = arith.addf %435, %436 : vector<8x128xf32>
    %438 = vector.extract_strided_slice %437 {offsets = [0, 0], sizes = [8, 32], strides = [1, 1]} : vector<8x128xf32> to vector<8x32xf32>
    %439 = arith.negf %438 : vector<8x32xf32>
    %440 = math.exp %439 : vector<8x32xf32>
    %cst_130 = arith.constant 1.000000e+00 : f32
    %441 = vector.broadcast %cst_130 : f32 to vector<8x32xf32>
    %442 = arith.addf %441, %440 : vector<8x32xf32>
    %443 = arith.divf %441, %442 : vector<8x32xf32>
    %444 = vector.extract_strided_slice %437 {offsets = [0, 32], sizes = [8, 32], strides = [1, 1]} : vector<8x128xf32> to vector<8x32xf32>
    %445 = arith.negf %444 : vector<8x32xf32>
    %446 = math.exp %445 : vector<8x32xf32>
    %cst_131 = arith.constant 1.000000e+00 : f32
    %447 = vector.broadcast %cst_131 : f32 to vector<8x32xf32>
    %448 = arith.addf %447, %446 : vector<8x32xf32>
    %449 = arith.divf %447, %448 : vector<8x32xf32>
    %450 = vector.extract_strided_slice %437 {offsets = [0, 64], sizes = [8, 32], strides = [1, 1]} : vector<8x128xf32> to vector<8x32xf32>
    %451 = math.tanh %450 : vector<8x32xf32>
    %452 = vector.extract_strided_slice %437 {offsets = [0, 96], sizes = [8, 32], strides = [1, 1]} : vector<8x128xf32> to vector<8x32xf32>
    %453 = arith.negf %452 : vector<8x32xf32>
    %454 = math.exp %453 : vector<8x32xf32>
    %cst_132 = arith.constant 1.000000e+00 : f32
    %455 = vector.broadcast %cst_132 : f32 to vector<8x32xf32>
    %456 = arith.addf %455, %454 : vector<8x32xf32>
    %457 = arith.divf %455, %456 : vector<8x32xf32>
    %458 = arith.mulf %449, %383 : vector<8x32xf32>
    %459 = arith.mulf %443, %451 : vector<8x32xf32>
    %460 = arith.addf %458, %459 : vector<8x32xf32>
    %461 = math.tanh %460 : vector<8x32xf32>
    %462 = arith.mulf %457, %461 : vector<8x32xf32>
    %463 = arith.index_cast %432 : i32 to index
    %c0_133 = arith.constant 0 : index
    %c0_134 = arith.constant 0 : index
    %464 = vector.load %arg6[%463, %c0_133, %c0_134] : memref<8x8x32xf32, #tpu.memory_space<vmem>>, vector<1x8x32xf32>
    %465 = vector.shape_cast %464 : vector<1x8x32xf32> to vector<8x32xf32>
    %466 = arith.addf %462, %465 : vector<8x32xf32>
    %467 = arith.index_cast %432 : i32 to index
    %c0_135 = arith.constant 0 : index
    %c0_136 = arith.constant 0 : index
    %468 = vector.load %arg8[%467, %c0_135, %c0_136] : memref<8x8x32xf32, #tpu.memory_space<vmem>>, vector<1x8x32xf32>
    %469 = vector.shape_cast %468 : vector<1x8x32xf32> to vector<8x32xf32>
    %470 = vector.shape_cast %466 : vector<8x32xf32> to vector<1x8x32xf32>
    tpu.vector_store %arg8[%467, %c0_135, %c0_136], %470 {strides = array<i32>} : memref<8x8x32xf32, #tpu.memory_space<vmem>>, vector<1x8x32xf32>,
    %c6_i32 = arith.constant 6 : i32
    %471 = arith.index_cast %c6_i32 : i32 to index
    %c0_137 = arith.constant 0 : index
    %c0_138 = arith.constant 0 : index
    %472 = vector.load %arg1[%471, %c0_137, %c0_138] : memref<8x8x128xf32, #tpu.memory_space<vmem>>, vector<1x8x128xf32>
    %473 = vector.shape_cast %472 : vector<1x8x128xf32> to vector<8x128xf32>
    %cst_139 = arith.constant dense<0.000000e+00> : vector<8x128xf32>
    %474 = tpu.matmul %423, %3, %cst_139 {dimension_numbers = #tpu.dot_dimension_numbers<[1], [0], [0], [1], [0, 0, 1, 1], [], []>, precision = #tpu.contract_precision<fp32>} : vector<8x32xf32>, vector<32x128xf32>, vector<8x128xf32> -> vector<8x128xf32>
    %475 = arith.addf %473, %474 : vector<8x128xf32>
    %476 = vector.extract_strided_slice %475 {offsets = [0, 0], sizes = [8, 32], strides = [1, 1]} : vector<8x128xf32> to vector<8x32xf32>
    %477 = arith.negf %476 : vector<8x32xf32>
    %478 = math.exp %477 : vector<8x32xf32>
    %cst_140 = arith.constant 1.000000e+00 : f32
    %479 = vector.broadcast %cst_140 : f32 to vector<8x32xf32>
    %480 = arith.addf %479, %478 : vector<8x32xf32>
    %481 = arith.divf %479, %480 : vector<8x32xf32>
    %482 = vector.extract_strided_slice %475 {offsets = [0, 32], sizes = [8, 32], strides = [1, 1]} : vector<8x128xf32> to vector<8x32xf32>
    %483 = arith.negf %482 : vector<8x32xf32>
    %484 = math.exp %483 : vector<8x32xf32>
    %cst_141 = arith.constant 1.000000e+00 : f32
    %485 = vector.broadcast %cst_141 : f32 to vector<8x32xf32>
    %486 = arith.addf %485, %484 : vector<8x32xf32>
    %487 = arith.divf %485, %486 : vector<8x32xf32>
    %488 = vector.extract_strided_slice %475 {offsets = [0, 64], sizes = [8, 32], strides = [1, 1]} : vector<8x128xf32> to vector<8x32xf32>
    %489 = math.tanh %488 : vector<8x32xf32>
    %490 = vector.extract_strided_slice %475 {offsets = [0, 96], sizes = [8, 32], strides = [1, 1]} : vector<8x128xf32> to vector<8x32xf32>
    %491 = arith.negf %490 : vector<8x32xf32>
    %492 = math.exp %491 : vector<8x32xf32>
    %cst_142 = arith.constant 1.000000e+00 : f32
    %493 = vector.broadcast %cst_142 : f32 to vector<8x32xf32>
    %494 = arith.addf %493, %492 : vector<8x32xf32>
    %495 = arith.divf %493, %494 : vector<8x32xf32>
    %496 = arith.mulf %487, %421 : vector<8x32xf32>
    %497 = arith.mulf %481, %489 : vector<8x32xf32>
    %498 = arith.addf %496, %497 : vector<8x32xf32>
    %499 = math.tanh %498 : vector<8x32xf32>
    %500 = arith.mulf %495, %499 : vector<8x32xf32>
    %501 = arith.index_cast %c6_i32 : i32 to index
    %c0_143 = arith.constant 0 : index
    %c0_144 = arith.constant 0 : index
    %502 = vector.load %arg5[%501, %c0_143, %c0_144] : memref<8x8x32xf32, #tpu.memory_space<vmem>>, vector<1x8x32xf32>
    %503 = vector.shape_cast %502 : vector<1x8x32xf32> to vector<8x32xf32>
    %504 = arith.addf %500, %503 : vector<8x32xf32>
    %505 = arith.index_cast %c6_i32 : i32 to index
    %c0_145 = arith.constant 0 : index
    %c0_146 = arith.constant 0 : index
    %506 = vector.load %arg7[%505, %c0_145, %c0_146] : memref<8x8x32xf32, #tpu.memory_space<vmem>>, vector<1x8x32xf32>
    %507 = vector.shape_cast %506 : vector<1x8x32xf32> to vector<8x32xf32>
    %508 = vector.shape_cast %504 : vector<8x32xf32> to vector<1x8x32xf32>
    tpu.vector_store %arg7[%505, %c0_145, %c0_146], %508 {strides = array<i32>} : memref<8x8x32xf32, #tpu.memory_space<vmem>>, vector<1x8x32xf32>,
    %c7_i32_147 = arith.constant 7 : i32
    %509 = arith.subi %c7_i32_147, %c6_i32 : i32
    %510 = arith.index_cast %509 : i32 to index
    %c0_148 = arith.constant 0 : index
    %c0_149 = arith.constant 0 : index
    %511 = vector.load %arg2[%510, %c0_148, %c0_149] : memref<8x8x128xf32, #tpu.memory_space<vmem>>, vector<1x8x128xf32>
    %512 = vector.shape_cast %511 : vector<1x8x128xf32> to vector<8x128xf32>
    %cst_150 = arith.constant dense<0.000000e+00> : vector<8x128xf32>
    %513 = tpu.matmul %462, %4, %cst_150 {dimension_numbers = #tpu.dot_dimension_numbers<[1], [0], [0], [1], [0, 0, 1, 1], [], []>, precision = #tpu.contract_precision<fp32>} : vector<8x32xf32>, vector<32x128xf32>, vector<8x128xf32> -> vector<8x128xf32>
    %514 = arith.addf %512, %513 : vector<8x128xf32>
    %515 = vector.extract_strided_slice %514 {offsets = [0, 0], sizes = [8, 32], strides = [1, 1]} : vector<8x128xf32> to vector<8x32xf32>
    %516 = arith.negf %515 : vector<8x32xf32>
    %517 = math.exp %516 : vector<8x32xf32>
    %cst_151 = arith.constant 1.000000e+00 : f32
    %518 = vector.broadcast %cst_151 : f32 to vector<8x32xf32>
    %519 = arith.addf %518, %517 : vector<8x32xf32>
    %520 = arith.divf %518, %519 : vector<8x32xf32>
    %521 = vector.extract_strided_slice %514 {offsets = [0, 32], sizes = [8, 32], strides = [1, 1]} : vector<8x128xf32> to vector<8x32xf32>
    %522 = arith.negf %521 : vector<8x32xf32>
    %523 = math.exp %522 : vector<8x32xf32>
    %cst_152 = arith.constant 1.000000e+00 : f32
    %524 = vector.broadcast %cst_152 : f32 to vector<8x32xf32>
    %525 = arith.addf %524, %523 : vector<8x32xf32>
    %526 = arith.divf %524, %525 : vector<8x32xf32>
    %527 = vector.extract_strided_slice %514 {offsets = [0, 64], sizes = [8, 32], strides = [1, 1]} : vector<8x128xf32> to vector<8x32xf32>
    %528 = math.tanh %527 : vector<8x32xf32>
    %529 = vector.extract_strided_slice %514 {offsets = [0, 96], sizes = [8, 32], strides = [1, 1]} : vector<8x128xf32> to vector<8x32xf32>
    %530 = arith.negf %529 : vector<8x32xf32>
    %531 = math.exp %530 : vector<8x32xf32>
    %cst_153 = arith.constant 1.000000e+00 : f32
    %532 = vector.broadcast %cst_153 : f32 to vector<8x32xf32>
    %533 = arith.addf %532, %531 : vector<8x32xf32>
    %534 = arith.divf %532, %533 : vector<8x32xf32>
    %535 = arith.mulf %526, %460 : vector<8x32xf32>
    %536 = arith.mulf %520, %528 : vector<8x32xf32>
    %537 = arith.addf %535, %536 : vector<8x32xf32>
    %538 = math.tanh %537 : vector<8x32xf32>
    %539 = arith.mulf %534, %538 : vector<8x32xf32>
    %540 = arith.index_cast %509 : i32 to index
    %c0_154 = arith.constant 0 : index
    %c0_155 = arith.constant 0 : index
    %541 = vector.load %arg6[%540, %c0_154, %c0_155] : memref<8x8x32xf32, #tpu.memory_space<vmem>>, vector<1x8x32xf32>
    %542 = vector.shape_cast %541 : vector<1x8x32xf32> to vector<8x32xf32>
    %543 = arith.addf %539, %542 : vector<8x32xf32>
    %544 = arith.index_cast %509 : i32 to index
    %c0_156 = arith.constant 0 : index
    %c0_157 = arith.constant 0 : index
    %545 = vector.load %arg8[%544, %c0_156, %c0_157] : memref<8x8x32xf32, #tpu.memory_space<vmem>>, vector<1x8x32xf32>
    %546 = vector.shape_cast %545 : vector<1x8x32xf32> to vector<8x32xf32>
    %547 = vector.shape_cast %543 : vector<8x32xf32> to vector<1x8x32xf32>
    tpu.vector_store %arg8[%544, %c0_156, %c0_157], %547 {strides = array<i32>} : memref<8x8x32xf32, #tpu.memory_space<vmem>>, vector<1x8x32xf32>,
    %c7_i32_158 = arith.constant 7 : i32
    %548 = arith.index_cast %c7_i32_158 : i32 to index
    %c0_159 = arith.constant 0 : index
    %c0_160 = arith.constant 0 : index
    %549 = vector.load %arg1[%548, %c0_159, %c0_160] : memref<8x8x128xf32, #tpu.memory_space<vmem>>, vector<1x8x128xf32>
    %550 = vector.shape_cast %549 : vector<1x8x128xf32> to vector<8x128xf32>
    %cst_161 = arith.constant dense<0.000000e+00> : vector<8x128xf32>
    %551 = tpu.matmul %500, %3, %cst_161 {dimension_numbers = #tpu.dot_dimension_numbers<[1], [0], [0], [1], [0, 0, 1, 1], [], []>, precision = #tpu.contract_precision<fp32>} : vector<8x32xf32>, vector<32x128xf32>, vector<8x128xf32> -> vector<8x128xf32>
    %552 = arith.addf %550, %551 : vector<8x128xf32>
    %553 = vector.extract_strided_slice %552 {offsets = [0, 0], sizes = [8, 32], strides = [1, 1]} : vector<8x128xf32> to vector<8x32xf32>
    %554 = arith.negf %553 : vector<8x32xf32>
    %555 = math.exp %554 : vector<8x32xf32>
    %cst_162 = arith.constant 1.000000e+00 : f32
    %556 = vector.broadcast %cst_162 : f32 to vector<8x32xf32>
    %557 = arith.addf %556, %555 : vector<8x32xf32>
    %558 = arith.divf %556, %557 : vector<8x32xf32>
    %559 = vector.extract_strided_slice %552 {offsets = [0, 32], sizes = [8, 32], strides = [1, 1]} : vector<8x128xf32> to vector<8x32xf32>
    %560 = arith.negf %559 : vector<8x32xf32>
    %561 = math.exp %560 : vector<8x32xf32>
    %cst_163 = arith.constant 1.000000e+00 : f32
    %562 = vector.broadcast %cst_163 : f32 to vector<8x32xf32>
    %563 = arith.addf %562, %561 : vector<8x32xf32>
    %564 = arith.divf %562, %563 : vector<8x32xf32>
    %565 = vector.extract_strided_slice %552 {offsets = [0, 64], sizes = [8, 32], strides = [1, 1]} : vector<8x128xf32> to vector<8x32xf32>
    %566 = math.tanh %565 : vector<8x32xf32>
    %567 = vector.extract_strided_slice %552 {offsets = [0, 96], sizes = [8, 32], strides = [1, 1]} : vector<8x128xf32> to vector<8x32xf32>
    %568 = arith.negf %567 : vector<8x32xf32>
    %569 = math.exp %568 : vector<8x32xf32>
    %cst_164 = arith.constant 1.000000e+00 : f32
    %570 = vector.broadcast %cst_164 : f32 to vector<8x32xf32>
    %571 = arith.addf %570, %569 : vector<8x32xf32>
    %572 = arith.divf %570, %571 : vector<8x32xf32>
    %573 = arith.mulf %564, %498 : vector<8x32xf32>
    %574 = arith.mulf %558, %566 : vector<8x32xf32>
    %575 = arith.addf %573, %574 : vector<8x32xf32>
    %576 = math.tanh %575 : vector<8x32xf32>
    %577 = arith.mulf %572, %576 : vector<8x32xf32>
    %578 = arith.index_cast %c7_i32_158 : i32 to index
    %c0_165 = arith.constant 0 : index
    %c0_166 = arith.constant 0 : index
    %579 = vector.load %arg5[%578, %c0_165, %c0_166] : memref<8x8x32xf32, #tpu.memory_space<vmem>>, vector<1x8x32xf32>
    %580 = vector.shape_cast %579 : vector<1x8x32xf32> to vector<8x32xf32>
    %581 = arith.addf %577, %580 : vector<8x32xf32>
    %582 = arith.index_cast %c7_i32_158 : i32 to index
    %c0_167 = arith.constant 0 : index
    %c0_168 = arith.constant 0 : index
    %583 = vector.load %arg7[%582, %c0_167, %c0_168] : memref<8x8x32xf32, #tpu.memory_space<vmem>>, vector<1x8x32xf32>
    %584 = vector.shape_cast %583 : vector<1x8x32xf32> to vector<8x32xf32>
    %585 = vector.shape_cast %581 : vector<8x32xf32> to vector<1x8x32xf32>
    tpu.vector_store %arg7[%582, %c0_167, %c0_168], %585 {strides = array<i32>} : memref<8x8x32xf32, #tpu.memory_space<vmem>>, vector<1x8x32xf32>,
    %c7_i32_169 = arith.constant 7 : i32
    %586 = arith.subi %c7_i32_169, %c7_i32_158 : i32
    %587 = arith.index_cast %586 : i32 to index
    %c0_170 = arith.constant 0 : index
    %c0_171 = arith.constant 0 : index
    %588 = vector.load %arg2[%587, %c0_170, %c0_171] : memref<8x8x128xf32, #tpu.memory_space<vmem>>, vector<1x8x128xf32>
    %589 = vector.shape_cast %588 : vector<1x8x128xf32> to vector<8x128xf32>
    %cst_172 = arith.constant dense<0.000000e+00> : vector<8x128xf32>
    %590 = tpu.matmul %539, %4, %cst_172 {dimension_numbers = #tpu.dot_dimension_numbers<[1], [0], [0], [1], [0, 0, 1, 1], [], []>, precision = #tpu.contract_precision<fp32>} : vector<8x32xf32>, vector<32x128xf32>, vector<8x128xf32> -> vector<8x128xf32>
    %591 = arith.addf %589, %590 : vector<8x128xf32>
    %592 = vector.extract_strided_slice %591 {offsets = [0, 0], sizes = [8, 32], strides = [1, 1]} : vector<8x128xf32> to vector<8x32xf32>
    %593 = arith.negf %592 : vector<8x32xf32>
    %594 = math.exp %593 : vector<8x32xf32>
    %cst_173 = arith.constant 1.000000e+00 : f32
    %595 = vector.broadcast %cst_173 : f32 to vector<8x32xf32>
    %596 = arith.addf %595, %594 : vector<8x32xf32>
    %597 = arith.divf %595, %596 : vector<8x32xf32>
    %598 = vector.extract_strided_slice %591 {offsets = [0, 32], sizes = [8, 32], strides = [1, 1]} : vector<8x128xf32> to vector<8x32xf32>
    %599 = arith.negf %598 : vector<8x32xf32>
    %600 = math.exp %599 : vector<8x32xf32>
    %cst_174 = arith.constant 1.000000e+00 : f32
    %601 = vector.broadcast %cst_174 : f32 to vector<8x32xf32>
    %602 = arith.addf %601, %600 : vector<8x32xf32>
    %603 = arith.divf %601, %602 : vector<8x32xf32>
    %604 = vector.extract_strided_slice %591 {offsets = [0, 64], sizes = [8, 32], strides = [1, 1]} : vector<8x128xf32> to vector<8x32xf32>
    %605 = math.tanh %604 : vector<8x32xf32>
    %606 = vector.extract_strided_slice %591 {offsets = [0, 96], sizes = [8, 32], strides = [1, 1]} : vector<8x128xf32> to vector<8x32xf32>
    %607 = arith.negf %606 : vector<8x32xf32>
    %608 = math.exp %607 : vector<8x32xf32>
    %cst_175 = arith.constant 1.000000e+00 : f32
    %609 = vector.broadcast %cst_175 : f32 to vector<8x32xf32>
    %610 = arith.addf %609, %608 : vector<8x32xf32>
    %611 = arith.divf %609, %610 : vector<8x32xf32>
    %612 = arith.mulf %603, %537 : vector<8x32xf32>
    %613 = arith.mulf %597, %605 : vector<8x32xf32>
    %614 = arith.addf %612, %613 : vector<8x32xf32>
    %615 = math.tanh %614 : vector<8x32xf32>
    %616 = arith.mulf %611, %615 : vector<8x32xf32>
    %617 = arith.index_cast %586 : i32 to index
    %c0_176 = arith.constant 0 : index
    %c0_177 = arith.constant 0 : index
    %618 = vector.load %arg6[%617, %c0_176, %c0_177] : memref<8x8x32xf32, #tpu.memory_space<vmem>>, vector<1x8x32xf32>
    %619 = vector.shape_cast %618 : vector<1x8x32xf32> to vector<8x32xf32>
    %620 = arith.addf %616, %619 : vector<8x32xf32>
    %621 = arith.index_cast %586 : i32 to index
    %c0_178 = arith.constant 0 : index
    %c0_179 = arith.constant 0 : index
    %622 = vector.load %arg8[%621, %c0_178, %c0_179] : memref<8x8x32xf32, #tpu.memory_space<vmem>>, vector<1x8x32xf32>
    %623 = vector.shape_cast %622 : vector<1x8x32xf32> to vector<8x32xf32>
    %624 = vector.shape_cast %620 : vector<8x32xf32> to vector<1x8x32xf32>
    tpu.vector_store %arg8[%621, %c0_178, %c0_179], %624 {strides = array<i32>} : memref<8x8x32xf32, #tpu.memory_space<vmem>>, vector<1x8x32xf32>,
    %c8_i32 = arith.constant 8 : i32
    %c0_180 = arith.constant 0 : index
    %c0_181 = arith.constant 0 : index
    %625 = vector.load %arg9[%c0_180, %c0_181] : memref<8x32xf32, #tpu.memory_space<vmem>>, vector<8x32xf32>
    tpu.vector_store %arg9[%c0_180, %c0_181], %577 {strides = array<i32>} : memref<8x32xf32, #tpu.memory_space<vmem>>, vector<8x32xf32>,
    %c0_182 = arith.constant 0 : index
    %c0_183 = arith.constant 0 : index
    %626 = vector.load %arg11[%c0_182, %c0_183] : memref<8x32xf32, #tpu.memory_space<vmem>>, vector<8x32xf32>
    tpu.vector_store %arg11[%c0_182, %c0_183], %575 {strides = array<i32>} : memref<8x32xf32, #tpu.memory_space<vmem>>, vector<8x32xf32>,
    %c0_184 = arith.constant 0 : index
    %c0_185 = arith.constant 0 : index
    %627 = vector.load %arg10[%c0_184, %c0_185] : memref<8x32xf32, #tpu.memory_space<vmem>>, vector<8x32xf32>
    tpu.vector_store %arg10[%c0_184, %c0_185], %616 {strides = array<i32>} : memref<8x32xf32, #tpu.memory_space<vmem>>, vector<8x32xf32>,
    %c0_186 = arith.constant 0 : index
    %c0_187 = arith.constant 0 : index
    %628 = vector.load %arg12[%c0_186, %c0_187] : memref<8x32xf32, #tpu.memory_space<vmem>>, vector<8x32xf32>
    tpu.vector_store %arg12[%c0_186, %c0_187], %614 {strides = array<i32>} : memref<8x32xf32, #tpu.memory_space<vmem>>, vector<8x32xf32>,
    return
  }
  func.func @transform_0(%arg0: i32) -> (i32, i32, i32) {
    %c0_i32 = arith.constant 0 : i32
    %c0_i32_0 = arith.constant 0 : i32
    %c0_i32_1 = arith.constant 0 : i32
    return %arg0, %c0_i32, %c0_i32_0 : i32, i32, i32
  }
  func.func @transform_1(%arg0: i32) -> (i32, i32, i32) {
    %c0_i32 = arith.constant 0 : i32
    %0 = arith.subi %c0_i32, %arg0 : i32
    %c0_i32_0 = arith.constant 0 : i32
    %c0_i32_1 = arith.constant 0 : i32
    %c0_i32_2 = arith.constant 0 : i32
    return %0, %c0_i32_0, %c0_i32_1 : i32, i32, i32
  }
  func.func @transform_2(%arg0: i32) -> (i32, i32) {
    %c0_i32 = arith.constant 0 : i32
    %c0_i32_0 = arith.constant 0 : i32
    %c0_i32_1 = arith.constant 0 : i32
    return %c0_i32, %c0_i32_0 : i32, i32
  }
  func.func @transform_3(%arg0: i32) -> (i32, i32) {
    %c0_i32 = arith.constant 0 : i32
    %c0_i32_0 = arith.constant 0 : i32
    %c0_i32_1 = arith.constant 0 : i32
    return %c0_i32, %c0_i32_0 : i32, i32
  }
  func.func @transform_4(%arg0: i32) -> (i32, i32, i32) {
    %c0_i32 = arith.constant 0 : i32
    %c0_i32_0 = arith.constant 0 : i32
    %c0_i32_1 = arith.constant 0 : i32
    return %arg0, %c0_i32, %c0_i32_0 : i32, i32, i32
  }
  func.func @transform_5(%arg0: i32) -> (i32, i32, i32) {
    %c0_i32 = arith.constant 0 : i32
    %0 = arith.subi %c0_i32, %arg0 : i32
    %c0_i32_0 = arith.constant 0 : i32
    %c0_i32_1 = arith.constant 0 : i32
    %c0_i32_2 = arith.constant 0 : i32
    return %0, %c0_i32_0, %c0_i32_1 : i32, i32, i32
  }
  func.func @transform_6(%arg0: i32) -> (i32, i32, i32) {
    %c0_i32 = arith.constant 0 : i32
    %c0_i32_0 = arith.constant 0 : i32
    %c0_i32_1 = arith.constant 0 : i32
    return %arg0, %c0_i32, %c0_i32_0 : i32, i32, i32
  }
  func.func @transform_7(%arg0: i32) -> (i32, i32, i32) {
    %c0_i32 = arith.constant 0 : i32
    %0 = arith.subi %c0_i32, %arg0 : i32
    %c0_i32_0 = arith.constant 0 : i32
    %c0_i32_1 = arith.constant 0 : i32
    %c0_i32_2 = arith.constant 0 : i32
    return %0, %c0_i32_0, %c0_i32_1 : i32, i32, i32
  }
}

</mosaic_0001>

<llo_original>
// kernel: residual_lstm_block.1
$region0: #{residual_lstm_block.1}
  #allocation0 [shape = 'u32[]', space=smem, size = 0x4, offset = 0x4, fixed_abs, tag = 'smem constant byte address 0x4 - core index']
  #allocation1 [shape = 'u32[144,128]{1,0:T(1,128)}', space=vmem, size = 0x12000, scoped, tag = 'internal scratch']
  #allocation2 [shape = 'f32[8,32]{1,0:T(8,128)}', space=vmem, size = 0x1000, scoped, tag = 'scratch operand']
  #allocation3 [shape = 'f32[8,32]{1,0:T(8,128)}', space=vmem, size = 0x1000, scoped, tag = 'scratch operand']
  #allocation4 [shape = 'f32[8,32]{1,0:T(8,128)}', space=vmem, size = 0x1000, scoped, tag = 'scratch operand']
  #allocation5 [shape = 'f32[8,32]{1,0:T(8,128)}', space=vmem, size = 0x1000, scoped, tag = 'scratch operand']
  %s0 = inlined_call_operand.vmem [shape: f32[8,8,128], index: 0, kind: input, shape index: {}]
  %s1 = inlined_call_operand.vmem [shape: f32[8,8,128], index: 1, kind: input, shape index: {}]
  %s2 = inlined_call_operand.vmem [shape: f32[32,128], index: 2, kind: input, shape index: {}]
  %s3 = inlined_call_operand.vmem [shape: f32[32,128], index: 3, kind: input, shape index: {}]
  %s4 = inlined_call_operand.vmem [shape: f32[8,8,32], index: 4, kind: input, shape index: {}]
  %s5 = inlined_call_operand.vmem [shape: f32[8,8,32], index: 5, kind: input, shape index: {}]
  %s6 = inlined_call_operand.vmem [shape: f32[8,8,32], index: 6, kind: output, shape index: {0}]
  %s7 = inlined_call_operand.vmem [shape: f32[8,8,32], index: 7, kind: output, shape index: {1}]
  %8 = xla_tuple %s6, %s7
  %s9 = sld [smem:[#allocation0]]
  $region46: #{residual_lstm_block.1} parent=0
    _
  %s11 = ssub.s32 1, %s9
  %s12 = scalar_select 0, %s11, %s9
  // Predicated region
  $region2: #{residual_lstm_block.1} parent=0 // pred_check
    _
  $region3: #{residual_lstm_block.1} parent=0 // pred_check_branch
    %14 = sbr.rel (0) target = $region5
  $region4: #{residual_lstm_block.1} parent=0 // pred_region
    _
  $region5: #{residual_lstm_block.1} parent=0 // pred_fallthru
    _
  // Predicated region
  $region6: #{residual_lstm_block.1} parent=0 // pred_check
    _
  $region7: #{residual_lstm_block.1} parent=0 // pred_check_branch
    %16 = sbr.rel (0) target = $region9
  $region8: #{residual_lstm_block.1} parent=0 // pred_region
    %s17 = ssub.s32 0, 0
    %s18 = smul.u32 8, %s17
    %p19 = scmp.lt.s32.totalorder %s18, 7
    %s20 = scalar_select %p19, %s18, 7
    %s21 = smul.addr %s20, 8
    %s22 = scalar_lea.vmem %s1, %s21
    %s23 = ssub.s32 0, 0
    %s24 = smul.u32 8, %s23
  $region9: #{residual_lstm_block.1} parent=0 // pred_fallthru
    _
  // Predicated region
  $region10: #{residual_lstm_block.1} parent=0 // pred_check
    _
  $region11: #{residual_lstm_block.1} parent=0 // pred_check_branch
    %26 = sbr.rel (0) target = $region13
  $region12: #{residual_lstm_block.1} parent=0 // pred_region
    _
  $region13: #{residual_lstm_block.1} parent=0 // pred_fallthru
    _
  // Predicated region
  $region14: #{residual_lstm_block.1} parent=0 // pred_check
    _
  $region15: #{residual_lstm_block.1} parent=0 // pred_check_branch
    %28 = sbr.rel (0) target = $region17
  $region16: #{residual_lstm_block.1} parent=0 // pred_region
    _
  $region17: #{residual_lstm_block.1} parent=0 // pred_fallthru
    _
  // Predicated region
  $region18: #{residual_lstm_block.1} parent=0 // pred_check
    _
  $region19: #{residual_lstm_block.1} parent=0 // pred_check_branch
    %30 = sbr.rel (0) target = $region21
  $region20: #{residual_lstm_block.1} parent=0 // pred_region
    _
  $region21: #{residual_lstm_block.1} parent=0 // pred_fallthru
    _
  // Predicated region
  $region22: #{residual_lstm_block.1} parent=0 // pred_check
    _
  $region23: #{residual_lstm_block.1} parent=0 // pred_check_branch
    %32 = sbr.rel (0) target = $region25
  $region24: #{residual_lstm_block.1} parent=0 // pred_region
    %s33 = ssub.s32 0, 0
    %s34 = smul.u32 8, %s33
    %p35 = scmp.lt.s32.totalorder %s34, 7
    %s36 = scalar_select %p35, %s34, 7
    %s37 = smul.addr %s36, 8
    %s38 = scalar_lea.vmem %s5, %s37
    %s39 = ssub.s32 0, 0
    %s40 = smul.u32 8, %s39
  $region25: #{residual_lstm_block.1} parent=0 // pred_fallthru
    _
  %s41 = ssub.s32 0, 0
  %s42 = smul.u32 8, %s41
  %p43 = scmp.lt.s32.totalorder %s42, 7
  %s44 = scalar_select %p43, %s42, 7
  %s45 = smul.addr %s44, 8
  %s46 = scalar_lea.vmem %s1, %s45
  %s47 = ssub.s32 0, 0
  %s48 = smul.u32 8, %s47
  %p49 = scmp.lt.s32.totalorder %s48, 7
  %s50 = scalar_select %p49, %s48, 7
  %s51 = smul.addr %s50, 8
  %s52 = scalar_lea.vmem %s5, %s51
  %s53 = ssub.s32 0, 0
  %s54 = smul.u32 8, %s53
  %p55 = scmp.lt.s32.totalorder %s54, 7
  %s56 = scalar_select %p55, %s54, 7
  %s57 = smul.addr %s56, 8
  %s58 = scalar_lea.vmem %s7, %s57
  %s59 = ssub.s32 0, 0
  %s60 = smul.u32 8, %s59
  %p61 = scmp.lt.s32.totalorder %s60, 7
  %s62 = scalar_select %p61, %s60, 7
  %s63 = smul.addr %s62, 8
  %s64 = scalar_lea.vmem %s1, %s63
  %s65 = ssub.s32 0, 0
  %s66 = smul.u32 8, %s65
  %s67 = ssub.s32 0, 0
  %s68 = smul.u32 8, %s67
  %p69 = scmp.lt.s32.totalorder %s68, 7
  %s70 = scalar_select %p69, %s68, 7
  %s71 = smul.addr %s70, 8
  %s72 = scalar_lea.vmem %s5, %s71
  %s73 = ssub.s32 0, 0
  %s74 = smul.u32 8, %s73
  %s75 = ssub.s32 0, 0
  %s76 = smul.u32 8, %s75
  %p77 = scmp.lt.s32.totalorder %s76, 7
  %s78 = scalar_select %p77, %s76, 7
  %s79 = smul.addr %s78, 8
  %s80 = scalar_lea.vmem %s7, %s79
  %s81 = ssub.s32 0, 0
  %s82 = smul.u32 8, %s81
  %p83 = scmp.eq.s32.totalorder 0, 0
  // Predicated region
  $region26: #{residual_lstm_block.1} parent=0 // pred_check
    %p84 = pneg %p83
  $region27: #{residual_lstm_block.1} parent=0 // pred_check_branch
    %86 = sbr.rel (%p84) target = $region29
  $region28: #{residual_lstm_block.1} parent=0 // pred_region
    %vm87 = vcmask 261120
    %88 = vst.msk [vmem:[#allocation2] sm:$0xff] %vm87, 0.0
    %89 = vst.msk [vmem:[#allocation4] sm:$0xff] %vm87, 0.0
    %90 = vst.msk [vmem:[#allocation3] sm:$0xff] %vm87, 0.0
    %91 = vst.msk [vmem:[#allocation5] sm:$0xff] %vm87, 0.0
  $region29: #{residual_lstm_block.1} parent=0 // pred_fallthru
    _
  %v92 = vld [vmem:[%s2] sm:$0xff]
  %v93 = vld [vmem:[%s2 + $0x8] sm:$0xff]
  %v94 = vld [vmem:[%s2 + $0x10] sm:$0xff]
  %v95 = vld [vmem:[%s2 + $0x18] sm:$0xff]
  %v96 = vld [vmem:[%s3] sm:$0xff]
  %v97 = vld [vmem:[%s3 + $0x8] sm:$0xff]
  %v98 = vld [vmem:[%s3 + $0x10] sm:$0xff]
  %v99 = vld [vmem:[%s3 + $0x18] sm:$0xff]
  %v100 = vld [vmem:[#allocation2] sm:$0xff]
  %v101 = vld [vmem:[#allocation3] sm:$0xff]
  %v102 = vld [vmem:[#allocation4] sm:$0xff]
  %v103 = vld [vmem:[#allocation5] sm:$0xff]
  %v104 = vld [vmem:[%s0] sm:$0xff]
  %vm105 = vcmask 261120
  %v107 = vsel %vm105, %v100, 0
  %109 = vmatprep.subr.mxu0 0.0
  %v110 = vand.u32 %v92, 4294901760
  %111 = vmatpush1.msra.mxu0 %v110
  %112 = vmatprep.subr.mxu0 0.0
  %v113 = vand.u32 %v93, 4294901760
  %114 = vmatpush1.msra.mxu0 %v113
  %115 = vmatprep.subr.mxu0 0.0
  %v116 = vand.u32 %v94, 4294901760
  %117 = vmatpush1.msra.mxu0 %v116
  %118 = vmatprep.subr.mxu0 0.0
  %v119 = vand.u32 %v95, 4294901760
  %120 = vmatpush1.msra.mxu0 %v119
  %121 = vmatprep.subr.mxu0 0.0
  %122 = vmatpush1.msra.mxu0 0.0
  %123 = vmatprep.subr.mxu0 0.0
  %124 = vmatpush1.msra.mxu0 0.0
  %125 = vmatprep.subr.mxu0 0.0
  %126 = vmatpush1.msra.mxu0 0.0
  %127 = vmatprep.subr.mxu0 0.0
  %128 = vmatpush1.msra.mxu0 0.0
  %129 = vmatprep.subr.mxu0 0.0
  %130 = vmatpush1.msra.mxu0 0.0
  %131 = vmatprep.subr.mxu0 0.0
  %132 = vmatpush1.msra.mxu0 0.0
  %133 = vmatprep.subr.mxu0 0.0
  %134 = vmatpush1.msra.mxu0 0.0
  %135 = vmatprep.subr.mxu0 0.0
  %136 = vmatpush1.msra.mxu0 0.0
  %137 = vmatprep.subr.mxu0 0.0
  %138 = vmatpush1.msra.mxu0 0.0
  %139 = vmatprep.subr.mxu0 0.0
  %140 = vmatpush1.msra.mxu0 0.0
  %141 = vmatprep.subr.mxu0 0.0
  %142 = vmatpush1.msra.mxu0 0.0
  %143 = vmatprep.subr.mxu0 0.0
  %144 = vmatpush1.msra.mxu0 0.0
  %145 = vmatprep.subr.mxu0 0.0
  %146 = vmatpush1.msra.mxu0 0.0
  %147 = vmatprep.subr.mxu0 0.0
  %148 = vmatpush1.msra.mxu0 0.0
  %149 = vmatprep.subr.mxu0 0.0
  %150 = vmatpush1.msra.mxu0 0.0
  %151 = vmatprep.subr.mxu0 0.0
  %152 = vmatpush1.msra.mxu0 0.0
  %153 = vmatprep.subr.mxu0 0.0
  %154 = vmatpush1.msra.mxu0 0.0
  %155 = vmatprep.subr.mxu0 0.0
  %156 = vmatpush1.msra.mxu0 0.0
  %157 = vmatprep.subr.mxu0 0.0
  %158 = vmatpush1.msra.mxu0 0.0
  %159 = vmatprep.subr.mxu0 0.0
  %160 = vmatpush1.msra.mxu0 0.0
  %161 = vmatprep.subr.mxu0 0.0
  %162 = vmatpush1.msra.mxu0 0.0
  %163 = vmatprep.subr.mxu0 0.0
  %164 = vmatpush1.msra.mxu0 0.0
  %165 = vmatprep.subr.mxu0 0.0
  %166 = vmatpush1.msra.mxu0 0.0
  %167 = vmatprep.subr.mxu0 0.0
  %168 = vmatpush1.msra.mxu0 0.0
  %169 = vmatprep.subr.mxu0 0.0
  %170 = vmatpush1.msra.mxu0 0.0
  %171 = vmatprep.subr.mxu0 0.0
  %172 = vmatpush1.msra.mxu0 0.0
  %173 = vmatprep.subr.mxu0 0.0
  %174 = vmatpush1.msra.mxu0 0.0
  %175 = vmatprep.subr.mxu0 0.0
  %176 = vmatpush1.msra.mxu0 0.0
  %177 = vmatprep.mubr.f32.mxu0 0.0
  %v178 = vand.u32 %v107, 4294901760
  %v179 = vsub.f32 %v107, %v178
  %v180 = vand.u32 %v179, 4294901760
  %v181 = vsub.f32 %v179, %v180
  %v182 = vand.u32 %v181, 4294901760
  %183 = vmatmul.mubr.f32.gmra.mrb[0].mxu0 %v182
  %v184 = vpop.f32.mrb[0].mxu0
  %v185 = vadd.f32 0.0, %v184
  %v186 = vpop.f32.mrb[0].mxu0
  %187 = vdwg.mxu0
  %188 = vmatprep.subr.mxu0 0.0
  %v189 = vand.u32 %v92, 4294901760
  %v190 = vsub.f32 %v92, %v189
  %v191 = vand.u32 %v190, 4294901760
  %v192 = vsub.f32 %v190, %v191
  %v193 = vand.u32 %v192, 4294901760
  %194 = vmatpush1.msra.mxu0 %v193
  %195 = vmatprep.subr.mxu0 0.0
  %v196 = vand.u32 %v93, 4294901760
  %v197 = vsub.f32 %v93, %v196
  %v198 = vand.u32 %v197, 4294901760
  %v199 = vsub.f32 %v197, %v198
  %v200 = vand.u32 %v199, 4294901760
  %201 = vmatpush1.msra.mxu0 %v200
  %202 = vmatprep.subr.mxu0 0.0
  %v203 = vand.u32 %v94, 4294901760
  %v204 = vsub.f32 %v94, %v203
  %v205 = vand.u32 %v204, 4294901760
  %v206 = vsub.f32 %v204, %v205
  %v207 = vand.u32 %v206, 4294901760
  %208 = vmatpush1.msra.mxu0 %v207
  %209 = vmatprep.subr.mxu0 0.0
  %v210 = vand.u32 %v95, 4294901760
  %v211 = vsub.f32 %v95, %v210
  %v212 = vand.u32 %v211, 4294901760
  %v213 = vsub.f32 %v211, %v212
  %v214 = vand.u32 %v213, 4294901760
  %215 = vmatpush1.msra.mxu0 %v214
  %216 = vmatprep.subr.mxu0 0.0
  %217 = vmatpush1.msra.mxu0 0.0
  %218 = vmatprep.subr.mxu0 0.0
  %219 = vmatpush1.msra.mxu0 0.0
  %220 = vmatprep.subr.mxu0 0.0
  %221 = vmatpush1.msra.mxu0 0.0
  %222 = vmatprep.subr.mxu0 0.0
  %223 = vmatpush1.msra.mxu0 0.0
  %224 = vmatprep.subr.mxu0 0.0
  %225 = vmatpush1.msra.mxu0 0.0
  %226 = vmatprep.subr.mxu0 0.0
  %227 = vmatpush1.msra.mxu0 0.0
  %228 = vmatprep.subr.mxu0 0.0
  %229 = vmatpush1.msra.mxu0 0.0
  %230 = vmatprep.subr.mxu0 0.0
  %231 = vmatpush1.msra.mxu0 0.0
  %232 = vmatprep.subr.mxu0 0.0
  %233 = vmatpush1.msra.mxu0 0.0
  %234 = vmatprep.subr.mxu0 0.0
  %235 = vmatpush1.msra.mxu0 0.0
  %236 = vmatprep.subr.mxu0 0.0
  %237 = vmatpush1.msra.mxu0 0.0
  %238 = vmatprep.subr.mxu0 0.0
  %239 = vmatpush1.msra.mxu0 0.0
  %240 = vmatprep.subr.mxu0 0.0
  %241 = vmatpush1.msra.mxu0 0.0
  %242 = vmatprep.subr.mxu0 0.0
  %243 = vmatpush1.msra.mxu0 0.0
  %244 = vmatprep.subr.mxu0 0.0
  %245 = vmatpush1.msra.mxu0 0.0
  %246 = vmatprep.subr.mxu0 0.0
  %247 = vmatpush1.msra.mxu0 0.0
  %248 = vmatprep.subr.mxu0 0.0
  %249 = vmatpush1.msra.mxu0 0.0
  %250 = vmatprep.subr.mxu0 0.0
  %251 = vmatpush1.msra.mxu0 0.0
  %252 = vmatprep.subr.mxu0 0.0
  %253 = vmatpush1.msra.mxu0 0.0
  %254 = vmatprep.subr.mxu0 0.0
  %255 = vmatpush1.msra.mxu0 0.0
  %256 = vmatprep.subr.mxu0 0.0
  %257 = vmatpush1.msra.mxu0 0.0
  %258 = vmatprep.subr.mxu0 0.0
  %259 = vmatpush1.msra.mxu0 0.0
  %260 = vmatprep.subr.mxu0 0.0
  %261 = vmatpush1.msra.mxu0 0.0
  %262 = vmatprep.subr.mxu0 0.0
  %263 = vmatpush1.msra.mxu0 0.0
  %264 = vmatprep.subr.mxu0 0.0
  %265 = vmatpush1.msra.mxu0 0.0
  %266 = vmatprep.subr.mxu0 0.0
  %267 = vmatpush1.msra.mxu0 0.0
  %268 = vmatprep.subr.mxu0 0.0
  %269 = vmatpush1.msra.mxu0 0.0
  %270 = vmatprep.subr.mxu0 0.0
  %271 = vmatpush1.msra.mxu0 0.0
  %272 = vmatprep.mubr.f32.mxu0 0.0
  %v273 = vand.u32 %v107, 4294901760
  %274 = vmatmul.mubr.f32.gmra.mrb[0].mxu0 %v273
  %v275 = vpop.f32.mrb[0].mxu0
  %v276 = vadd.f32 %v185, %v275
  %v277 = vpop.f32.mrb[0].mxu0
  %278 = vdwg.mxu0
  %279 = vmatprep.subr.mxu0 0.0
  %v280 = vand.u32 %v92, 4294901760
  %v281 = vsub.f32 %v92, %v280
  %282 = vmatpush1.msra.mxu0 %v281
  %283 = vmatprep.subr.mxu0 0.0
  %v284 = vand.u32 %v93, 4294901760
  %v285 = vsub.f32 %v93, %v284
  %286 = vmatpush1.msra.mxu0 %v285
  %287 = vmatprep.subr.mxu0 0.0
  %v288 = vand.u32 %v94, 4294901760
  %v289 = vsub.f32 %v94, %v288
  %290 = vmatpush1.msra.mxu0 %v289
  %291 = vmatprep.subr.mxu0 0.0
  %v292 = vand.u32 %v95, 4294901760
  %v293 = vsub.f32 %v95, %v292
  %294 = vmatpush1.msra.mxu0 %v293
  %295 = vmatprep.subr.mxu0 0.0
  %296 = vmatpush1.msra.mxu0 0.0
  %297 = vmatprep.subr.mxu0 0.0
  %298 = vmatpush1.msra.mxu0 0.0
  %299 = vmatprep.subr.mxu0 0.0
  %300 = vmatpush1.msra.mxu0 0.0
  %301 = vmatprep.subr.mxu0 0.0
  %302 = vmatpush1.msra.mxu0 0.0
  %303 = vmatprep.subr.mxu0 0.0
  %304 = vmatpush1.msra.mxu0 0.0
  %305 = vmatprep.subr.mxu0 0.0
  %306 = vmatpush1.msra.mxu0 0.0
  %307 = vmatprep.subr.mxu0 0.0
  %308 = vmatpush1.msra.mxu0 0.0
  %309 = vmatprep.subr.mxu0 0.0
  %310 = vmatpush1.msra.mxu0 0.0
  %311 = vmatprep.subr.mxu0 0.0
  %312 = vmatpush1.msra.mxu0 0.0
  %313 = vmatprep.subr.mxu0 0.0
  %314 = vmatpush1.msra.mxu0 0.0
  %315 = vmatprep.subr.mxu0 0.0
  %316 = vmatpush1.msra.mxu0 0.0
  %317 = vmatprep.subr.mxu0 0.0
  %318 = vmatpush1.msra.mxu0 0.0
  %319 = vmatprep.subr.mxu0 0.0
  %320 = vmatpush1.msra.mxu0 0.0
  %321 = vmatprep.subr.mxu0 0.0
  %322 = vmatpush1.msra.mxu0 0.0
  %323 = vmatprep.subr.mxu0 0.0
  %324 = vmatpush1.msra.mxu0 0.0
  %325 = vmatprep.subr.mxu0 0.0
  %326 = vmatpush1.msra.mxu0 0.0
  %327 = vmatprep.subr.mxu0 0.0
  %328 = vmatpush1.msra.mxu0 0.0
  %329 = vmatprep.subr.mxu0 0.0
  %330 = vmatpush1.msra.mxu0 0.0
  %331 = vmatprep.subr.mxu0 0.0
  %332 = vmatpush1.msra.mxu0 0.0
  %333 = vmatprep.subr.mxu0 0.0
  %334 = vmatpush1.msra.mxu0 0.0
  %335 = vmatprep.subr.mxu0 0.0
  %336 = vmatpush1.msra.mxu0 0.0
  %337 = vmatprep.subr.mxu0 0.0
  %338 = vmatpush1.msra.mxu0 0.0
  %339 = vmatprep.subr.mxu0 0.0
  %340 = vmatpush1.msra.mxu0 0.0
  %341 = vmatprep.subr.mxu0 0.0
  %342 = vmatpush1.msra.mxu0 0.0
  %343 = vmatprep.subr.mxu0 0.0
  %344 = vmatpush1.msra.mxu0 0.0
  %345 = vmatprep.subr.mxu0 0.0
  %346 = vmatpush1.msra.mxu0 0.0
  %347 = vmatprep.subr.mxu0 0.0
  %348 = vmatpush1.msra.mxu0 0.0
  %349 = vmatprep.subr.mxu0 0.0
  %350 = vmatpush1.msra.mxu0 0.0
  %351 = vmatprep.mubr.f32.mxu0 0.0
  %v352 = vand.u32 %v107, 4294901760
  %v353 = vsub.f32 %v107, %v352
  %354 = vmatmul.mubr.f32.gmra.mrb[0].mxu0 %v353
  %v355 = vpop.f32.mrb[0].mxu0
  %v356 = vadd.f32 %v276, %v355
  %v357 = vpop.f32.mrb[0].mxu0
  %358 = vdwg.mxu0
  %359 = vmatprep.subr.mxu0 0.0
  %v360 = vand.u32 %v92, 4294901760
  %361 = vmatpush1.msra.mxu0 %v360
  %362 = vmatprep.subr.mxu0 0.0
  %v363 = vand.u32 %v93, 4294901760
  %364 = vmatpush1.msra.mxu0 %v363
  %365 = vmatprep.subr.mxu0 0.0
  %v366 = vand.u32 %v94, 4294901760
  %367 = vmatpush1.msra.mxu0 %v366
  %368 = vmatprep.subr.mxu0 0.0
  %v369 = vand.u32 %v95, 4294901760
  %370 = vmatpush1.msra.mxu0 %v369
  %371 = vmatprep.subr.mxu0 0.0
  %372 = vmatpush1.msra.mxu0 0.0
  %373 = vmatprep.subr.mxu0 0.0
  %374 = vmatpush1.msra.mxu0 0.0
  %375 = vmatprep.subr.mxu0 0.0
  %376 = vmatpush1.msra.mxu0 0.0
  %377 = vmatprep.subr.mxu0 0.0
  %378 = vmatpush1.msra.mxu0 0.0
  %379 = vmatprep.subr.mxu0 0.0
  %380 = vmatpush1.msra.mxu0 0.0
  %381 = vmatprep.subr.mxu0 0.0
  %382 = vmatpush1.msra.mxu0 0.0
  %383 = vmatprep.subr.mxu0 0.0
  %384 = vmatpush1.msra.mxu0 0.0
  %385 = vmatprep.subr.mxu0 0.0
  %386 = vmatpush1.msra.mxu0 0.0
  %387 = vmatprep.subr.mxu0 0.0
  %388 = vmatpush1.msra.mxu0 0.0
  %389 = vmatprep.subr.mxu0 0.0
  %390 = vmatpush1.msra.mxu0 0.0
  %391 = vmatprep.subr.mxu0 0.0
  %392 = vmatpush1.msra.mxu0 0.0
  %393 = vmatprep.subr.mxu0 0.0
  %394 = vmatpush1.msra.mxu0 0.0
  %395 = vmatprep.subr.mxu0 0.0
  %396 = vmatpush1.msra.mxu0 0.0
  %397 = vmatprep.subr.mxu0 0.0
  %398 = vmatpush1.msra.mxu0 0.0
  %399 = vmatprep.subr.mxu0 0.0
  %400 = vmatpush1.msra.mxu0 0.0
  %401 = vmatprep.subr.mxu0 0.0
  %402 = vmatpush1.msra.mxu0 0.0
  %403 = vmatprep.subr.mxu0 0.0
  %404 = vmatpush1.msra.mxu0 0.0
  %405 = vmatprep.subr.mxu0 0.0
  %406 = vmatpush1.msra.mxu0 0.0
  %407 = vmatprep.subr.mxu0 0.0
  %408 = vmatpush1.msra.mxu0 0.0
  %409 = vmatprep.subr.mxu0 0.0
  %410 = vmatpush1.msra.mxu0 0.0
  %411 = vmatprep.subr.mxu0 0.0
  %412 = vmatpush1.msra.mxu0 0.0
  %413 = vmatprep.subr.mxu0 0.0
  %414 = vmatpush1.msra.mxu0 0.0
  %415 = vmatprep.subr.mxu0 0.0
  %416 = vmatpush1.msra.mxu0 0.0
  %417 = vmatprep.subr.mxu0 0.0
  %418 = vmatpush1.msra.mxu0 0.0
  %419 = vmatprep.subr.mxu0 0.0
  %420 = vmatpush1.msra.mxu0 0.0
  %421 = vmatprep.subr.mxu0 0.0
  %422 = vmatpush1.msra.mxu0 0.0
  %423 = vmatprep.subr.mxu0 0.0
  %424 = vmatpush1.msra.mxu0 0.0
  %425 = vmatprep.subr.mxu0 0.0
  %426 = vmatpush1.msra.mxu0 0.0
  %427 = vmatprep.mubr.f32.mxu0 0.0
  %v428 = vand.u32 %v107, 4294901760
  %v429 = vsub.f32 %v107, %v428
  %v430 = vand.u32 %v429, 4294901760
  %431 = vmatmul.mubr.f32.gmra.mrb[0].mxu0 %v430
  %v432 = vpop.f32.mrb[0].mxu0
  %v433 = vadd.f32 %v356, %v432
  %v434 = vpop.f32.mrb[0].mxu0
  %435 = vdwg.mxu0
  %436 = vmatprep.subr.mxu0 0.0
  %v437 = vand.u32 %v92, 4294901760
  %v438 = vsub.f32 %v92, %v437
  %v439 = vand.u32 %v438, 4294901760
  %440 = vmatpush1.msra.mxu0 %v439
  %441 = vmatprep.subr.mxu0 0.0
  %v442 = vand.u32 %v93, 4294901760
  %v443 = vsub.f32 %v93, %v442
  %v444 = vand.u32 %v443, 4294901760
  %445 = vmatpush1.msra.mxu0 %v444
  %446 = vmatprep.subr.mxu0 0.0
  %v447 = vand.u32 %v94, 4294901760
  %v448 = vsub.f32 %v94, %v447
  %v449 = vand.u32 %v448, 4294901760
  %450 = vmatpush1.msra.mxu0 %v449
  %451 = vmatprep.subr.mxu0 0.0
  %v452 = vand.u32 %v95, 4294901760
  %v453 = vsub.f32 %v95, %v452
  %v454 = vand.u32 %v453, 4294901760
  %455 = vmatpush1.msra.mxu0 %v454
  %456 = vmatprep.subr.mxu0 0.0
  %457 = vmatpush1.msra.mxu0 0.0
  %458 = vmatprep.subr.mxu0 0.0
  %459 = vmatpush1.msra.mxu0 0.0
  %460 = vmatprep.subr.mxu0 0.0
  %461 = vmatpush1.msra.mxu0 0.0
  %462 = vmatprep.subr.mxu0 0.0
  %463 = vmatpush1.msra.mxu0 0.0
  %464 = vmatprep.subr.mxu0 0.0
  %465 = vmatpush1.msra.mxu0 0.0
  %466 = vmatprep.subr.mxu0 0.0
  %467 = vmatpush1.msra.mxu0 0.0
  %468 = vmatprep.subr.mxu0 0.0
  %469 = vmatpush1.msra.mxu0 0.0
  %470 = vmatprep.subr.mxu0 0.0
  %471 = vmatpush1.msra.mxu0 0.0
  %472 = vmatprep.subr.mxu0 0.0
  %473 = vmatpush1.msra.mxu0 0.0
  %474 = vmatprep.subr.mxu0 0.0
  %475 = vmatpush1.msra.mxu0 0.0
  %476 = vmatprep.subr.mxu0 0.0
  %477 = vmatpush1.msra.mxu0 0.0
  %478 = vmatprep.subr.mxu0 0.0
  %479 = vmatpush1.msra.mxu0 0.0
  %480 = vmatprep.subr.mxu0 0.0
  %481 = vmatpush1.msra.mxu0 0.0
  %482 = vmatprep.subr.mxu0 0.0
  %483 = vmatpush1.msra.mxu0 0.0
  %484 = vmatprep.subr.mxu0 0.0
  %485 = vmatpush1.msra.mxu0 0.0
  %486 = vmatprep.subr.mxu0 0.0
  %487 = vmatpush1.msra.mxu0 0.0
  %488 = vmatprep.subr.mxu0 0.0
  %489 = vmatpush1.msra.mxu0 0.0
  %490 = vmatprep.subr.mxu0 0.0
  %491 = vmatpush1.msra.mxu0 0.0
  %492 = vmatprep.subr.mxu0 0.0
  %493 = vmatpush1.msra.mxu0 0.0
  %494 = vmatprep.subr.mxu0 0.0
  %495 = vmatpush1.msra.mxu0 0.0
  %496 = vmatprep.subr.mxu0 0.0
  %497 = vmatpush1.msra.mxu0 0.0
  %498 = vmatprep.subr.mxu0 0.0
  %499 = vmatpush1.msra.mxu0 0.0
  %500 = vmatprep.subr.mxu0 0.0
  %501 = vmatpush1.msra.mxu0 0.0
  %502 = vmatprep.subr.mxu0 0.0
  %503 = vmatpush1.msra.mxu0 0.0
  %504 = vmatprep.subr.mxu0 0.0
  %505 = vmatpush1.msra.mxu0 0.0
  %506 = vmatprep.subr.mxu0 0.0
  %507 = vmatpush1.msra.mxu0 0.0
  %508 = vmatprep.subr.mxu0 0.0
  %509 = vmatpush1.msra.mxu0 0.0
  %510 = vmatprep.subr.mxu0 0.0
  %511 = vmatpush1.msra.mxu0 0.0
  %512 = vmatprep.mubr.f32.mxu0 0.0
  %v513 = vand.u32 %v107, 4294901760
  %514 = vmatmul.mubr.f32.gmra.mrb[0].mxu0 %v513
  %v515 = vpop.f32.mrb[0].mxu0
  %v516 = vadd.f32 %v433, %v515
  %v517 = vpop.f32.mrb[0].mxu0
  %518 = vdwg.mxu0
  %519 = vmatprep.subr.mxu0 0.0
  %v520 = vand.u32 %v92, 4294901760
  %521 = vmatpush1.msra.mxu0 %v520
  %522 = vmatprep.subr.mxu0 0.0
  %v523 = vand.u32 %v93, 4294901760
  %524 = vmatpush1.msra.mxu0 %v523
  %525 = vmatprep.subr.mxu0 0.0
  %v526 = vand.u32 %v94, 4294901760
  %527 = vmatpush1.msra.mxu0 %v526
  %528 = vmatprep.subr.mxu0 0.0
  %v529 = vand.u32 %v95, 4294901760
  %530 = vmatpush1.msra.mxu0 %v529
  %531 = vmatprep.subr.mxu0 0.0
  %532 = vmatpush1.msra.mxu0 0.0
  %533 = vmatprep.subr.mxu0 0.0
  %534 = vmatpush1.msra.mxu0 0.0
  %535 = vmatprep.subr.mxu0 0.0
  %536 = vmatpush1.msra.mxu0 0.0
  %537 = vmatprep.subr.mxu0 0.0
  %538 = vmatpush1.msra.mxu0 0.0
  %539 = vmatprep.subr.mxu0 0.0
  %540 = vmatpush1.msra.mxu0 0.0
  %541 = vmatprep.subr.mxu0 0.0
  %542 = vmatpush1.msra.mxu0 0.0
  %543 = vmatprep.subr.mxu0 0.0
  %544 = vmatpush1.msra.mxu0 0.0
  %545 = vmatprep.subr.mxu0 0.0
  %546 = vmatpush1.msra.mxu0 0.0
  %547 = vmatprep.subr.mxu0 0.0
  %548 = vmatpush1.msra.mxu0 0.0
  %549 = vmatprep.subr.mxu0 0.0
  %550 = vmatpush1.msra.mxu0 0.0
  %551 = vmatprep.subr.mxu0 0.0
  %552 = vmatpush1.msra.mxu0 0.0
  %553 = vmatprep.subr.mxu0 0.0
  %554 = vmatpush1.msra.mxu0 0.0
  %555 = vmatprep.subr.mxu0 0.0
  %556 = vmatpush1.msra.mxu0 0.0
  %557 = vmatprep.subr.mxu0 0.0
  %558 = vmatpush1.msra.mxu0 0.0
  %559 = vmatprep.subr.mxu0 0.0
  %560 = vmatpush1.msra.mxu0 0.0
  %561 = vmatprep.subr.mxu0 0.0
  %562 = vmatpush1.msra.mxu0 0.0
  %563 = vmatprep.subr.mxu0 0.0
  %564 = vmatpush1.msra.mxu0 0.0
  %565 = vmatprep.subr.mxu0 0.0
  %566 = vmatpush1.msra.mxu0 0.0
  %567 = vmatprep.subr.mxu0 0.0
  %568 = vmatpush1.msra.mxu0 0.0
  %569 = vmatprep.subr.mxu0 0.0
  %570 = vmatpush1.msra.mxu0 0.0
  %571 = vmatprep.subr.mxu0 0.0
  %572 = vmatpush1.msra.mxu0 0.0
  %573 = vmatprep.subr.mxu0 0.0
  %574 = vmatpush1.msra.mxu0 0.0
  %575 = vmatprep.subr.mxu0 0.0
  %576 = vmatpush1.msra.mxu0 0.0
  %577 = vmatprep.subr.mxu0 0.0
  %578 = vmatpush1.msra.mxu0 0.0
  %579 = vmatprep.subr.mxu0 0.0
  %580 = vmatpush1.msra.mxu0 0.0
  %581 = vmatprep.subr.mxu0 0.0
  %582 = vmatpush1.msra.mxu0 0.0
  %583 = vmatprep.subr.mxu0 0.0
  %584 = vmatpush1.msra.mxu0 0.0
  %585 = vmatprep.subr.mxu0 0.0
  %586 = vmatpush1.msra.mxu0 0.0
  %587 = vmatprep.mubr.f32.mxu0 0.0
  %v588 = vand.u32 %v107, 4294901760
  %589 = vmatmul.mubr.f32.gmra.mrb[0].mxu0 %v588
  %v590 = vpop.f32.mrb[0].mxu0
  %v591 = vadd.f32 %v516, %v590
  %v592 = vpop.f32.mrb[0].mxu0
  %593 = vdwg.mxu0
  %v594 = vadd.f32 %v104, %v591
  %v595 = vxor.u32 %v594, 2147483648
  %v596 = vmul.f32 %v595, 1.442695
  %v597 = vpow.pop %v596
  %v598 = vadd.f32 %v597, 1.0
  %v599 = vrcp.pop %v598
  %v600 = vmul.f32 1.0, %v599
  %v601 = vtanh.pop %v594
  %603 = vrot.lane.b32.xlu0 %v102, 32
  %v604 = vpop.permute.xlu0 %603
  %v606 = vmul.f32 %v600, %v604
  %608 = vrot.lane.b32.xlu0 %v601, 64
  %v609 = vpop.permute.xlu0 %608
  %v611 = vmul.f32 %v600, %v609
  %613 = vrot.lane.b32.xlu0 %v611, 32
  %v614 = vpop.permute.xlu0 %613
  %v616 = vadd.f32 %v606, %v614
  %v617 = vtanh.pop %v616
  %619 = vrot.lane.b32.xlu0 %v617, 64
  %v620 = vpop.permute.xlu0 %619
  %v622 = vmul.f32 %v600, %v620
  %v623 = vld [vmem:[%s4] sm:$0xff]
  %625 = vrot.lane.b32.xlu0 %v623, 96
  %v626 = vpop.permute.xlu0 %625
  %v628 = vadd.f32 %v622, %v626
  %630 = vrot.lane.b32.xlu0 %v628, 32
  %v631 = vpop.permute.xlu0 %630
  %633 = vst.msk [vmem:[%s6] sm:$0xff] %vm105, %v631
  %s634 = scalar_lea.vmem %s64, 56
  %v635 = vld [vmem:[%s634] sm:$0xff]
  %v637 = vsel %vm105, %v101, 0
  %639 = vmatprep.subr.mxu0 0.0
  %v640 = vand.u32 %v96, 4294901760
  %641 = vmatpush1.msra.mxu0 %v640
  %642 = vmatprep.subr.mxu0 0.0
  %v643 = vand.u32 %v97, 4294901760
  %644 = vmatpush1.msra.mxu0 %v643
  %645 = vmatprep.subr.mxu0 0.0
  %v646 = vand.u32 %v98, 4294901760
  %647 = vmatpush1.msra.mxu0 %v646
  %648 = vmatprep.subr.mxu0 0.0
  %v649 = vand.u32 %v99, 4294901760
  %650 = vmatpush1.msra.mxu0 %v649
  %651 = vmatprep.subr.mxu0 0.0
  %652 = vmatpush1.msra.mxu0 0.0
  %653 = vmatprep.subr.mxu0 0.0
  %654 = vmatpush1.msra.mxu0 0.0
  %655 = vmatprep.subr.mxu0 0.0
  %656 = vmatpush1.msra.mxu0 0.0
  %657 = vmatprep.subr.mxu0 0.0
  %658 = vmatpush1.msra.mxu0 0.0
  %659 = vmatprep.subr.mxu0 0.0
  %660 = vmatpush1.msra.mxu0 0.0
  %661 = vmatprep.subr.mxu0 0.0
  %662 = vmatpush1.msra.mxu0 0.0
  %663 = vmatprep.subr.mxu0 0.0
  %664 = vmatpush1.msra.mxu0 0.0
  %665 = vmatprep.subr.mxu0 0.0
  %666 = vmatpush1.msra.mxu0 0.0
  %667 = vmatprep.subr.mxu0 0.0
  %668 = vmatpush1.msra.mxu0 0.0
  %669 = vmatprep.subr.mxu0 0.0
  %670 = vmatpush1.msra.mxu0 0.0
  %671 = vmatprep.subr.mxu0 0.0
  %672 = vmatpush1.msra.mxu0 0.0
  %673 = vmatprep.subr.mxu0 0.0
  %674 = vmatpush1.msra.mxu0 0.0
  %675 = vmatprep.subr.mxu0 0.0
  %676 = vmatpush1.msra.mxu0 0.0
  %677 = vmatprep.subr.mxu0 0.0
  %678 = vmatpush1.msra.mxu0 0.0
  %679 = vmatprep.subr.mxu0 0.0
  %680 = vmatpush1.msra.mxu0 0.0
  %681 = vmatprep.subr.mxu0 0.0
  %682 = vmatpush1.msra.mxu0 0.0
  %683 = vmatprep.subr.mxu0 0.0
  %684 = vmatpush1.msra.mxu0 0.0
  %685 = vmatprep.subr.mxu0 0.0
  %686 = vmatpush1.msra.mxu0 0.0
  %687 = vmatprep.subr.mxu0 0.0
  %688 = vmatpush1.msra.mxu0 0.0
  %689 = vmatprep.subr.mxu0 0.0
  %690 = vmatpush1.msra.mxu0 0.0
  %691 = vmatprep.subr.mxu0 0.0
  %692 = vmatpush1.msra.mxu0 0.0
  %693 = vmatprep.subr.mxu0 0.0
  %694 = vmatpush1.msra.mxu0 0.0
  %695 = vmatprep.subr.mxu0 0.0
  %696 = vmatpush1.msra.mxu0 0.0
  %697 = vmatprep.subr.mxu0 0.0
  %698 = vmatpush1.msra.mxu0 0.0
  %699 = vmatprep.subr.mxu0 0.0
  %700 = vmatpush1.msra.mxu0 0.0
  %701 = vmatprep.subr.mxu0 0.0
  %702 = vmatpush1.msra.mxu0 0.0
  %703 = vmatprep.subr.mxu0 0.0
  %704 = vmatpush1.msra.mxu0 0.0
  %705 = vmatprep.subr.mxu0 0.0
  %706 = vmatpush1.msra.mxu0 0.0
  %707 = vmatprep.mubr.f32.mxu0 0.0
  %v708 = vand.u32 %v637, 4294901760
  %v709 = vsub.f32 %v637, %v708
  %v710 = vand.u32 %v709, 4294901760
  %v711 = vsub.f32 %v709, %v710
  %v712 = vand.u32 %v711, 4294901760
  %713 = vmatmul.mubr.f32.gmra.mrb[0].mxu0 %v712
  %v714 = vpop.f32.mrb[0].mxu0
  %v715 = vadd.f32 0.0, %v714
  %v716 = vpop.f32.mrb[0].mxu0
  %717 = vdwg.mxu0
  %718 = vmatprep.subr.mxu0 0.0
  %v719 = vand.u32 %v96, 4294901760
  %v720 = vsub.f32 %v96, %v719
  %v721 = vand.u32 %v720, 4294901760
  %v722 = vsub.f32 %v720, %v721
  %v723 = vand.u32 %v722, 4294901760
  %724 = vmatpush1.msra.mxu0 %v723
  %725 = vmatprep.subr.mxu0 0.0
  %v726 = vand.u32 %v97, 4294901760
  %v727 = vsub.f32 %v97, %v726
  %v728 = vand.u32 %v727, 4294901760
  %v729 = vsub.f32 %v727, %v728
  %v730 = vand.u32 %v729, 4294901760
  %731 = vmatpush1.msra.mxu0 %v730
  %732 = vmatprep.subr.mxu0 0.0
  %v733 = vand.u32 %v98, 4294901760
  %v734 = vsub.f32 %v98, %v733
  %v735 = vand.u32 %v734, 4294901760
  %v736 = vsub.f32 %v734, %v735
  %v737 = vand.u32 %v736, 4294901760
  %738 = vmatpush1.msra.mxu0 %v737
  %739 = vmatprep.subr.mxu0 0.0
  %v740 = vand.u32 %v99, 4294901760
  %v741 = vsub.f32 %v99, %v740
  %v742 = vand.u32 %v741, 4294901760
  %v743 = vsub.f32 %v741, %v742
  %v744 = vand.u32 %v743, 4294901760
  %745 = vmatpush1.msra.mxu0 %v744
  %746 = vmatprep.subr.mxu0 0.0
  %747 = vmatpush1.msra.mxu0 0.0
  %748 = vmatprep.subr.mxu0 0.0
  %749 = vmatpush1.msra.mxu0 0.0
  %750 = vmatprep.subr.mxu0 0.0
  %751 = vmatpush1.msra.mxu0 0.0
  %752 = vmatprep.subr.mxu0 0.0
  %753 = vmatpush1.msra.mxu0 0.0
  %754 = vmatprep.subr.mxu0 0.0
  %755 = vmatpush1.msra.mxu0 0.0
  %756 = vmatprep.subr.mxu0 0.0
  %757 = vmatpush1.msra.mxu0 0.0
  %758 = vmatprep.subr.mxu0 0.0
  %759 = vmatpush1.msra.mxu0 0.0
  %760 = vmatprep.subr.mxu0 0.0
  %761 = vmatpush1.msra.mxu0 0.0
  %762 = vmatprep.subr.mxu0 0.0
  %763 = vmatpush1.msra.mxu0 0.0
  %764 = vmatprep.subr.mxu0 0.0
  %765 = vmatpush1.msra.mxu0 0.0
  %766 = vmatprep.subr.mxu0 0.0
  %767 = vmatpush1.msra.mxu0 0.0
  %768 = vmatprep.subr.mxu0 0.0
  %769 = vmatpush1.msra.mxu0 0.0
  %770 = vmatprep.subr.mxu0 0.0
  %771 = vmatpush1.msra.mxu0 0.0
  %772 = vmatprep.subr.mxu0 0.0
  %773 = vmatpush1.msra.mxu0 0.0
  %774 = vmatprep.subr.mxu0 0.0
  %775 = vmatpush1.msra.mxu0 0.0
  %776 = vmatprep.subr.mxu0 0.0
  %777 = vmatpush1.msra.mxu0 0.0
  %778 = vmatprep.subr.mxu0 0.0
  %779 = vmatpush1.msra.mxu0 0.0
  %780 = vmatprep.subr.mxu0 0.0
  %781 = vmatpush1.msra.mxu0 0.0
  %782 = vmatprep.subr.mxu0 0.0
  %783 = vmatpush1.msra.mxu0 0.0
  %784 = vmatprep.subr.mxu0 0.0
  %785 = vmatpush1.msra.mxu0 0.0
  %786 = vmatprep.subr.mxu0 0.0
  %787 = vmatpush1.msra.mxu0 0.0
  %788 = vmatprep.subr.mxu0 0.0
  %789 = vmatpush1.msra.mxu0 0.0
  %790 = vmatprep.subr.mxu0 0.0
  %791 = vmatpush1.msra.mxu0 0.0
  %792 = vmatprep.subr.mxu0 0.0
  %793 = vmatpush1.msra.mxu0 0.0
  %794 = vmatprep.subr.mxu0 0.0
  %795 = vmatpush1.msra.mxu0 0.0
  %796 = vmatprep.subr.mxu0 0.0
  %797 = vmatpush1.msra.mxu0 0.0
  %798 = vmatprep.subr.mxu0 0.0
  %799 = vmatpush1.msra.mxu0 0.0
  %800 = vmatprep.subr.mxu0 0.0
  %801 = vmatpush1.msra.mxu0 0.0
  %802 = vmatprep.mubr.f32.mxu0 0.0
  %v803 = vand.u32 %v637, 4294901760
  %804 = vmatmul.mubr.f32.gmra.mrb[0].mxu0 %v803
  %v805 = vpop.f32.mrb[0].mxu0
  %v806 = vadd.f32 %v715, %v805
  %v807 = vpop.f32.mrb[0].mxu0
  %808 = vdwg.mxu0
  %809 = vmatprep.subr.mxu0 0.0
  %v810 = vand.u32 %v96, 4294901760
  %v811 = vsub.f32 %v96, %v810
  %812 = vmatpush1.msra.mxu0 %v811
  %813 = vmatprep.subr.mxu0 0.0
  %v814 = vand.u32 %v97, 4294901760
  %v815 = vsub.f32 %v97, %v814
  %816 = vmatpush1.msra.mxu0 %v815
  %817 = vmatprep.subr.mxu0 0.0
  %v818 = vand.u32 %v98, 4294901760
  %v819 = vsub.f32 %v98, %v818
  %820 = vmatpush1.msra.mxu0 %v819
  %821 = vmatprep.subr.mxu0 0.0
  %v822 = vand.u32 %v99, 4294901760
  %v823 = vsub.f32 %v99, %v822
  %824 = vmatpush1.msra.mxu0 %v823
  %825 = vmatprep.subr.mxu0 0.0
  %826 = vmatpush1.msra.mxu0 0.0
  %827 = vmatprep.subr.mxu0 0.0
  %828 = vmatpush1.msra.mxu0 0.0
  %829 = vmatprep.subr.mxu0 0.0
  %830 = vmatpush1.msra.mxu0 0.0
  %831 = vmatprep.subr.mxu0 0.0
  %832 = vmatpush1.msra.mxu0 0.0
  %833 = vmatprep.subr.mxu0 0.0
  %834 = vmatpush1.msra.mxu0 0.0
  %835 = vmatprep.subr.mxu0 0.0
  %836 = vmatpush1.msra.mxu0 0.0
  %837 = vmatprep.subr.mxu0 0.0
  %838 = vmatpush1.msra.mxu0 0.0
  %839 = vmatprep.subr.mxu0 0.0
  %840 = vmatpush1.msra.mxu0 0.0
  %841 = vmatprep.subr.mxu0 0.0
  %842 = vmatpush1.msra.mxu0 0.0
  %843 = vmatprep.subr.mxu0 0.0
  %844 = vmatpush1.msra.mxu0 0.0
  %845 = vmatprep.subr.mxu0 0.0
  %846 = vmatpush1.msra.mxu0 0.0
  %847 = vmatprep.subr.mxu0 0.0
  %848 = vmatpush1.msra.mxu0 0.0
  %849 = vmatprep.subr.mxu0 0.0
  %850 = vmatpush1.msra.mxu0 0.0
  %851 = vmatprep.subr.mxu0 0.0
  %852 = vmatpush1.msra.mxu0 0.0
  %853 = vmatprep.subr.mxu0 0.0
  %854 = vmatpush1.msra.mxu0 0.0
  %855 = vmatprep.subr.mxu0 0.0
  %856 = vmatpush1.msra.mxu0 0.0
  %857 = vmatprep.subr.mxu0 0.0
  %858 = vmatpush1.msra.mxu0 0.0
  %859 = vmatprep.subr.mxu0 0.0
  %860 = vmatpush1.msra.mxu0 0.0
  %861 = vmatprep.subr.mxu0 0.0
  %862 = vmatpush1.msra.mxu0 0.0
  %863 = vmatprep.subr.mxu0 0.0
  %864 = vmatpush1.msra.mxu0 0.0
  %865 = vmatprep.subr.mxu0 0.0
  %866 = vmatpush1.msra.mxu0 0.0
  %867 = vmatprep.subr.mxu0 0.0
  %868 = vmatpush1.msra.mxu0 0.0
  %869 = vmatprep.subr.mxu0 0.0
  %870 = vmatpush1.msra.mxu0 0.0
  %871 = vmatprep.subr.mxu0 0.0
  %872 = vmatpush1.msra.mxu0 0.0
  %873 = vmatprep.subr.mxu0 0.0
  %874 = vmatpush1.msra.mxu0 0.0
  %875 = vmatprep.subr.mxu0 0.0
  %876 = vmatpush1.msra.mxu0 0.0
  %877 = vmatprep.subr.mxu0 0.0
  %878 = vmatpush1.msra.mxu0 0.0
  %879 = vmatprep.subr.mxu0 0.0
  %880 = vmatpush1.msra.mxu0 0.0
  %881 = vmatprep.mubr.f32.mxu0 0.0
  %v882 = vand.u32 %v637, 4294901760
  %v883 = vsub.f32 %v637, %v882
  %884 = vmatmul.mubr.f32.gmra.mrb[0].mxu0 %v883
  %v885 = vpop.f32.mrb[0].mxu0
  %v886 = vadd.f32 %v806, %v885
  %v887 = vpop.f32.mrb[0].mxu0
  %888 = vdwg.mxu0
  %889 = vmatprep.subr.mxu0 0.0
  %v890 = vand.u32 %v96, 4294901760
  %891 = vmatpush1.msra.mxu0 %v890
  %892 = vmatprep.subr.mxu0 0.0
  %v893 = vand.u32 %v97, 4294901760
  %894 = vmatpush1.msra.mxu0 %v893
  %895 = vmatprep.subr.mxu0 0.0
  %v896 = vand.u32 %v98, 4294901760
  %897 = vmatpush1.msra.mxu0 %v896
  %898 = vmatprep.subr.mxu0 0.0
  %v899 = vand.u32 %v99, 4294901760
  %900 = vmatpush1.msra.mxu0 %v899
  %901 = vmatprep.subr.mxu0 0.0
  %902 = vmatpush1.msra.mxu0 0.0
  %903 = vmatprep.subr.mxu0 0.0
  %904 = vmatpush1.msra.mxu0 0.0
  %905 = vmatprep.subr.mxu0 0.0
  %906 = vmatpush1.msra.mxu0 0.0
  %907 = vmatprep.subr.mxu0 0.0
  %908 = vmatpush1.msra.mxu0 0.0
  %909 = vmatprep.subr.mxu0 0.0
  %910 = vmatpush1.msra.mxu0 0.0
  %911 = vmatprep.subr.mxu0 0.0
  %912 = vmatpush1.msra.mxu0 0.0
  %913 = vmatprep.subr.mxu0 0.0
  %914 = vmatpush1.msra.mxu0 0.0
  %915 = vmatprep.subr.mxu0 0.0
  %916 = vmatpush1.msra.mxu0 0.0
  %917 = vmatprep.subr.mxu0 0.0
  %918 = vmatpush1.msra.mxu0 0.0
  %919 = vmatprep.subr.mxu0 0.0
  %920 = vmatpush1.msra.mxu0 0.0
  %921 = vmatprep.subr.mxu0 0.0
  %922 = vmatpush1.msra.mxu0 0.0
  %923 = vmatprep.subr.mxu0 0.0
  %924 = vmatpush1.msra.mxu0 0.0
  %925 = vmatprep.subr.mxu0 0.0
  %926 = vmatpush1.msra.mxu0 0.0
  %927 = vmatprep.subr.mxu0 0.0
  %928 = vmatpush1.msra.mxu0 0.0
  %929 = vmatprep.subr.mxu0 0.0
  %930 = vmatpush1.msra.mxu0 0.0
  %931 = vmatprep.subr.mxu0 0.0
  %932 = vmatpush1.msra.mxu0 0.0
  %933 = vmatprep.subr.mxu0 0.0
  %934 = vmatpush1.msra.mxu0 0.0
  %935 = vmatprep.subr.mxu0 0.0
  %936 = vmatpush1.msra.mxu0 0.0
  %937 = vmatprep.subr.mxu0 0.0
  %938 = vmatpush1.msra.mxu0 0.0
  %939 = vmatprep.subr.mxu0 0.0
  %940 = vmatpush1.msra.mxu0 0.0
  %941 = vmatprep.subr.mxu0 0.0
  %942 = vmatpush1.msra.mxu0 0.0
  %943 = vmatprep.subr.mxu0 0.0
  %944 = vmatpush1.msra.mxu0 0.0
  %945 = vmatprep.subr.mxu0 0.0
  %946 = vmatpush1.msra.mxu0 0.0
  %947 = vmatprep.subr.mxu0 0.0
  %948 = vmatpush1.msra.mxu0 0.0
  %949 = vmatprep.subr.mxu0 0.0
  %950 = vmatpush1.msra.mxu0 0.0
  %951 = vmatprep.subr.mxu0 0.0
  %952 = vmatpush1.msra.mxu0 0.0
  %953 = vmatprep.subr.mxu0 0.0
  %954 = vmatpush1.msra.mxu0 0.0
  %955 = vmatprep.subr.mxu0 0.0
  %956 = vmatpush1.msra.mxu0 0.0
  %957 = vmatprep.mubr.f32.mxu0 0.0
  %v958 = vand.u32 %v637, 4294901760
  %v959 = vsub.f32 %v637, %v958
  %v960 = vand.u32 %v959, 4294901760
  %961 = vmatmul.mubr.f32.gmra.mrb[0].mxu0 %v960
  %v962 = vpop.f32.mrb[0].mxu0
  %v963 = vadd.f32 %v886, %v962
  %v964 = vpop.f32.mrb[0].mxu0
  %965 = vdwg.mxu0
  %966 = vmatprep.subr.mxu0 0.0
  %v967 = vand.u32 %v96, 4294901760
  %v968 = vsub.f32 %v96, %v967
  %v969 = vand.u32 %v968, 4294901760
  %970 = vmatpush1.msra.mxu0 %v969
  %971 = vmatprep.subr.mxu0 0.0
  %v972 = vand.u32 %v97, 4294901760
  %v973 = vsub.f32 %v97, %v972
  %v974 = vand.u32 %v973, 4294901760
  %975 = vmatpush1.msra.mxu0 %v974
  %976 = vmatprep.subr.mxu0 0.0
  %v977 = vand.u32 %v98, 4294901760
  %v978 = vsub.f32 %v98, %v977
  %v979 = vand.u32 %v978, 4294901760
  %980 = vmatpush1.msra.mxu0 %v979
  %981 = vmatprep.subr.mxu0 0.0
  %v982 = vand.u32 %v99, 4294901760
  %v983 = vsub.f32 %v99, %v982
  %v984 = vand.u32 %v983, 4294901760
  %985 = vmatpush1.msra.mxu0 %v984
  %986 = vmatprep.subr.mxu0 0.0
  %987 = vmatpush1.msra.mxu0 0.0
  %988 = vmatprep.subr.mxu0 0.0
  %989 = vmatpush1.msra.mxu0 0.0
  %990 = vmatprep.subr.mxu0 0.0
  %991 = vmatpush1.msra.mxu0 0.0
  %992 = vmatprep.subr.mxu0 0.0
  %993 = vmatpush1.msra.mxu0 0.0
  %994 = vmatprep.subr.mxu0 0.0
  %995 = vmatpush1.msra.mxu0 0.0
  %996 = vmatprep.subr.mxu0 0.0
  %997 = vmatpush1.msra.mxu0 0.0
  %998 = vmatprep.subr.mxu0 0.0
  %999 = vmatpush1.msra.mxu0 0.0
  %1000 = vmatprep.subr.mxu0 0.0
  %1001 = vmatpush1.msra.mxu0 0.0
  %1002 = vmatprep.subr.mxu0 0.0
  %1003 = vmatpush1.msra.mxu0 0.0
  %1004 = vmatprep.subr.mxu0 0.0
  %1005 = vmatpush1.msra.mxu0 0.0
  %1006 = vmatprep.subr.mxu0 0.0
  %1007 = vmatpush1.msra.mxu0 0.0
  %1008 = vmatprep.subr.mxu0 0.0
  %1009 = vmatpush1.msra.mxu0 0.0
  %1010 = vmatprep.subr.mxu0 0.0
  %1011 = vmatpush1.msra.mxu0 0.0
  %1012 = vmatprep.subr.mxu0 0.0
  %1013 = vmatpush1.msra.mxu0 0.0
  %1014 = vmatprep.subr.mxu0 0.0
  %1015 = vmatpush1.msra.mxu0 0.0
  %1016 = vmatprep.subr.mxu0 0.0
  %1017 = vmatpush1.msra.mxu0 0.0
  %1018 = vmatprep.subr.mxu0 0.0
  %1019 = vmatpush1.msra.mxu0 0.0
  %1020 = vmatprep.subr.mxu0 0.0
  %1021 = vmatpush1.msra.mxu0 0.0
  %1022 = vmatprep.subr.mxu0 0.0
  %1023 = vmatpush1.msra.mxu0 0.0
  %1024 = vmatprep.subr.mxu0 0.0
  %1025 = vmatpush1.msra.mxu0 0.0
  %1026 = vmatprep.subr.mxu0 0.0
  %1027 = vmatpush1.msra.mxu0 0.0
  %1028 = vmatprep.subr.mxu0 0.0
  %1029 = vmatpush1.msra.mxu0 0.0
  %1030 = vmatprep.subr.mxu0 0.0
  %1031 = vmatpush1.msra.mxu0 0.0
  %1032 = vmatprep.subr.mxu0 0.0
  %1033 = vmatpush1.msra.mxu0 0.0
  %1034 = vmatprep.subr.mxu0 0.0
  %1035 = vmatpush1.msra.mxu0 0.0
  %1036 = vmatprep.subr.mxu0 0.0
  %1037 = vmatpush1.msra.mxu0 0.0
  %1038 = vmatprep.subr.mxu0 0.0
  %1039 = vmatpush1.msra.mxu0 0.0
  %1040 = vmatprep.subr.mxu0 0.0
  %1041 = vmatpush1.msra.mxu0 0.0
  %1042 = vmatprep.mubr.f32.mxu0 0.0
  %v1043 = vand.u32 %v637, 4294901760
  %1044 = vmatmul.mubr.f32.gmra.mrb[0].mxu0 %v1043
  %v1045 = vpop.f32.mrb[0].mxu0
  %v1046 = vadd.f32 %v963, %v1045
  %v1047 = vpop.f32.mrb[0].mxu0
  %1048 = vdwg.mxu0
  %1049 = vmatprep.subr.mxu0 0.0
  %v1050 = vand.u32 %v96, 4294901760
  %1051 = vmatpush1.msra.mxu0 %v1050
  %1052 = vmatprep.subr.mxu0 0.0
  %v1053 = vand.u32 %v97, 4294901760
  %1054 = vmatpush1.msra.mxu0 %v1053
  %1055 = vmatprep.subr.mxu0 0.0
  %v1056 = vand.u32 %v98, 4294901760
  %1057 = vmatpush1.msra.mxu0 %v1056
  %1058 = vmatprep.subr.mxu0 0.0
  %v1059 = vand.u32 %v99, 4294901760
  %1060 = vmatpush1.msra.mxu0 %v1059
  %1061 = vmatprep.subr.mxu0 0.0
  %1062 = vmatpush1.msra.mxu0 0.0
  %1063 = vmatprep.subr.mxu0 0.0
  %1064 = vmatpush1.msra.mxu0 0.0
  %1065 = vmatprep.subr.mxu0 0.0
  %1066 = vmatpush1.msra.mxu0 0.0
  %1067 = vmatprep.subr.mxu0 0.0
  %1068 = vmatpush1.msra.mxu0 0.0
  %1069 = vmatprep.subr.mxu0 0.0
  %1070 = vmatpush1.msra.mxu0 0.0
  %1071 = vmatprep.subr.mxu0 0.0
  %1072 = vmatpush1.msra.mxu0 0.0
  %1073 = vmatprep.subr.mxu0 0.0
  %1074 = vmatpush1.msra.mxu0 0.0
  %1075 = vmatprep.subr.mxu0 0.0
  %1076 = vmatpush1.msra.mxu0 0.0
  %1077 = vmatprep.subr.mxu0 0.0
  %1078 = vmatpush1.msra.mxu0 0.0
  %1079 = vmatprep.subr.mxu0 0.0
  %1080 = vmatpush1.msra.mxu0 0.0
  %1081 = vmatprep.subr.mxu0 0.0
  %1082 = vmatpush1.msra.mxu0 0.0
  %1083 = vmatprep.subr.mxu0 0.0
  %1084 = vmatpush1.msra.mxu0 0.0
  %1085 = vmatprep.subr.mxu0 0.0
  %1086 = vmatpush1.msra.mxu0 0.0
  %1087 = vmatprep.subr.mxu0 0.0
  %1088 = vmatpush1.msra.mxu0 0.0
  %1089 = vmatprep.subr.mxu0 0.0
  %1090 = vmatpush1.msra.mxu0 0.0
  %1091 = vmatprep.subr.mxu0 0.0
  %1092 = vmatpush1.msra.mxu0 0.0
  %1093 = vmatprep.subr.mxu0 0.0
  %1094 = vmatpush1.msra.mxu0 0.0
  %1095 = vmatprep.subr.mxu0 0.0
  %1096 = vmatpush1.msra.mxu0 0.0
  %1097 = vmatprep.subr.mxu0 0.0
  %1098 = vmatpush1.msra.mxu0 0.0
  %1099 = vmatprep.subr.mxu0 0.0
  %1100 = vmatpush1.msra.mxu0 0.0
  %1101 = vmatprep.subr.mxu0 0.0
  %1102 = vmatpush1.msra.mxu0 0.0
  %1103 = vmatprep.subr.mxu0 0.0
  %1104 = vmatpush1.msra.mxu0 0.0
  %1105 = vmatprep.subr.mxu0 0.0
  %1106 = vmatpush1.msra.mxu0 0.0
  %1107 = vmatprep.subr.mxu0 0.0
  %1108 = vmatpush1.msra.mxu0 0.0
  %1109 = vmatprep.subr.mxu0 0.0
  %1110 = vmatpush1.msra.mxu0 0.0
  %1111 = vmatprep.subr.mxu0 0.0
  %1112 = vmatpush1.msra.mxu0 0.0
  %1113 = vmatprep.subr.mxu0 0.0
  %1114 = vmatpush1.msra.mxu0 0.0
  %1115 = vmatprep.subr.mxu0 0.0
  %1116 = vmatpush1.msra.mxu0 0.0
  %1117 = vmatprep.mubr.f32.mxu0 0.0
  %v1118 = vand.u32 %v637, 4294901760
  %1119 = vmatmul.mubr.f32.gmra.mrb[0].mxu0 %v1118
  %v1120 = vpop.f32.mrb[0].mxu0
  %v1121 = vadd.f32 %v1046, %v1120
  %v1122 = vpop.f32.mrb[0].mxu0
  %1123 = vdwg.mxu0
  %v1124 = vadd.f32 %v635, %v1121
  %v1125 = vxor.u32 %v1124, 2147483648
  %v1126 = vmul.f32 %v1125, 1.442695
  %v1127 = vpow.pop %v1126
  %v1128 = vadd.f32 %v1127, 1.0
  %v1129 = vrcp.pop %v1128
  %v1130 = vmul.f32 1.0, %v1129
  %v1131 = vtanh.pop %v1124
  %1133 = vrot.lane.b32.xlu0 %v103, 32
  %v1134 = vpop.permute.xlu0 %1133
  %v1136 = vmul.f32 %v1130, %v1134
  %1138 = vrot.lane.b32.xlu0 %v1131, 64
  %v1139 = vpop.permute.xlu0 %1138
  %v1141 = vmul.f32 %v1130, %v1139
  %1143 = vrot.lane.b32.xlu0 %v1141, 32
  %v1144 = vpop.permute.xlu0 %1143
  %v1146 = vadd.f32 %v1136, %v1144
  %v1147 = vtanh.pop %v1146
  %1149 = vrot.lane.b32.xlu0 %v1147, 64
  %v1150 = vpop.permute.xlu0 %1149
  %v1152 = vmul.f32 %v1130, %v1150
  %s1153 = scalar_lea.vmem %s72, 56
  %v1154 = vld [vmem:[%s1153] sm:$0xff]
  %1156 = vrot.lane.b32.xlu0 %v1154, 96
  %v1157 = vpop.permute.xlu0 %1156
  %v1159 = vadd.f32 %v1152, %v1157
  %1161 = vrot.lane.b32.xlu0 %v1159, 32
  %v1162 = vpop.permute.xlu0 %1161
  %s1164 = scalar_lea.vmem %s80, 56
  %1165 = vst.msk [vmem:[%s1164] sm:$0xff] %vm105, %v1162
  %s1166 = scalar_lea.vmem %s0, 8
  %v1167 = vld [vmem:[%s1166] sm:$0xff]
  %1169 = vrot.lane.b32.xlu0 %v622, 32
  %v1170 = vpop.permute.xlu0 %1169
  %v1171 = vsel %vm105, %v1170, 0
  %1173 = vmatprep.subr.mxu0 0.0
  %v1174 = vand.u32 %v92, 4294901760
  %1175 = vmatpush1.msra.mxu0 %v1174
  %1176 = vmatprep.subr.mxu0 0.0
  %v1177 = vand.u32 %v93, 4294901760
  %1178 = vmatpush1.msra.mxu0 %v1177
  %1179 = vmatprep.subr.mxu0 0.0
  %v1180 = vand.u32 %v94, 4294901760
  %1181 = vmatpush1.msra.mxu0 %v1180
  %1182 = vmatprep.subr.mxu0 0.0
  %v1183 = vand.u32 %v95, 4294901760
  %1184 = vmatpush1.msra.mxu0 %v1183
  %1185 = vmatprep.subr.mxu0 0.0
  %1186 = vmatpush1.msra.mxu0 0.0
  %1187 = vmatprep.subr.mxu0 0.0
  %1188 = vmatpush1.msra.mxu0 0.0
  %1189 = vmatprep.subr.mxu0 0.0
  %1190 = vmatpush1.msra.mxu0 0.0
  %1191 = vmatprep.subr.mxu0 0.0
  %1192 = vmatpush1.msra.mxu0 0.0
  %1193 = vmatprep.subr.mxu0 0.0
  %1194 = vmatpush1.msra.mxu0 0.0
  %1195 = vmatprep.subr.mxu0 0.0
  %1196 = vmatpush1.msra.mxu0 0.0
  %1197 = vmatprep.subr.mxu0 0.0
  %1198 = vmatpush1.msra.mxu0 0.0
  %1199 = vmatprep.subr.mxu0 0.0
  %1200 = vmatpush1.msra.mxu0 0.0
  %1201 = vmatprep.subr.mxu0 0.0
  %1202 = vmatpush1.msra.mxu0 0.0
  %1203 = vmatprep.subr.mxu0 0.0
  %1204 = vmatpush1.msra.mxu0 0.0
  %1205 = vmatprep.subr.mxu0 0.0
  %1206 = vmatpush1.msra.mxu0 0.0
  %1207 = vmatprep.subr.mxu0 0.0
  %1208 = vmatpush1.msra.mxu0 0.0
  %1209 = vmatprep.subr.mxu0 0.0
  %1210 = vmatpush1.msra.mxu0 0.0
  %1211 = vmatprep.subr.mxu0 0.0
  %1212 = vmatpush1.msra.mxu0 0.0
  %1213 = vmatprep.subr.mxu0 0.0
  %1214 = vmatpush1.msra.mxu0 0.0
  %1215 = vmatprep.subr.mxu0 0.0
  %1216 = vmatpush1.msra.mxu0 0.0
  %1217 = vmatprep.subr.mxu0 0.0
  %1218 = vmatpush1.msra.mxu0 0.0
  %1219 = vmatprep.subr.mxu0 0.0
  %1220 = vmatpush1.msra.mxu0 0.0
  %1221 = vmatprep.subr.mxu0 0.0
  %1222 = vmatpush1.msra.mxu0 0.0
  %1223 = vmatprep.subr.mxu0 0.0
  %1224 = vmatpush1.msra.mxu0 0.0
  %1225 = vmatprep.subr.mxu0 0.0
  %1226 = vmatpush1.msra.mxu0 0.0
  %1227 = vmatprep.subr.mxu0 0.0
  %1228 = vmatpush1.msra.mxu0 0.0
  %1229 = vmatprep.subr.mxu0 0.0
  %1230 = vmatpush1.msra.mxu0 0.0
  %1231 = vmatprep.subr.mxu0 0.0
  %1232 = vmatpush1.msra.mxu0 0.0
  %1233 = vmatprep.subr.mxu0 0.0
  %1234 = vmatpush1.msra.mxu0 0.0
  %1235 = vmatprep.subr.mxu0 0.0
  %1236 = vmatpush1.msra.mxu0 0.0
  %1237 = vmatprep.subr.mxu0 0.0
  %1238 = vmatpush1.msra.mxu0 0.0
  %1239 = vmatprep.subr.mxu0 0.0
  %1240 = vmatpush1.msra.mxu0 0.0
  %1241 = vmatprep.mubr.f32.mxu0 0.0
  %v1242 = vand.u32 %v1171, 4294901760
  %v1243 = vsub.f32 %v1171, %v1242
  %v1244 = vand.u32 %v1243, 4294901760
  %v1245 = vsub.f32 %v1243, %v1244
  %v1246 = vand.u32 %v1245, 4294901760
  %1247 = vmatmul.mubr.f32.gmra.mrb[0].mxu0 %v1246
  %v1248 = vpop.f32.mrb[0].mxu0
  %v1249 = vadd.f32 0.0, %v1248
  %v1250 = vpop.f32.mrb[0].mxu0
  %1251 = vdwg.mxu0
  %1252 = vmatprep.subr.mxu0 0.0
  %v1253 = vand.u32 %v92, 4294901760
  %v1254 = vsub.f32 %v92, %v1253
  %v1255 = vand.u32 %v1254, 4294901760
  %v1256 = vsub.f32 %v1254, %v1255
  %v1257 = vand.u32 %v1256, 4294901760
  %1258 = vmatpush1.msra.mxu0 %v1257
  %1259 = vmatprep.subr.mxu0 0.0
  %v1260 = vand.u32 %v93, 4294901760
  %v1261 = vsub.f32 %v93, %v1260
  %v1262 = vand.u32 %v1261, 4294901760
  %v1263 = vsub.f32 %v1261, %v1262
  %v1264 = vand.u32 %v1263, 4294901760
  %1265 = vmatpush1.msra.mxu0 %v1264
  %1266 = vmatprep.subr.mxu0 0.0
  %v1267 = vand.u32 %v94, 4294901760
  %v1268 = vsub.f32 %v94, %v1267
  %v1269 = vand.u32 %v1268, 4294901760
  %v1270 = vsub.f32 %v1268, %v1269
  %v1271 = vand.u32 %v1270, 4294901760
  %1272 = vmatpush1.msra.mxu0 %v1271
  %1273 = vmatprep.subr.mxu0 0.0
  %v1274 = vand.u32 %v95, 4294901760
  %v1275 = vsub.f32 %v95, %v1274
  %v1276 = vand.u32 %v1275, 4294901760
  %v1277 = vsub.f32 %v1275, %v1276
  %v1278 = vand.u32 %v1277, 4294901760
  %1279 = vmatpush1.msra.mxu0 %v1278
  %1280 = vmatprep.subr.mxu0 0.0
  %1281 = vmatpush1.msra.mxu0 0.0
  %1282 = vmatprep.subr.mxu0 0.0
  %1283 = vmatpush1.msra.mxu0 0.0
  %1284 = vmatprep.subr.mxu0 0.0
  %1285 = vmatpush1.msra.mxu0 0.0
  %1286 = vmatprep.subr.mxu0 0.0
  %1287 = vmatpush1.msra.mxu0 0.0
  %1288 = vmatprep.subr.mxu0 0.0
  %1289 = vmatpush1.msra.mxu0 0.0
  %1290 = vmatprep.subr.mxu0 0.0
  %1291 = vmatpush1.msra.mxu0 0.0
  %1292 = vmatprep.subr.mxu0 0.0
  %1293 = vmatpush1.msra.mxu0 0.0
  %1294 = vmatprep.subr.mxu0 0.0
  %1295 = vmatpush1.msra.mxu0 0.0
  %1296 = vmatprep.subr.mxu0 0.0
  %1297 = vmatpush1.msra.mxu0 0.0
  %1298 = vmatprep.subr.mxu0 0.0
  %1299 = vmatpush1.msra.mxu0 0.0
  %1300 = vmatprep.subr.mxu0 0.0
  %1301 = vmatpush1.msra.mxu0 0.0
  %1302 = vmatprep.subr.mxu0 0.0
  %1303 = vmatpush1.msra.mxu0 0.0
  %1304 = vmatprep.subr.mxu0 0.0
  %1305 = vmatpush1.msra.mxu0 0.0
  %1306 = vmatprep.subr.mxu0 0.0
  %1307 = vmatpush1.msra.mxu0 0.0
  %1308 = vmatprep.subr.mxu0 0.0
  %1309 = vmatpush1.msra.mxu0 0.0
  %1310 = vmatprep.subr.mxu0 0.0
  %1311 = vmatpush1.msra.mxu0 0.0
  %1312 = vmatprep.subr.mxu0 0.0
  %1313 = vmatpush1.msra.mxu0 0.0
  %1314 = vmatprep.subr.mxu0 0.0
  %1315 = vmatpush1.msra.mxu0 0.0
  %1316 = vmatprep.subr.mxu0 0.0
  %1317 = vmatpush1.msra.mxu0 0.0
  %1318 = vmatprep.subr.mxu0 0.0
  %1319 = vmatpush1.msra.mxu0 0.0
  %1320 = vmatprep.subr.mxu0 0.0
  %1321 = vmatpush1.msra.mxu0 0.0
  %1322 = vmatprep.subr.mxu0 0.0
  %1323 = vmatpush1.msra.mxu0 0.0
  %1324 = vmatprep.subr.mxu0 0.0
  %1325 = vmatpush1.msra.mxu0 0.0
  %1326 = vmatprep.subr.mxu0 0.0
  %1327 = vmatpush1.msra.mxu0 0.0
  %1328 = vmatprep.subr.mxu0 0.0
  %1329 = vmatpush1.msra.mxu0 0.0
  %1330 = vmatprep.subr.mxu0 0.0
  %1331 = vmatpush1.msra.mxu0 0.0
  %1332 = vmatprep.subr.mxu0 0.0
  %1333 = vmatpush1.msra.mxu0 0.0
  %1334 = vmatprep.subr.mxu0 0.0
  %1335 = vmatpush1.msra.mxu0 0.0
  %1336 = vmatprep.mubr.f32.mxu0 0.0
  %v1337 = vand.u32 %v1171, 4294901760
  %1338 = vmatmul.mubr.f32.gmra.mrb[0].mxu0 %v1337
  %v1339 = vpop.f32.mrb[0].mxu0
  %v1340 = vadd.f32 %v1249, %v1339
  %v1341 = vpop.f32.mrb[0].mxu0
  %1342 = vdwg.mxu0
  %1343 = vmatprep.subr.mxu0 0.0
  %v1344 = vand.u32 %v92, 4294901760
  %v1345 = vsub.f32 %v92, %v1344
  %1346 = vmatpush1.msra.mxu0 %v1345
  %1347 = vmatprep.subr.mxu0 0.0
  %v1348 = vand.u32 %v93, 4294901760
  %v1349 = vsub.f32 %v93, %v1348
  %1350 = vmatpush1.msra.mxu0 %v1349
  %1351 = vmatprep.subr.mxu0 0.0
  %v1352 = vand.u32 %v94, 4294901760
  %v1353 = vsub.f32 %v94, %v1352
  %1354 = vmatpush1.msra.mxu0 %v1353
  %1355 = vmatprep.subr.mxu0 0.0
  %v1356 = vand.u32 %v95, 4294901760
  %v1357 = vsub.f32 %v95, %v1356
  %1358 = vmatpush1.msra.mxu0 %v1357
  %1359 = vmatprep.subr.mxu0 0.0
  %1360 = vmatpush1.msra.mxu0 0.0
  %1361 = vmatprep.subr.mxu0 0.0
  %1362 = vmatpush1.msra.mxu0 0.0
  %1363 = vmatprep.subr.mxu0 0.0
  %1364 = vmatpush1.msra.mxu0 0.0
  %1365 = vmatprep.subr.mxu0 0.0
  %1366 = vmatpush1.msra.mxu0 0.0
  %1367 = vmatprep.subr.mxu0 0.0
  %1368 = vmatpush1.msra.mxu0 0.0
  %1369 = vmatprep.subr.mxu0 0.0
  %1370 = vmatpush1.msra.mxu0 0.0
  %1371 = vmatprep.subr.mxu0 0.0
  %1372 = vmatpush1.msra.mxu0 0.0
  %1373 = vmatprep.subr.mxu0 0.0
  %1374 = vmatpush1.msra.mxu0 0.0
  %1375 = vmatprep.subr.mxu0 0.0
  %1376 = vmatpush1.msra.mxu0 0.0
  %1377 = vmatprep.subr.mxu0 0.0
  %1378 = vmatpush1.msra.mxu0 0.0
  %1379 = vmatprep.subr.mxu0 0.0
  %1380 = vmatpush1.msra.mxu0 0.0
  %1381 = vmatprep.subr.mxu0 0.0
  %1382 = vmatpush1.msra.mxu0 0.0
  %1383 = vmatprep.subr.mxu0 0.0
  %1384 = vmatpush1.msra.mxu0 0.0
  %1385 = vmatprep.subr.mxu0 0.0
  %1386 = vmatpush1.msra.mxu0 0.0
  %1387 = vmatprep.subr.mxu0 0.0
  %1388 = vmatpush1.msra.mxu0 0.0
  %1389 = vmatprep.subr.mxu0 0.0
  %1390 = vmatpush1.msra.mxu0 0.0
  %1391 = vmatprep.subr.mxu0 0.0
  %1392 = vmatpush1.msra.mxu0 0.0
  %1393 = vmatprep.subr.mxu0 0.0
  %1394 = vmatpush1.msra.mxu0 0.0
  %1395 = vmatprep.subr.mxu0 0.0
  %1396 = vmatpush1.msra.mxu0 0.0
  %1397 = vmatprep.subr.mxu0 0.0
  %1398 = vmatpush1.msra.mxu0 0.0
  %1399 = vmatprep.subr.mxu0 0.0
  %1400 = vmatpush1.msra.mxu0 0.0
  %1401 = vmatprep.subr.mxu0 0.0
  %1402 = vmatpush1.msra.mxu0 0.0
  %1403 = vmatprep.subr.mxu0 0.0
  %1404 = vmatpush1.msra.mxu0 0.0
  %1405 = vmatprep.subr.mxu0 0.0
  %1406 = vmatpush1.msra.mxu0 0.0
  %1407 = vmatprep.subr.mxu0 0.0
  %1408 = vmatpush1.msra.mxu0 0.0
  %1409 = vmatprep.subr.mxu0 0.0
  %1410 = vmatpush1.msra.mxu0 0.0
  %1411 = vmatprep.subr.mxu0 0.0
  %1412 = vmatpush1.msra.mxu0 0.0
  %1413 = vmatprep.subr.mxu0 0.0
  %1414 = vmatpush1.msra.mxu0 0.0
  %1415 = vmatprep.mubr.f32.mxu0 0.0
  %v1416 = vand.u32 %v1171, 4294901760
  %v1417 = vsub.f32 %v1171, %v1416
  %1418 = vmatmul.mubr.f32.gmra.mrb[0].mxu0 %v1417
  %v1419 = vpop.f32.mrb[0].mxu0
  %v1420 = vadd.f32 %v1340, %v1419
  %v1421 = vpop.f32.mrb[0].mxu0
  %1422 = vdwg.mxu0
  %1423 = vmatprep.subr.mxu0 0.0
  %v1424 = vand.u32 %v92, 4294901760
  %1425 = vmatpush1.msra.mxu0 %v1424
  %1426 = vmatprep.subr.mxu0 0.0
  %v1427 = vand.u32 %v93, 4294901760
  %1428 = vmatpush1.msra.mxu0 %v1427
  %1429 = vmatprep.subr.mxu0 0.0
  %v1430 = vand.u32 %v94, 4294901760
  %1431 = vmatpush1.msra.mxu0 %v1430
  %1432 = vmatprep.subr.mxu0 0.0
  %v1433 = vand.u32 %v95, 4294901760
  %1434 = vmatpush1.msra.mxu0 %v1433
  %1435 = vmatprep.subr.mxu0 0.0
  %1436 = vmatpush1.msra.mxu0 0.0
  %1437 = vmatprep.subr.mxu0 0.0
  %1438 = vmatpush1.msra.mxu0 0.0
  %1439 = vmatprep.subr.mxu0 0.0
  %1440 = vmatpush1.msra.mxu0 0.0
  %1441 = vmatprep.subr.mxu0 0.0
  %1442 = vmatpush1.msra.mxu0 0.0
  %1443 = vmatprep.subr.mxu0 0.0
  %1444 = vmatpush1.msra.mxu0 0.0
  %1445 = vmatprep.subr.mxu0 0.0
  %1446 = vmatpush1.msra.mxu0 0.0
  %1447 = vmatprep.subr.mxu0 0.0
  %1448 = vmatpush1.msra.mxu0 0.0
  %1449 = vmatprep.subr.mxu0 0.0
  %1450 = vmatpush1.msra.mxu0 0.0
  %1451 = vmatprep.subr.mxu0 0.0
  %1452 = vmatpush1.msra.mxu0 0.0
  %1453 = vmatprep.subr.mxu0 0.0
  %1454 = vmatpush1.msra.mxu0 0.0
  %1455 = vmatprep.subr.mxu0 0.0
  %1456 = vmatpush1.msra.mxu0 0.0
  %1457 = vmatprep.subr.mxu0 0.0
  %1458 = vmatpush1.msra.mxu0 0.0
  %1459 = vmatprep.subr.mxu0 0.0
  %1460 = vmatpush1.msra.mxu0 0.0
  %1461 = vmatprep.subr.mxu0 0.0
  %1462 = vmatpush1.msra.mxu0 0.0
  %1463 = vmatprep.subr.mxu0 0.0
  %1464 = vmatpush1.msra.mxu0 0.0
  %1465 = vmatprep.subr.mxu0 0.0
  %1466 = vmatpush1.msra.mxu0 0.0
  %1467 = vmatprep.subr.mxu0 0.0
  %1468 = vmatpush1.msra.mxu0 0.0
  %1469 = vmatprep.subr.mxu0 0.0
  %1470 = vmatpush1.msra.mxu0 0.0
  %1471 = vmatprep.subr.mxu0 0.0
  %1472 = vmatpush1.msra.mxu0 0.0
  %1473 = vmatprep.subr.mxu0 0.0
  %1474 = vmatpush1.msra.mxu0 0.0
  %1475 = vmatprep.subr.mxu0 0.0
  %1476 = vmatpush1.msra.mxu0 0.0
  %1477 = vmatprep.subr.mxu0 0.0
  %1478 = vmatpush1.msra.mxu0 0.0
  %1479 = vmatprep.subr.mxu0 0.0
  %1480 = vmatpush1.msra.mxu0 0.0
  %1481 = vmatprep.subr.mxu0 0.0
  %1482 = vmatpush1.msra.mxu0 0.0
  %1483 = vmatprep.subr.mxu0 0.0
  %1484 = vmatpush1.msra.mxu0 0.0
  %1485 = vmatprep.subr.mxu0 0.0
  %1486 = vmatpush1.msra.mxu0 0.0
  %1487 = vmatprep.subr.mxu0 0.0
  %1488 = vmatpush1.msra.mxu0 0.0
  %1489 = vmatprep.subr.mxu0 0.0
  %1490 = vmatpush1.msra.mxu0 0.0
  %1491 = vmatprep.mubr.f32.mxu0 0.0
  %v1492 = vand.u32 %v1171, 4294901760
  %v1493 = vsub.f32 %v1171, %v1492
  %v1494 = vand.u32 %v1493, 4294901760
  %1495 = vmatmul.mubr.f32.gmra.mrb[0].mxu0 %v1494
  %v1496 = vpop.f32.mrb[0].mxu0
  %v1497 = vadd.f32 %v1420, %v1496
  %v1498 = vpop.f32.mrb[0].mxu0
  %1499 = vdwg.mxu0
  %1500 = vmatprep.subr.mxu0 0.0
  %v1501 = vand.u32 %v92, 4294901760
  %v1502 = vsub.f32 %v92, %v1501
  %v1503 = vand.u32 %v1502, 4294901760
  %1504 = vmatpush1.msra.mxu0 %v1503
  %1505 = vmatprep.subr.mxu0 0.0
  %v1506 = vand.u32 %v93, 4294901760
  %v1507 = vsub.f32 %v93, %v1506
  %v1508 = vand.u32 %v1507, 4294901760
  %1509 = vmatpush1.msra.mxu0 %v1508
  %1510 = vmatprep.subr.mxu0 0.0
  %v1511 = vand.u32 %v94, 4294901760
  %v1512 = vsub.f32 %v94, %v1511
  %v1513 = vand.u32 %v1512, 4294901760
  %1514 = vmatpush1.msra.mxu0 %v1513
  %1515 = vmatprep.subr.mxu0 0.0
  %v1516 = vand.u32 %v95, 4294901760
  %v1517 = vsub.f32 %v95, %v1516
  %v1518 = vand.u32 %v1517, 4294901760
  %1519 = vmatpush1.msra.mxu0 %v1518
  %1520 = vmatprep.subr.mxu0 0.0
  %1521 = vmatpush1.msra.mxu0 0.0
  %1522 = vmatprep.subr.mxu0 0.0
  %1523 = vmatpush1.msra.mxu0 0.0
  %1524 = vmatprep.subr.mxu0 0.0
  %1525 = vmatpush1.msra.mxu0 0.0
  %1526 = vmatprep.subr.mxu0 0.0
  %1527 = vmatpush1.msra.mxu0 0.0
  %1528 = vmatprep.subr.mxu0 0.0
  %1529 = vmatpush1.msra.mxu0 0.0
  %1530 = vmatprep.subr.mxu0 0.0
  %1531 = vmatpush1.msra.mxu0 0.0
  %1532 = vmatprep.subr.mxu0 0.0
  %1533 = vmatpush1.msra.mxu0 0.0
  %1534 = vmatprep.subr.mxu0 0.0
  %1535 = vmatpush1.msra.mxu0 0.0
  %1536 = vmatprep.subr.mxu0 0.0
  %1537 = vmatpush1.msra.mxu0 0.0
  %1538 = vmatprep.subr.mxu0 0.0
  %1539 = vmatpush1.msra.mxu0 0.0
  %1540 = vmatprep.subr.mxu0 0.0
  %1541 = vmatpush1.msra.mxu0 0.0
  %1542 = vmatprep.subr.mxu0 0.0
  %1543 = vmatpush1.msra.mxu0 0.0
  %1544 = vmatprep.subr.mxu0 0.0
  %1545 = vmatpush1.msra.mxu0 0.0
  %1546 = vmatprep.subr.mxu0 0.0
  %1547 = vmatpush1.msra.mxu0 0.0
  %1548 = vmatprep.subr.mxu0 0.0
  %1549 = vmatpush1.msra.mxu0 0.0
  %1550 = vmatprep.subr.mxu0 0.0
  %1551 = vmatpush1.msra.mxu0 0.0
  %1552 = vmatprep.subr.mxu0 0.0
  %1553 = vmatpush1.msra.mxu0 0.0
  %1554 = vmatprep.subr.mxu0 0.0
  %1555 = vmatpush1.msra.mxu0 0.0
  %1556 = vmatprep.subr.mxu0 0.0
  %1557 = vmatpush1.msra.mxu0 0.0
  %1558 = vmatprep.subr.mxu0 0.0
  %1559 = vmatpush1.msra.mxu0 0.0
  %1560 = vmatprep.subr.mxu0 0.0
  %1561 = vmatpush1.msra.mxu0 0.0
  %1562 = vmatprep.subr.mxu0 0.0
  %1563 = vmatpush1.msra.mxu0 0.0
  %1564 = vmatprep.subr.mxu0 0.0
  %1565 = vmatpush1.msra.mxu0 0.0
  %1566 = vmatprep.subr.mxu0 0.0
  %1567 = vmatpush1.msra.mxu0 0.0
  %1568 = vmatprep.subr.mxu0 0.0
  %1569 = vmatpush1.msra.mxu0 0.0
  %1570 = vmatprep.subr.mxu0 0.0
  %1571 = vmatpush1.msra.mxu0 0.0
  %1572 = vmatprep.subr.mxu0 0.0
  %1573 = vmatpush1.msra.mxu0 0.0
  %1574 = vmatprep.subr.mxu0 0.0
  %1575 = vmatpush1.msra.mxu0 0.0
  %1576 = vmatprep.mubr.f32.mxu0 0.0
  %v1577 = vand.u32 %v1171, 4294901760
  %1578 = vmatmul.mubr.f32.gmra.mrb[0].mxu0 %v1577
  %v1579 = vpop.f32.mrb[0].mxu0
  %v1580 = vadd.f32 %v1497, %v1579
  %v1581 = vpop.f32.mrb[0].mxu0
  %1582 = vdwg.mxu0
  %1583 = vmatprep.subr.mxu0 0.0
  %v1584 = vand.u32 %v92, 4294901760
  %1585 = vmatpush1.msra.mxu0 %v1584
  %1586 = vmatprep.subr.mxu0 0.0
  %v1587 = vand.u32 %v93, 4294901760
  %1588 = vmatpush1.msra.mxu0 %v1587
  %1589 = vmatprep.subr.mxu0 0.0
  %v1590 = vand.u32 %v94, 4294901760
  %1591 = vmatpush1.msra.mxu0 %v1590
  %1592 = vmatprep.subr.mxu0 0.0
  %v1593 = vand.u32 %v95, 4294901760
  %1594 = vmatpush1.msra.mxu0 %v1593
  %1595 = vmatprep.subr.mxu0 0.0
  %1596 = vmatpush1.msra.mxu0 0.0
  %1597 = vmatprep.subr.mxu0 0.0
  %1598 = vmatpush1.msra.mxu0 0.0
  %1599 = vmatprep.subr.mxu0 0.0
  %1600 = vmatpush1.msra.mxu0 0.0
  %1601 = vmatprep.subr.mxu0 0.0
  %1602 = vmatpush1.msra.mxu0 0.0
  %1603 = vmatprep.subr.mxu0 0.0
  %1604 = vmatpush1.msra.mxu0 0.0
  %1605 = vmatprep.subr.mxu0 0.0
  %1606 = vmatpush1.msra.mxu0 0.0
  %1607 = vmatprep.subr.mxu0 0.0
  %1608 = vmatpush1.msra.mxu0 0.0
  %1609 = vmatprep.subr.mxu0 0.0
  %1610 = vmatpush1.msra.mxu0 0.0
  %1611 = vmatprep.subr.mxu0 0.0
  %1612 = vmatpush1.msra.mxu0 0.0
  %1613 = vmatprep.subr.mxu0 0.0
  %1614 = vmatpush1.msra.mxu0 0.0
  %1615 = vmatprep.subr.mxu0 0.0
  %1616 = vmatpush1.msra.mxu0 0.0
  %1617 = vmatprep.subr.mxu0 0.0
  %1618 = vmatpush1.msra.mxu0 0.0
  %1619 = vmatprep.subr.mxu0 0.0
  %1620 = vmatpush1.msra.mxu0 0.0
  %1621 = vmatprep.subr.mxu0 0.0
  %1622 = vmatpush1.msra.mxu0 0.0
  %1623 = vmatprep.subr.mxu0 0.0
  %1624 = vmatpush1.msra.mxu0 0.0
  %1625 = vmatprep.subr.mxu0 0.0
  %1626 = vmatpush1.msra.mxu0 0.0
  %1627 = vmatprep.subr.mxu0 0.0
  %1628 = vmatpush1.msra.mxu0 0.0
  %1629 = vmatprep.subr.mxu0 0.0
  %1630 = vmatpush1.msra.mxu0 0.0
  %1631 = vmatprep.subr.mxu0 0.0
  %1632 = vmatpush1.msra.mxu0 0.0
  %1633 = vmatprep.subr.mxu0 0.0
  %1634 = vmatpush1.msra.mxu0 0.0
  %1635 = vmatprep.subr.mxu0 0.0
  %1636 = vmatpush1.msra.mxu0 0.0
  %1637 = vmatprep.subr.mxu0 0.0
  %1638 = vmatpush1.msra.mxu0 0.0
  %1639 = vmatprep.subr.mxu0 0.0
  %1640 = vmatpush1.msra.mxu0 0.0
  %1641 = vmatprep.subr.mxu0 0.0
  %1642 = vmatpush1.msra.mxu0 0.0
  %1643 = vmatprep.subr.mxu0 0.0
  %1644 = vmatpush1.msra.mxu0 0.0
  %1645 = vmatprep.subr.mxu0 0.0
  %1646 = vmatpush1.msra.mxu0 0.0
  %1647 = vmatprep.subr.mxu0 0.0
  %1648 = vmatpush1.msra.mxu0 0.0
  %1649 = vmatprep.subr.mxu0 0.0
  %1650 = vmatpush1.msra.mxu0 0.0
  %1651 = vmatprep.mubr.f32.mxu0 0.0
  %v1652 = vand.u32 %v1171, 4294901760
  %1653 = vmatmul.mubr.f32.gmra.mrb[0].mxu0 %v1652
  %v1654 = vpop.f32.mrb[0].mxu0
  %v1655 = vadd.f32 %v1580, %v1654
  %v1656 = vpop.f32.mrb[0].mxu0
  %1657 = vdwg.mxu0
  %v1658 = vadd.f32 %v1167, %v1655
  %v1659 = vxor.u32 %v1658, 2147483648
  %v1660 = vmul.f32 %v1659, 1.442695
  %v1661 = vpow.pop %v1660
  %v1662 = vadd.f32 %v1661, 1.0
  %v1663 = vrcp.pop %v1662
  %v1664 = vmul.f32 1.0, %v1663
  %v1665 = vtanh.pop %v1658
  %v1666 = vmul.f32 %v1664, %v616
  %1668 = vrot.lane.b32.xlu0 %v1665, 64
  %v1669 = vpop.permute.xlu0 %1668
  %v1671 = vmul.f32 %v1664, %v1669
  %1673 = vrot.lane.b32.xlu0 %v1671, 32
  %v1674 = vpop.permute.xlu0 %1673
  %v1676 = vadd.f32 %v1666, %v1674
  %v1677 = vtanh.pop %v1676
  %1679 = vrot.lane.b32.xlu0 %v1677, 64
  %v1680 = vpop.permute.xlu0 %1679
  %v1682 = vmul.f32 %v1664, %v1680
  %s1683 = scalar_lea.vmem %s4, 8
  %v1684 = vld [vmem:[%s1683] sm:$0xff]
  %1686 = vrot.lane.b32.xlu0 %v1684, 96
  %v1687 = vpop.permute.xlu0 %1686
  %v1689 = vadd.f32 %v1682, %v1687
  %1691 = vrot.lane.b32.xlu0 %v1689, 32
  %v1692 = vpop.permute.xlu0 %1691
  %s1694 = scalar_lea.vmem %s6, 8
  %1695 = vst.msk [vmem:[%s1694] sm:$0xff] %vm105, %v1692
  %s1696 = scalar_lea.vmem %s64, 48
  %v1697 = vld [vmem:[%s1696] sm:$0xff]
  %1699 = vrot.lane.b32.xlu0 %v1152, 32
  %v1700 = vpop.permute.xlu0 %1699
  %v1701 = vsel %vm105, %v1700, 0
  %1703 = vmatprep.subr.mxu0 0.0
  %v1704 = vand.u32 %v96, 4294901760
  %1705 = vmatpush1.msra.mxu0 %v1704
  %1706 = vmatprep.subr.mxu0 0.0
  %v1707 = vand.u32 %v97, 4294901760
  %1708 = vmatpush1.msra.mxu0 %v1707
  %1709 = vmatprep.subr.mxu0 0.0
  %v1710 = vand.u32 %v98, 4294901760
  %1711 = vmatpush1.msra.mxu0 %v1710
  %1712 = vmatprep.subr.mxu0 0.0
  %v1713 = vand.u32 %v99, 4294901760
  %1714 = vmatpush1.msra.mxu0 %v1713
  %1715 = vmatprep.subr.mxu0 0.0
  %1716 = vmatpush1.msra.mxu0 0.0
  %1717 = vmatprep.subr.mxu0 0.0
  %1718 = vmatpush1.msra.mxu0 0.0
  %1719 = vmatprep.subr.mxu0 0.0
  %1720 = vmatpush1.msra.mxu0 0.0
  %1721 = vmatprep.subr.mxu0 0.0
  %1722 = vmatpush1.msra.mxu0 0.0
  %1723 = vmatprep.subr.mxu0 0.0
  %1724 = vmatpush1.msra.mxu0 0.0
  %1725 = vmatprep.subr.mxu0 0.0
  %1726 = vmatpush1.msra.mxu0 0.0
  %1727 = vmatprep.subr.mxu0 0.0
  %1728 = vmatpush1.msra.mxu0 0.0
  %1729 = vmatprep.subr.mxu0 0.0
  %1730 = vmatpush1.msra.mxu0 0.0
  %1731 = vmatprep.subr.mxu0 0.0
  %1732 = vmatpush1.msra.mxu0 0.0
  %1733 = vmatprep.subr.mxu0 0.0
  %1734 = vmatpush1.msra.mxu0 0.0
  %1735 = vmatprep.subr.mxu0 0.0
  %1736 = vmatpush1.msra.mxu0 0.0
  %1737 = vmatprep.subr.mxu0 0.0
  %1738 = vmatpush1.msra.mxu0 0.0
  %1739 = vmatprep.subr.mxu0 0.0
  %1740 = vmatpush1.msra.mxu0 0.0
  %1741 = vmatprep.subr.mxu0 0.0
  %1742 = vmatpush1.msra.mxu0 0.0
  %1743 = vmatprep.subr.mxu0 0.0
  %1744 = vmatpush1.msra.mxu0 0.0
  %1745 = vmatprep.subr.mxu0 0.0
  %1746 = vmatpush1.msra.mxu0 0.0
  %1747 = vmatprep.subr.mxu0 0.0
  %1748 = vmatpush1.msra.mxu0 0.0
  %1749 = vmatprep.subr.mxu0 0.0
  %1750 = vmatpush1.msra.mxu0 0.0
  %1751 = vmatprep.subr.mxu0 0.0
  %1752 = vmatpush1.msra.mxu0 0.0
  %1753 = vmatprep.subr.mxu0 0.0
  %1754 = vmatpush1.msra.mxu0 0.0
  %1755 = vmatprep.subr.mxu0 0.0
  %1756 = vmatpush1.msra.mxu0 0.0
  %1757 = vmatprep.subr.mxu0 0.0
  %1758 = vmatpush1.msra.mxu0 0.0
  %1759 = vmatprep.subr.mxu0 0.0
  %1760 = vmatpush1.msra.mxu0 0.0
  %1761 = vmatprep.subr.mxu0 0.0
  %1762 = vmatpush1.msra.mxu0 0.0
  %1763 = vmatprep.subr.mxu0 0.0
  %1764 = vmatpush1.msra.mxu0 0.0
  %1765 = vmatprep.subr.mxu0 0.0
  %1766 = vmatpush1.msra.mxu0 0.0
  %1767 = vmatprep.subr.mxu0 0.0
  %1768 = vmatpush1.msra.mxu0 0.0
  %1769 = vmatprep.subr.mxu0 0.0
  %1770 = vmatpush1.msra.mxu0 0.0
  %1771 = vmatprep.mubr.f32.mxu0 0.0
  %v1772 = vand.u32 %v1701, 4294901760
  %v1773 = vsub.f32 %v1701, %v1772
  %v1774 = vand.u32 %v1773, 4294901760
  %v1775 = vsub.f32 %v1773, %v1774
  %v1776 = vand.u32 %v1775, 4294901760
  %1777 = vmatmul.mubr.f32.gmra.mrb[0].mxu0 %v1776
  %v1778 = vpop.f32.mrb[0].mxu0
  %v1779 = vadd.f32 0.0, %v1778
  %v1780 = vpop.f32.mrb[0].mxu0
  %1781 = vdwg.mxu0
  %1782 = vmatprep.subr.mxu0 0.0
  %v1783 = vand.u32 %v96, 4294901760
  %v1784 = vsub.f32 %v96, %v1783
  %v1785 = vand.u32 %v1784, 4294901760
  %v1786 = vsub.f32 %v1784, %v1785
  %v1787 = vand.u32 %v1786, 4294901760
  %1788 = vmatpush1.msra.mxu0 %v1787
  %1789 = vmatprep.subr.mxu0 0.0
  %v1790 = vand.u32 %v97, 4294901760
  %v1791 = vsub.f32 %v97, %v1790
  %v1792 = vand.u32 %v1791, 4294901760
  %v1793 = vsub.f32 %v1791, %v1792
  %v1794 = vand.u32 %v1793, 4294901760
  %1795 = vmatpush1.msra.mxu0 %v1794
  %1796 = vmatprep.subr.mxu0 0.0
  %v1797 = vand.u32 %v98, 4294901760
  %v1798 = vsub.f32 %v98, %v1797
  %v1799 = vand.u32 %v1798, 4294901760
  %v1800 = vsub.f32 %v1798, %v1799
  %v1801 = vand.u32 %v1800, 4294901760
  %1802 = vmatpush1.msra.mxu0 %v1801
  %1803 = vmatprep.subr.mxu0 0.0
  %v1804 = vand.u32 %v99, 4294901760
  %v1805 = vsub.f32 %v99, %v1804
  %v1806 = vand.u32 %v1805, 4294901760
  %v1807 = vsub.f32 %v1805, %v1806
  %v1808 = vand.u32 %v1807, 4294901760
  %1809 = vmatpush1.msra.mxu0 %v1808
  %1810 = vmatprep.subr.mxu0 0.0
  %1811 = vmatpush1.msra.mxu0 0.0
  %1812 = vmatprep.subr.mxu0 0.0
  %1813 = vmatpush1.msra.mxu0 0.0
  %1814 = vmatprep.subr.mxu0 0.0
  %1815 = vmatpush1.msra.mxu0 0.0
  %1816 = vmatprep.subr.mxu0 0.0
  %1817 = vmatpush1.msra.mxu0 0.0
  %1818 = vmatprep.subr.mxu0 0.0
  %1819 = vmatpush1.msra.mxu0 0.0
  %1820 = vmatprep.subr.mxu0 0.0
  %1821 = vmatpush1.msra.mxu0 0.0
  %1822 = vmatprep.subr.mxu0 0.0
  %1823 = vmatpush1.msra.mxu0 0.0
  %1824 = vmatprep.subr.mxu0 0.0
  %1825 = vmatpush1.msra.mxu0 0.0
  %1826 = vmatprep.subr.mxu0 0.0
  %1827 = vmatpush1.msra.mxu0 0.0
  %1828 = vmatprep.subr.mxu0 0.0
  %1829 = vmatpush1.msra.mxu0 0.0
  %1830 = vmatprep.subr.mxu0 0.0
  %1831 = vmatpush1.msra.mxu0 0.0
  %1832 = vmatprep.subr.mxu0 0.0
  %1833 = vmatpush1.msra.mxu0 0.0
  %1834 = vmatprep.subr.mxu0 0.0
  %1835 = vmatpush1.msra.mxu0 0.0
  %1836 = vmatprep.subr.mxu0 0.0
  %1837 = vmatpush1.msra.mxu0 0.0
  %1838 = vmatprep.subr.mxu0 0.0
  %1839 = vmatpush1.msra.mxu0 0.0
  %1840 = vmatprep.subr.mxu0 0.0
  %1841 = vmatpush1.msra.mxu0 0.0
  %1842 = vmatprep.subr.mxu0 0.0
  %1843 = vmatpush1.msra.mxu0 0.0
  %1844 = vmatprep.subr.mxu0 0.0
  %1845 = vmatpush1.msra.mxu0 0.0
  %1846 = vmatprep.subr.mxu0 0.0
  %1847 = vmatpush1.msra.mxu0 0.0
  %1848 = vmatprep.subr.mxu0 0.0
  %1849 = vmatpush1.msra.mxu0 0.0
  %1850 = vmatprep.subr.mxu0 0.0
  %1851 = vmatpush1.msra.mxu0 0.0
  %1852 = vmatprep.subr.mxu0 0.0
  %1853 = vmatpush1.msra.mxu0 0.0
  %1854 = vmatprep.subr.mxu0 0.0
  %1855 = vmatpush1.msra.mxu0 0.0
  %1856 = vmatprep.subr.mxu0 0.0
  %1857 = vmatpush1.msra.mxu0 0.0
  %1858 = vmatprep.subr.mxu0 0.0
  %1859 = vmatpush1.msra.mxu0 0.0
  %1860 = vmatprep.subr.mxu0 0.0
  %1861 = vmatpush1.msra.mxu0 0.0
  %1862 = vmatprep.subr.mxu0 0.0
  %1863 = vmatpush1.msra.mxu0 0.0
  %1864 = vmatprep.subr.mxu0 0.0
  %1865 = vmatpush1.msra.mxu0 0.0
  %1866 = vmatprep.mubr.f32.mxu0 0.0
  %v1867 = vand.u32 %v1701, 4294901760
  %1868 = vmatmul.mubr.f32.gmra.mrb[0].mxu0 %v1867
  %v1869 = vpop.f32.mrb[0].mxu0
  %v1870 = vadd.f32 %v1779, %v1869
  %v1871 = vpop.f32.mrb[0].mxu0
  %1872 = vdwg.mxu0
  %1873 = vmatprep.subr.mxu0 0.0
  %v1874 = vand.u32 %v96, 4294901760
  %v1875 = vsub.f32 %v96, %v1874
  %1876 = vmatpush1.msra.mxu0 %v1875
  %1877 = vmatprep.subr.mxu0 0.0
  %v1878 = vand.u32 %v97, 4294901760
  %v1879 = vsub.f32 %v97, %v1878
  %1880 = vmatpush1.msra.mxu0 %v1879
  %1881 = vmatprep.subr.mxu0 0.0
  %v1882 = vand.u32 %v98, 4294901760
  %v1883 = vsub.f32 %v98, %v1882
  %1884 = vmatpush1.msra.mxu0 %v1883
  %1885 = vmatprep.subr.mxu0 0.0
  %v1886 = vand.u32 %v99, 4294901760
  %v1887 = vsub.f32 %v99, %v1886
  %1888 = vmatpush1.msra.mxu0 %v1887
  %1889 = vmatprep.subr.mxu0 0.0
  %1890 = vmatpush1.msra.mxu0 0.0
  %1891 = vmatprep.subr.mxu0 0.0
  %1892 = vmatpush1.msra.mxu0 0.0
  %1893 = vmatprep.subr.mxu0 0.0
  %1894 = vmatpush1.msra.mxu0 0.0
  %1895 = vmatprep.subr.mxu0 0.0
  %1896 = vmatpush1.msra.mxu0 0.0
  %1897 = vmatprep.subr.mxu0 0.0
  %1898 = vmatpush1.msra.mxu0 0.0
  %1899 = vmatprep.subr.mxu0 0.0
  %1900 = vmatpush1.msra.mxu0 0.0
  %1901 = vmatprep.subr.mxu0 0.0
  %1902 = vmatpush1.msra.mxu0 0.0
  %1903 = vmatprep.subr.mxu0 0.0
  %1904 = vmatpush1.msra.mxu0 0.0
  %1905 = vmatprep.subr.mxu0 0.0
  %1906 = vmatpush1.msra.mxu0 0.0
  %1907 = vmatprep.subr.mxu0 0.0
  %1908 = vmatpush1.msra.mxu0 0.0
  %1909 = vmatprep.subr.mxu0 0.0
  %1910 = vmatpush1.msra.mxu0 0.0
  %1911 = vmatprep.subr.mxu0 0.0
  %1912 = vmatpush1.msra.mxu0 0.0
  %1913 = vmatprep.subr.mxu0 0.0
  %1914 = vmatpush1.msra.mxu0 0.0
  %1915 = vmatprep.subr.mxu0 0.0
  %1916 = vmatpush1.msra.mxu0 0.0
  %1917 = vmatprep.subr.mxu0 0.0
  %1918 = vmatpush1.msra.mxu0 0.0
  %1919 = vmatprep.subr.mxu0 0.0
  %1920 = vmatpush1.msra.mxu0 0.0
  %1921 = vmatprep.subr.mxu0 0.0
  %1922 = vmatpush1.msra.mxu0 0.0
  %1923 = vmatprep.subr.mxu0 0.0
  %1924 = vmatpush1.msra.mxu0 0.0
  %1925 = vmatprep.subr.mxu0 0.0
  %1926 = vmatpush1.msra.mxu0 0.0
  %1927 = vmatprep.subr.mxu0 0.0
  %1928 = vmatpush1.msra.mxu0 0.0
  %1929 = vmatprep.subr.mxu0 0.0
  %1930 = vmatpush1.msra.mxu0 0.0
  %1931 = vmatprep.subr.mxu0 0.0
  %1932 = vmatpush1.msra.mxu0 0.0
  %1933 = vmatprep.subr.mxu0 0.0
  %1934 = vmatpush1.msra.mxu0 0.0
  %1935 = vmatprep.subr.mxu0 0.0
  %1936 = vmatpush1.msra.mxu0 0.0
  %1937 = vmatprep.subr.mxu0 0.0
  %1938 = vmatpush1.msra.mxu0 0.0
  %1939 = vmatprep.subr.mxu0 0.0
  %1940 = vmatpush1.msra.mxu0 0.0
  %1941 = vmatprep.subr.mxu0 0.0
  %1942 = vmatpush1.msra.mxu0 0.0
  %1943 = vmatprep.subr.mxu0 0.0
  %1944 = vmatpush1.msra.mxu0 0.0
  %1945 = vmatprep.mubr.f32.mxu0 0.0
  %v1946 = vand.u32 %v1701, 4294901760
  %v1947 = vsub.f32 %v1701, %v1946
  %1948 = vmatmul.mubr.f32.gmra.mrb[0].mxu0 %v1947
  %v1949 = vpop.f32.mrb[0].mxu0
  %v1950 = vadd.f32 %v1870, %v1949
  %v1951 = vpop.f32.mrb[0].mxu0
  %1952 = vdwg.mxu0
  %1953 = vmatprep.subr.mxu0 0.0
  %v1954 = vand.u32 %v96, 4294901760
  %1955 = vmatpush1.msra.mxu0 %v1954
  %1956 = vmatprep.subr.mxu0 0.0
  %v1957 = vand.u32 %v97, 4294901760
  %1958 = vmatpush1.msra.mxu0 %v1957
  %1959 = vmatprep.subr.mxu0 0.0
  %v1960 = vand.u32 %v98, 4294901760
  %1961 = vmatpush1.msra.mxu0 %v1960
  %1962 = vmatprep.subr.mxu0 0.0
  %v1963 = vand.u32 %v99, 4294901760
  %1964 = vmatpush1.msra.mxu0 %v1963
  %1965 = vmatprep.subr.mxu0 0.0
  %1966 = vmatpush1.msra.mxu0 0.0
  %1967 = vmatprep.subr.mxu0 0.0
  %1968 = vmatpush1.msra.mxu0 0.0
  %1969 = vmatprep.subr.mxu0 0.0
  %1970 = vmatpush1.msra.mxu0 0.0
  %1971 = vmatprep.subr.mxu0 0.0
  %1972 = vmatpush1.msra.mxu0 0.0
  %1973 = vmatprep.subr.mxu0 0.0
  %1974 = vmatpush1.msra.mxu0 0.0
  %1975 = vmatprep.subr.mxu0 0.0
  %1976 = vmatpush1.msra.mxu0 0.0
  %1977 = vmatprep.subr.mxu0 0.0
  %1978 = vmatpush1.msra.mxu0 0.0
  %1979 = vmatprep.subr.mxu0 0.0
  %1980 = vmatpush1.msra.mxu0 0.0
  %1981 = vmatprep.subr.mxu0 0.0
  %1982 = vmatpush1.msra.mxu0 0.0
  %1983 = vmatprep.subr.mxu0 0.0
  %1984 = vmatpush1.msra.mxu0 0.0
  %1985 = vmatprep.subr.mxu0 0.0
  %1986 = vmatpush1.msra.mxu0 0.0
  %1987 = vmatprep.subr.mxu0 0.0
  %1988 = vmatpush1.msra.mxu0 0.0
  %1989 = vmatprep.subr.mxu0 0.0
  %1990 = vmatpush1.msra.mxu0 0.0
  %1991 = vmatprep.subr.mxu0 0.0
  %1992 = vmatpush1.msra.mxu0 0.0
  %1993 = vmatprep.subr.mxu0 0.0
  %1994 = vmatpush1.msra.mxu0 0.0
  %1995 = vmatprep.subr.mxu0 0.0
  %1996 = vmatpush1.msra.mxu0 0.0
  %1997 = vmatprep.subr.mxu0 0.0
  %1998 = vmatpush1.msra.mxu0 0.0
  %1999 = vmatprep.subr.mxu0 0.0
  %2000 = vmatpush1.msra.mxu0 0.0
  %2001 = vmatprep.subr.mxu0 0.0
  %2002 = vmatpush1.msra.mxu0 0.0
  %2003 = vmatprep.subr.mxu0 0.0
  %2004 = vmatpush1.msra.mxu0 0.0
  %2005 = vmatprep.subr.mxu0 0.0
  %2006 = vmatpush1.msra.mxu0 0.0
  %2007 = vmatprep.subr.mxu0 0.0
  %2008 = vmatpush1.msra.mxu0 0.0
  %2009 = vmatprep.subr.mxu0 0.0
  %2010 = vmatpush1.msra.mxu0 0.0
  %2011 = vmatprep.subr.mxu0 0.0
  %2012 = vmatpush1.msra.mxu0 0.0
  %2013 = vmatprep.subr.mxu0 0.0
  %2014 = vmatpush1.msra.mxu0 0.0
  %2015 = vmatprep.subr.mxu0 0.0
  %2016 = vmatpush1.msra.mxu0 0.0
  %2017 = vmatprep.subr.mxu0 0.0
  %2018 = vmatpush1.msra.mxu0 0.0
  %2019 = vmatprep.subr.mxu0 0.0
  %2020 = vmatpush1.msra.mxu0 0.0
  %2021 = vmatprep.mubr.f32.mxu0 0.0
  %v2022 = vand.u32 %v1701, 4294901760
  %v2023 = vsub.f32 %v1701, %v2022
  %v2024 = vand.u32 %v2023, 4294901760
  %2025 = vmatmul.mubr.f32.gmra.mrb[0].mxu0 %v2024
  %v2026 = vpop.f32.mrb[0].mxu0
  %v2027 = vadd.f32 %v1950, %v2026
  %v2028 = vpop.f32.mrb[0].mxu0
  %2029 = vdwg.mxu0
  %2030 = vmatprep.subr.mxu0 0.0
  %v2031 = vand.u32 %v96, 4294901760
  %v2032 = vsub.f32 %v96, %v2031
  %v2033 = vand.u32 %v2032, 4294901760
  %2034 = vmatpush1.msra.mxu0 %v2033
  %2035 = vmatprep.subr.mxu0 0.0
  %v2036 = vand.u32 %v97, 4294901760
  %v2037 = vsub.f32 %v97, %v2036
  %v2038 = vand.u32 %v2037, 4294901760
  %2039 = vmatpush1.msra.mxu0 %v2038
  %2040 = vmatprep.subr.mxu0 0.0
  %v2041 = vand.u32 %v98, 4294901760
  %v2042 = vsub.f32 %v98, %v2041
  %v2043 = vand.u32 %v2042, 4294901760
  %2044 = vmatpush1.msra.mxu0 %v2043
  %2045 = vmatprep.subr.mxu0 0.0
  %v2046 = vand.u32 %v99, 4294901760
  %v2047 = vsub.f32 %v99, %v2046
  %v2048 = vand.u32 %v2047, 4294901760
  %2049 = vmatpush1.msra.mxu0 %v2048
  %2050 = vmatprep.subr.mxu0 0.0
  %2051 = vmatpush1.msra.mxu0 0.0
  %2052 = vmatprep.subr.mxu0 0.0
  %2053 = vmatpush1.msra.mxu0 0.0
  %2054 = vmatprep.subr.mxu0 0.0
  %2055 = vmatpush1.msra.mxu0 0.0
  %2056 = vmatprep.subr.mxu0 0.0
  %2057 = vmatpush1.msra.mxu0 0.0
  %2058 = vmatprep.subr.mxu0 0.0
  %2059 = vmatpush1.msra.mxu0 0.0
  %2060 = vmatprep.subr.mxu0 0.0
  %2061 = vmatpush1.msra.mxu0 0.0
  %2062 = vmatprep.subr.mxu0 0.0
  %2063 = vmatpush1.msra.mxu0 0.0
  %2064 = vmatprep.subr.mxu0 0.0
  %2065 = vmatpush1.msra.mxu0 0.0
  %2066 = vmatprep.subr.mxu0 0.0
  %2067 = vmatpush1.msra.mxu0 0.0
  %2068 = vmatprep.subr.mxu0 0.0
  %2069 = vmatpush1.msra.mxu0 0.0
  %2070 = vmatprep.subr.mxu0 0.0
  %2071 = vmatpush1.msra.mxu0 0.0
  %2072 = vmatprep.subr.mxu0 0.0
  %2073 = vmatpush1.msra.mxu0 0.0
  %2074 = vmatprep.subr.mxu0 0.0
  %2075 = vmatpush1.msra.mxu0 0.0
  %2076 = vmatprep.subr.mxu0 0.0
  %2077 = vmatpush1.msra.mxu0 0.0
  %2078 = vmatprep.subr.mxu0 0.0
  %2079 = vmatpush1.msra.mxu0 0.0
  %2080 = vmatprep.subr.mxu0 0.0
  %2081 = vmatpush1.msra.mxu0 0.0
  %2082 = vmatprep.subr.mxu0 0.0
  %2083 = vmatpush1.msra.mxu0 0.0
  %2084 = vmatprep.subr.mxu0 0.0
  %2085 = vmatpush1.msra.mxu0 0.0
  %2086 = vmatprep.subr.mxu0 0.0
  %2087 = vmatpush1.msra.mxu0 0.0
  %2088 = vmatprep.subr.mxu0 0.0
  %2089 = vmatpush1.msra.mxu0 0.0
  %2090 = vmatprep.subr.mxu0 0.0
  %2091 = vmatpush1.msra.mxu0 0.0
  %2092 = vmatprep.subr.mxu0 0.0
  %2093 = vmatpush1.msra.mxu0 0.0
  %2094 = vmatprep.subr.mxu0 0.0
  %2095 = vmatpush1.msra.mxu0 0.0
  %2096 = vmatprep.subr.mxu0 0.0
  %2097 = vmatpush1.msra.mxu0 0.0
  %2098 = vmatprep.subr.mxu0 0.0
  %2099 = vmatpush1.msra.mxu0 0.0
  %2100 = vmatprep.subr.mxu0 0.0
  %2101 = vmatpush1.msra.mxu0 0.0
  %2102 = vmatprep.subr.mxu0 0.0
  %2103 = vmatpush1.msra.mxu0 0.0
  %2104 = vmatprep.subr.mxu0 0.0
  %2105 = vmatpush1.msra.mxu0 0.0
  %2106 = vmatprep.mubr.f32.mxu0 0.0
  %v2107 = vand.u32 %v1701, 4294901760
  %2108 = vmatmul.mubr.f32.gmra.mrb[0].mxu0 %v2107
  %v2109 = vpop.f32.mrb[0].mxu0
  %v2110 = vadd.f32 %v2027, %v2109
  %v2111 = vpop.f32.mrb[0].mxu0
  %2112 = vdwg.mxu0
  %2113 = vmatprep.subr.mxu0 0.0
  %v2114 = vand.u32 %v96, 4294901760
  %2115 = vmatpush1.msra.mxu0 %v2114
  %2116 = vmatprep.subr.mxu0 0.0
  %v2117 = vand.u32 %v97, 4294901760
  %2118 = vmatpush1.msra.mxu0 %v2117
  %2119 = vmatprep.subr.mxu0 0.0
  %v2120 = vand.u32 %v98, 4294901760
  %2121 = vmatpush1.msra.mxu0 %v2120
  %2122 = vmatprep.subr.mxu0 0.0
  %v2123 = vand.u32 %v99, 4294901760
  %2124 = vmatpush1.msra.mxu0 %v2123
  %2125 = vmatprep.subr.mxu0 0.0
  %2126 = vmatpush1.msra.mxu0 0.0
  %2127 = vmatprep.subr.mxu0 0.0
  %2128 = vmatpush1.msra.mxu0 0.0
  %2129 = vmatprep.subr.mxu0 0.0
  %2130 = vmatpush1.msra.mxu0 0.0
  %2131 = vmatprep.subr.mxu0 0.0
  %2132 = vmatpush1.msra.mxu0 0.0
  %2133 = vmatprep.subr.mxu0 0.0
  %2134 = vmatpush1.msra.mxu0 0.0
  %2135 = vmatprep.subr.mxu0 0.0
  %2136 = vmatpush1.msra.mxu0 0.0
  %2137 = vmatprep.subr.mxu0 0.0
  %2138 = vmatpush1.msra.mxu0 0.0
  %2139 = vmatprep.subr.mxu0 0.0
  %2140 = vmatpush1.msra.mxu0 0.0
  %2141 = vmatprep.subr.mxu0 0.0
  %2142 = vmatpush1.msra.mxu0 0.0
  %2143 = vmatprep.subr.mxu0 0.0
  %2144 = vmatpush1.msra.mxu0 0.0
  %2145 = vmatprep.subr.mxu0 0.0
  %2146 = vmatpush1.msra.mxu0 0.0
  %2147 = vmatprep.subr.mxu0 0.0
  %2148 = vmatpush1.msra.mxu0 0.0
  %2149 = vmatprep.subr.mxu0 0.0
  %2150 = vmatpush1.msra.mxu0 0.0
  %2151 = vmatprep.subr.mxu0 0.0
  %2152 = vmatpush1.msra.mxu0 0.0
  %2153 = vmatprep.subr.mxu0 0.0
  %2154 = vmatpush1.msra.mxu0 0.0
  %2155 = vmatprep.subr.mxu0 0.0
  %2156 = vmatpush1.msra.mxu0 0.0
  %2157 = vmatprep.subr.mxu0 0.0
  %2158 = vmatpush1.msra.mxu0 0.0
  %2159 = vmatprep.subr.mxu0 0.0
  %2160 = vmatpush1.msra.mxu0 0.0
  %2161 = vmatprep.subr.mxu0 0.0
  %2162 = vmatpush1.msra.mxu0 0.0
  %2163 = vmatprep.subr.mxu0 0.0
  %2164 = vmatpush1.msra.mxu0 0.0
  %2165 = vmatprep.subr.mxu0 0.0
  %2166 = vmatpush1.msra.mxu0 0.0
  %2167 = vmatprep.subr.mxu0 0.0
  %2168 = vmatpush1.msra.mxu0 0.0
  %2169 = vmatprep.subr.mxu0 0.0
  %2170 = vmatpush1.msra.mxu0 0.0
  %2171 = vmatprep.subr.mxu0 0.0
  %2172 = vmatpush1.msra.mxu0 0.0
  %2173 = vmatprep.subr.mxu0 0.0
  %2174 = vmatpush1.msra.mxu0 0.0
  %2175 = vmatprep.subr.mxu0 0.0
  %2176 = vmatpush1.msra.mxu0 0.0
  %2177 = vmatprep.subr.mxu0 0.0
  %2178 = vmatpush1.msra.mxu0 0.0
  %2179 = vmatprep.subr.mxu0 0.0
  %2180 = vmatpush1.msra.mxu0 0.0
  %2181 = vmatprep.mubr.f32.mxu0 0.0
  %v2182 = vand.u32 %v1701, 4294901760
  %2183 = vmatmul.mubr.f32.gmra.mrb[0].mxu0 %v2182
  %v2184 = vpop.f32.mrb[0].mxu0
  %v2185 = vadd.f32 %v2110, %v2184
  %v2186 = vpop.f32.mrb[0].mxu0
  %2187 = vdwg.mxu0
  %v2188 = vadd.f32 %v1697, %v2185
  %v2189 = vxor.u32 %v2188, 2147483648
  %v2190 = vmul.f32 %v2189, 1.442695
  %v2191 = vpow.pop %v2190
  %v2192 = vadd.f32 %v2191, 1.0
  %v2193 = vrcp.pop %v2192
  %v2194 = vmul.f32 1.0, %v2193
  %v2195 = vtanh.pop %v2188
  %v2196 = vmul.f32 %v2194, %v1146
  %2198 = vrot.lane.b32.xlu0 %v2195, 64
  %v2199 = vpop.permute.xlu0 %2198
  %v2201 = vmul.f32 %v2194, %v2199
  %2203 = vrot.lane.b32.xlu0 %v2201, 32
  %v2204 = vpop.permute.xlu0 %2203
  %v2206 = vadd.f32 %v2196, %v2204
  %v2207 = vtanh.pop %v2206
  %2209 = vrot.lane.b32.xlu0 %v2207, 64
  %v2210 = vpop.permute.xlu0 %2209
  %v2212 = vmul.f32 %v2194, %v2210
  %s2213 = scalar_lea.vmem %s72, 48
  %v2214 = vld [vmem:[%s2213] sm:$0xff]
  %2216 = vrot.lane.b32.xlu0 %v2214, 96
  %v2217 = vpop.permute.xlu0 %2216
  %v2219 = vadd.f32 %v2212, %v2217
  %2221 = vrot.lane.b32.xlu0 %v2219, 32
  %v2222 = vpop.permute.xlu0 %2221
  %s2224 = scalar_lea.vmem %s80, 48
  %2225 = vst.msk [vmem:[%s2224] sm:$0xff] %vm105, %v2222
  %s2226 = scalar_lea.vmem %s0, 16
  %v2227 = vld [vmem:[%s2226] sm:$0xff]
  %2229 = vrot.lane.b32.xlu0 %v1682, 32
  %v2230 = vpop.permute.xlu0 %2229
  %v2231 = vsel %vm105, %v2230, 0
  %2233 = vmatprep.subr.mxu0 0.0
  %v2234 = vand.u32 %v92, 4294901760
  %2235 = vmatpush1.msra.mxu0 %v2234
  %2236 = vmatprep.subr.mxu0 0.0
  %v2237 = vand.u32 %v93, 4294901760
  %2238 = vmatpush1.msra.mxu0 %v2237
  %2239 = vmatprep.subr.mxu0 0.0
  %v2240 = vand.u32 %v94, 4294901760
  %2241 = vmatpush1.msra.mxu0 %v2240
  %2242 = vmatprep.subr.mxu0 0.0
  %v2243 = vand.u32 %v95, 4294901760
  %2244 = vmatpush1.msra.mxu0 %v2243
  %2245 = vmatprep.subr.mxu0 0.0
  %2246 = vmatpush1.msra.mxu0 0.0
  %2247 = vmatprep.subr.mxu0 0.0
  %2248 = vmatpush1.msra.mxu0 0.0
  %2249 = vmatprep.subr.mxu0 0.0
  %2250 = vmatpush1.msra.mxu0 0.0
  %2251 = vmatprep.subr.mxu0 0.0
  %2252 = vmatpush1.msra.mxu0 0.0
  %2253 = vmatprep.subr.mxu0 0.0
  %2254 = vmatpush1.msra.mxu0 0.0
  %2255 = vmatprep.subr.mxu0 0.0
  %2256 = vmatpush1.msra.mxu0 0.0
  %2257 = vmatprep.subr.mxu0 0.0
  %2258 = vmatpush1.msra.mxu0 0.0
  %2259 = vmatprep.subr.mxu0 0.0
  %2260 = vmatpush1.msra.mxu0 0.0
  %2261 = vmatprep.subr.mxu0 0.0
  %2262 = vmatpush1.msra.mxu0 0.0
  %2263 = vmatprep.subr.mxu0 0.0
  %2264 = vmatpush1.msra.mxu0 0.0
  %2265 = vmatprep.subr.mxu0 0.0
  %2266 = vmatpush1.msra.mxu0 0.0
  %2267 = vmatprep.subr.mxu0 0.0
  %2268 = vmatpush1.msra.mxu0 0.0
  %2269 = vmatprep.subr.mxu0 0.0
  %2270 = vmatpush1.msra.mxu0 0.0
  %2271 = vmatprep.subr.mxu0 0.0
  %2272 = vmatpush1.msra.mxu0 0.0
  %2273 = vmatprep.subr.mxu0 0.0
  %2274 = vmatpush1.msra.mxu0 0.0
  %2275 = vmatprep.subr.mxu0 0.0
  %2276 = vmatpush1.msra.mxu0 0.0
  %2277 = vmatprep.subr.mxu0 0.0
  %2278 = vmatpush1.msra.mxu0 0.0
  %2279 = vmatprep.subr.mxu0 0.0
  %2280 = vmatpush1.msra.mxu0 0.0
  %2281 = vmatprep.subr.mxu0 0.0
  %2282 = vmatpush1.msra.mxu0 0.0
  %2283 = vmatprep.subr.mxu0 0.0
  %2284 = vmatpush1.msra.mxu0 0.0
  %2285 = vmatprep.subr.mxu0 0.0
  %2286 = vmatpush1.msra.mxu0 0.0
  %2287 = vmatprep.subr.mxu0 0.0
  %2288 = vmatpush1.msra.mxu0 0.0
  %2289 = vmatprep.subr.mxu0 0.0
  %2290 = vmatpush1.msra.mxu0 0.0
  %2291 = vmatprep.subr.mxu0 0.0
  %2292 = vmatpush1.msra.mxu0 0.0
  %2293 = vmatprep.subr.mxu0 0.0
  %2294 = vmatpush1.msra.mxu0 0.0
  %2295 = vmatprep.subr.mxu0 0.0
  %2296 = vmatpush1.msra.mxu0 0.0
  %2297 = vmatprep.subr.mxu0 0.0
  %2298 = vmatpush1.msra.mxu0 0.0
  %2299 = vmatprep.subr.mxu0 0.0
  %2300 = vmatpush1.msra.mxu0 0.0
  %2301 = vmatprep.mubr.f32.mxu0 0.0
  %v2302 = vand.u32 %v2231, 4294901760
  %v2303 = vsub.f32 %v2231, %v2302
  %v2304 = vand.u32 %v2303, 4294901760
  %v2305 = vsub.f32 %v2303, %v2304
  %v2306 = vand.u32 %v2305, 4294901760
  %2307 = vmatmul.mubr.f32.gmra.mrb[0].mxu0 %v2306
  %v2308 = vpop.f32.mrb[0].mxu0
  %v2309 = vadd.f32 0.0, %v2308
  %v2310 = vpop.f32.mrb[0].mxu0
  %2311 = vdwg.mxu0
  %2312 = vmatprep.subr.mxu0 0.0
  %v2313 = vand.u32 %v92, 4294901760
  %v2314 = vsub.f32 %v92, %v2313
  %v2315 = vand.u32 %v2314, 4294901760
  %v2316 = vsub.f32 %v2314, %v2315
  %v2317 = vand.u32 %v2316, 4294901760
  %2318 = vmatpush1.msra.mxu0 %v2317
  %2319 = vmatprep.subr.mxu0 0.0
  %v2320 = vand.u32 %v93, 4294901760
  %v2321 = vsub.f32 %v93, %v2320
  %v2322 = vand.u32 %v2321, 4294901760
  %v2323 = vsub.f32 %v2321, %v2322
  %v2324 = vand.u32 %v2323, 4294901760
  %2325 = vmatpush1.msra.mxu0 %v2324
  %2326 = vmatprep.subr.mxu0 0.0
  %v2327 = vand.u32 %v94, 4294901760
  %v2328 = vsub.f32 %v94, %v2327
  %v2329 = vand.u32 %v2328, 4294901760
  %v2330 = vsub.f32 %v2328, %v2329
  %v2331 = vand.u32 %v2330, 4294901760
  %2332 = vmatpush1.msra.mxu0 %v2331
  %2333 = vmatprep.subr.mxu0 0.0
  %v2334 = vand.u32 %v95, 4294901760
  %v2335 = vsub.f32 %v95, %v2334
  %v2336 = vand.u32 %v2335, 4294901760
  %v2337 = vsub.f32 %v2335, %v2336
  %v2338 = vand.u32 %v2337, 4294901760
  %2339 = vmatpush1.msra.mxu0 %v2338
  %2340 = vmatprep.subr.mxu0 0.0
  %2341 = vmatpush1.msra.mxu0 0.0
  %2342 = vmatprep.subr.mxu0 0.0
  %2343 = vmatpush1.msra.mxu0 0.0
  %2344 = vmatprep.subr.mxu0 0.0
  %2345 = vmatpush1.msra.mxu0 0.0
  %2346 = vmatprep.subr.mxu0 0.0
  %2347 = vmatpush1.msra.mxu0 0.0
  %2348 = vmatprep.subr.mxu0 0.0
  %2349 = vmatpush1.msra.mxu0 0.0
  %2350 = vmatprep.subr.mxu0 0.0
  %2351 = vmatpush1.msra.mxu0 0.0
  %2352 = vmatprep.subr.mxu0 0.0
  %2353 = vmatpush1.msra.mxu0 0.0
  %2354 = vmatprep.subr.mxu0 0.0
  %2355 = vmatpush1.msra.mxu0 0.0
  %2356 = vmatprep.subr.mxu0 0.0
  %2357 = vmatpush1.msra.mxu0 0.0
  %2358 = vmatprep.subr.mxu0 0.0
  %2359 = vmatpush1.msra.mxu0 0.0
  %2360 = vmatprep.subr.mxu0 0.0
  %2361 = vmatpush1.msra.mxu0 0.0
  %2362 = vmatprep.subr.mxu0 0.0
  %2363 = vmatpush1.msra.mxu0 0.0
  %2364 = vmatprep.subr.mxu0 0.0
  %2365 = vmatpush1.msra.mxu0 0.0
  %2366 = vmatprep.subr.mxu0 0.0
  %2367 = vmatpush1.msra.mxu0 0.0
  %2368 = vmatprep.subr.mxu0 0.0
  %2369 = vmatpush1.msra.mxu0 0.0
  %2370 = vmatprep.subr.mxu0 0.0
  %2371 = vmatpush1.msra.mxu0 0.0
  %2372 = vmatprep.subr.mxu0 0.0
  %2373 = vmatpush1.msra.mxu0 0.0
  %2374 = vmatprep.subr.mxu0 0.0
  %2375 = vmatpush1.msra.mxu0 0.0
  %2376 = vmatprep.subr.mxu0 0.0
  %2377 = vmatpush1.msra.mxu0 0.0
  %2378 = vmatprep.subr.mxu0 0.0
  %2379 = vmatpush1.msra.mxu0 0.0
  %2380 = vmatprep.subr.mxu0 0.0
  %2381 = vmatpush1.msra.mxu0 0.0
  %2382 = vmatprep.subr.mxu0 0.0
  %2383 = vmatpush1.msra.mxu0 0.0
  %2384 = vmatprep.subr.mxu0 0.0
  %2385 = vmatpush1.msra.mxu0 0.0
  %2386 = vmatprep.subr.mxu0 0.0
  %2387 = vmatpush1.msra.mxu0 0.0
  %2388 = vmatprep.subr.mxu0 0.0
  %2389 = vmatpush1.msra.mxu0 0.0
  %2390 = vmatprep.subr.mxu0 0.0
  %2391 = vmatpush1.msra.mxu0 0.0
  %2392 = vmatprep.subr.mxu0 0.0
  %2393 = vmatpush1.msra.mxu0 0.0
  %2394 = vmatprep.subr.mxu0 0.0
  %2395 = vmatpush1.msra.mxu0 0.0
  %2396 = vmatprep.mubr.f32.mxu0 0.0
  %v2397 = vand.u32 %v2231, 4294901760
  %2398 = vmatmul.mubr.f32.gmra.mrb[0].mxu0 %v2397
  %v2399 = vpop.f32.mrb[0].mxu0
  %v2400 = vadd.f32 %v2309, %v2399
  %v2401 = vpop.f32.mrb[0].mxu0
  %2402 = vdwg.mxu0
  %2403 = vmatprep.subr.mxu0 0.0
  %v2404 = vand.u32 %v92, 4294901760
  %v2405 = vsub.f32 %v92, %v2404
  %2406 = vmatpush1.msra.mxu0 %v2405
  %2407 = vmatprep.subr.mxu0 0.0
  %v2408 = vand.u32 %v93, 4294901760
  %v2409 = vsub.f32 %v93, %v2408
  %2410 = vmatpush1.msra.mxu0 %v2409
  %2411 = vmatprep.subr.mxu0 0.0
  %v2412 = vand.u32 %v94, 4294901760
  %v2413 = vsub.f32 %v94, %v2412
  %2414 = vmatpush1.msra.mxu0 %v2413
  %2415 = vmatprep.subr.mxu0 0.0
  %v2416 = vand.u32 %v95, 4294901760
  %v2417 = vsub.f32 %v95, %v2416
  %2418 = vmatpush1.msra.mxu0 %v2417
  %2419 = vmatprep.subr.mxu0 0.0
  %2420 = vmatpush1.msra.mxu0 0.0
  %2421 = vmatprep.subr.mxu0 0.0
  %2422 = vmatpush1.msra.mxu0 0.0
  %2423 = vmatprep.subr.mxu0 0.0
  %2424 = vmatpush1.msra.mxu0 0.0
  %2425 = vmatprep.subr.mxu0 0.0
  %2426 = vmatpush1.msra.mxu0 0.0
  %2427 = vmatprep.subr.mxu0 0.0
  %2428 = vmatpush1.msra.mxu0 0.0
  %2429 = vmatprep.subr.mxu0 0.0
  %2430 = vmatpush1.msra.mxu0 0.0
  %2431 = vmatprep.subr.mxu0 0.0
  %2432 = vmatpush1.msra.mxu0 0.0
  %2433 = vmatprep.subr.mxu0 0.0
  %2434 = vmatpush1.msra.mxu0 0.0
  %2435 = vmatprep.subr.mxu0 0.0
  %2436 = vmatpush1.msra.mxu0 0.0
  %2437 = vmatprep.subr.mxu0 0.0
  %2438 = vmatpush1.msra.mxu0 0.0
  %2439 = vmatprep.subr.mxu0 0.0
  %2440 = vmatpush1.msra.mxu0 0.0
  %2441 = vmatprep.subr.mxu0 0.0
  %2442 = vmatpush1.msra.mxu0 0.0
  %2443 = vmatprep.subr.mxu0 0.0
  %2444 = vmatpush1.msra.mxu0 0.0
  %2445 = vmatprep.subr.mxu0 0.0
  %2446 = vmatpush1.msra.mxu0 0.0
  %2447 = vmatprep.subr.mxu0 0.0
  %2448 = vmatpush1.msra.mxu0 0.0
  %2449 = vmatprep.subr.mxu0 0.0
  %2450 = vmatpush1.msra.mxu0 0.0
  %2451 = vmatprep.subr.mxu0 0.0
  %2452 = vmatpush1.msra.mxu0 0.0
  %2453 = vmatprep.subr.mxu0 0.0
  %2454 = vmatpush1.msra.mxu0 0.0
  %2455 = vmatprep.subr.mxu0 0.0
  %2456 = vmatpush1.msra.mxu0 0.0
  %2457 = vmatprep.subr.mxu0 0.0
  %2458 = vmatpush1.msra.mxu0 0.0
  %2459 = vmatprep.subr.mxu0 0.0
  %2460 = vmatpush1.msra.mxu0 0.0
  %2461 = vmatprep.subr.mxu0 0.0
  %2462 = vmatpush1.msra.mxu0 0.0
  %2463 = vmatprep.subr.mxu0 0.0
  %2464 = vmatpush1.msra.mxu0 0.0
  %2465 = vmatprep.subr.mxu0 0.0
  %2466 = vmatpush1.msra.mxu0 0.0
  %2467 = vmatprep.subr.mxu0 0.0
  %2468 = vmatpush1.msra.mxu0 0.0
  %2469 = vmatprep.subr.mxu0 0.0
  %2470 = vmatpush1.msra.mxu0 0.0
  %2471 = vmatprep.subr.mxu0 0.0
  %2472 = vmatpush1.msra.mxu0 0.0
  %2473 = vmatprep.subr.mxu0 0.0
  %2474 = vmatpush1.msra.mxu0 0.0
  %2475 = vmatprep.mubr.f32.mxu0 0.0
  %v2476 = vand.u32 %v2231, 4294901760
  %v2477 = vsub.f32 %v2231, %v2476
  %2478 = vmatmul.mubr.f32.gmra.mrb[0].mxu0 %v2477
  %v2479 = vpop.f32.mrb[0].mxu0
  %v2480 = vadd.f32 %v2400, %v2479
  %v2481 = vpop.f32.mrb[0].mxu0
  %2482 = vdwg.mxu0
  %2483 = vmatprep.subr.mxu0 0.0
  %v2484 = vand.u32 %v92, 4294901760
  %2485 = vmatpush1.msra.mxu0 %v2484
  %2486 = vmatprep.subr.mxu0 0.0
  %v2487 = vand.u32 %v93, 4294901760
  %2488 = vmatpush1.msra.mxu0 %v2487
  %2489 = vmatprep.subr.mxu0 0.0
  %v2490 = vand.u32 %v94, 4294901760
  %2491 = vmatpush1.msra.mxu0 %v2490
  %2492 = vmatprep.subr.mxu0 0.0
  %v2493 = vand.u32 %v95, 4294901760
  %2494 = vmatpush1.msra.mxu0 %v2493
  %2495 = vmatprep.subr.mxu0 0.0
  %2496 = vmatpush1.msra.mxu0 0.0
  %2497 = vmatprep.subr.mxu0 0.0
  %2498 = vmatpush1.msra.mxu0 0.0
  %2499 = vmatprep.subr.mxu0 0.0
  %2500 = vmatpush1.msra.mxu0 0.0
  %2501 = vmatprep.subr.mxu0 0.0
  %2502 = vmatpush1.msra.mxu0 0.0
  %2503 = vmatprep.subr.mxu0 0.0
  %2504 = vmatpush1.msra.mxu0 0.0
  %2505 = vmatprep.subr.mxu0 0.0
  %2506 = vmatpush1.msra.mxu0 0.0
  %2507 = vmatprep.subr.mxu0 0.0
  %2508 = vmatpush1.msra.mxu0 0.0
  %2509 = vmatprep.subr.mxu0 0.0
  %2510 = vmatpush1.msra.mxu0 0.0
  %2511 = vmatprep.subr.mxu0 0.0
  %2512 = vmatpush1.msra.mxu0 0.0
  %2513 = vmatprep.subr.mxu0 0.0
  %2514 = vmatpush1.msra.mxu0 0.0
  %2515 = vmatprep.subr.mxu0 0.0
  %2516 = vmatpush1.msra.mxu0 0.0
  %2517 = vmatprep.subr.mxu0 0.0
  %2518 = vmatpush1.msra.mxu0 0.0
  %2519 = vmatprep.subr.mxu0 0.0
  %2520 = vmatpush1.msra.mxu0 0.0
  %2521 = vmatprep.subr.mxu0 0.0
  %2522 = vmatpush1.msra.mxu0 0.0
  %2523 = vmatprep.subr.mxu0 0.0
  %2524 = vmatpush1.msra.mxu0 0.0
  %2525 = vmatprep.subr.mxu0 0.0
  %2526 = vmatpush1.msra.mxu0 0.0
  %2527 = vmatprep.subr.mxu0 0.0
  %2528 = vmatpush1.msra.mxu0 0.0
  %2529 = vmatprep.subr.mxu0 0.0
  %2530 = vmatpush1.msra.mxu0 0.0
  %2531 = vmatprep.subr.mxu0 0.0
  %2532 = vmatpush1.msra.mxu0 0.0
  %2533 = vmatprep.subr.mxu0 0.0
  %2534 = vmatpush1.msra.mxu0 0.0
  %2535 = vmatprep.subr.mxu0 0.0
  %2536 = vmatpush1.msra.mxu0 0.0
  %2537 = vmatprep.subr.mxu0 0.0
  %2538 = vmatpush1.msra.mxu0 0.0
  %2539 = vmatprep.subr.mxu0 0.0
  %2540 = vmatpush1.msra.mxu0 0.0
  %2541 = vmatprep.subr.mxu0 0.0
  %2542 = vmatpush1.msra.mxu0 0.0
  %2543 = vmatprep.subr.mxu0 0.0
  %2544 = vmatpush1.msra.mxu0 0.0
  %2545 = vmatprep.subr.mxu0 0.0
  %2546 = vmatpush1.msra.mxu0 0.0
  %2547 = vmatprep.subr.mxu0 0.0
  %2548 = vmatpush1.msra.mxu0 0.0
  %2549 = vmatprep.subr.mxu0 0.0
  %2550 = vmatpush1.msra.mxu0 0.0
  %2551 = vmatprep.mubr.f32.mxu0 0.0
  %v2552 = vand.u32 %v2231, 4294901760
  %v2553 = vsub.f32 %v2231, %v2552
  %v2554 = vand.u32 %v2553, 4294901760
  %2555 = vmatmul.mubr.f32.gmra.mrb[0].mxu0 %v2554
  %v2556 = vpop.f32.mrb[0].mxu0
  %v2557 = vadd.f32 %v2480, %v2556
  %v2558 = vpop.f32.mrb[0].mxu0
  %2559 = vdwg.mxu0
  %2560 = vmatprep.subr.mxu0 0.0
  %v2561 = vand.u32 %v92, 4294901760
  %v2562 = vsub.f32 %v92, %v2561
  %v2563 = vand.u32 %v2562, 4294901760
  %2564 = vmatpush1.msra.mxu0 %v2563
  %2565 = vmatprep.subr.mxu0 0.0
  %v2566 = vand.u32 %v93, 4294901760
  %v2567 = vsub.f32 %v93, %v2566
  %v2568 = vand.u32 %v2567, 4294901760
  %2569 = vmatpush1.msra.mxu0 %v2568
  %2570 = vmatprep.subr.mxu0 0.0
  %v2571 = vand.u32 %v94, 4294901760
  %v2572 = vsub.f32 %v94, %v2571
  %v2573 = vand.u32 %v2572, 4294901760
  %2574 = vmatpush1.msra.mxu0 %v2573
  %2575 = vmatprep.subr.mxu0 0.0
  %v2576 = vand.u32 %v95, 4294901760
  %v2577 = vsub.f32 %v95, %v2576
  %v2578 = vand.u32 %v2577, 4294901760
  %2579 = vmatpush1.msra.mxu0 %v2578
  %2580 = vmatprep.subr.mxu0 0.0
  %2581 = vmatpush1.msra.mxu0 0.0
  %2582 = vmatprep.subr.mxu0 0.0
  %2583 = vmatpush1.msra.mxu0 0.0
  %2584 = vmatprep.subr.mxu0 0.0
  %2585 = vmatpush1.msra.mxu0 0.0
  %2586 = vmatprep.subr.mxu0 0.0
  %2587 = vmatpush1.msra.mxu0 0.0
  %2588 = vmatprep.subr.mxu0 0.0
  %2589 = vmatpush1.msra.mxu0 0.0
  %2590 = vmatprep.subr.mxu0 0.0
  %2591 = vmatpush1.msra.mxu0 0.0
  %2592 = vmatprep.subr.mxu0 0.0
  %2593 = vmatpush1.msra.mxu0 0.0
  %2594 = vmatprep.subr.mxu0 0.0
  %2595 = vmatpush1.msra.mxu0 0.0
  %2596 = vmatprep.subr.mxu0 0.0
  %2597 = vmatpush1.msra.mxu0 0.0
  %2598 = vmatprep.subr.mxu0 0.0
  %2599 = vmatpush1.msra.mxu0 0.0
  %2600 = vmatprep.subr.mxu0 0.0
  %2601 = vmatpush1.msra.mxu0 0.0
  %2602 = vmatprep.subr.mxu0 0.0
  %2603 = vmatpush1.msra.mxu0 0.0
  %2604 = vmatprep.subr.mxu0 0.0
  %2605 = vmatpush1.msra.mxu0 0.0
  %2606 = vmatprep.subr.mxu0 0.0
  %2607 = vmatpush1.msra.mxu0 0.0
  %2608 = vmatprep.subr.mxu0 0.0
  %2609 = vmatpush1.msra.mxu0 0.0
  %2610 = vmatprep.subr.mxu0 0.0
  %2611 = vmatpush1.msra.mxu0 0.0
  %2612 = vmatprep.subr.mxu0 0.0
  %2613 = vmatpush1.msra.mxu0 0.0
  %2614 = vmatprep.subr.mxu0 0.0
  %2615 = vmatpush1.msra.mxu0 0.0
  %2616 = vmatprep.subr.mxu0 0.0
  %2617 = vmatpush1.msra.mxu0 0.0
  %2618 = vmatprep.subr.mxu0 0.0
  %2619 = vmatpush1.msra.mxu0 0.0
  %2620 = vmatprep.subr.mxu0 0.0
  %2621 = vmatpush1.msra.mxu0 0.0
  %2622 = vmatprep.subr.mxu0 0.0
  %2623 = vmatpush1.msra.mxu0 0.0
  %2624 = vmatprep.subr.mxu0 0.0
  %2625 = vmatpush1.msra.mxu0 0.0
  %2626 = vmatprep.subr.mxu0 0.0
  %2627 = vmatpush1.msra.mxu0 0.0
  %2628 = vmatprep.subr.mxu0 0.0
  %2629 = vmatpush1.msra.mxu0 0.0
  %2630 = vmatprep.subr.mxu0 0.0
  %2631 = vmatpush1.msra.mxu0 0.0
  %2632 = vmatprep.subr.mxu0 0.0
  %2633 = vmatpush1.msra.mxu0 0.0
  %2634 = vmatprep.subr.mxu0 0.0
  %2635 = vmatpush1.msra.mxu0 0.0
  %2636 = vmatprep.mubr.f32.mxu0 0.0
  %v2637 = vand.u32 %v2231, 4294901760
  %2638 = vmatmul.mubr.f32.gmra.mrb[0].mxu0 %v2637
  %v2639 = vpop.f32.mrb[0].mxu0
  %v2640 = vadd.f32 %v2557, %v2639
  %v2641 = vpop.f32.mrb[0].mxu0
  %2642 = vdwg.mxu0
  %2643 = vmatprep.subr.mxu0 0.0
  %v2644 = vand.u32 %v92, 4294901760
  %2645 = vmatpush1.msra.mxu0 %v2644
  %2646 = vmatprep.subr.mxu0 0.0
  %v2647 = vand.u32 %v93, 4294901760
  %2648 = vmatpush1.msra.mxu0 %v2647
  %2649 = vmatprep.subr.mxu0 0.0
  %v2650 = vand.u32 %v94, 4294901760
  %2651 = vmatpush1.msra.mxu0 %v2650
  %2652 = vmatprep.subr.mxu0 0.0
  %v2653 = vand.u32 %v95, 4294901760
  %2654 = vmatpush1.msra.mxu0 %v2653
  %2655 = vmatprep.subr.mxu0 0.0
  %2656 = vmatpush1.msra.mxu0 0.0
  %2657 = vmatprep.subr.mxu0 0.0
  %2658 = vmatpush1.msra.mxu0 0.0
  %2659 = vmatprep.subr.mxu0 0.0
  %2660 = vmatpush1.msra.mxu0 0.0
  %2661 = vmatprep.subr.mxu0 0.0
  %2662 = vmatpush1.msra.mxu0 0.0
  %2663 = vmatprep.subr.mxu0 0.0
  %2664 = vmatpush1.msra.mxu0 0.0
  %2665 = vmatprep.subr.mxu0 0.0
  %2666 = vmatpush1.msra.mxu0 0.0
  %2667 = vmatprep.subr.mxu0 0.0
  %2668 = vmatpush1.msra.mxu0 0.0
  %2669 = vmatprep.subr.mxu0 0.0
  %2670 = vmatpush1.msra.mxu0 0.0
  %2671 = vmatprep.subr.mxu0 0.0
  %2672 = vmatpush1.msra.mxu0 0.0
  %2673 = vmatprep.subr.mxu0 0.0
  %2674 = vmatpush1.msra.mxu0 0.0
  %2675 = vmatprep.subr.mxu0 0.0
  %2676 = vmatpush1.msra.mxu0 0.0
  %2677 = vmatprep.subr.mxu0 0.0
  %2678 = vmatpush1.msra.mxu0 0.0
  %2679 = vmatprep.subr.mxu0 0.0
  %2680 = vmatpush1.msra.mxu0 0.0
  %2681 = vmatprep.subr.mxu0 0.0
  %2682 = vmatpush1.msra.mxu0 0.0
  %2683 = vmatprep.subr.mxu0 0.0
  %2684 = vmatpush1.msra.mxu0 0.0
  %2685 = vmatprep.subr.mxu0 0.0
  %2686 = vmatpush1.msra.mxu0 0.0
  %2687 = vmatprep.subr.mxu0 0.0
  %2688 = vmatpush1.msra.mxu0 0.0
  %2689 = vmatprep.subr.mxu0 0.0
  %2690 = vmatpush1.msra.mxu0 0.0
  %2691 = vmatprep.subr.mxu0 0.0
  %2692 = vmatpush1.msra.mxu0 0.0
  %2693 = vmatprep.subr.mxu0 0.0
  %2694 = vmatpush1.msra.mxu0 0.0
  %2695 = vmatprep.subr.mxu0 0.0
  %2696 = vmatpush1.msra.mxu0 0.0
  %2697 = vmatprep.subr.mxu0 0.0
  %2698 = vmatpush1.msra.mxu0 0.0
  %2699 = vmatprep.subr.mxu0 0.0
  %2700 = vmatpush1.msra.mxu0 0.0
  %2701 = vmatprep.subr.mxu0 0.0
  %2702 = vmatpush1.msra.mxu0 0.0
  %2703 = vmatprep.subr.mxu0 0.0
  %2704 = vmatpush1.msra.mxu0 0.0
  %2705 = vmatprep.subr.mxu0 0.0
  %2706 = vmatpush1.msra.mxu0 0.0
  %2707 = vmatprep.subr.mxu0 0.0
  %2708 = vmatpush1.msra.mxu0 0.0
  %2709 = vmatprep.subr.mxu0 0.0
  %2710 = vmatpush1.msra.mxu0 0.0
  %2711 = vmatprep.mubr.f32.mxu0 0.0
  %v2712 = vand.u32 %v2231, 4294901760
  %2713 = vmatmul.mubr.f32.gmra.mrb[0].mxu0 %v2712
  %v2714 = vpop.f32.mrb[0].mxu0
  %v2715 = vadd.f32 %v2640, %v2714
  %v2716 = vpop.f32.mrb[0].mxu0
  %2717 = vdwg.mxu0
  %v2718 = vadd.f32 %v2227, %v2715
  %v2719 = vxor.u32 %v2718, 2147483648
  %v2720 = vmul.f32 %v2719, 1.442695
  %v2721 = vpow.pop %v2720
  %v2722 = vadd.f32 %v2721, 1.0
  %v2723 = vrcp.pop %v2722
  %v2724 = vmul.f32 1.0, %v2723
  %v2725 = vtanh.pop %v2718
  %v2726 = vmul.f32 %v2724, %v1676
  %2728 = vrot.lane.b32.xlu0 %v2725, 64
  %v2729 = vpop.permute.xlu0 %2728
  %v2731 = vmul.f32 %v2724, %v2729
  %2733 = vrot.lane.b32.xlu0 %v2731, 32
  %v2734 = vpop.permute.xlu0 %2733
  %v2736 = vadd.f32 %v2726, %v2734
  %v2737 = vtanh.pop %v2736
  %2739 = vrot.lane.b32.xlu0 %v2737, 64
  %v2740 = vpop.permute.xlu0 %2739
  %v2742 = vmul.f32 %v2724, %v2740
  %s2743 = scalar_lea.vmem %s4, 16
  %v2744 = vld [vmem:[%s2743] sm:$0xff]
  %2746 = vrot.lane.b32.xlu0 %v2744, 96
  %v2747 = vpop.permute.xlu0 %2746
  %v2749 = vadd.f32 %v2742, %v2747
  %2751 = vrot.lane.b32.xlu0 %v2749, 32
  %v2752 = vpop.permute.xlu0 %2751
  %s2754 = scalar_lea.vmem %s6, 16
  %2755 = vst.msk [vmem:[%s2754] sm:$0xff] %vm105, %v2752
  %s2756 = scalar_lea.vmem %s64, 40
  %v2757 = vld [vmem:[%s2756] sm:$0xff]
  %2759 = vrot.lane.b32.xlu0 %v2212, 32
  %v2760 = vpop.permute.xlu0 %2759
  %v2761 = vsel %vm105, %v2760, 0
  %2763 = vmatprep.subr.mxu0 0.0
  %v2764 = vand.u32 %v96, 4294901760
  %2765 = vmatpush1.msra.mxu0 %v2764
  %2766 = vmatprep.subr.mxu0 0.0
  %v2767 = vand.u32 %v97, 4294901760
  %2768 = vmatpush1.msra.mxu0 %v2767
  %2769 = vmatprep.subr.mxu0 0.0
  %v2770 = vand.u32 %v98, 4294901760
  %2771 = vmatpush1.msra.mxu0 %v2770
  %2772 = vmatprep.subr.mxu0 0.0
  %v2773 = vand.u32 %v99, 4294901760
  %2774 = vmatpush1.msra.mxu0 %v2773
  %2775 = vmatprep.subr.mxu0 0.0
  %2776 = vmatpush1.msra.mxu0 0.0
  %2777 = vmatprep.subr.mxu0 0.0
  %2778 = vmatpush1.msra.mxu0 0.0
  %2779 = vmatprep.subr.mxu0 0.0
  %2780 = vmatpush1.msra.mxu0 0.0
  %2781 = vmatprep.subr.mxu0 0.0
  %2782 = vmatpush1.msra.mxu0 0.0
  %2783 = vmatprep.subr.mxu0 0.0
  %2784 = vmatpush1.msra.mxu0 0.0
  %2785 = vmatprep.subr.mxu0 0.0
  %2786 = vmatpush1.msra.mxu0 0.0
  %2787 = vmatprep.subr.mxu0 0.0
  %2788 = vmatpush1.msra.mxu0 0.0
  %2789 = vmatprep.subr.mxu0 0.0
  %2790 = vmatpush1.msra.mxu0 0.0
  %2791 = vmatprep.subr.mxu0 0.0
  %2792 = vmatpush1.msra.mxu0 0.0
  %2793 = vmatprep.subr.mxu0 0.0
  %2794 = vmatpush1.msra.mxu0 0.0
  %2795 = vmatprep.subr.mxu0 0.0
  %2796 = vmatpush1.msra.mxu0 0.0
  %2797 = vmatprep.subr.mxu0 0.0
  %2798 = vmatpush1.msra.mxu0 0.0
  %2799 = vmatprep.subr.mxu0 0.0
  %2800 = vmatpush1.msra.mxu0 0.0
  %2801 = vmatprep.subr.mxu0 0.0
  %2802 = vmatpush1.msra.mxu0 0.0
  %2803 = vmatprep.subr.mxu0 0.0
  %2804 = vmatpush1.msra.mxu0 0.0
  %2805 = vmatprep.subr.mxu0 0.0
  %2806 = vmatpush1.msra.mxu0 0.0
  %2807 = vmatprep.subr.mxu0 0.0
  %2808 = vmatpush1.msra.mxu0 0.0
  %2809 = vmatprep.subr.mxu0 0.0
  %2810 = vmatpush1.msra.mxu0 0.0
  %2811 = vmatprep.subr.mxu0 0.0
  %2812 = vmatpush1.msra.mxu0 0.0
  %2813 = vmatprep.subr.mxu0 0.0
  %2814 = vmatpush1.msra.mxu0 0.0
  %2815 = vmatprep.subr.mxu0 0.0
  %2816 = vmatpush1.msra.mxu0 0.0
  %2817 = vmatprep.subr.mxu0 0.0
  %2818 = vmatpush1.msra.mxu0 0.0
  %2819 = vmatprep.subr.mxu0 0.0
  %2820 = vmatpush1.msra.mxu0 0.0
  %2821 = vmatprep.subr.mxu0 0.0
  %2822 = vmatpush1.msra.mxu0 0.0
  %2823 = vmatprep.subr.mxu0 0.0
  %2824 = vmatpush1.msra.mxu0 0.0
  %2825 = vmatprep.subr.mxu0 0.0
  %2826 = vmatpush1.msra.mxu0 0.0
  %2827 = vmatprep.subr.mxu0 0.0
  %2828 = vmatpush1.msra.mxu0 0.0
  %2829 = vmatprep.subr.mxu0 0.0
  %2830 = vmatpush1.msra.mxu0 0.0
  %2831 = vmatprep.mubr.f32.mxu0 0.0
  %v2832 = vand.u32 %v2761, 4294901760
  %v2833 = vsub.f32 %v2761, %v2832
  %v2834 = vand.u32 %v2833, 4294901760
  %v2835 = vsub.f32 %v2833, %v2834
  %v2836 = vand.u32 %v2835, 4294901760
  %2837 = vmatmul.mubr.f32.gmra.mrb[0].mxu0 %v2836
  %v2838 = vpop.f32.mrb[0].mxu0
  %v2839 = vadd.f32 0.0, %v2838
  %v2840 = vpop.f32.mrb[0].mxu0
  %2841 = vdwg.mxu0
  %2842 = vmatprep.subr.mxu0 0.0
  %v2843 = vand.u32 %v96, 4294901760
  %v2844 = vsub.f32 %v96, %v2843
  %v2845 = vand.u32 %v2844, 4294901760
  %v2846 = vsub.f32 %v2844, %v2845
  %v2847 = vand.u32 %v2846, 4294901760
  %2848 = vmatpush1.msra.mxu0 %v2847
  %2849 = vmatprep.subr.mxu0 0.0
  %v2850 = vand.u32 %v97, 4294901760
  %v2851 = vsub.f32 %v97, %v2850
  %v2852 = vand.u32 %v2851, 4294901760
  %v2853 = vsub.f32 %v2851, %v2852
  %v2854 = vand.u32 %v2853, 4294901760
  %2855 = vmatpush1.msra.mxu0 %v2854
  %2856 = vmatprep.subr.mxu0 0.0
  %v2857 = vand.u32 %v98, 4294901760
  %v2858 = vsub.f32 %v98, %v2857
  %v2859 = vand.u32 %v2858, 4294901760
  %v2860 = vsub.f32 %v2858, %v2859
  %v2861 = vand.u32 %v2860, 4294901760
  %2862 = vmatpush1.msra.mxu0 %v2861
  %2863 = vmatprep.subr.mxu0 0.0
  %v2864 = vand.u32 %v99, 4294901760
  %v2865 = vsub.f32 %v99, %v2864
  %v2866 = vand.u32 %v2865, 4294901760
  %v2867 = vsub.f32 %v2865, %v2866
  %v2868 = vand.u32 %v2867, 4294901760
  %2869 = vmatpush1.msra.mxu0 %v2868
  %2870 = vmatprep.subr.mxu0 0.0
  %2871 = vmatpush1.msra.mxu0 0.0
  %2872 = vmatprep.subr.mxu0 0.0
  %2873 = vmatpush1.msra.mxu0 0.0
  %2874 = vmatprep.subr.mxu0 0.0
  %2875 = vmatpush1.msra.mxu0 0.0
  %2876 = vmatprep.subr.mxu0 0.0
  %2877 = vmatpush1.msra.mxu0 0.0
  %2878 = vmatprep.subr.mxu0 0.0
  %2879 = vmatpush1.msra.mxu0 0.0
  %2880 = vmatprep.subr.mxu0 0.0
  %2881 = vmatpush1.msra.mxu0 0.0
  %2882 = vmatprep.subr.mxu0 0.0
  %2883 = vmatpush1.msra.mxu0 0.0
  %2884 = vmatprep.subr.mxu0 0.0
  %2885 = vmatpush1.msra.mxu0 0.0
  %2886 = vmatprep.subr.mxu0 0.0
  %2887 = vmatpush1.msra.mxu0 0.0
  %2888 = vmatprep.subr.mxu0 0.0
  %2889 = vmatpush1.msra.mxu0 0.0
  %2890 = vmatprep.subr.mxu0 0.0
  %2891 = vmatpush1.msra.mxu0 0.0
  %2892 = vmatprep.subr.mxu0 0.0
  %2893 = vmatpush1.msra.mxu0 0.0
  %2894 = vmatprep.subr.mxu0 0.0
  %2895 = vmatpush1.msra.mxu0 0.0
  %2896 = vmatprep.subr.mxu0 0.0
  %2897 = vmatpush1.msra.mxu0 0.0
  %2898 = vmatprep.subr.mxu0 0.0
  %2899 = vmatpush1.msra.mxu0 0.0
  %2900 = vmatprep.subr.mxu0 0.0
  %2901 = vmatpush1.msra.mxu0 0.0
  %2902 = vmatprep.subr.mxu0 0.0
  %2903 = vmatpush1.msra.mxu0 0.0
  %2904 = vmatprep.subr.mxu0 0.0
  %2905 = vmatpush1.msra.mxu0 0.0
  %2906 = vmatprep.subr.mxu0 0.0
  %2907 = vmatpush1.msra.mxu0 0.0
  %2908 = vmatprep.subr.mxu0 0.0
  %2909 = vmatpush1.msra.mxu0 0.0
  %2910 = vmatprep.subr.mxu0 0.0
  %2911 = vmatpush1.msra.mxu0 0.0
  %2912 = vmatprep.subr.mxu0 0.0
  %2913 = vmatpush1.msra.mxu0 0.0
  %2914 = vmatprep.subr.mxu0 0.0
  %2915 = vmatpush1.msra.mxu0 0.0
  %2916 = vmatprep.subr.mxu0 0.0
  %2917 = vmatpush1.msra.mxu0 0.0
  %2918 = vmatprep.subr.mxu0 0.0
  %2919 = vmatpush1.msra.mxu0 0.0
  %2920 = vmatprep.subr.mxu0 0.0
  %2921 = vmatpush1.msra.mxu0 0.0
  %2922 = vmatprep.subr.mxu0 0.0
  %2923 = vmatpush1.msra.mxu0 0.0
  %2924 = vmatprep.subr.mxu0 0.0
  %2925 = vmatpush1.msra.mxu0 0.0
  %2926 = vmatprep.mubr.f32.mxu0 0.0
  %v2927 = vand.u32 %v2761, 4294901760
  %2928 = vmatmul.mubr.f32.gmra.mrb[0].mxu0 %v2927
  %v2929 = vpop.f32.mrb[0].mxu0
  %v2930 = vadd.f32 %v2839, %v2929
  %v2931 = vpop.f32.mrb[0].mxu0
  %2932 = vdwg.mxu0
  %2933 = vmatprep.subr.mxu0 0.0
  %v2934 = vand.u32 %v96, 4294901760
  %v2935 = vsub.f32 %v96, %v2934
  %2936 = vmatpush1.msra.mxu0 %v2935
  %2937 = vmatprep.subr.mxu0 0.0
  %v2938 = vand.u32 %v97, 4294901760
  %v2939 = vsub.f32 %v97, %v2938
  %2940 = vmatpush1.msra.mxu0 %v2939
  %2941 = vmatprep.subr.mxu0 0.0
  %v2942 = vand.u32 %v98, 4294901760
  %v2943 = vsub.f32 %v98, %v2942
  %2944 = vmatpush1.msra.mxu0 %v2943
  %2945 = vmatprep.subr.mxu0 0.0
  %v2946 = vand.u32 %v99, 4294901760
  %v2947 = vsub.f32 %v99, %v2946
  %2948 = vmatpush1.msra.mxu0 %v2947
  %2949 = vmatprep.subr.mxu0 0.0
  %2950 = vmatpush1.msra.mxu0 0.0
  %2951 = vmatprep.subr.mxu0 0.0
  %2952 = vmatpush1.msra.mxu0 0.0
  %2953 = vmatprep.subr.mxu0 0.0
  %2954 = vmatpush1.msra.mxu0 0.0
  %2955 = vmatprep.subr.mxu0 0.0
  %2956 = vmatpush1.msra.mxu0 0.0
  %2957 = vmatprep.subr.mxu0 0.0
  %2958 = vmatpush1.msra.mxu0 0.0
  %2959 = vmatprep.subr.mxu0 0.0
  %2960 = vmatpush1.msra.mxu0 0.0
  %2961 = vmatprep.subr.mxu0 0.0
  %2962 = vmatpush1.msra.mxu0 0.0
  %2963 = vmatprep.subr.mxu0 0.0
  %2964 = vmatpush1.msra.mxu0 0.0
  %2965 = vmatprep.subr.mxu0 0.0
  %2966 = vmatpush1.msra.mxu0 0.0
  %2967 = vmatprep.subr.mxu0 0.0
  %2968 = vmatpush1.msra.mxu0 0.0
  %2969 = vmatprep.subr.mxu0 0.0
  %2970 = vmatpush1.msra.mxu0 0.0
  %2971 = vmatprep.subr.mxu0 0.0
  %2972 = vmatpush1.msra.mxu0 0.0
  %2973 = vmatprep.subr.mxu0 0.0
  %2974 = vmatpush1.msra.mxu0 0.0
  %2975 = vmatprep.subr.mxu0 0.0
  %2976 = vmatpush1.msra.mxu0 0.0
  %2977 = vmatprep.subr.mxu0 0.0
  %2978 = vmatpush1.msra.mxu0 0.0
  %2979 = vmatprep.subr.mxu0 0.0
  %2980 = vmatpush1.msra.mxu0 0.0
  %2981 = vmatprep.subr.mxu0 0.0
  %2982 = vmatpush1.msra.mxu0 0.0
  %2983 = vmatprep.subr.mxu0 0.0
  %2984 = vmatpush1.msra.mxu0 0.0
  %2985 = vmatprep.subr.mxu0 0.0
  %2986 = vmatpush1.msra.mxu0 0.0
  %2987 = vmatprep.subr.mxu0 0.0
  %2988 = vmatpush1.msra.mxu0 0.0
  %2989 = vmatprep.subr.mxu0 0.0
  %2990 = vmatpush1.msra.mxu0 0.0
  %2991 = vmatprep.subr.mxu0 0.0
  %2992 = vmatpush1.msra.mxu0 0.0
  %2993 = vmatprep.subr.mxu0 0.0
  %2994 = vmatpush1.msra.mxu0 0.0
  %2995 = vmatprep.subr.mxu0 0.0
  %2996 = vmatpush1.msra.mxu0 0.0
  %2997 = vmatprep.subr.mxu0 0.0
  %2998 = vmatpush1.msra.mxu0 0.0
  %2999 = vmatprep.subr.mxu0 0.0
  %3000 = vmatpush1.msra.mxu0 0.0
  %3001 = vmatprep.subr.mxu0 0.0
  %3002 = vmatpush1.msra.mxu0 0.0
  %3003 = vmatprep.subr.mxu0 0.0
  %3004 = vmatpush1.msra.mxu0 0.0
  %3005 = vmatprep.mubr.f32.mxu0 0.0
  %v3006 = vand.u32 %v2761, 4294901760
  %v3007 = vsub.f32 %v2761, %v3006
  %3008 = vmatmul.mubr.f32.gmra.mrb[0].mxu0 %v3007
  %v3009 = vpop.f32.mrb[0].mxu0
  %v3010 = vadd.f32 %v2930, %v3009
  %v3011 = vpop.f32.mrb[0].mxu0
  %3012 = vdwg.mxu0
  %3013 = vmatprep.subr.mxu0 0.0
  %v3014 = vand.u32 %v96, 4294901760
  %3015 = vmatpush1.msra.mxu0 %v3014
  %3016 = vmatprep.subr.mxu0 0.0
  %v3017 = vand.u32 %v97, 4294901760
  %3018 = vmatpush1.msra.mxu0 %v3017
  %3019 = vmatprep.subr.mxu0 0.0
  %v3020 = vand.u32 %v98, 4294901760
  %3021 = vmatpush1.msra.mxu0 %v3020
  %3022 = vmatprep.subr.mxu0 0.0
  %v3023 = vand.u32 %v99, 4294901760
  %3024 = vmatpush1.msra.mxu0 %v3023
  %3025 = vmatprep.subr.mxu0 0.0
  %3026 = vmatpush1.msra.mxu0 0.0
  %3027 = vmatprep.subr.mxu0 0.0
  %3028 = vmatpush1.msra.mxu0 0.0
  %3029 = vmatprep.subr.mxu0 0.0
  %3030 = vmatpush1.msra.mxu0 0.0
  %3031 = vmatprep.subr.mxu0 0.0
  %3032 = vmatpush1.msra.mxu0 0.0
  %3033 = vmatprep.subr.mxu0 0.0
  %3034 = vmatpush1.msra.mxu0 0.0
  %3035 = vmatprep.subr.mxu0 0.0
  %3036 = vmatpush1.msra.mxu0 0.0
  %3037 = vmatprep.subr.mxu0 0.0
  %3038 = vmatpush1.msra.mxu0 0.0
  %3039 = vmatprep.subr.mxu0 0.0
  %3040 = vmatpush1.msra.mxu0 0.0
  %3041 = vmatprep.subr.mxu0 0.0
  %3042 = vmatpush1.msra.mxu0 0.0
  %3043 = vmatprep.subr.mxu0 0.0
  %3044 = vmatpush1.msra.mxu0 0.0
  %3045 = vmatprep.subr.mxu0 0.0
  %3046 = vmatpush1.msra.mxu0 0.0
  %3047 = vmatprep.subr.mxu0 0.0
  %3048 = vmatpush1.msra.mxu0 0.0
  %3049 = vmatprep.subr.mxu0 0.0
  %3050 = vmatpush1.msra.mxu0 0.0
  %3051 = vmatprep.subr.mxu0 0.0
  %3052 = vmatpush1.msra.mxu0 0.0
  %3053 = vmatprep.subr.mxu0 0.0
  %3054 = vmatpush1.msra.mxu0 0.0
  %3055 = vmatprep.subr.mxu0 0.0
  %3056 = vmatpush1.msra.mxu0 0.0
  %3057 = vmatprep.subr.mxu0 0.0
  %3058 = vmatpush1.msra.mxu0 0.0
  %3059 = vmatprep.subr.mxu0 0.0
  %3060 = vmatpush1.msra.mxu0 0.0
  %3061 = vmatprep.subr.mxu0 0.0
  %3062 = vmatpush1.msra.mxu0 0.0
  %3063 = vmatprep.subr.mxu0 0.0
  %3064 = vmatpush1.msra.mxu0 0.0
  %3065 = vmatprep.subr.mxu0 0.0
  %3066 = vmatpush1.msra.mxu0 0.0
  %3067 = vmatprep.subr.mxu0 0.0
  %3068 = vmatpush1.msra.mxu0 0.0
  %3069 = vmatprep.subr.mxu0 0.0
  %3070 = vmatpush1.msra.mxu0 0.0
  %3071 = vmatprep.subr.mxu0 0.0
  %3072 = vmatpush1.msra.mxu0 0.0
  %3073 = vmatprep.subr.mxu0 0.0
  %3074 = vmatpush1.msra.mxu0 0.0
  %3075 = vmatprep.subr.mxu0 0.0
  %3076 = vmatpush1.msra.mxu0 0.0
  %3077 = vmatprep.subr.mxu0 0.0
  %3078 = vmatpush1.msra.mxu0 0.0
  %3079 = vmatprep.subr.mxu0 0.0
  %3080 = vmatpush1.msra.mxu0 0.0
  %3081 = vmatprep.mubr.f32.mxu0 0.0
  %v3082 = vand.u32 %v2761, 4294901760
  %v3083 = vsub.f32 %v2761, %v3082
  %v3084 = vand.u32 %v3083, 4294901760
  %3085 = vmatmul.mubr.f32.gmra.mrb[0].mxu0 %v3084
  %v3086 = vpop.f32.mrb[0].mxu0
  %v3087 = vadd.f32 %v3010, %v3086
  %v3088 = vpop.f32.mrb[0].mxu0
  %3089 = vdwg.mxu0
  %3090 = vmatprep.subr.mxu0 0.0
  %v3091 = vand.u32 %v96, 4294901760
  %v3092 = vsub.f32 %v96, %v3091
  %v3093 = vand.u32 %v3092, 4294901760
  %3094 = vmatpush1.msra.mxu0 %v3093
  %3095 = vmatprep.subr.mxu0 0.0
  %v3096 = vand.u32 %v97, 4294901760
  %v3097 = vsub.f32 %v97, %v3096
  %v3098 = vand.u32 %v3097, 4294901760
  %3099 = vmatpush1.msra.mxu0 %v3098
  %3100 = vmatprep.subr.mxu0 0.0
  %v3101 = vand.u32 %v98, 4294901760
  %v3102 = vsub.f32 %v98, %v3101
  %v3103 = vand.u32 %v3102, 4294901760
  %3104 = vmatpush1.msra.mxu0 %v3103
  %3105 = vmatprep.subr.mxu0 0.0
  %v3106 = vand.u32 %v99, 4294901760
  %v3107 = vsub.f32 %v99, %v3106
  %v3108 = vand.u32 %v3107, 4294901760
  %3109 = vmatpush1.msra.mxu0 %v3108
  %3110 = vmatprep.subr.mxu0 0.0
  %3111 = vmatpush1.msra.mxu0 0.0
  %3112 = vmatprep.subr.mxu0 0.0
  %3113 = vmatpush1.msra.mxu0 0.0
  %3114 = vmatprep.subr.mxu0 0.0
  %3115 = vmatpush1.msra.mxu0 0.0
  %3116 = vmatprep.subr.mxu0 0.0
  %3117 = vmatpush1.msra.mxu0 0.0
  %3118 = vmatprep.subr.mxu0 0.0
  %3119 = vmatpush1.msra.mxu0 0.0
  %3120 = vmatprep.subr.mxu0 0.0
  %3121 = vmatpush1.msra.mxu0 0.0
  %3122 = vmatprep.subr.mxu0 0.0
  %3123 = vmatpush1.msra.mxu0 0.0
  %3124 = vmatprep.subr.mxu0 0.0
  %3125 = vmatpush1.msra.mxu0 0.0
  %3126 = vmatprep.subr.mxu0 0.0
  %3127 = vmatpush1.msra.mxu0 0.0
  %3128 = vmatprep.subr.mxu0 0.0
  %3129 = vmatpush1.msra.mxu0 0.0
  %3130 = vmatprep.subr.mxu0 0.0
  %3131 = vmatpush1.msra.mxu0 0.0
  %3132 = vmatprep.subr.mxu0 0.0
  %3133 = vmatpush1.msra.mxu0 0.0
  %3134 = vmatprep.subr.mxu0 0.0
  %3135 = vmatpush1.msra.mxu0 0.0
  %3136 = vmatprep.subr.mxu0 0.0
  %3137 = vmatpush1.msra.mxu0 0.0
  %3138 = vmatprep.subr.mxu0 0.0
  %3139 = vmatpush1.msra.mxu0 0.0
  %3140 = vmatprep.subr.mxu0 0.0
  %3141 = vmatpush1.msra.mxu0 0.0
  %3142 = vmatprep.subr.mxu0 0.0
  %3143 = vmatpush1.msra.mxu0 0.0
  %3144 = vmatprep.subr.mxu0 0.0
  %3145 = vmatpush1.msra.mxu0 0.0
  %3146 = vmatprep.subr.mxu0 0.0
  %3147 = vmatpush1.msra.mxu0 0.0
  %3148 = vmatprep.subr.mxu0 0.0
  %3149 = vmatpush1.msra.mxu0 0.0
  %3150 = vmatprep.subr.mxu0 0.0
  %3151 = vmatpush1.msra.mxu0 0.0
  %3152 = vmatprep.subr.mxu0 0.0
  %3153 = vmatpush1.msra.mxu0 0.0
  %3154 = vmatprep.subr.mxu0 0.0
  %3155 = vmatpush1.msra.mxu0 0.0
  %3156 = vmatprep.subr.mxu0 0.0
  %3157 = vmatpush1.msra.mxu0 0.0
  %3158 = vmatprep.subr.mxu0 0.0
  %3159 = vmatpush1.msra.mxu0 0.0
  %3160 = vmatprep.subr.mxu0 0.0
  %3161 = vmatpush1.msra.mxu0 0.0
  %3162 = vmatprep.subr.mxu0 0.0
  %3163 = vmatpush1.msra.mxu0 0.0
  %3164 = vmatprep.subr.mxu0 0.0
  %3165 = vmatpush1.msra.mxu0 0.0
  %3166 = vmatprep.mubr.f32.mxu0 0.0
  %v3167 = vand.u32 %v2761, 4294901760
  %3168 = vmatmul.mubr.f32.gmra.mrb[0].mxu0 %v3167
  %v3169 = vpop.f32.mrb[0].mxu0
  %v3170 = vadd.f32 %v3087, %v3169
  %v3171 = vpop.f32.mrb[0].mxu0
  %3172 = vdwg.mxu0
  %3173 = vmatprep.subr.mxu0 0.0
  %v3174 = vand.u32 %v96, 4294901760
  %3175 = vmatpush1.msra.mxu0 %v3174
  %3176 = vmatprep.subr.mxu0 0.0
  %v3177 = vand.u32 %v97, 4294901760
  %3178 = vmatpush1.msra.mxu0 %v3177
  %3179 = vmatprep.subr.mxu0 0.0
  %v3180 = vand.u32 %v98, 4294901760
  %3181 = vmatpush1.msra.mxu0 %v3180
  %3182 = vmatprep.subr.mxu0 0.0
  %v3183 = vand.u32 %v99, 4294901760
  %3184 = vmatpush1.msra.mxu0 %v3183
  %3185 = vmatprep.subr.mxu0 0.0
  %3186 = vmatpush1.msra.mxu0 0.0
  %3187 = vmatprep.subr.mxu0 0.0
  %3188 = vmatpush1.msra.mxu0 0.0
  %3189 = vmatprep.subr.mxu0 0.0
  %3190 = vmatpush1.msra.mxu0 0.0
  %3191 = vmatprep.subr.mxu0 0.0
  %3192 = vmatpush1.msra.mxu0 0.0
  %3193 = vmatprep.subr.mxu0 0.0
  %3194 = vmatpush1.msra.mxu0 0.0
  %3195 = vmatprep.subr.mxu0 0.0
  %3196 = vmatpush1.msra.mxu0 0.0
  %3197 = vmatprep.subr.mxu0 0.0
  %3198 = vmatpush1.msra.mxu0 0.0
  %3199 = vmatprep.subr.mxu0 0.0
  %3200 = vmatpush1.msra.mxu0 0.0
  %3201 = vmatprep.subr.mxu0 0.0
  %3202 = vmatpush1.msra.mxu0 0.0
  %3203 = vmatprep.subr.mxu0 0.0
  %3204 = vmatpush1.msra.mxu0 0.0
  %3205 = vmatprep.subr.mxu0 0.0
  %3206 = vmatpush1.msra.mxu0 0.0
  %3207 = vmatprep.subr.mxu0 0.0
  %3208 = vmatpush1.msra.mxu0 0.0
  %3209 = vmatprep.subr.mxu0 0.0
  %3210 = vmatpush1.msra.mxu0 0.0
  %3211 = vmatprep.subr.mxu0 0.0
  %3212 = vmatpush1.msra.mxu0 0.0
  %3213 = vmatprep.subr.mxu0 0.0
  %3214 = vmatpush1.msra.mxu0 0.0
  %3215 = vmatprep.subr.mxu0 0.0
  %3216 = vmatpush1.msra.mxu0 0.0
  %3217 = vmatprep.subr.mxu0 0.0
  %3218 = vmatpush1.msra.mxu0 0.0
  %3219 = vmatprep.subr.mxu0 0.0
  %3220 = vmatpush1.msra.mxu0 0.0
  %3221 = vmatprep.subr.mxu0 0.0
  %3222 = vmatpush1.msra.mxu0 0.0
  %3223 = vmatprep.subr.mxu0 0.0
  %3224 = vmatpush1.msra.mxu0 0.0
  %3225 = vmatprep.subr.mxu0 0.0
  %3226 = vmatpush1.msra.mxu0 0.0
  %3227 = vmatprep.subr.mxu0 0.0
  %3228 = vmatpush1.msra.mxu0 0.0
  %3229 = vmatprep.subr.mxu0 0.0
  %3230 = vmatpush1.msra.mxu0 0.0
  %3231 = vmatprep.subr.mxu0 0.0
  %3232 = vmatpush1.msra.mxu0 0.0
  %3233 = vmatprep.subr.mxu0 0.0
  %3234 = vmatpush1.msra.mxu0 0.0
  %3235 = vmatprep.subr.mxu0 0.0
  %3236 = vmatpush1.msra.mxu0 0.0
  %3237 = vmatprep.subr.mxu0 0.0
  %3238 = vmatpush1.msra.mxu0 0.0
  %3239 = vmatprep.subr.mxu0 0.0
  %3240 = vmatpush1.msra.mxu0 0.0
  %3241 = vmatprep.mubr.f32.mxu0 0.0
  %v3242 = vand.u32 %v2761, 4294901760
  %3243 = vmatmul.mubr.f32.gmra.mrb[0].mxu0 %v3242
  %v3244 = vpop.f32.mrb[0].mxu0
  %v3245 = vadd.f32 %v3170, %v3244
  %v3246 = vpop.f32.mrb[0].mxu0
  %3247 = vdwg.mxu0
  %v3248 = vadd.f32 %v2757, %v3245
  %v3249 = vxor.u32 %v3248, 2147483648
  %v3250 = vmul.f32 %v3249, 1.442695
  %v3251 = vpow.pop %v3250
  %v3252 = vadd.f32 %v3251, 1.0
  %v3253 = vrcp.pop %v3252
  %v3254 = vmul.f32 1.0, %v3253
  %v3255 = vtanh.pop %v3248
  %v3256 = vmul.f32 %v3254, %v2206
  %3258 = vrot.lane.b32.xlu0 %v3255, 64
  %v3259 = vpop.permute.xlu0 %3258
  %v3261 = vmul.f32 %v3254, %v3259
  %3263 = vrot.lane.b32.xlu0 %v3261, 32
  %v3264 = vpop.permute.xlu0 %3263
  %v3266 = vadd.f32 %v3256, %v3264
  %v3267 = vtanh.pop %v3266
  %3269 = vrot.lane.b32.xlu0 %v3267, 64
  %v3270 = vpop.permute.xlu0 %3269
  %v3272 = vmul.f32 %v3254, %v3270
  %s3273 = scalar_lea.vmem %s72, 40
  %v3274 = vld [vmem:[%s3273] sm:$0xff]
  %3276 = vrot.lane.b32.xlu0 %v3274, 96
  %v3277 = vpop.permute.xlu0 %3276
  %v3279 = vadd.f32 %v3272, %v3277
  %3281 = vrot.lane.b32.xlu0 %v3279, 32
  %v3282 = vpop.permute.xlu0 %3281
  %s3284 = scalar_lea.vmem %s80, 40
  %3285 = vst.msk [vmem:[%s3284] sm:$0xff] %vm105, %v3282
  %s3286 = scalar_lea.vmem %s0, 24
  %v3287 = vld [vmem:[%s3286] sm:$0xff]
  %3289 = vrot.lane.b32.xlu0 %v2742, 32
  %v3290 = vpop.permute.xlu0 %3289
  %v3291 = vsel %vm105, %v3290, 0
  %3293 = vmatprep.subr.mxu0 0.0
  %v3294 = vand.u32 %v92, 4294901760
  %3295 = vmatpush1.msra.mxu0 %v3294
  %3296 = vmatprep.subr.mxu0 0.0
  %v3297 = vand.u32 %v93, 4294901760
  %3298 = vmatpush1.msra.mxu0 %v3297
  %3299 = vmatprep.subr.mxu0 0.0
  %v3300 = vand.u32 %v94, 4294901760
  %3301 = vmatpush1.msra.mxu0 %v3300
  %3302 = vmatprep.subr.mxu0 0.0
  %v3303 = vand.u32 %v95, 4294901760
  %3304 = vmatpush1.msra.mxu0 %v3303
  %3305 = vmatprep.subr.mxu0 0.0
  %3306 = vmatpush1.msra.mxu0 0.0
  %3307 = vmatprep.subr.mxu0 0.0
  %3308 = vmatpush1.msra.mxu0 0.0
  %3309 = vmatprep.subr.mxu0 0.0
  %3310 = vmatpush1.msra.mxu0 0.0
  %3311 = vmatprep.subr.mxu0 0.0
  %3312 = vmatpush1.msra.mxu0 0.0
  %3313 = vmatprep.subr.mxu0 0.0
  %3314 = vmatpush1.msra.mxu0 0.0
  %3315 = vmatprep.subr.mxu0 0.0
  %3316 = vmatpush1.msra.mxu0 0.0
  %3317 = vmatprep.subr.mxu0 0.0
  %3318 = vmatpush1.msra.mxu0 0.0
  %3319 = vmatprep.subr.mxu0 0.0
  %3320 = vmatpush1.msra.mxu0 0.0
  %3321 = vmatprep.subr.mxu0 0.0
  %3322 = vmatpush1.msra.mxu0 0.0
  %3323 = vmatprep.subr.mxu0 0.0
  %3324 = vmatpush1.msra.mxu0 0.0
  %3325 = vmatprep.subr.mxu0 0.0
  %3326 = vmatpush1.msra.mxu0 0.0
  %3327 = vmatprep.subr.mxu0 0.0
  %3328 = vmatpush1.msra.mxu0 0.0
  %3329 = vmatprep.subr.mxu0 0.0
  %3330 = vmatpush1.msra.mxu0 0.0
  %3331 = vmatprep.subr.mxu0 0.0
  %3332 = vmatpush1.msra.mxu0 0.0
  %3333 = vmatprep.subr.mxu0 0.0
  %3334 = vmatpush1.msra.mxu0 0.0
  %3335 = vmatprep.subr.mxu0 0.0
  %3336 = vmatpush1.msra.mxu0 0.0
  %3337 = vmatprep.subr.mxu0 0.0
  %3338 = vmatpush1.msra.mxu0 0.0
  %3339 = vmatprep.subr.mxu0 0.0
  %3340 = vmatpush1.msra.mxu0 0.0
  %3341 = vmatprep.subr.mxu0 0.0
  %3342 = vmatpush1.msra.mxu0 0.0
  %3343 = vmatprep.subr.mxu0 0.0
  %3344 = vmatpush1.msra.mxu0 0.0
  %3345 = vmatprep.subr.mxu0 0.0
  %3346 = vmatpush1.msra.mxu0 0.0
  %3347 = vmatprep.subr.mxu0 0.0
  %3348 = vmatpush1.msra.mxu0 0.0
  %3349 = vmatprep.subr.mxu0 0.0
  %3350 = vmatpush1.msra.mxu0 0.0
  %3351 = vmatprep.subr.mxu0 0.0
  %3352 = vmatpush1.msra.mxu0 0.0
  %3353 = vmatprep.subr.mxu0 0.0
  %3354 = vmatpush1.msra.mxu0 0.0
  %3355 = vmatprep.subr.mxu0 0.0
  %3356 = vmatpush1.msra.mxu0 0.0
  %3357 = vmatprep.subr.mxu0 0.0
  %3358 = vmatpush1.msra.mxu0 0.0
  %3359 = vmatprep.subr.mxu0 0.0
  %3360 = vmatpush1.msra.mxu0 0.0
  %3361 = vmatprep.mubr.f32.mxu0 0.0
  %v3362 = vand.u32 %v3291, 4294901760
  %v3363 = vsub.f32 %v3291, %v3362
  %v3364 = vand.u32 %v3363, 4294901760
  %v3365 = vsub.f32 %v3363, %v3364
  %v3366 = vand.u32 %v3365, 4294901760
  %3367 = vmatmul.mubr.f32.gmra.mrb[0].mxu0 %v3366
  %v3368 = vpop.f32.mrb[0].mxu0
  %v3369 = vadd.f32 0.0, %v3368
  %v3370 = vpop.f32.mrb[0].mxu0
  %3371 = vdwg.mxu0
  %3372 = vmatprep.subr.mxu0 0.0
  %v3373 = vand.u32 %v92, 4294901760
  %v3374 = vsub.f32 %v92, %v3373
  %v3375 = vand.u32 %v3374, 4294901760
  %v3376 = vsub.f32 %v3374, %v3375
  %v3377 = vand.u32 %v3376, 4294901760
  %3378 = vmatpush1.msra.mxu0 %v3377
  %3379 = vmatprep.subr.mxu0 0.0
  %v3380 = vand.u32 %v93, 4294901760
  %v3381 = vsub.f32 %v93, %v3380
  %v3382 = vand.u32 %v3381, 4294901760
  %v3383 = vsub.f32 %v3381, %v3382
  %v3384 = vand.u32 %v3383, 4294901760
  %3385 = vmatpush1.msra.mxu0 %v3384
  %3386 = vmatprep.subr.mxu0 0.0
  %v3387 = vand.u32 %v94, 4294901760
  %v3388 = vsub.f32 %v94, %v3387
  %v3389 = vand.u32 %v3388, 4294901760
  %v3390 = vsub.f32 %v3388, %v3389
  %v3391 = vand.u32 %v3390, 4294901760
  %3392 = vmatpush1.msra.mxu0 %v3391
  %3393 = vmatprep.subr.mxu0 0.0
  %v3394 = vand.u32 %v95, 4294901760
  %v3395 = vsub.f32 %v95, %v3394
  %v3396 = vand.u32 %v3395, 4294901760
  %v3397 = vsub.f32 %v3395, %v3396
  %v3398 = vand.u32 %v3397, 4294901760
  %3399 = vmatpush1.msra.mxu0 %v3398
  %3400 = vmatprep.subr.mxu0 0.0
  %3401 = vmatpush1.msra.mxu0 0.0
  %3402 = vmatprep.subr.mxu0 0.0
  %3403 = vmatpush1.msra.mxu0 0.0
  %3404 = vmatprep.subr.mxu0 0.0
  %3405 = vmatpush1.msra.mxu0 0.0
  %3406 = vmatprep.subr.mxu0 0.0
  %3407 = vmatpush1.msra.mxu0 0.0
  %3408 = vmatprep.subr.mxu0 0.0
  %3409 = vmatpush1.msra.mxu0 0.0
  %3410 = vmatprep.subr.mxu0 0.0
  %3411 = vmatpush1.msra.mxu0 0.0
  %3412 = vmatprep.subr.mxu0 0.0
  %3413 = vmatpush1.msra.mxu0 0.0
  %3414 = vmatprep.subr.mxu0 0.0
  %3415 = vmatpush1.msra.mxu0 0.0
  %3416 = vmatprep.subr.mxu0 0.0
  %3417 = vmatpush1.msra.mxu0 0.0
  %3418 = vmatprep.subr.mxu0 0.0
  %3419 = vmatpush1.msra.mxu0 0.0
  %3420 = vmatprep.subr.mxu0 0.0
  %3421 = vmatpush1.msra.mxu0 0.0
  %3422 = vmatprep.subr.mxu0 0.0
  %3423 = vmatpush1.msra.mxu0 0.0
  %3424 = vmatprep.subr.mxu0 0.0
  %3425 = vmatpush1.msra.mxu0 0.0
  %3426 = vmatprep.subr.mxu0 0.0
  %3427 = vmatpush1.msra.mxu0 0.0
  %3428 = vmatprep.subr.mxu0 0.0
  %3429 = vmatpush1.msra.mxu0 0.0
  %3430 = vmatprep.subr.mxu0 0.0
  %3431 = vmatpush1.msra.mxu0 0.0
  %3432 = vmatprep.subr.mxu0 0.0
  %3433 = vmatpush1.msra.mxu0 0.0
  %3434 = vmatprep.subr.mxu0 0.0
  %3435 = vmatpush1.msra.mxu0 0.0
  %3436 = vmatprep.subr.mxu0 0.0
  %3437 = vmatpush1.msra.mxu0 0.0
  %3438 = vmatprep.subr.mxu0 0.0
  %3439 = vmatpush1.msra.mxu0 0.0
  %3440 = vmatprep.subr.mxu0 0.0
  %3441 = vmatpush1.msra.mxu0 0.0
  %3442 = vmatprep.subr.mxu0 0.0
  %3443 = vmatpush1.msra.mxu0 0.0
  %3444 = vmatprep.subr.mxu0 0.0
  %3445 = vmatpush1.msra.mxu0 0.0
  %3446 = vmatprep.subr.mxu0 0.0
  %3447 = vmatpush1.msra.mxu0 0.0
  %3448 = vmatprep.subr.mxu0 0.0
  %3449 = vmatpush1.msra.mxu0 0.0
  %3450 = vmatprep.subr.mxu0 0.0
  %3451 = vmatpush1.msra.mxu0 0.0
  %3452 = vmatprep.subr.mxu0 0.0
  %3453 = vmatpush1.msra.mxu0 0.0
  %3454 = vmatprep.subr.mxu0 0.0
  %3455 = vmatpush1.msra.mxu0 0.0
  %3456 = vmatprep.mubr.f32.mxu0 0.0
  %v3457 = vand.u32 %v3291, 4294901760
  %3458 = vmatmul.mubr.f32.gmra.mrb[0].mxu0 %v3457
  %v3459 = vpop.f32.mrb[0].mxu0
  %v3460 = vadd.f32 %v3369, %v3459
  %v3461 = vpop.f32.mrb[0].mxu0
  %3462 = vdwg.mxu0
  %3463 = vmatprep.subr.mxu0 0.0
  %v3464 = vand.u32 %v92, 4294901760
  %v3465 = vsub.f32 %v92, %v3464
  %3466 = vmatpush1.msra.mxu0 %v3465
  %3467 = vmatprep.subr.mxu0 0.0
  %v3468 = vand.u32 %v93, 4294901760
  %v3469 = vsub.f32 %v93, %v3468
  %3470 = vmatpush1.msra.mxu0 %v3469
  %3471 = vmatprep.subr.mxu0 0.0
  %v3472 = vand.u32 %v94, 4294901760
  %v3473 = vsub.f32 %v94, %v3472
  %3474 = vmatpush1.msra.mxu0 %v3473
  %3475 = vmatprep.subr.mxu0 0.0
  %v3476 = vand.u32 %v95, 4294901760
  %v3477 = vsub.f32 %v95, %v3476
  %3478 = vmatpush1.msra.mxu0 %v3477
  %3479 = vmatprep.subr.mxu0 0.0
  %3480 = vmatpush1.msra.mxu0 0.0
  %3481 = vmatprep.subr.mxu0 0.0
  %3482 = vmatpush1.msra.mxu0 0.0
  %3483 = vmatprep.subr.mxu0 0.0
  %3484 = vmatpush1.msra.mxu0 0.0
  %3485 = vmatprep.subr.mxu0 0.0
  %3486 = vmatpush1.msra.mxu0 0.0
  %3487 = vmatprep.subr.mxu0 0.0
  %3488 = vmatpush1.msra.mxu0 0.0
  %3489 = vmatprep.subr.mxu0 0.0
  %3490 = vmatpush1.msra.mxu0 0.0
  %3491 = vmatprep.subr.mxu0 0.0
  %3492 = vmatpush1.msra.mxu0 0.0
  %3493 = vmatprep.subr.mxu0 0.0
  %3494 = vmatpush1.msra.mxu0 0.0
  %3495 = vmatprep.subr.mxu0 0.0
  %3496 = vmatpush1.msra.mxu0 0.0
  %3497 = vmatprep.subr.mxu0 0.0
  %3498 = vmatpush1.msra.mxu0 0.0
  %3499 = vmatprep.subr.mxu0 0.0
  %3500 = vmatpush1.msra.mxu0 0.0
  %3501 = vmatprep.subr.mxu0 0.0
  %3502 = vmatpush1.msra.mxu0 0.0
  %3503 = vmatprep.subr.mxu0 0.0
  %3504 = vmatpush1.msra.mxu0 0.0
  %3505 = vmatprep.subr.mxu0 0.0
  %3506 = vmatpush1.msra.mxu0 0.0
  %3507 = vmatprep.subr.mxu0 0.0
  %3508 = vmatpush1.msra.mxu0 0.0
  %3509 = vmatprep.subr.mxu0 0.0
  %3510 = vmatpush1.msra.mxu0 0.0
  %3511 = vmatprep.subr.mxu0 0.0
  %3512 = vmatpush1.msra.mxu0 0.0
  %3513 = vmatprep.subr.mxu0 0.0
  %3514 = vmatpush1.msra.mxu0 0.0
  %3515 = vmatprep.subr.mxu0 0.0
  %3516 = vmatpush1.msra.mxu0 0.0
  %3517 = vmatprep.subr.mxu0 0.0
  %3518 = vmatpush1.msra.mxu0 0.0
  %3519 = vmatprep.subr.mxu0 0.0
  %3520 = vmatpush1.msra.mxu0 0.0
  %3521 = vmatprep.subr.mxu0 0.0
  %3522 = vmatpush1.msra.mxu0 0.0
  %3523 = vmatprep.subr.mxu0 0.0
  %3524 = vmatpush1.msra.mxu0 0.0
  %3525 = vmatprep.subr.mxu0 0.0
  %3526 = vmatpush1.msra.mxu0 0.0
  %3527 = vmatprep.subr.mxu0 0.0
  %3528 = vmatpush1.msra.mxu0 0.0
  %3529 = vmatprep.subr.mxu0 0.0
  %3530 = vmatpush1.msra.mxu0 0.0
  %3531 = vmatprep.subr.mxu0 0.0
  %3532 = vmatpush1.msra.mxu0 0.0
  %3533 = vmatprep.subr.mxu0 0.0
  %3534 = vmatpush1.msra.mxu0 0.0
  %3535 = vmatprep.mubr.f32.mxu0 0.0
  %v3536 = vand.u32 %v3291, 4294901760
  %v3537 = vsub.f32 %v3291, %v3536
  %3538 = vmatmul.mubr.f32.gmra.mrb[0].mxu0 %v3537
  %v3539 = vpop.f32.mrb[0].mxu0
  %v3540 = vadd.f32 %v3460, %v3539
  %v3541 = vpop.f32.mrb[0].mxu0
  %3542 = vdwg.mxu0
  %3543 = vmatprep.subr.mxu0 0.0
  %v3544 = vand.u32 %v92, 4294901760
  %3545 = vmatpush1.msra.mxu0 %v3544
  %3546 = vmatprep.subr.mxu0 0.0
  %v3547 = vand.u32 %v93, 4294901760
  %3548 = vmatpush1.msra.mxu0 %v3547
  %3549 = vmatprep.subr.mxu0 0.0
  %v3550 = vand.u32 %v94, 4294901760
  %3551 = vmatpush1.msra.mxu0 %v3550
  %3552 = vmatprep.subr.mxu0 0.0
  %v3553 = vand.u32 %v95, 4294901760
  %3554 = vmatpush1.msra.mxu0 %v3553
  %3555 = vmatprep.subr.mxu0 0.0
  %3556 = vmatpush1.msra.mxu0 0.0
  %3557 = vmatprep.subr.mxu0 0.0
  %3558 = vmatpush1.msra.mxu0 0.0
  %3559 = vmatprep.subr.mxu0 0.0
  %3560 = vmatpush1.msra.mxu0 0.0
  %3561 = vmatprep.subr.mxu0 0.0
  %3562 = vmatpush1.msra.mxu0 0.0
  %3563 = vmatprep.subr.mxu0 0.0
  %3564 = vmatpush1.msra.mxu0 0.0
  %3565 = vmatprep.subr.mxu0 0.0
  %3566 = vmatpush1.msra.mxu0 0.0
  %3567 = vmatprep.subr.mxu0 0.0
  %3568 = vmatpush1.msra.mxu0 0.0
  %3569 = vmatprep.subr.mxu0 0.0
  %3570 = vmatpush1.msra.mxu0 0.0
  %3571 = vmatprep.subr.mxu0 0.0
  %3572 = vmatpush1.msra.mxu0 0.0
  %3573 = vmatprep.subr.mxu0 0.0
  %3574 = vmatpush1.msra.mxu0 0.0
  %3575 = vmatprep.subr.mxu0 0.0
  %3576 = vmatpush1.msra.mxu0 0.0
  %3577 = vmatprep.subr.mxu0 0.0
  %3578 = vmatpush1.msra.mxu0 0.0
  %3579 = vmatprep.subr.mxu0 0.0
  %3580 = vmatpush1.msra.mxu0 0.0
  %3581 = vmatprep.subr.mxu0 0.0
  %3582 = vmatpush1.msra.mxu0 0.0
  %3583 = vmatprep.subr.mxu0 0.0
  %3584 = vmatpush1.msra.mxu0 0.0
  %3585 = vmatprep.subr.mxu0 0.0
  %3586 = vmatpush1.msra.mxu0 0.0
  %3587 = vmatprep.subr.mxu0 0.0
  %3588 = vmatpush1.msra.mxu0 0.0
  %3589 = vmatprep.subr.mxu0 0.0
  %3590 = vmatpush1.msra.mxu0 0.0
  %3591 = vmatprep.subr.mxu0 0.0
  %3592 = vmatpush1.msra.mxu0 0.0
  %3593 = vmatprep.subr.mxu0 0.0
  %3594 = vmatpush1.msra.mxu0 0.0
  %3595 = vmatprep.subr.mxu0 0.0
  %3596 = vmatpush1.msra.mxu0 0.0
  %3597 = vmatprep.subr.mxu0 0.0
  %3598 = vmatpush1.msra.mxu0 0.0
  %3599 = vmatprep.subr.mxu0 0.0
  %3600 = vmatpush1.msra.mxu0 0.0
  %3601 = vmatprep.subr.mxu0 0.0
  %3602 = vmatpush1.msra.mxu0 0.0
  %3603 = vmatprep.subr.mxu0 0.0
  %3604 = vmatpush1.msra.mxu0 0.0
  %3605 = vmatprep.subr.mxu0 0.0
  %3606 = vmatpush1.msra.mxu0 0.0
  %3607 = vmatprep.subr.mxu0 0.0
  %3608 = vmatpush1.msra.mxu0 0.0
  %3609 = vmatprep.subr.mxu0 0.0
  %3610 = vmatpush1.msra.mxu0 0.0
  %3611 = vmatprep.mubr.f32.mxu0 0.0
  %v3612 = vand.u32 %v3291, 4294901760
  %v3613 = vsub.f32 %v3291, %v3612
  %v3614 = vand.u32 %v3613, 4294901760
  %3615 = vmatmul.mubr.f32.gmra.mrb[0].mxu0 %v3614
  %v3616 = vpop.f32.mrb[0].mxu0
  %v3617 = vadd.f32 %v3540, %v3616
  %v3618 = vpop.f32.mrb[0].mxu0
  %3619 = vdwg.mxu0
  %3620 = vmatprep.subr.mxu0 0.0
  %v3621 = vand.u32 %v92, 4294901760
  %v3622 = vsub.f32 %v92, %v3621
  %v3623 = vand.u32 %v3622, 4294901760
  %3624 = vmatpush1.msra.mxu0 %v3623
  %3625 = vmatprep.subr.mxu0 0.0
  %v3626 = vand.u32 %v93, 4294901760
  %v3627 = vsub.f32 %v93, %v3626
  %v3628 = vand.u32 %v3627, 4294901760
  %3629 = vmatpush1.msra.mxu0 %v3628
  %3630 = vmatprep.subr.mxu0 0.0
  %v3631 = vand.u32 %v94, 4294901760
  %v3632 = vsub.f32 %v94, %v3631
  %v3633 = vand.u32 %v3632, 4294901760
  %3634 = vmatpush1.msra.mxu0 %v3633
  %3635 = vmatprep.subr.mxu0 0.0
  %v3636 = vand.u32 %v95, 4294901760
  %v3637 = vsub.f32 %v95, %v3636
  %v3638 = vand.u32 %v3637, 4294901760
  %3639 = vmatpush1.msra.mxu0 %v3638
  %3640 = vmatprep.subr.mxu0 0.0
  %3641 = vmatpush1.msra.mxu0 0.0
  %3642 = vmatprep.subr.mxu0 0.0
  %3643 = vmatpush1.msra.mxu0 0.0
  %3644 = vmatprep.subr.mxu0 0.0
  %3645 = vmatpush1.msra.mxu0 0.0
  %3646 = vmatprep.subr.mxu0 0.0
  %3647 = vmatpush1.msra.mxu0 0.0
  %3648 = vmatprep.subr.mxu0 0.0
  %3649 = vmatpush1.msra.mxu0 0.0
  %3650 = vmatprep.subr.mxu0 0.0
  %3651 = vmatpush1.msra.mxu0 0.0
  %3652 = vmatprep.subr.mxu0 0.0
  %3653 = vmatpush1.msra.mxu0 0.0
  %3654 = vmatprep.subr.mxu0 0.0
  %3655 = vmatpush1.msra.mxu0 0.0
  %3656 = vmatprep.subr.mxu0 0.0
  %3657 = vmatpush1.msra.mxu0 0.0
  %3658 = vmatprep.subr.mxu0 0.0
  %3659 = vmatpush1.msra.mxu0 0.0
  %3660 = vmatprep.subr.mxu0 0.0
  %3661 = vmatpush1.msra.mxu0 0.0
  %3662 = vmatprep.subr.mxu0 0.0
  %3663 = vmatpush1.msra.mxu0 0.0
  %3664 = vmatprep.subr.mxu0 0.0
  %3665 = vmatpush1.msra.mxu0 0.0
  %3666 = vmatprep.subr.mxu0 0.0
  %3667 = vmatpush1.msra.mxu0 0.0
  %3668 = vmatprep.subr.mxu0 0.0
  %3669 = vmatpush1.msra.mxu0 0.0
  %3670 = vmatprep.subr.mxu0 0.0
  %3671 = vmatpush1.msra.mxu0 0.0
  %3672 = vmatprep.subr.mxu0 0.0
  %3673 = vmatpush1.msra.mxu0 0.0
  %3674 = vmatprep.subr.mxu0 0.0
  %3675 = vmatpush1.msra.mxu0 0.0
  %3676 = vmatprep.subr.mxu0 0.0
  %3677 = vmatpush1.msra.mxu0 0.0
  %3678 = vmatprep.subr.mxu0 0.0
  %3679 = vmatpush1.msra.mxu0 0.0
  %3680 = vmatprep.subr.mxu0 0.0
  %3681 = vmatpush1.msra.mxu0 0.0
  %3682 = vmatprep.subr.mxu0 0.0
  %3683 = vmatpush1.msra.mxu0 0.0
  %3684 = vmatprep.subr.mxu0 0.0
  %3685 = vmatpush1.msra.mxu0 0.0
  %3686 = vmatprep.subr.mxu0 0.0
  %3687 = vmatpush1.msra.mxu0 0.0
  %3688 = vmatprep.subr.mxu0 0.0
  %3689 = vmatpush1.msra.mxu0 0.0
  %3690 = vmatprep.subr.mxu0 0.0
  %3691 = vmatpush1.msra.mxu0 0.0
  %3692 = vmatprep.subr.mxu0 0.0
  %3693 = vmatpush1.msra.mxu0 0.0
  %3694 = vmatprep.subr.mxu0 0.0
  %3695 = vmatpush1.msra.mxu0 0.0
  %3696 = vmatprep.mubr.f32.mxu0 0.0
  %v3697 = vand.u32 %v3291, 4294901760
  %3698 = vmatmul.mubr.f32.gmra.mrb[0].mxu0 %v3697
  %v3699 = vpop.f32.mrb[0].mxu0
  %v3700 = vadd.f32 %v3617, %v3699
  %v3701 = vpop.f32.mrb[0].mxu0
  %3702 = vdwg.mxu0
  %3703 = vmatprep.subr.mxu0 0.0
  %v3704 = vand.u32 %v92, 4294901760
  %3705 = vmatpush1.msra.mxu0 %v3704
  %3706 = vmatprep.subr.mxu0 0.0
  %v3707 = vand.u32 %v93, 4294901760
  %3708 = vmatpush1.msra.mxu0 %v3707
  %3709 = vmatprep.subr.mxu0 0.0
  %v3710 = vand.u32 %v94, 4294901760
  %3711 = vmatpush1.msra.mxu0 %v3710
  %3712 = vmatprep.subr.mxu0 0.0
  %v3713 = vand.u32 %v95, 4294901760
  %3714 = vmatpush1.msra.mxu0 %v3713
  %3715 = vmatprep.subr.mxu0 0.0
  %3716 = vmatpush1.msra.mxu0 0.0
  %3717 = vmatprep.subr.mxu0 0.0
  %3718 = vmatpush1.msra.mxu0 0.0
  %3719 = vmatprep.subr.mxu0 0.0
  %3720 = vmatpush1.msra.mxu0 0.0
  %3721 = vmatprep.subr.mxu0 0.0
  %3722 = vmatpush1.msra.mxu0 0.0
  %3723 = vmatprep.subr.mxu0 0.0
  %3724 = vmatpush1.msra.mxu0 0.0
  %3725 = vmatprep.subr.mxu0 0.0
  %3726 = vmatpush1.msra.mxu0 0.0
  %3727 = vmatprep.subr.mxu0 0.0
  %3728 = vmatpush1.msra.mxu0 0.0
  %3729 = vmatprep.subr.mxu0 0.0
  %3730 = vmatpush1.msra.mxu0 0.0
  %3731 = vmatprep.subr.mxu0 0.0
  %3732 = vmatpush1.msra.mxu0 0.0
  %3733 = vmatprep.subr.mxu0 0.0
  %3734 = vmatpush1.msra.mxu0 0.0
  %3735 = vmatprep.subr.mxu0 0.0
  %3736 = vmatpush1.msra.mxu0 0.0
  %3737 = vmatprep.subr.mxu0 0.0
  %3738 = vmatpush1.msra.mxu0 0.0
  %3739 = vmatprep.subr.mxu0 0.0
  %3740 = vmatpush1.msra.mxu0 0.0
  %3741 = vmatprep.subr.mxu0 0.0
  %3742 = vmatpush1.msra.mxu0 0.0
  %3743 = vmatprep.subr.mxu0 0.0
  %3744 = vmatpush1.msra.mxu0 0.0
  %3745 = vmatprep.subr.mxu0 0.0
  %3746 = vmatpush1.msra.mxu0 0.0
  %3747 = vmatprep.subr.mxu0 0.0
  %3748 = vmatpush1.msra.mxu0 0.0
  %3749 = vmatprep.subr.mxu0 0.0
  %3750 = vmatpush1.msra.mxu0 0.0
  %3751 = vmatprep.subr.mxu0 0.0
  %3752 = vmatpush1.msra.mxu0 0.0
  %3753 = vmatprep.subr.mxu0 0.0
  %3754 = vmatpush1.msra.mxu0 0.0
  %3755 = vmatprep.subr.mxu0 0.0
  %3756 = vmatpush1.msra.mxu0 0.0
  %3757 = vmatprep.subr.mxu0 0.0
  %3758 = vmatpush1.msra.mxu0 0.0
  %3759 = vmatprep.subr.mxu0 0.0
  %3760 = vmatpush1.msra.mxu0 0.0
  %3761 = vmatprep.subr.mxu0 0.0
  %3762 = vmatpush1.msra.mxu0 0.0
  %3763 = vmatprep.subr.mxu0 0.0
  %3764 = vmatpush1.msra.mxu0 0.0
  %3765 = vmatprep.subr.mxu0 0.0
  %3766 = vmatpush1.msra.mxu0 0.0
  %3767 = vmatprep.subr.mxu0 0.0
  %3768 = vmatpush1.msra.mxu0 0.0
  %3769 = vmatprep.subr.mxu0 0.0
  %3770 = vmatpush1.msra.mxu0 0.0
  %3771 = vmatprep.mubr.f32.mxu0 0.0
  %v3772 = vand.u32 %v3291, 4294901760
  %3773 = vmatmul.mubr.f32.gmra.mrb[0].mxu0 %v3772
  %v3774 = vpop.f32.mrb[0].mxu0
  %v3775 = vadd.f32 %v3700, %v3774
  %v3776 = vpop.f32.mrb[0].mxu0
  %3777 = vdwg.mxu0
  %v3778 = vadd.f32 %v3287, %v3775
  %v3779 = vxor.u32 %v3778, 2147483648
  %v3780 = vmul.f32 %v3779, 1.442695
  %v3781 = vpow.pop %v3780
  %v3782 = vadd.f32 %v3781, 1.0
  %v3783 = vrcp.pop %v3782
  %v3784 = vmul.f32 1.0, %v3783
  %v3785 = vtanh.pop %v3778
  %v3786 = vmul.f32 %v3784, %v2736
  %3788 = vrot.lane.b32.xlu0 %v3785, 64
  %v3789 = vpop.permute.xlu0 %3788
  %v3791 = vmul.f32 %v3784, %v3789
  %3793 = vrot.lane.b32.xlu0 %v3791, 32
  %v3794 = vpop.permute.xlu0 %3793
  %v3796 = vadd.f32 %v3786, %v3794
  %v3797 = vtanh.pop %v3796
  %3799 = vrot.lane.b32.xlu0 %v3797, 64
  %v3800 = vpop.permute.xlu0 %3799
  %v3802 = vmul.f32 %v3784, %v3800
  %s3803 = scalar_lea.vmem %s4, 24
  %v3804 = vld [vmem:[%s3803] sm:$0xff]
  %3806 = vrot.lane.b32.xlu0 %v3804, 96
  %v3807 = vpop.permute.xlu0 %3806
  %v3809 = vadd.f32 %v3802, %v3807
  %3811 = vrot.lane.b32.xlu0 %v3809, 32
  %v3812 = vpop.permute.xlu0 %3811
  %s3814 = scalar_lea.vmem %s6, 24
  %3815 = vst.msk [vmem:[%s3814] sm:$0xff] %vm105, %v3812
  %s3816 = scalar_lea.vmem %s64, 32
  %v3817 = vld [vmem:[%s3816] sm:$0xff]
  %3819 = vrot.lane.b32.xlu0 %v3272, 32
  %v3820 = vpop.permute.xlu0 %3819
  %v3821 = vsel %vm105, %v3820, 0
  %3823 = vmatprep.subr.mxu0 0.0
  %v3824 = vand.u32 %v96, 4294901760
  %3825 = vmatpush1.msra.mxu0 %v3824
  %3826 = vmatprep.subr.mxu0 0.0
  %v3827 = vand.u32 %v97, 4294901760
  %3828 = vmatpush1.msra.mxu0 %v3827
  %3829 = vmatprep.subr.mxu0 0.0
  %v3830 = vand.u32 %v98, 4294901760
  %3831 = vmatpush1.msra.mxu0 %v3830
  %3832 = vmatprep.subr.mxu0 0.0
  %v3833 = vand.u32 %v99, 4294901760
  %3834 = vmatpush1.msra.mxu0 %v3833
  %3835 = vmatprep.subr.mxu0 0.0
  %3836 = vmatpush1.msra.mxu0 0.0
  %3837 = vmatprep.subr.mxu0 0.0
  %3838 = vmatpush1.msra.mxu0 0.0
  %3839 = vmatprep.subr.mxu0 0.0
  %3840 = vmatpush1.msra.mxu0 0.0
  %3841 = vmatprep.subr.mxu0 0.0
  %3842 = vmatpush1.msra.mxu0 0.0
  %3843 = vmatprep.subr.mxu0 0.0
  %3844 = vmatpush1.msra.mxu0 0.0
  %3845 = vmatprep.subr.mxu0 0.0
  %3846 = vmatpush1.msra.mxu0 0.0
  %3847 = vmatprep.subr.mxu0 0.0
  %3848 = vmatpush1.msra.mxu0 0.0
  %3849 = vmatprep.subr.mxu0 0.0
  %3850 = vmatpush1.msra.mxu0 0.0
  %3851 = vmatprep.subr.mxu0 0.0
  %3852 = vmatpush1.msra.mxu0 0.0
  %3853 = vmatprep.subr.mxu0 0.0
  %3854 = vmatpush1.msra.mxu0 0.0
  %3855 = vmatprep.subr.mxu0 0.0
  %3856 = vmatpush1.msra.mxu0 0.0
  %3857 = vmatprep.subr.mxu0 0.0
  %3858 = vmatpush1.msra.mxu0 0.0
  %3859 = vmatprep.subr.mxu0 0.0
  %3860 = vmatpush1.msra.mxu0 0.0
  %3861 = vmatprep.subr.mxu0 0.0
  %3862 = vmatpush1.msra.mxu0 0.0
  %3863 = vmatprep.subr.mxu0 0.0
  %3864 = vmatpush1.msra.mxu0 0.0
  %3865 = vmatprep.subr.mxu0 0.0
  %3866 = vmatpush1.msra.mxu0 0.0
  %3867 = vmatprep.subr.mxu0 0.0
  %3868 = vmatpush1.msra.mxu0 0.0
  %3869 = vmatprep.subr.mxu0 0.0
  %3870 = vmatpush1.msra.mxu0 0.0
  %3871 = vmatprep.subr.mxu0 0.0
  %3872 = vmatpush1.msra.mxu0 0.0
  %3873 = vmatprep.subr.mxu0 0.0
  %3874 = vmatpush1.msra.mxu0 0.0
  %3875 = vmatprep.subr.mxu0 0.0
  %3876 = vmatpush1.msra.mxu0 0.0
  %3877 = vmatprep.subr.mxu0 0.0
  %3878 = vmatpush1.msra.mxu0 0.0
  %3879 = vmatprep.subr.mxu0 0.0
  %3880 = vmatpush1.msra.mxu0 0.0
  %3881 = vmatprep.subr.mxu0 0.0
  %3882 = vmatpush1.msra.mxu0 0.0
  %3883 = vmatprep.subr.mxu0 0.0
  %3884 = vmatpush1.msra.mxu0 0.0
  %3885 = vmatprep.subr.mxu0 0.0
  %3886 = vmatpush1.msra.mxu0 0.0
  %3887 = vmatprep.subr.mxu0 0.0
  %3888 = vmatpush1.msra.mxu0 0.0
  %3889 = vmatprep.subr.mxu0 0.0
  %3890 = vmatpush1.msra.mxu0 0.0
  %3891 = vmatprep.mubr.f32.mxu0 0.0
  %v3892 = vand.u32 %v3821, 4294901760
  %v3893 = vsub.f32 %v3821, %v3892
  %v3894 = vand.u32 %v3893, 4294901760
  %v3895 = vsub.f32 %v3893, %v3894
  %v3896 = vand.u32 %v3895, 4294901760
  %3897 = vmatmul.mubr.f32.gmra.mrb[0].mxu0 %v3896
  %v3898 = vpop.f32.mrb[0].mxu0
  %v3899 = vadd.f32 0.0, %v3898
  %v3900 = vpop.f32.mrb[0].mxu0
  %3901 = vdwg.mxu0
  %3902 = vmatprep.subr.mxu0 0.0
  %v3903 = vand.u32 %v96, 4294901760
  %v3904 = vsub.f32 %v96, %v3903
  %v3905 = vand.u32 %v3904, 4294901760
  %v3906 = vsub.f32 %v3904, %v3905
  %v3907 = vand.u32 %v3906, 4294901760
  %3908 = vmatpush1.msra.mxu0 %v3907
  %3909 = vmatprep.subr.mxu0 0.0
  %v3910 = vand.u32 %v97, 4294901760
  %v3911 = vsub.f32 %v97, %v3910
  %v3912 = vand.u32 %v3911, 4294901760
  %v3913 = vsub.f32 %v3911, %v3912
  %v3914 = vand.u32 %v3913, 4294901760
  %3915 = vmatpush1.msra.mxu0 %v3914
  %3916 = vmatprep.subr.mxu0 0.0
  %v3917 = vand.u32 %v98, 4294901760
  %v3918 = vsub.f32 %v98, %v3917
  %v3919 = vand.u32 %v3918, 4294901760
  %v3920 = vsub.f32 %v3918, %v3919
  %v3921 = vand.u32 %v3920, 4294901760
  %3922 = vmatpush1.msra.mxu0 %v3921
  %3923 = vmatprep.subr.mxu0 0.0
  %v3924 = vand.u32 %v99, 4294901760
  %v3925 = vsub.f32 %v99, %v3924
  %v3926 = vand.u32 %v3925, 4294901760
  %v3927 = vsub.f32 %v3925, %v3926
  %v3928 = vand.u32 %v3927, 4294901760
  %3929 = vmatpush1.msra.mxu0 %v3928
  %3930 = vmatprep.subr.mxu0 0.0
  %3931 = vmatpush1.msra.mxu0 0.0
  %3932 = vmatprep.subr.mxu0 0.0
  %3933 = vmatpush1.msra.mxu0 0.0
  %3934 = vmatprep.subr.mxu0 0.0
  %3935 = vmatpush1.msra.mxu0 0.0
  %3936 = vmatprep.subr.mxu0 0.0
  %3937 = vmatpush1.msra.mxu0 0.0
  %3938 = vmatprep.subr.mxu0 0.0
  %3939 = vmatpush1.msra.mxu0 0.0
  %3940 = vmatprep.subr.mxu0 0.0
  %3941 = vmatpush1.msra.mxu0 0.0
  %3942 = vmatprep.subr.mxu0 0.0
  %3943 = vmatpush1.msra.mxu0 0.0
  %3944 = vmatprep.subr.mxu0 0.0
  %3945 = vmatpush1.msra.mxu0 0.0
  %3946 = vmatprep.subr.mxu0 0.0
  %3947 = vmatpush1.msra.mxu0 0.0
  %3948 = vmatprep.subr.mxu0 0.0
  %3949 = vmatpush1.msra.mxu0 0.0
  %3950 = vmatprep.subr.mxu0 0.0
  %3951 = vmatpush1.msra.mxu0 0.0
  %3952 = vmatprep.subr.mxu0 0.0
  %3953 = vmatpush1.msra.mxu0 0.0
  %3954 = vmatprep.subr.mxu0 0.0
  %3955 = vmatpush1.msra.mxu0 0.0
  %3956 = vmatprep.subr.mxu0 0.0
  %3957 = vmatpush1.msra.mxu0 0.0
  %3958 = vmatprep.subr.mxu0 0.0
  %3959 = vmatpush1.msra.mxu0 0.0
  %3960 = vmatprep.subr.mxu0 0.0
  %3961 = vmatpush1.msra.mxu0 0.0
  %3962 = vmatprep.subr.mxu0 0.0
  %3963 = vmatpush1.msra.mxu0 0.0
  %3964 = vmatprep.subr.mxu0 0.0
  %3965 = vmatpush1.msra.mxu0 0.0
  %3966 = vmatprep.subr.mxu0 0.0
  %3967 = vmatpush1.msra.mxu0 0.0
  %3968 = vmatprep.subr.mxu0 0.0
  %3969 = vmatpush1.msra.mxu0 0.0
  %3970 = vmatprep.subr.mxu0 0.0
  %3971 = vmatpush1.msra.mxu0 0.0
  %3972 = vmatprep.subr.mxu0 0.0
  %3973 = vmatpush1.msra.mxu0 0.0
  %3974 = vmatprep.subr.mxu0 0.0
  %3975 = vmatpush1.msra.mxu0 0.0
  %3976 = vmatprep.subr.mxu0 0.0
  %3977 = vmatpush1.msra.mxu0 0.0
  %3978 = vmatprep.subr.mxu0 0.0
  %3979 = vmatpush1.msra.mxu0 0.0
  %3980 = vmatprep.subr.mxu0 0.0
  %3981 = vmatpush1.msra.mxu0 0.0
  %3982 = vmatprep.subr.mxu0 0.0
  %3983 = vmatpush1.msra.mxu0 0.0
  %3984 = vmatprep.subr.mxu0 0.0
  %3985 = vmatpush1.msra.mxu0 0.0
  %3986 = vmatprep.mubr.f32.mxu0 0.0
  %v3987 = vand.u32 %v3821, 4294901760
  %3988 = vmatmul.mubr.f32.gmra.mrb[0].mxu0 %v3987
  %v3989 = vpop.f32.mrb[0].mxu0
  %v3990 = vadd.f32 %v3899, %v3989
  %v3991 = vpop.f32.mrb[0].mxu0
  %3992 = vdwg.mxu0
  %3993 = vmatprep.subr.mxu0 0.0
  %v3994 = vand.u32 %v96, 4294901760
  %v3995 = vsub.f32 %v96, %v3994
  %3996 = vmatpush1.msra.mxu0 %v3995
  %3997 = vmatprep.subr.mxu0 0.0
  %v3998 = vand.u32 %v97, 4294901760
  %v3999 = vsub.f32 %v97, %v3998
  %4000 = vmatpush1.msra.mxu0 %v3999
  %4001 = vmatprep.subr.mxu0 0.0
  %v4002 = vand.u32 %v98, 4294901760
  %v4003 = vsub.f32 %v98, %v4002
  %4004 = vmatpush1.msra.mxu0 %v4003
  %4005 = vmatprep.subr.mxu0 0.0
  %v4006 = vand.u32 %v99, 4294901760
  %v4007 = vsub.f32 %v99, %v4006
  %4008 = vmatpush1.msra.mxu0 %v4007
  %4009 = vmatprep.subr.mxu0 0.0
  %4010 = vmatpush1.msra.mxu0 0.0
  %4011 = vmatprep.subr.mxu0 0.0
  %4012 = vmatpush1.msra.mxu0 0.0
  %4013 = vmatprep.subr.mxu0 0.0
  %4014 = vmatpush1.msra.mxu0 0.0
  %4015 = vmatprep.subr.mxu0 0.0
  %4016 = vmatpush1.msra.mxu0 0.0
  %4017 = vmatprep.subr.mxu0 0.0
  %4018 = vmatpush1.msra.mxu0 0.0
  %4019 = vmatprep.subr.mxu0 0.0
  %4020 = vmatpush1.msra.mxu0 0.0
  %4021 = vmatprep.subr.mxu0 0.0
  %4022 = vmatpush1.msra.mxu0 0.0
  %4023 = vmatprep.subr.mxu0 0.0
  %4024 = vmatpush1.msra.mxu0 0.0
  %4025 = vmatprep.subr.mxu0 0.0
  %4026 = vmatpush1.msra.mxu0 0.0
  %4027 = vmatprep.subr.mxu0 0.0
  %4028 = vmatpush1.msra.mxu0 0.0
  %4029 = vmatprep.subr.mxu0 0.0
  %4030 = vmatpush1.msra.mxu0 0.0
  %4031 = vmatprep.subr.mxu0 0.0
  %4032 = vmatpush1.msra.mxu0 0.0
  %4033 = vmatprep.subr.mxu0 0.0
  %4034 = vmatpush1.msra.mxu0 0.0
  %4035 = vmatprep.subr.mxu0 0.0
  %4036 = vmatpush1.msra.mxu0 0.0
  %4037 = vmatprep.subr.mxu0 0.0
  %4038 = vmatpush1.msra.mxu0 0.0
  %4039 = vmatprep.subr.mxu0 0.0
  %4040 = vmatpush1.msra.mxu0 0.0
  %4041 = vmatprep.subr.mxu0 0.0
  %4042 = vmatpush1.msra.mxu0 0.0
  %4043 = vmatprep.subr.mxu0 0.0
  %4044 = vmatpush1.msra.mxu0 0.0
  %4045 = vmatprep.subr.mxu0 0.0
  %4046 = vmatpush1.msra.mxu0 0.0
  %4047 = vmatprep.subr.mxu0 0.0
  %4048 = vmatpush1.msra.mxu0 0.0
  %4049 = vmatprep.subr.mxu0 0.0
  %4050 = vmatpush1.msra.mxu0 0.0
  %4051 = vmatprep.subr.mxu0 0.0
  %4052 = vmatpush1.msra.mxu0 0.0
  %4053 = vmatprep.subr.mxu0 0.0
  %4054 = vmatpush1.msra.mxu0 0.0
  %4055 = vmatprep.subr.mxu0 0.0
  %4056 = vmatpush1.msra.mxu0 0.0
  %4057 = vmatprep.subr.mxu0 0.0
  %4058 = vmatpush1.msra.mxu0 0.0
  %4059 = vmatprep.subr.mxu0 0.0
  %4060 = vmatpush1.msra.mxu0 0.0
  %4061 = vmatprep.subr.mxu0 0.0
  %4062 = vmatpush1.msra.mxu0 0.0
  %4063 = vmatprep.subr.mxu0 0.0
  %4064 = vmatpush1.msra.mxu0 0.0
  %4065 = vmatprep.mubr.f32.mxu0 0.0
  %v4066 = vand.u32 %v3821, 4294901760
  %v4067 = vsub.f32 %v3821, %v4066
  %4068 = vmatmul.mubr.f32.gmra.mrb[0].mxu0 %v4067
  %v4069 = vpop.f32.mrb[0].mxu0
  %v4070 = vadd.f32 %v3990, %v4069
  %v4071 = vpop.f32.mrb[0].mxu0
  %4072 = vdwg.mxu0
  %4073 = vmatprep.subr.mxu0 0.0
  %v4074 = vand.u32 %v96, 4294901760
  %4075 = vmatpush1.msra.mxu0 %v4074
  %4076 = vmatprep.subr.mxu0 0.0
  %v4077 = vand.u32 %v97, 4294901760
  %4078 = vmatpush1.msra.mxu0 %v4077
  %4079 = vmatprep.subr.mxu0 0.0
  %v4080 = vand.u32 %v98, 4294901760
  %4081 = vmatpush1.msra.mxu0 %v4080
  %4082 = vmatprep.subr.mxu0 0.0
  %v4083 = vand.u32 %v99, 4294901760
  %4084 = vmatpush1.msra.mxu0 %v4083
  %4085 = vmatprep.subr.mxu0 0.0
  %4086 = vmatpush1.msra.mxu0 0.0
  %4087 = vmatprep.subr.mxu0 0.0
  %4088 = vmatpush1.msra.mxu0 0.0
  %4089 = vmatprep.subr.mxu0 0.0
  %4090 = vmatpush1.msra.mxu0 0.0
  %4091 = vmatprep.subr.mxu0 0.0
  %4092 = vmatpush1.msra.mxu0 0.0
  %4093 = vmatprep.subr.mxu0 0.0
  %4094 = vmatpush1.msra.mxu0 0.0
  %4095 = vmatprep.subr.mxu0 0.0
  %4096 = vmatpush1.msra.mxu0 0.0
  %4097 = vmatprep.subr.mxu0 0.0
  %4098 = vmatpush1.msra.mxu0 0.0
  %4099 = vmatprep.subr.mxu0 0.0
  %4100 = vmatpush1.msra.mxu0 0.0
  %4101 = vmatprep.subr.mxu0 0.0
  %4102 = vmatpush1.msra.mxu0 0.0
  %4103 = vmatprep.subr.mxu0 0.0
  %4104 = vmatpush1.msra.mxu0 0.0
  %4105 = vmatprep.subr.mxu0 0.0
  %4106 = vmatpush1.msra.mxu0 0.0
  %4107 = vmatprep.subr.mxu0 0.0
  %4108 = vmatpush1.msra.mxu0 0.0
  %4109 = vmatprep.subr.mxu0 0.0
  %4110 = vmatpush1.msra.mxu0 0.0
  %4111 = vmatprep.subr.mxu0 0.0
  %4112 = vmatpush1.msra.mxu0 0.0
  %4113 = vmatprep.subr.mxu0 0.0
  %4114 = vmatpush1.msra.mxu0 0.0
  %4115 = vmatprep.subr.mxu0 0.0
  %4116 = vmatpush1.msra.mxu0 0.0
  %4117 = vmatprep.subr.mxu0 0.0
  %4118 = vmatpush1.msra.mxu0 0.0
  %4119 = vmatprep.subr.mxu0 0.0
  %4120 = vmatpush1.msra.mxu0 0.0
  %4121 = vmatprep.subr.mxu0 0.0
  %4122 = vmatpush1.msra.mxu0 0.0
  %4123 = vmatprep.subr.mxu0 0.0
  %4124 = vmatpush1.msra.mxu0 0.0
  %4125 = vmatprep.subr.mxu0 0.0
  %4126 = vmatpush1.msra.mxu0 0.0
  %4127 = vmatprep.subr.mxu0 0.0
  %4128 = vmatpush1.msra.mxu0 0.0
  %4129 = vmatprep.subr.mxu0 0.0
  %4130 = vmatpush1.msra.mxu0 0.0
  %4131 = vmatprep.subr.mxu0 0.0
  %4132 = vmatpush1.msra.mxu0 0.0
  %4133 = vmatprep.subr.mxu0 0.0
  %4134 = vmatpush1.msra.mxu0 0.0
  %4135 = vmatprep.subr.mxu0 0.0
  %4136 = vmatpush1.msra.mxu0 0.0
  %4137 = vmatprep.subr.mxu0 0.0
  %4138 = vmatpush1.msra.mxu0 0.0
  %4139 = vmatprep.subr.mxu0 0.0
  %4140 = vmatpush1.msra.mxu0 0.0
  %4141 = vmatprep.mubr.f32.mxu0 0.0
  %v4142 = vand.u32 %v3821, 4294901760
  %v4143 = vsub.f32 %v3821, %v4142
  %v4144 = vand.u32 %v4143, 4294901760
  %4145 = vmatmul.mubr.f32.gmra.mrb[0].mxu0 %v4144
  %v4146 = vpop.f32.mrb[0].mxu0
  %v4147 = vadd.f32 %v4070, %v4146
  %v4148 = vpop.f32.mrb[0].mxu0
  %4149 = vdwg.mxu0
  %4150 = vmatprep.subr.mxu0 0.0
  %v4151 = vand.u32 %v96, 4294901760
  %v4152 = vsub.f32 %v96, %v4151
  %v4153 = vand.u32 %v4152, 4294901760
  %4154 = vmatpush1.msra.mxu0 %v4153
  %4155 = vmatprep.subr.mxu0 0.0
  %v4156 = vand.u32 %v97, 4294901760
  %v4157 = vsub.f32 %v97, %v4156
  %v4158 = vand.u32 %v4157, 4294901760
  %4159 = vmatpush1.msra.mxu0 %v4158
  %4160 = vmatprep.subr.mxu0 0.0
  %v4161 = vand.u32 %v98, 4294901760
  %v4162 = vsub.f32 %v98, %v4161
  %v4163 = vand.u32 %v4162, 4294901760
  %4164 = vmatpush1.msra.mxu0 %v4163
  %4165 = vmatprep.subr.mxu0 0.0
  %v4166 = vand.u32 %v99, 4294901760
  %v4167 = vsub.f32 %v99, %v4166
  %v4168 = vand.u32 %v4167, 4294901760
  %4169 = vmatpush1.msra.mxu0 %v4168
  %4170 = vmatprep.subr.mxu0 0.0
  %4171 = vmatpush1.msra.mxu0 0.0
  %4172 = vmatprep.subr.mxu0 0.0
  %4173 = vmatpush1.msra.mxu0 0.0
  %4174 = vmatprep.subr.mxu0 0.0
  %4175 = vmatpush1.msra.mxu0 0.0
  %4176 = vmatprep.subr.mxu0 0.0
  %4177 = vmatpush1.msra.mxu0 0.0
  %4178 = vmatprep.subr.mxu0 0.0
  %4179 = vmatpush1.msra.mxu0 0.0
  %4180 = vmatprep.subr.mxu0 0.0
  %4181 = vmatpush1.msra.mxu0 0.0
  %4182 = vmatprep.subr.mxu0 0.0
  %4183 = vmatpush1.msra.mxu0 0.0
  %4184 = vmatprep.subr.mxu0 0.0
  %4185 = vmatpush1.msra.mxu0 0.0
  %4186 = vmatprep.subr.mxu0 0.0
  %4187 = vmatpush1.msra.mxu0 0.0
  %4188 = vmatprep.subr.mxu0 0.0
  %4189 = vmatpush1.msra.mxu0 0.0
  %4190 = vmatprep.subr.mxu0 0.0
  %4191 = vmatpush1.msra.mxu0 0.0
  %4192 = vmatprep.subr.mxu0 0.0
  %4193 = vmatpush1.msra.mxu0 0.0
  %4194 = vmatprep.subr.mxu0 0.0
  %4195 = vmatpush1.msra.mxu0 0.0
  %4196 = vmatprep.subr.mxu0 0.0
  %4197 = vmatpush1.msra.mxu0 0.0
  %4198 = vmatprep.subr.mxu0 0.0
  %4199 = vmatpush1.msra.mxu0 0.0
  %4200 = vmatprep.subr.mxu0 0.0
  %4201 = vmatpush1.msra.mxu0 0.0
  %4202 = vmatprep.subr.mxu0 0.0
  %4203 = vmatpush1.msra.mxu0 0.0
  %4204 = vmatprep.subr.mxu0 0.0
  %4205 = vmatpush1.msra.mxu0 0.0
  %4206 = vmatprep.subr.mxu0 0.0
  %4207 = vmatpush1.msra.mxu0 0.0
  %4208 = vmatprep.subr.mxu0 0.0
  %4209 = vmatpush1.msra.mxu0 0.0
  %4210 = vmatprep.subr.mxu0 0.0
  %4211 = vmatpush1.msra.mxu0 0.0
  %4212 = vmatprep.subr.mxu0 0.0
  %4213 = vmatpush1.msra.mxu0 0.0
  %4214 = vmatprep.subr.mxu0 0.0
  %4215 = vmatpush1.msra.mxu0 0.0
  %4216 = vmatprep.subr.mxu0 0.0
  %4217 = vmatpush1.msra.mxu0 0.0
  %4218 = vmatprep.subr.mxu0 0.0
  %4219 = vmatpush1.msra.mxu0 0.0
  %4220 = vmatprep.subr.mxu0 0.0
  %4221 = vmatpush1.msra.mxu0 0.0
  %4222 = vmatprep.subr.mxu0 0.0
  %4223 = vmatpush1.msra.mxu0 0.0
  %4224 = vmatprep.subr.mxu0 0.0
  %4225 = vmatpush1.msra.mxu0 0.0
  %4226 = vmatprep.mubr.f32.mxu0 0.0
  %v4227 = vand.u32 %v3821, 4294901760
  %4228 = vmatmul.mubr.f32.gmra.mrb[0].mxu0 %v4227
  %v4229 = vpop.f32.mrb[0].mxu0
  %v4230 = vadd.f32 %v4147, %v4229
  %v4231 = vpop.f32.mrb[0].mxu0
  %4232 = vdwg.mxu0
  %4233 = vmatprep.subr.mxu0 0.0
  %v4234 = vand.u32 %v96, 4294901760
  %4235 = vmatpush1.msra.mxu0 %v4234
  %4236 = vmatprep.subr.mxu0 0.0
  %v4237 = vand.u32 %v97, 4294901760
  %4238 = vmatpush1.msra.mxu0 %v4237
  %4239 = vmatprep.subr.mxu0 0.0
  %v4240 = vand.u32 %v98, 4294901760
  %4241 = vmatpush1.msra.mxu0 %v4240
  %4242 = vmatprep.subr.mxu0 0.0
  %v4243 = vand.u32 %v99, 4294901760
  %4244 = vmatpush1.msra.mxu0 %v4243
  %4245 = vmatprep.subr.mxu0 0.0
  %4246 = vmatpush1.msra.mxu0 0.0
  %4247 = vmatprep.subr.mxu0 0.0
  %4248 = vmatpush1.msra.mxu0 0.0
  %4249 = vmatprep.subr.mxu0 0.0
  %4250 = vmatpush1.msra.mxu0 0.0
  %4251 = vmatprep.subr.mxu0 0.0
  %4252 = vmatpush1.msra.mxu0 0.0
  %4253 = vmatprep.subr.mxu0 0.0
  %4254 = vmatpush1.msra.mxu0 0.0
  %4255 = vmatprep.subr.mxu0 0.0
  %4256 = vmatpush1.msra.mxu0 0.0
  %4257 = vmatprep.subr.mxu0 0.0
  %4258 = vmatpush1.msra.mxu0 0.0
  %4259 = vmatprep.subr.mxu0 0.0
  %4260 = vmatpush1.msra.mxu0 0.0
  %4261 = vmatprep.subr.mxu0 0.0
  %4262 = vmatpush1.msra.mxu0 0.0
  %4263 = vmatprep.subr.mxu0 0.0
  %4264 = vmatpush1.msra.mxu0 0.0
  %4265 = vmatprep.subr.mxu0 0.0
  %4266 = vmatpush1.msra.mxu0 0.0
  %4267 = vmatprep.subr.mxu0 0.0
  %4268 = vmatpush1.msra.mxu0 0.0
  %4269 = vmatprep.subr.mxu0 0.0
  %4270 = vmatpush1.msra.mxu0 0.0
  %4271 = vmatprep.subr.mxu0 0.0
  %4272 = vmatpush1.msra.mxu0 0.0
  %4273 = vmatprep.subr.mxu0 0.0
  %4274 = vmatpush1.msra.mxu0 0.0
  %4275 = vmatprep.subr.mxu0 0.0
  %4276 = vmatpush1.msra.mxu0 0.0
  %4277 = vmatprep.subr.mxu0 0.0
  %4278 = vmatpush1.msra.mxu0 0.0
  %4279 = vmatprep.subr.mxu0 0.0
  %4280 = vmatpush1.msra.mxu0 0.0
  %4281 = vmatprep.subr.mxu0 0.0
  %4282 = vmatpush1.msra.mxu0 0.0
  %4283 = vmatprep.subr.mxu0 0.0
  %4284 = vmatpush1.msra.mxu0 0.0
  %4285 = vmatprep.subr.mxu0 0.0
  %4286 = vmatpush1.msra.mxu0 0.0
  %4287 = vmatprep.subr.mxu0 0.0
  %4288 = vmatpush1.msra.mxu0 0.0
  %4289 = vmatprep.subr.mxu0 0.0
  %4290 = vmatpush1.msra.mxu0 0.0
  %4291 = vmatprep.subr.mxu0 0.0
  %4292 = vmatpush1.msra.mxu0 0.0
  %4293 = vmatprep.subr.mxu0 0.0
  %4294 = vmatpush1.msra.mxu0 0.0
  %4295 = vmatprep.subr.mxu0 0.0
  %4296 = vmatpush1.msra.mxu0 0.0
  %4297 = vmatprep.subr.mxu0 0.0
  %4298 = vmatpush1.msra.mxu0 0.0
  %4299 = vmatprep.subr.mxu0 0.0
  %4300 = vmatpush1.msra.mxu0 0.0
  %4301 = vmatprep.mubr.f32.mxu0 0.0
  %v4302 = vand.u32 %v3821, 4294901760
  %4303 = vmatmul.mubr.f32.gmra.mrb[0].mxu0 %v4302
  %v4304 = vpop.f32.mrb[0].mxu0
  %v4305 = vadd.f32 %v4230, %v4304
  %v4306 = vpop.f32.mrb[0].mxu0
  %4307 = vdwg.mxu0
  %v4308 = vadd.f32 %v3817, %v4305
  %v4309 = vxor.u32 %v4308, 2147483648
  %v4310 = vmul.f32 %v4309, 1.442695
  %v4311 = vpow.pop %v4310
  %v4312 = vadd.f32 %v4311, 1.0
  %v4313 = vrcp.pop %v4312
  %v4314 = vmul.f32 1.0, %v4313
  %v4315 = vtanh.pop %v4308
  %v4316 = vmul.f32 %v4314, %v3266
  %4318 = vrot.lane.b32.xlu0 %v4315, 64
  %v4319 = vpop.permute.xlu0 %4318
  %v4321 = vmul.f32 %v4314, %v4319
  %4323 = vrot.lane.b32.xlu0 %v4321, 32
  %v4324 = vpop.permute.xlu0 %4323
  %v4326 = vadd.f32 %v4316, %v4324
  %v4327 = vtanh.pop %v4326
  %4329 = vrot.lane.b32.xlu0 %v4327, 64
  %v4330 = vpop.permute.xlu0 %4329
  %v4332 = vmul.f32 %v4314, %v4330
  %s4333 = scalar_lea.vmem %s72, 32
  %v4334 = vld [vmem:[%s4333] sm:$0xff]
  %4336 = vrot.lane.b32.xlu0 %v4334, 96
  %v4337 = vpop.permute.xlu0 %4336
  %v4339 = vadd.f32 %v4332, %v4337
  %4341 = vrot.lane.b32.xlu0 %v4339, 32
  %v4342 = vpop.permute.xlu0 %4341
  %s4344 = scalar_lea.vmem %s80, 32
  %4345 = vst.msk [vmem:[%s4344] sm:$0xff] %vm105, %v4342
  %s4346 = scalar_lea.vmem %s0, 32
  %v4347 = vld [vmem:[%s4346] sm:$0xff]
  %4349 = vrot.lane.b32.xlu0 %v3802, 32
  %v4350 = vpop.permute.xlu0 %4349
  %v4351 = vsel %vm105, %v4350, 0
  %4353 = vmatprep.subr.mxu0 0.0
  %v4354 = vand.u32 %v92, 4294901760
  %4355 = vmatpush1.msra.mxu0 %v4354
  %4356 = vmatprep.subr.mxu0 0.0
  %v4357 = vand.u32 %v93, 4294901760
  %4358 = vmatpush1.msra.mxu0 %v4357
  %4359 = vmatprep.subr.mxu0 0.0
  %v4360 = vand.u32 %v94, 4294901760
  %4361 = vmatpush1.msra.mxu0 %v4360
  %4362 = vmatprep.subr.mxu0 0.0
  %v4363 = vand.u32 %v95, 4294901760
  %4364 = vmatpush1.msra.mxu0 %v4363
  %4365 = vmatprep.subr.mxu0 0.0
  %4366 = vmatpush1.msra.mxu0 0.0
  %4367 = vmatprep.subr.mxu0 0.0
  %4368 = vmatpush1.msra.mxu0 0.0
  %4369 = vmatprep.subr.mxu0 0.0
  %4370 = vmatpush1.msra.mxu0 0.0
  %4371 = vmatprep.subr.mxu0 0.0
  %4372 = vmatpush1.msra.mxu0 0.0
  %4373 = vmatprep.subr.mxu0 0.0
  %4374 = vmatpush1.msra.mxu0 0.0
  %4375 = vmatprep.subr.mxu0 0.0
  %4376 = vmatpush1.msra.mxu0 0.0
  %4377 = vmatprep.subr.mxu0 0.0
  %4378 = vmatpush1.msra.mxu0 0.0
  %4379 = vmatprep.subr.mxu0 0.0
  %4380 = vmatpush1.msra.mxu0 0.0
  %4381 = vmatprep.subr.mxu0 0.0
  %4382 = vmatpush1.msra.mxu0 0.0
  %4383 = vmatprep.subr.mxu0 0.0
  %4384 = vmatpush1.msra.mxu0 0.0
  %4385 = vmatprep.subr.mxu0 0.0
  %4386 = vmatpush1.msra.mxu0 0.0
  %4387 = vmatprep.subr.mxu0 0.0
  %4388 = vmatpush1.msra.mxu0 0.0
  %4389 = vmatprep.subr.mxu0 0.0
  %4390 = vmatpush1.msra.mxu0 0.0
  %4391 = vmatprep.subr.mxu0 0.0
  %4392 = vmatpush1.msra.mxu0 0.0
  %4393 = vmatprep.subr.mxu0 0.0
  %4394 = vmatpush1.msra.mxu0 0.0
  %4395 = vmatprep.subr.mxu0 0.0
  %4396 = vmatpush1.msra.mxu0 0.0
  %4397 = vmatprep.subr.mxu0 0.0
  %4398 = vmatpush1.msra.mxu0 0.0
  %4399 = vmatprep.subr.mxu0 0.0
  %4400 = vmatpush1.msra.mxu0 0.0
  %4401 = vmatprep.subr.mxu0 0.0
  %4402 = vmatpush1.msra.mxu0 0.0
  %4403 = vmatprep.subr.mxu0 0.0
  %4404 = vmatpush1.msra.mxu0 0.0
  %4405 = vmatprep.subr.mxu0 0.0
  %4406 = vmatpush1.msra.mxu0 0.0
  %4407 = vmatprep.subr.mxu0 0.0
  %4408 = vmatpush1.msra.mxu0 0.0
  %4409 = vmatprep.subr.mxu0 0.0
  %4410 = vmatpush1.msra.mxu0 0.0
  %4411 = vmatprep.subr.mxu0 0.0
  %4412 = vmatpush1.msra.mxu0 0.0
  %4413 = vmatprep.subr.mxu0 0.0
  %4414 = vmatpush1.msra.mxu0 0.0
  %4415 = vmatprep.subr.mxu0 0.0
  %4416 = vmatpush1.msra.mxu0 0.0
  %4417 = vmatprep.subr.mxu0 0.0
  %4418 = vmatpush1.msra.mxu0 0.0
  %4419 = vmatprep.subr.mxu0 0.0
  %4420 = vmatpush1.msra.mxu0 0.0
  %4421 = vmatprep.mubr.f32.mxu0 0.0
  %v4422 = vand.u32 %v4351, 4294901760
  %v4423 = vsub.f32 %v4351, %v4422
  %v4424 = vand.u32 %v4423, 4294901760
  %v4425 = vsub.f32 %v4423, %v4424
  %v4426 = vand.u32 %v4425, 4294901760
  %4427 = vmatmul.mubr.f32.gmra.mrb[0].mxu0 %v4426
  %v4428 = vpop.f32.mrb[0].mxu0
  %v4429 = vadd.f32 0.0, %v4428
  %v4430 = vpop.f32.mrb[0].mxu0
  %4431 = vdwg.mxu0
  %4432 = vmatprep.subr.mxu0 0.0
  %v4433 = vand.u32 %v92, 4294901760
  %v4434 = vsub.f32 %v92, %v4433
  %v4435 = vand.u32 %v4434, 4294901760
  %v4436 = vsub.f32 %v4434, %v4435
  %v4437 = vand.u32 %v4436, 4294901760
  %4438 = vmatpush1.msra.mxu0 %v4437
  %4439 = vmatprep.subr.mxu0 0.0
  %v4440 = vand.u32 %v93, 4294901760
  %v4441 = vsub.f32 %v93, %v4440
  %v4442 = vand.u32 %v4441, 4294901760
  %v4443 = vsub.f32 %v4441, %v4442
  %v4444 = vand.u32 %v4443, 4294901760
  %4445 = vmatpush1.msra.mxu0 %v4444
  %4446 = vmatprep.subr.mxu0 0.0
  %v4447 = vand.u32 %v94, 4294901760
  %v4448 = vsub.f32 %v94, %v4447
  %v4449 = vand.u32 %v4448, 4294901760
  %v4450 = vsub.f32 %v4448, %v4449
  %v4451 = vand.u32 %v4450, 4294901760
  %4452 = vmatpush1.msra.mxu0 %v4451
  %4453 = vmatprep.subr.mxu0 0.0
  %v4454 = vand.u32 %v95, 4294901760
  %v4455 = vsub.f32 %v95, %v4454
  %v4456 = vand.u32 %v4455, 4294901760
  %v4457 = vsub.f32 %v4455, %v4456
  %v4458 = vand.u32 %v4457, 4294901760
  %4459 = vmatpush1.msra.mxu0 %v4458
  %4460 = vmatprep.subr.mxu0 0.0
  %4461 = vmatpush1.msra.mxu0 0.0
  %4462 = vmatprep.subr.mxu0 0.0
  %4463 = vmatpush1.msra.mxu0 0.0
  %4464 = vmatprep.subr.mxu0 0.0
  %4465 = vmatpush1.msra.mxu0 0.0
  %4466 = vmatprep.subr.mxu0 0.0
  %4467 = vmatpush1.msra.mxu0 0.0
  %4468 = vmatprep.subr.mxu0 0.0
  %4469 = vmatpush1.msra.mxu0 0.0
  %4470 = vmatprep.subr.mxu0 0.0
  %4471 = vmatpush1.msra.mxu0 0.0
  %4472 = vmatprep.subr.mxu0 0.0
  %4473 = vmatpush1.msra.mxu0 0.0
  %4474 = vmatprep.subr.mxu0 0.0
  %4475 = vmatpush1.msra.mxu0 0.0
  %4476 = vmatprep.subr.mxu0 0.0
  %4477 = vmatpush1.msra.mxu0 0.0
  %4478 = vmatprep.subr.mxu0 0.0
  %4479 = vmatpush1.msra.mxu0 0.0
  %4480 = vmatprep.subr.mxu0 0.0
  %4481 = vmatpush1.msra.mxu0 0.0
  %4482 = vmatprep.subr.mxu0 0.0
  %4483 = vmatpush1.msra.mxu0 0.0
  %4484 = vmatprep.subr.mxu0 0.0
  %4485 = vmatpush1.msra.mxu0 0.0
  %4486 = vmatprep.subr.mxu0 0.0
  %4487 = vmatpush1.msra.mxu0 0.0
  %4488 = vmatprep.subr.mxu0 0.0
  %4489 = vmatpush1.msra.mxu0 0.0
  %4490 = vmatprep.subr.mxu0 0.0
  %4491 = vmatpush1.msra.mxu0 0.0
  %4492 = vmatprep.subr.mxu0 0.0
  %4493 = vmatpush1.msra.mxu0 0.0
  %4494 = vmatprep.subr.mxu0 0.0
  %4495 = vmatpush1.msra.mxu0 0.0
  %4496 = vmatprep.subr.mxu0 0.0
  %4497 = vmatpush1.msra.mxu0 0.0
  %4498 = vmatprep.subr.mxu0 0.0
  %4499 = vmatpush1.msra.mxu0 0.0
  %4500 = vmatprep.subr.mxu0 0.0
  %4501 = vmatpush1.msra.mxu0 0.0
  %4502 = vmatprep.subr.mxu0 0.0
  %4503 = vmatpush1.msra.mxu0 0.0
  %4504 = vmatprep.subr.mxu0 0.0
  %4505 = vmatpush1.msra.mxu0 0.0
  %4506 = vmatprep.subr.mxu0 0.0
  %4507 = vmatpush1.msra.mxu0 0.0
  %4508 = vmatprep.subr.mxu0 0.0
  %4509 = vmatpush1.msra.mxu0 0.0
  %4510 = vmatprep.subr.mxu0 0.0
  %4511 = vmatpush1.msra.mxu0 0.0
  %4512 = vmatprep.subr.mxu0 0.0
  %4513 = vmatpush1.msra.mxu0 0.0
  %4514 = vmatprep.subr.mxu0 0.0
  %4515 = vmatpush1.msra.mxu0 0.0
  %4516 = vmatprep.mubr.f32.mxu0 0.0
  %v4517 = vand.u32 %v4351, 4294901760
  %4518 = vmatmul.mubr.f32.gmra.mrb[0].mxu0 %v4517
  %v4519 = vpop.f32.mrb[0].mxu0
  %v4520 = vadd.f32 %v4429, %v4519
  %v4521 = vpop.f32.mrb[0].mxu0
  %4522 = vdwg.mxu0
  %4523 = vmatprep.subr.mxu0 0.0
  %v4524 = vand.u32 %v92, 4294901760
  %v4525 = vsub.f32 %v92, %v4524
  %4526 = vmatpush1.msra.mxu0 %v4525
  %4527 = vmatprep.subr.mxu0 0.0
  %v4528 = vand.u32 %v93, 4294901760
  %v4529 = vsub.f32 %v93, %v4528
  %4530 = vmatpush1.msra.mxu0 %v4529
  %4531 = vmatprep.subr.mxu0 0.0
  %v4532 = vand.u32 %v94, 4294901760
  %v4533 = vsub.f32 %v94, %v4532
  %4534 = vmatpush1.msra.mxu0 %v4533
  %4535 = vmatprep.subr.mxu0 0.0
  %v4536 = vand.u32 %v95, 4294901760
  %v4537 = vsub.f32 %v95, %v4536
  %4538 = vmatpush1.msra.mxu0 %v4537
  %4539 = vmatprep.subr.mxu0 0.0
  %4540 = vmatpush1.msra.mxu0 0.0
  %4541 = vmatprep.subr.mxu0 0.0
  %4542 = vmatpush1.msra.mxu0 0.0
  %4543 = vmatprep.subr.mxu0 0.0
  %4544 = vmatpush1.msra.mxu0 0.0
  %4545 = vmatprep.subr.mxu0 0.0
  %4546 = vmatpush1.msra.mxu0 0.0
  %4547 = vmatprep.subr.mxu0 0.0
  %4548 = vmatpush1.msra.mxu0 0.0
  %4549 = vmatprep.subr.mxu0 0.0
  %4550 = vmatpush1.msra.mxu0 0.0
  %4551 = vmatprep.subr.mxu0 0.0
  %4552 = vmatpush1.msra.mxu0 0.0
  %4553 = vmatprep.subr.mxu0 0.0
  %4554 = vmatpush1.msra.mxu0 0.0
  %4555 = vmatprep.subr.mxu0 0.0
  %4556 = vmatpush1.msra.mxu0 0.0
  %4557 = vmatprep.subr.mxu0 0.0
  %4558 = vmatpush1.msra.mxu0 0.0
  %4559 = vmatprep.subr.mxu0 0.0
  %4560 = vmatpush1.msra.mxu0 0.0
  %4561 = vmatprep.subr.mxu0 0.0
  %4562 = vmatpush1.msra.mxu0 0.0
  %4563 = vmatprep.subr.mxu0 0.0
  %4564 = vmatpush1.msra.mxu0 0.0
  %4565 = vmatprep.subr.mxu0 0.0
  %4566 = vmatpush1.msra.mxu0 0.0
  %4567 = vmatprep.subr.mxu0 0.0
  %4568 = vmatpush1.msra.mxu0 0.0
  %4569 = vmatprep.subr.mxu0 0.0
  %4570 = vmatpush1.msra.mxu0 0.0
  %4571 = vmatprep.subr.mxu0 0.0
  %4572 = vmatpush1.msra.mxu0 0.0
  %4573 = vmatprep.subr.mxu0 0.0
  %4574 = vmatpush1.msra.mxu0 0.0
  %4575 = vmatprep.subr.mxu0 0.0
  %4576 = vmatpush1.msra.mxu0 0.0
  %4577 = vmatprep.subr.mxu0 0.0
  %4578 = vmatpush1.msra.mxu0 0.0
  %4579 = vmatprep.subr.mxu0 0.0
  %4580 = vmatpush1.msra.mxu0 0.0
  %4581 = vmatprep.subr.mxu0 0.0
  %4582 = vmatpush1.msra.mxu0 0.0
  %4583 = vmatprep.subr.mxu0 0.0
  %4584 = vmatpush1.msra.mxu0 0.0
  %4585 = vmatprep.subr.mxu0 0.0
  %4586 = vmatpush1.msra.mxu0 0.0
  %4587 = vmatprep.subr.mxu0 0.0
  %4588 = vmatpush1.msra.mxu0 0.0
  %4589 = vmatprep.subr.mxu0 0.0
  %4590 = vmatpush1.msra.mxu0 0.0
  %4591 = vmatprep.subr.mxu0 0.0
  %4592 = vmatpush1.msra.mxu0 0.0
  %4593 = vmatprep.subr.mxu0 0.0
  %4594 = vmatpush1.msra.mxu0 0.0
  %4595 = vmatprep.mubr.f32.mxu0 0.0
  %v4596 = vand.u32 %v4351, 4294901760
  %v4597 = vsub.f32 %v4351, %v4596
  %4598 = vmatmul.mubr.f32.gmra.mrb[0].mxu0 %v4597
  %v4599 = vpop.f32.mrb[0].mxu0
  %v4600 = vadd.f32 %v4520, %v4599
  %v4601 = vpop.f32.mrb[0].mxu0
  %4602 = vdwg.mxu0
  %4603 = vmatprep.subr.mxu0 0.0
  %v4604 = vand.u32 %v92, 4294901760
  %4605 = vmatpush1.msra.mxu0 %v4604
  %4606 = vmatprep.subr.mxu0 0.0
  %v4607 = vand.u32 %v93, 4294901760
  %4608 = vmatpush1.msra.mxu0 %v4607
  %4609 = vmatprep.subr.mxu0 0.0
  %v4610 = vand.u32 %v94, 4294901760
  %4611 = vmatpush1.msra.mxu0 %v4610
  %4612 = vmatprep.subr.mxu0 0.0
  %v4613 = vand.u32 %v95, 4294901760
  %4614 = vmatpush1.msra.mxu0 %v4613
  %4615 = vmatprep.subr.mxu0 0.0
  %4616 = vmatpush1.msra.mxu0 0.0
  %4617 = vmatprep.subr.mxu0 0.0
  %4618 = vmatpush1.msra.mxu0 0.0
  %4619 = vmatprep.subr.mxu0 0.0
  %4620 = vmatpush1.msra.mxu0 0.0
  %4621 = vmatprep.subr.mxu0 0.0
  %4622 = vmatpush1.msra.mxu0 0.0
  %4623 = vmatprep.subr.mxu0 0.0
  %4624 = vmatpush1.msra.mxu0 0.0
  %4625 = vmatprep.subr.mxu0 0.0
  %4626 = vmatpush1.msra.mxu0 0.0
  %4627 = vmatprep.subr.mxu0 0.0
  %4628 = vmatpush1.msra.mxu0 0.0
  %4629 = vmatprep.subr.mxu0 0.0
  %4630 = vmatpush1.msra.mxu0 0.0
  %4631 = vmatprep.subr.mxu0 0.0
  %4632 = vmatpush1.msra.mxu0 0.0
  %4633 = vmatprep.subr.mxu0 0.0
  %4634 = vmatpush1.msra.mxu0 0.0
  %4635 = vmatprep.subr.mxu0 0.0
  %4636 = vmatpush1.msra.mxu0 0.0
  %4637 = vmatprep.subr.mxu0 0.0
  %4638 = vmatpush1.msra.mxu0 0.0
  %4639 = vmatprep.subr.mxu0 0.0
  %4640 = vmatpush1.msra.mxu0 0.0
  %4641 = vmatprep.subr.mxu0 0.0
  %4642 = vmatpush1.msra.mxu0 0.0
  %4643 = vmatprep.subr.mxu0 0.0
  %4644 = vmatpush1.msra.mxu0 0.0
  %4645 = vmatprep.subr.mxu0 0.0
  %4646 = vmatpush1.msra.mxu0 0.0
  %4647 = vmatprep.subr.mxu0 0.0
  %4648 = vmatpush1.msra.mxu0 0.0
  %4649 = vmatprep.subr.mxu0 0.0
  %4650 = vmatpush1.msra.mxu0 0.0
  %4651 = vmatprep.subr.mxu0 0.0
  %4652 = vmatpush1.msra.mxu0 0.0
  %4653 = vmatprep.subr.mxu0 0.0
  %4654 = vmatpush1.msra.mxu0 0.0
  %4655 = vmatprep.subr.mxu0 0.0
  %4656 = vmatpush1.msra.mxu0 0.0
  %4657 = vmatprep.subr.mxu0 0.0
  %4658 = vmatpush1.msra.mxu0 0.0
  %4659 = vmatprep.subr.mxu0 0.0
  %4660 = vmatpush1.msra.mxu0 0.0
  %4661 = vmatprep.subr.mxu0 0.0
  %4662 = vmatpush1.msra.mxu0 0.0
  %4663 = vmatprep.subr.mxu0 0.0
  %4664 = vmatpush1.msra.mxu0 0.0
  %4665 = vmatprep.subr.mxu0 0.0
  %4666 = vmatpush1.msra.mxu0 0.0
  %4667 = vmatprep.subr.mxu0 0.0
  %4668 = vmatpush1.msra.mxu0 0.0
  %4669 = vmatprep.subr.mxu0 0.0
  %4670 = vmatpush1.msra.mxu0 0.0
  %4671 = vmatprep.mubr.f32.mxu0 0.0
  %v4672 = vand.u32 %v4351, 4294901760
  %v4673 = vsub.f32 %v4351, %v4672
  %v4674 = vand.u32 %v4673, 4294901760
  %4675 = vmatmul.mubr.f32.gmra.mrb[0].mxu0 %v4674
  %v4676 = vpop.f32.mrb[0].mxu0
  %v4677 = vadd.f32 %v4600, %v4676
  %v4678 = vpop.f32.mrb[0].mxu0
  %4679 = vdwg.mxu0
  %4680 = vmatprep.subr.mxu0 0.0
  %v4681 = vand.u32 %v92, 4294901760
  %v4682 = vsub.f32 %v92, %v4681
  %v4683 = vand.u32 %v4682, 4294901760
  %4684 = vmatpush1.msra.mxu0 %v4683
  %4685 = vmatprep.subr.mxu0 0.0
  %v4686 = vand.u32 %v93, 4294901760
  %v4687 = vsub.f32 %v93, %v4686
  %v4688 = vand.u32 %v4687, 4294901760
  %4689 = vmatpush1.msra.mxu0 %v4688
  %4690 = vmatprep.subr.mxu0 0.0
  %v4691 = vand.u32 %v94, 4294901760
  %v4692 = vsub.f32 %v94, %v4691
  %v4693 = vand.u32 %v4692, 4294901760
  %4694 = vmatpush1.msra.mxu0 %v4693
  %4695 = vmatprep.subr.mxu0 0.0
  %v4696 = vand.u32 %v95, 4294901760
  %v4697 = vsub.f32 %v95, %v4696
  %v4698 = vand.u32 %v4697, 4294901760
  %4699 = vmatpush1.msra.mxu0 %v4698
  %4700 = vmatprep.subr.mxu0 0.0
  %4701 = vmatpush1.msra.mxu0 0.0
  %4702 = vmatprep.subr.mxu0 0.0
  %4703 = vmatpush1.msra.mxu0 0.0
  %4704 = vmatprep.subr.mxu0 0.0
  %4705 = vmatpush1.msra.mxu0 0.0
  %4706 = vmatprep.subr.mxu0 0.0
  %4707 = vmatpush1.msra.mxu0 0.0
  %4708 = vmatprep.subr.mxu0 0.0
  %4709 = vmatpush1.msra.mxu0 0.0
  %4710 = vmatprep.subr.mxu0 0.0
  %4711 = vmatpush1.msra.mxu0 0.0
  %4712 = vmatprep.subr.mxu0 0.0
  %4713 = vmatpush1.msra.mxu0 0.0
  %4714 = vmatprep.subr.mxu0 0.0
  %4715 = vmatpush1.msra.mxu0 0.0
  %4716 = vmatprep.subr.mxu0 0.0
  %4717 = vmatpush1.msra.mxu0 0.0
  %4718 = vmatprep.subr.mxu0 0.0
  %4719 = vmatpush1.msra.mxu0 0.0
  %4720 = vmatprep.subr.mxu0 0.0
  %4721 = vmatpush1.msra.mxu0 0.0
  %4722 = vmatprep.subr.mxu0 0.0
  %4723 = vmatpush1.msra.mxu0 0.0
  %4724 = vmatprep.subr.mxu0 0.0
  %4725 = vmatpush1.msra.mxu0 0.0
  %4726 = vmatprep.subr.mxu0 0.0
  %4727 = vmatpush1.msra.mxu0 0.0
  %4728 = vmatprep.subr.mxu0 0.0
  %4729 = vmatpush1.msra.mxu0 0.0
  %4730 = vmatprep.subr.mxu0 0.0
  %4731 = vmatpush1.msra.mxu0 0.0
  %4732 = vmatprep.subr.mxu0 0.0
  %4733 = vmatpush1.msra.mxu0 0.0
  %4734 = vmatprep.subr.mxu0 0.0
  %4735 = vmatpush1.msra.mxu0 0.0
  %4736 = vmatprep.subr.mxu0 0.0
  %4737 = vmatpush1.msra.mxu0 0.0
  %4738 = vmatprep.subr.mxu0 0.0
  %4739 = vmatpush1.msra.mxu0 0.0
  %4740 = vmatprep.subr.mxu0 0.0
  %4741 = vmatpush1.msra.mxu0 0.0
  %4742 = vmatprep.subr.mxu0 0.0
  %4743 = vmatpush1.msra.mxu0 0.0
  %4744 = vmatprep.subr.mxu0 0.0
  %4745 = vmatpush1.msra.mxu0 0.0
  %4746 = vmatprep.subr.mxu0 0.0
  %4747 = vmatpush1.msra.mxu0 0.0
  %4748 = vmatprep.subr.mxu0 0.0
  %4749 = vmatpush1.msra.mxu0 0.0
  %4750 = vmatprep.subr.mxu0 0.0
  %4751 = vmatpush1.msra.mxu0 0.0
  %4752 = vmatprep.subr.mxu0 0.0
  %4753 = vmatpush1.msra.mxu0 0.0
  %4754 = vmatprep.subr.mxu0 0.0
  %4755 = vmatpush1.msra.mxu0 0.0
  %4756 = vmatprep.mubr.f32.mxu0 0.0
  %v4757 = vand.u32 %v4351, 4294901760
  %4758 = vmatmul.mubr.f32.gmra.mrb[0].mxu0 %v4757
  %v4759 = vpop.f32.mrb[0].mxu0
  %v4760 = vadd.f32 %v4677, %v4759
  %v4761 = vpop.f32.mrb[0].mxu0
  %4762 = vdwg.mxu0
  %4763 = vmatprep.subr.mxu0 0.0
  %v4764 = vand.u32 %v92, 4294901760
  %4765 = vmatpush1.msra.mxu0 %v4764
  %4766 = vmatprep.subr.mxu0 0.0
  %v4767 = vand.u32 %v93, 4294901760
  %4768 = vmatpush1.msra.mxu0 %v4767
  %4769 = vmatprep.subr.mxu0 0.0
  %v4770 = vand.u32 %v94, 4294901760
  %4771 = vmatpush1.msra.mxu0 %v4770
  %4772 = vmatprep.subr.mxu0 0.0
  %v4773 = vand.u32 %v95, 4294901760
  %4774 = vmatpush1.msra.mxu0 %v4773
  %4775 = vmatprep.subr.mxu0 0.0
  %4776 = vmatpush1.msra.mxu0 0.0
  %4777 = vmatprep.subr.mxu0 0.0
  %4778 = vmatpush1.msra.mxu0 0.0
  %4779 = vmatprep.subr.mxu0 0.0
  %4780 = vmatpush1.msra.mxu0 0.0
  %4781 = vmatprep.subr.mxu0 0.0
  %4782 = vmatpush1.msra.mxu0 0.0
  %4783 = vmatprep.subr.mxu0 0.0
  %4784 = vmatpush1.msra.mxu0 0.0
  %4785 = vmatprep.subr.mxu0 0.0
  %4786 = vmatpush1.msra.mxu0 0.0
  %4787 = vmatprep.subr.mxu0 0.0
  %4788 = vmatpush1.msra.mxu0 0.0
  %4789 = vmatprep.subr.mxu0 0.0
  %4790 = vmatpush1.msra.mxu0 0.0
  %4791 = vmatprep.subr.mxu0 0.0
  %4792 = vmatpush1.msra.mxu0 0.0
  %4793 = vmatprep.subr.mxu0 0.0
  %4794 = vmatpush1.msra.mxu0 0.0
  %4795 = vmatprep.subr.mxu0 0.0
  %4796 = vmatpush1.msra.mxu0 0.0
  %4797 = vmatprep.subr.mxu0 0.0
  %4798 = vmatpush1.msra.mxu0 0.0
  %4799 = vmatprep.subr.mxu0 0.0
  %4800 = vmatpush1.msra.mxu0 0.0
  %4801 = vmatprep.subr.mxu0 0.0
  %4802 = vmatpush1.msra.mxu0 0.0
  %4803 = vmatprep.subr.mxu0 0.0
  %4804 = vmatpush1.msra.mxu0 0.0
  %4805 = vmatprep.subr.mxu0 0.0
  %4806 = vmatpush1.msra.mxu0 0.0
  %4807 = vmatprep.subr.mxu0 0.0
  %4808 = vmatpush1.msra.mxu0 0.0
  %4809 = vmatprep.subr.mxu0 0.0
  %4810 = vmatpush1.msra.mxu0 0.0
  %4811 = vmatprep.subr.mxu0 0.0
  %4812 = vmatpush1.msra.mxu0 0.0
  %4813 = vmatprep.subr.mxu0 0.0
  %4814 = vmatpush1.msra.mxu0 0.0
  %4815 = vmatprep.subr.mxu0 0.0
  %4816 = vmatpush1.msra.mxu0 0.0
  %4817 = vmatprep.subr.mxu0 0.0
  %4818 = vmatpush1.msra.mxu0 0.0
  %4819 = vmatprep.subr.mxu0 0.0
  %4820 = vmatpush1.msra.mxu0 0.0
  %4821 = vmatprep.subr.mxu0 0.0
  %4822 = vmatpush1.msra.mxu0 0.0
  %4823 = vmatprep.subr.mxu0 0.0
  %4824 = vmatpush1.msra.mxu0 0.0
  %4825 = vmatprep.subr.mxu0 0.0
  %4826 = vmatpush1.msra.mxu0 0.0
  %4827 = vmatprep.subr.mxu0 0.0
  %4828 = vmatpush1.msra.mxu0 0.0
  %4829 = vmatprep.subr.mxu0 0.0
  %4830 = vmatpush1.msra.mxu0 0.0
  %4831 = vmatprep.mubr.f32.mxu0 0.0
  %v4832 = vand.u32 %v4351, 4294901760
  %4833 = vmatmul.mubr.f32.gmra.mrb[0].mxu0 %v4832
  %v4834 = vpop.f32.mrb[0].mxu0
  %v4835 = vadd.f32 %v4760, %v4834
  %v4836 = vpop.f32.mrb[0].mxu0
  %4837 = vdwg.mxu0
  %v4838 = vadd.f32 %v4347, %v4835
  %v4839 = vxor.u32 %v4838, 2147483648
  %v4840 = vmul.f32 %v4839, 1.442695
  %v4841 = vpow.pop %v4840
  %v4842 = vadd.f32 %v4841, 1.0
  %v4843 = vrcp.pop %v4842
  %v4844 = vmul.f32 1.0, %v4843
  %v4845 = vtanh.pop %v4838
  %v4846 = vmul.f32 %v4844, %v3796
  %4848 = vrot.lane.b32.xlu0 %v4845, 64
  %v4849 = vpop.permute.xlu0 %4848
  %v4851 = vmul.f32 %v4844, %v4849
  %4853 = vrot.lane.b32.xlu0 %v4851, 32
  %v4854 = vpop.permute.xlu0 %4853
  %v4856 = vadd.f32 %v4846, %v4854
  %v4857 = vtanh.pop %v4856
  %4859 = vrot.lane.b32.xlu0 %v4857, 64
  %v4860 = vpop.permute.xlu0 %4859
  %v4862 = vmul.f32 %v4844, %v4860
  %s4863 = scalar_lea.vmem %s4, 32
  %v4864 = vld [vmem:[%s4863] sm:$0xff]
  %4866 = vrot.lane.b32.xlu0 %v4864, 96
  %v4867 = vpop.permute.xlu0 %4866
  %v4869 = vadd.f32 %v4862, %v4867
  %4871 = vrot.lane.b32.xlu0 %v4869, 32
  %v4872 = vpop.permute.xlu0 %4871
  %s4874 = scalar_lea.vmem %s6, 32
  %4875 = vst.msk [vmem:[%s4874] sm:$0xff] %vm105, %v4872
  %s4876 = scalar_lea.vmem %s64, 24
  %v4877 = vld [vmem:[%s4876] sm:$0xff]
  %4879 = vrot.lane.b32.xlu0 %v4332, 32
  %v4880 = vpop.permute.xlu0 %4879
  %v4881 = vsel %vm105, %v4880, 0
  %4883 = vmatprep.subr.mxu0 0.0
  %v4884 = vand.u32 %v96, 4294901760
  %4885 = vmatpush1.msra.mxu0 %v4884
  %4886 = vmatprep.subr.mxu0 0.0
  %v4887 = vand.u32 %v97, 4294901760
  %4888 = vmatpush1.msra.mxu0 %v4887
  %4889 = vmatprep.subr.mxu0 0.0
  %v4890 = vand.u32 %v98, 4294901760
  %4891 = vmatpush1.msra.mxu0 %v4890
  %4892 = vmatprep.subr.mxu0 0.0
  %v4893 = vand.u32 %v99, 4294901760
  %4894 = vmatpush1.msra.mxu0 %v4893
  %4895 = vmatprep.subr.mxu0 0.0
  %4896 = vmatpush1.msra.mxu0 0.0
  %4897 = vmatprep.subr.mxu0 0.0
  %4898 = vmatpush1.msra.mxu0 0.0
  %4899 = vmatprep.subr.mxu0 0.0
  %4900 = vmatpush1.msra.mxu0 0.0
  %4901 = vmatprep.subr.mxu0 0.0
  %4902 = vmatpush1.msra.mxu0 0.0
  %4903 = vmatprep.subr.mxu0 0.0
  %4904 = vmatpush1.msra.mxu0 0.0
  %4905 = vmatprep.subr.mxu0 0.0
  %4906 = vmatpush1.msra.mxu0 0.0
  %4907 = vmatprep.subr.mxu0 0.0
  %4908 = vmatpush1.msra.mxu0 0.0
  %4909 = vmatprep.subr.mxu0 0.0
  %4910 = vmatpush1.msra.mxu0 0.0
  %4911 = vmatprep.subr.mxu0 0.0
  %4912 = vmatpush1.msra.mxu0 0.0
  %4913 = vmatprep.subr.mxu0 0.0
  %4914 = vmatpush1.msra.mxu0 0.0
  %4915 = vmatprep.subr.mxu0 0.0
  %4916 = vmatpush1.msra.mxu0 0.0
  %4917 = vmatprep.subr.mxu0 0.0
  %4918 = vmatpush1.msra.mxu0 0.0
  %4919 = vmatprep.subr.mxu0 0.0
  %4920 = vmatpush1.msra.mxu0 0.0
  %4921 = vmatprep.subr.mxu0 0.0
  %4922 = vmatpush1.msra.mxu0 0.0
  %4923 = vmatprep.subr.mxu0 0.0
  %4924 = vmatpush1.msra.mxu0 0.0
  %4925 = vmatprep.subr.mxu0 0.0
  %4926 = vmatpush1.msra.mxu0 0.0
  %4927 = vmatprep.subr.mxu0 0.0
  %4928 = vmatpush1.msra.mxu0 0.0
  %4929 = vmatprep.subr.mxu0 0.0
  %4930 = vmatpush1.msra.mxu0 0.0
  %4931 = vmatprep.subr.mxu0 0.0
  %4932 = vmatpush1.msra.mxu0 0.0
  %4933 = vmatprep.subr.mxu0 0.0
  %4934 = vmatpush1.msra.mxu0 0.0
  %4935 = vmatprep.subr.mxu0 0.0
  %4936 = vmatpush1.msra.mxu0 0.0
  %4937 = vmatprep.subr.mxu0 0.0
  %4938 = vmatpush1.msra.mxu0 0.0
  %4939 = vmatprep.subr.mxu0 0.0
  %4940 = vmatpush1.msra.mxu0 0.0
  %4941 = vmatprep.subr.mxu0 0.0
  %4942 = vmatpush1.msra.mxu0 0.0
  %4943 = vmatprep.subr.mxu0 0.0
  %4944 = vmatpush1.msra.mxu0 0.0
  %4945 = vmatprep.subr.mxu0 0.0
  %4946 = vmatpush1.msra.mxu0 0.0
  %4947 = vmatprep.subr.mxu0 0.0
  %4948 = vmatpush1.msra.mxu0 0.0
  %4949 = vmatprep.subr.mxu0 0.0
  %4950 = vmatpush1.msra.mxu0 0.0
  %4951 = vmatprep.mubr.f32.mxu0 0.0
  %v4952 = vand.u32 %v4881, 4294901760
  %v4953 = vsub.f32 %v4881, %v4952
  %v4954 = vand.u32 %v4953, 4294901760
  %v4955 = vsub.f32 %v4953, %v4954
  %v4956 = vand.u32 %v4955, 4294901760
  %4957 = vmatmul.mubr.f32.gmra.mrb[0].mxu0 %v4956
  %v4958 = vpop.f32.mrb[0].mxu0
  %v4959 = vadd.f32 0.0, %v4958
  %v4960 = vpop.f32.mrb[0].mxu0
  %4961 = vdwg.mxu0
  %4962 = vmatprep.subr.mxu0 0.0
  %v4963 = vand.u32 %v96, 4294901760
  %v4964 = vsub.f32 %v96, %v4963
  %v4965 = vand.u32 %v4964, 4294901760
  %v4966 = vsub.f32 %v4964, %v4965
  %v4967 = vand.u32 %v4966, 4294901760
  %4968 = vmatpush1.msra.mxu0 %v4967
  %4969 = vmatprep.subr.mxu0 0.0
  %v4970 = vand.u32 %v97, 4294901760
  %v4971 = vsub.f32 %v97, %v4970
  %v4972 = vand.u32 %v4971, 4294901760
  %v4973 = vsub.f32 %v4971, %v4972
  %v4974 = vand.u32 %v4973, 4294901760
  %4975 = vmatpush1.msra.mxu0 %v4974
  %4976 = vmatprep.subr.mxu0 0.0
  %v4977 = vand.u32 %v98, 4294901760
  %v4978 = vsub.f32 %v98, %v4977
  %v4979 = vand.u32 %v4978, 4294901760
  %v4980 = vsub.f32 %v4978, %v4979
  %v4981 = vand.u32 %v4980, 4294901760
  %4982 = vmatpush1.msra.mxu0 %v4981
  %4983 = vmatprep.subr.mxu0 0.0
  %v4984 = vand.u32 %v99, 4294901760
  %v4985 = vsub.f32 %v99, %v4984
  %v4986 = vand.u32 %v4985, 4294901760
  %v4987 = vsub.f32 %v4985, %v4986
  %v4988 = vand.u32 %v4987, 4294901760
  %4989 = vmatpush1.msra.mxu0 %v4988
  %4990 = vmatprep.subr.mxu0 0.0
  %4991 = vmatpush1.msra.mxu0 0.0
  %4992 = vmatprep.subr.mxu0 0.0
  %4993 = vmatpush1.msra.mxu0 0.0
  %4994 = vmatprep.subr.mxu0 0.0
  %4995 = vmatpush1.msra.mxu0 0.0
  %4996 = vmatprep.subr.mxu0 0.0
  %4997 = vmatpush1.msra.mxu0 0.0
  %4998 = vmatprep.subr.mxu0 0.0
  %4999 = vmatpush1.msra.mxu0 0.0
  %5000 = vmatprep.subr.mxu0 0.0
  %5001 = vmatpush1.msra.mxu0 0.0
  %5002 = vmatprep.subr.mxu0 0.0
  %5003 = vmatpush1.msra.mxu0 0.0
  %5004 = vmatprep.subr.mxu0 0.0
  %5005 = vmatpush1.msra.mxu0 0.0
  %5006 = vmatprep.subr.mxu0 0.0
  %5007 = vmatpush1.msra.mxu0 0.0
  %5008 = vmatprep.subr.mxu0 0.0
  %5009 = vmatpush1.msra.mxu0 0.0
  %5010 = vmatprep.subr.mxu0 0.0
  %5011 = vmatpush1.msra.mxu0 0.0
  %5012 = vmatprep.subr.mxu0 0.0
  %5013 = vmatpush1.msra.mxu0 0.0
  %5014 = vmatprep.subr.mxu0 0.0
  %5015 = vmatpush1.msra.mxu0 0.0
  %5016 = vmatprep.subr.mxu0 0.0
  %5017 = vmatpush1.msra.mxu0 0.0
  %5018 = vmatprep.subr.mxu0 0.0
  %5019 = vmatpush1.msra.mxu0 0.0
  %5020 = vmatprep.subr.mxu0 0.0
  %5021 = vmatpush1.msra.mxu0 0.0
  %5022 = vmatprep.subr.mxu0 0.0
  %5023 = vmatpush1.msra.mxu0 0.0
  %5024 = vmatprep.subr.mxu0 0.0
  %5025 = vmatpush1.msra.mxu0 0.0
  %5026 = vmatprep.subr.mxu0 0.0
  %5027 = vmatpush1.msra.mxu0 0.0
  %5028 = vmatprep.subr.mxu0 0.0
  %5029 = vmatpush1.msra.mxu0 0.0
  %5030 = vmatprep.subr.mxu0 0.0
  %5031 = vmatpush1.msra.mxu0 0.0
  %5032 = vmatprep.subr.mxu0 0.0
  %5033 = vmatpush1.msra.mxu0 0.0
  %5034 = vmatprep.subr.mxu0 0.0
  %5035 = vmatpush1.msra.mxu0 0.0
  %5036 = vmatprep.subr.mxu0 0.0
  %5037 = vmatpush1.msra.mxu0 0.0
  %5038 = vmatprep.subr.mxu0 0.0
  %5039 = vmatpush1.msra.mxu0 0.0
  %5040 = vmatprep.subr.mxu0 0.0
  %5041 = vmatpush1.msra.mxu0 0.0
  %5042 = vmatprep.subr.mxu0 0.0
  %5043 = vmatpush1.msra.mxu0 0.0
  %5044 = vmatprep.subr.mxu0 0.0
  %5045 = vmatpush1.msra.mxu0 0.0
  %5046 = vmatprep.mubr.f32.mxu0 0.0
  %v5047 = vand.u32 %v4881, 4294901760
  %5048 = vmatmul.mubr.f32.gmra.mrb[0].mxu0 %v5047
  %v5049 = vpop.f32.mrb[0].mxu0
  %v5050 = vadd.f32 %v4959, %v5049
  %v5051 = vpop.f32.mrb[0].mxu0
  %5052 = vdwg.mxu0
  %5053 = vmatprep.subr.mxu0 0.0
  %v5054 = vand.u32 %v96, 4294901760
  %v5055 = vsub.f32 %v96, %v5054
  %5056 = vmatpush1.msra.mxu0 %v5055
  %5057 = vmatprep.subr.mxu0 0.0
  %v5058 = vand.u32 %v97, 4294901760
  %v5059 = vsub.f32 %v97, %v5058
  %5060 = vmatpush1.msra.mxu0 %v5059
  %5061 = vmatprep.subr.mxu0 0.0
  %v5062 = vand.u32 %v98, 4294901760
  %v5063 = vsub.f32 %v98, %v5062
  %5064 = vmatpush1.msra.mxu0 %v5063
  %5065 = vmatprep.subr.mxu0 0.0
  %v5066 = vand.u32 %v99, 4294901760
  %v5067 = vsub.f32 %v99, %v5066
  %5068 = vmatpush1.msra.mxu0 %v5067
  %5069 = vmatprep.subr.mxu0 0.0
  %5070 = vmatpush1.msra.mxu0 0.0
  %5071 = vmatprep.subr.mxu0 0.0
  %5072 = vmatpush1.msra.mxu0 0.0
  %5073 = vmatprep.subr.mxu0 0.0
  %5074 = vmatpush1.msra.mxu0 0.0
  %5075 = vmatprep.subr.mxu0 0.0
  %5076 = vmatpush1.msra.mxu0 0.0
  %5077 = vmatprep.subr.mxu0 0.0
  %5078 = vmatpush1.msra.mxu0 0.0
  %5079 = vmatprep.subr.mxu0 0.0
  %5080 = vmatpush1.msra.mxu0 0.0
  %5081 = vmatprep.subr.mxu0 0.0
  %5082 = vmatpush1.msra.mxu0 0.0
  %5083 = vmatprep.subr.mxu0 0.0
  %5084 = vmatpush1.msra.mxu0 0.0
  %5085 = vmatprep.subr.mxu0 0.0
  %5086 = vmatpush1.msra.mxu0 0.0
  %5087 = vmatprep.subr.mxu0 0.0
  %5088 = vmatpush1.msra.mxu0 0.0
  %5089 = vmatprep.subr.mxu0 0.0
  %5090 = vmatpush1.msra.mxu0 0.0
  %5091 = vmatprep.subr.mxu0 0.0
  %5092 = vmatpush1.msra.mxu0 0.0
  %5093 = vmatprep.subr.mxu0 0.0
  %5094 = vmatpush1.msra.mxu0 0.0
  %5095 = vmatprep.subr.mxu0 0.0
  %5096 = vmatpush1.msra.mxu0 0.0
  %5097 = vmatprep.subr.mxu0 0.0
  %5098 = vmatpush1.msra.mxu0 0.0
  %5099 = vmatprep.subr.mxu0 0.0
  %5100 = vmatpush1.msra.mxu0 0.0
  %5101 = vmatprep.subr.mxu0 0.0
  %5102 = vmatpush1.msra.mxu0 0.0
  %5103 = vmatprep.subr.mxu0 0.0
  %5104 = vmatpush1.msra.mxu0 0.0
  %5105 = vmatprep.subr.mxu0 0.0
  %5106 = vmatpush1.msra.mxu0 0.0
  %5107 = vmatprep.subr.mxu0 0.0
  %5108 = vmatpush1.msra.mxu0 0.0
  %5109 = vmatprep.subr.mxu0 0.0
  %5110 = vmatpush1.msra.mxu0 0.0
  %5111 = vmatprep.subr.mxu0 0.0
  %5112 = vmatpush1.msra.mxu0 0.0
  %5113 = vmatprep.subr.mxu0 0.0
  %5114 = vmatpush1.msra.mxu0 0.0
  %5115 = vmatprep.subr.mxu0 0.0
  %5116 = vmatpush1.msra.mxu0 0.0
  %5117 = vmatprep.subr.mxu0 0.0
  %5118 = vmatpush1.msra.mxu0 0.0
  %5119 = vmatprep.subr.mxu0 0.0
  %5120 = vmatpush1.msra.mxu0 0.0
  %5121 = vmatprep.subr.mxu0 0.0
  %5122 = vmatpush1.msra.mxu0 0.0
  %5123 = vmatprep.subr.mxu0 0.0
  %5124 = vmatpush1.msra.mxu0 0.0
  %5125 = vmatprep.mubr.f32.mxu0 0.0
  %v5126 = vand.u32 %v4881, 4294901760
  %v5127 = vsub.f32 %v4881, %v5126
  %5128 = vmatmul.mubr.f32.gmra.mrb[0].mxu0 %v5127
  %v5129 = vpop.f32.mrb[0].mxu0
  %v5130 = vadd.f32 %v5050, %v5129
  %v5131 = vpop.f32.mrb[0].mxu0
  %5132 = vdwg.mxu0
  %5133 = vmatprep.subr.mxu0 0.0
  %v5134 = vand.u32 %v96, 4294901760
  %5135 = vmatpush1.msra.mxu0 %v5134
  %5136 = vmatprep.subr.mxu0 0.0
  %v5137 = vand.u32 %v97, 4294901760
  %5138 = vmatpush1.msra.mxu0 %v5137
  %5139 = vmatprep.subr.mxu0 0.0
  %v5140 = vand.u32 %v98, 4294901760
  %5141 = vmatpush1.msra.mxu0 %v5140
  %5142 = vmatprep.subr.mxu0 0.0
  %v5143 = vand.u32 %v99, 4294901760
  %5144 = vmatpush1.msra.mxu0 %v5143
  %5145 = vmatprep.subr.mxu0 0.0
  %5146 = vmatpush1.msra.mxu0 0.0
  %5147 = vmatprep.subr.mxu0 0.0
  %5148 = vmatpush1.msra.mxu0 0.0
  %5149 = vmatprep.subr.mxu0 0.0
  %5150 = vmatpush1.msra.mxu0 0.0
  %5151 = vmatprep.subr.mxu0 0.0
  %5152 = vmatpush1.msra.mxu0 0.0
  %5153 = vmatprep.subr.mxu0 0.0
  %5154 = vmatpush1.msra.mxu0 0.0
  %5155 = vmatprep.subr.mxu0 0.0
  %5156 = vmatpush1.msra.mxu0 0.0
  %5157 = vmatprep.subr.mxu0 0.0
  %5158 = vmatpush1.msra.mxu0 0.0
  %5159 = vmatprep.subr.mxu0 0.0
  %5160 = vmatpush1.msra.mxu0 0.0
  %5161 = vmatprep.subr.mxu0 0.0
  %5162 = vmatpush1.msra.mxu0 0.0
  %5163 = vmatprep.subr.mxu0 0.0
  %5164 = vmatpush1.msra.mxu0 0.0
  %5165 = vmatprep.subr.mxu0 0.0
  %5166 = vmatpush1.msra.mxu0 0.0
  %5167 = vmatprep.subr.mxu0 0.0
  %5168 = vmatpush1.msra.mxu0 0.0
  %5169 = vmatprep.subr.mxu0 0.0
  %5170 = vmatpush1.msra.mxu0 0.0
  %5171 = vmatprep.subr.mxu0 0.0
  %5172 = vmatpush1.msra.mxu0 0.0
  %5173 = vmatprep.subr.mxu0 0.0
  %5174 = vmatpush1.msra.mxu0 0.0
  %5175 = vmatprep.subr.mxu0 0.0
  %5176 = vmatpush1.msra.mxu0 0.0
  %5177 = vmatprep.subr.mxu0 0.0
  %5178 = vmatpush1.msra.mxu0 0.0
  %5179 = vmatprep.subr.mxu0 0.0
  %5180 = vmatpush1.msra.mxu0 0.0
  %5181 = vmatprep.subr.mxu0 0.0
  %5182 = vmatpush1.msra.mxu0 0.0
  %5183 = vmatprep.subr.mxu0 0.0
  %5184 = vmatpush1.msra.mxu0 0.0
  %5185 = vmatprep.subr.mxu0 0.0
  %5186 = vmatpush1.msra.mxu0 0.0
  %5187 = vmatprep.subr.mxu0 0.0
  %5188 = vmatpush1.msra.mxu0 0.0
  %5189 = vmatprep.subr.mxu0 0.0
  %5190 = vmatpush1.msra.mxu0 0.0
  %5191 = vmatprep.subr.mxu0 0.0
  %5192 = vmatpush1.msra.mxu0 0.0
  %5193 = vmatprep.subr.mxu0 0.0
  %5194 = vmatpush1.msra.mxu0 0.0
  %5195 = vmatprep.subr.mxu0 0.0
  %5196 = vmatpush1.msra.mxu0 0.0
  %5197 = vmatprep.subr.mxu0 0.0
  %5198 = vmatpush1.msra.mxu0 0.0
  %5199 = vmatprep.subr.mxu0 0.0
  %5200 = vmatpush1.msra.mxu0 0.0
  %5201 = vmatprep.mubr.f32.mxu0 0.0
  %v5202 = vand.u32 %v4881, 4294901760
  %v5203 = vsub.f32 %v4881, %v5202
  %v5204 = vand.u32 %v5203, 4294901760
  %5205 = vmatmul.mubr.f32.gmra.mrb[0].mxu0 %v5204
  %v5206 = vpop.f32.mrb[0].mxu0
  %v5207 = vadd.f32 %v5130, %v5206
  %v5208 = vpop.f32.mrb[0].mxu0
  %5209 = vdwg.mxu0
  %5210 = vmatprep.subr.mxu0 0.0
  %v5211 = vand.u32 %v96, 4294901760
  %v5212 = vsub.f32 %v96, %v5211
  %v5213 = vand.u32 %v5212, 4294901760
  %5214 = vmatpush1.msra.mxu0 %v5213
  %5215 = vmatprep.subr.mxu0 0.0
  %v5216 = vand.u32 %v97, 4294901760
  %v5217 = vsub.f32 %v97, %v5216
  %v5218 = vand.u32 %v5217, 4294901760
  %5219 = vmatpush1.msra.mxu0 %v5218
  %5220 = vmatprep.subr.mxu0 0.0
  %v5221 = vand.u32 %v98, 4294901760
  %v5222 = vsub.f32 %v98, %v5221
  %v5223 = vand.u32 %v5222, 4294901760
  %5224 = vmatpush1.msra.mxu0 %v5223
  %5225 = vmatprep.subr.mxu0 0.0
  %v5226 = vand.u32 %v99, 4294901760
  %v5227 = vsub.f32 %v99, %v5226
  %v5228 = vand.u32 %v5227, 4294901760
  %5229 = vmatpush1.msra.mxu0 %v5228
  %5230 = vmatprep.subr.mxu0 0.0
  %5231 = vmatpush1.msra.mxu0 0.0
  %5232 = vmatprep.subr.mxu0 0.0
  %5233 = vmatpush1.msra.mxu0 0.0
  %5234 = vmatprep.subr.mxu0 0.0
  %5235 = vmatpush1.msra.mxu0 0.0
  %5236 = vmatprep.subr.mxu0 0.0
  %5237 = vmatpush1.msra.mxu0 0.0
  %5238 = vmatprep.subr.mxu0 0.0
  %5239 = vmatpush1.msra.mxu0 0.0
  %5240 = vmatprep.subr.mxu0 0.0
  %5241 = vmatpush1.msra.mxu0 0.0
  %5242 = vmatprep.subr.mxu0 0.0
  %5243 = vmatpush1.msra.mxu0 0.0
  %5244 = vmatprep.subr.mxu0 0.0
  %5245 = vmatpush1.msra.mxu0 0.0
  %5246 = vmatprep.subr.mxu0 0.0
  %5247 = vmatpush1.msra.mxu0 0.0
  %5248 = vmatprep.subr.mxu0 0.0
  %5249 = vmatpush1.msra.mxu0 0.0
  %5250 = vmatprep.subr.mxu0 0.0
  %5251 = vmatpush1.msra.mxu0 0.0
  %5252 = vmatprep.subr.mxu0 0.0
  %5253 = vmatpush1.msra.mxu0 0.0
  %5254 = vmatprep.subr.mxu0 0.0
  %5255 = vmatpush1.msra.mxu0 0.0
  %5256 = vmatprep.subr.mxu0 0.0
  %5257 = vmatpush1.msra.mxu0 0.0
  %5258 = vmatprep.subr.mxu0 0.0
  %5259 = vmatpush1.msra.mxu0 0.0
  %5260 = vmatprep.subr.mxu0 0.0
  %5261 = vmatpush1.msra.mxu0 0.0
  %5262 = vmatprep.subr.mxu0 0.0
  %5263 = vmatpush1.msra.mxu0 0.0
  %5264 = vmatprep.subr.mxu0 0.0
  %5265 = vmatpush1.msra.mxu0 0.0
  %5266 = vmatprep.subr.mxu0 0.0
  %5267 = vmatpush1.msra.mxu0 0.0
  %5268 = vmatprep.subr.mxu0 0.0
  %5269 = vmatpush1.msra.mxu0 0.0
  %5270 = vmatprep.subr.mxu0 0.0
  %5271 = vmatpush1.msra.mxu0 0.0
  %5272 = vmatprep.subr.mxu0 0.0
  %5273 = vmatpush1.msra.mxu0 0.0
  %5274 = vmatprep.subr.mxu0 0.0
  %5275 = vmatpush1.msra.mxu0 0.0
  %5276 = vmatprep.subr.mxu0 0.0
  %5277 = vmatpush1.msra.mxu0 0.0
  %5278 = vmatprep.subr.mxu0 0.0
  %5279 = vmatpush1.msra.mxu0 0.0
  %5280 = vmatprep.subr.mxu0 0.0
  %5281 = vmatpush1.msra.mxu0 0.0
  %5282 = vmatprep.subr.mxu0 0.0
  %5283 = vmatpush1.msra.mxu0 0.0
  %5284 = vmatprep.subr.mxu0 0.0
  %5285 = vmatpush1.msra.mxu0 0.0
  %5286 = vmatprep.mubr.f32.mxu0 0.0
  %v5287 = vand.u32 %v4881, 4294901760
  %5288 = vmatmul.mubr.f32.gmra.mrb[0].mxu0 %v5287
  %v5289 = vpop.f32.mrb[0].mxu0
  %v5290 = vadd.f32 %v5207, %v5289
  %v5291 = vpop.f32.mrb[0].mxu0
  %5292 = vdwg.mxu0
  %5293 = vmatprep.subr.mxu0 0.0
  %v5294 = vand.u32 %v96, 4294901760
  %5295 = vmatpush1.msra.mxu0 %v5294
  %5296 = vmatprep.subr.mxu0 0.0
  %v5297 = vand.u32 %v97, 4294901760
  %5298 = vmatpush1.msra.mxu0 %v5297
  %5299 = vmatprep.subr.mxu0 0.0
  %v5300 = vand.u32 %v98, 4294901760
  %5301 = vmatpush1.msra.mxu0 %v5300
  %5302 = vmatprep.subr.mxu0 0.0
  %v5303 = vand.u32 %v99, 4294901760
  %5304 = vmatpush1.msra.mxu0 %v5303
  %5305 = vmatprep.subr.mxu0 0.0
  %5306 = vmatpush1.msra.mxu0 0.0
  %5307 = vmatprep.subr.mxu0 0.0
  %5308 = vmatpush1.msra.mxu0 0.0
  %5309 = vmatprep.subr.mxu0 0.0
  %5310 = vmatpush1.msra.mxu0 0.0
  %5311 = vmatprep.subr.mxu0 0.0
  %5312 = vmatpush1.msra.mxu0 0.0
  %5313 = vmatprep.subr.mxu0 0.0
  %5314 = vmatpush1.msra.mxu0 0.0
  %5315 = vmatprep.subr.mxu0 0.0
  %5316 = vmatpush1.msra.mxu0 0.0
  %5317 = vmatprep.subr.mxu0 0.0
  %5318 = vmatpush1.msra.mxu0 0.0
  %5319 = vmatprep.subr.mxu0 0.0
  %5320 = vmatpush1.msra.mxu0 0.0
  %5321 = vmatprep.subr.mxu0 0.0
  %5322 = vmatpush1.msra.mxu0 0.0
  %5323 = vmatprep.subr.mxu0 0.0
  %5324 = vmatpush1.msra.mxu0 0.0
  %5325 = vmatprep.subr.mxu0 0.0
  %5326 = vmatpush1.msra.mxu0 0.0
  %5327 = vmatprep.subr.mxu0 0.0
  %5328 = vmatpush1.msra.mxu0 0.0
  %5329 = vmatprep.subr.mxu0 0.0
  %5330 = vmatpush1.msra.mxu0 0.0
  %5331 = vmatprep.subr.mxu0 0.0
  %5332 = vmatpush1.msra.mxu0 0.0
  %5333 = vmatprep.subr.mxu0 0.0
  %5334 = vmatpush1.msra.mxu0 0.0
  %5335 = vmatprep.subr.mxu0 0.0
  %5336 = vmatpush1.msra.mxu0 0.0
  %5337 = vmatprep.subr.mxu0 0.0
  %5338 = vmatpush1.msra.mxu0 0.0
  %5339 = vmatprep.subr.mxu0 0.0
  %5340 = vmatpush1.msra.mxu0 0.0
  %5341 = vmatprep.subr.mxu0 0.0
  %5342 = vmatpush1.msra.mxu0 0.0
  %5343 = vmatprep.subr.mxu0 0.0
  %5344 = vmatpush1.msra.mxu0 0.0
  %5345 = vmatprep.subr.mxu0 0.0
  %5346 = vmatpush1.msra.mxu0 0.0
  %5347 = vmatprep.subr.mxu0 0.0
  %5348 = vmatpush1.msra.mxu0 0.0
  %5349 = vmatprep.subr.mxu0 0.0
  %5350 = vmatpush1.msra.mxu0 0.0
  %5351 = vmatprep.subr.mxu0 0.0
  %5352 = vmatpush1.msra.mxu0 0.0
  %5353 = vmatprep.subr.mxu0 0.0
  %5354 = vmatpush1.msra.mxu0 0.0
  %5355 = vmatprep.subr.mxu0 0.0
  %5356 = vmatpush1.msra.mxu0 0.0
  %5357 = vmatprep.subr.mxu0 0.0
  %5358 = vmatpush1.msra.mxu0 0.0
  %5359 = vmatprep.subr.mxu0 0.0
  %5360 = vmatpush1.msra.mxu0 0.0
  %5361 = vmatprep.mubr.f32.mxu0 0.0
  %v5362 = vand.u32 %v4881, 4294901760
  %5363 = vmatmul.mubr.f32.gmra.mrb[0].mxu0 %v5362
  %v5364 = vpop.f32.mrb[0].mxu0
  %v5365 = vadd.f32 %v5290, %v5364
  %v5366 = vpop.f32.mrb[0].mxu0
  %5367 = vdwg.mxu0
  %v5368 = vadd.f32 %v4877, %v5365
  %v5369 = vxor.u32 %v5368, 2147483648
  %v5370 = vmul.f32 %v5369, 1.442695
  %v5371 = vpow.pop %v5370
  %v5372 = vadd.f32 %v5371, 1.0
  %v5373 = vrcp.pop %v5372
  %v5374 = vmul.f32 1.0, %v5373
  %v5375 = vtanh.pop %v5368
  %v5376 = vmul.f32 %v5374, %v4326
  %5378 = vrot.lane.b32.xlu0 %v5375, 64
  %v5379 = vpop.permute.xlu0 %5378
  %v5381 = vmul.f32 %v5374, %v5379
  %5383 = vrot.lane.b32.xlu0 %v5381, 32
  %v5384 = vpop.permute.xlu0 %5383
  %v5386 = vadd.f32 %v5376, %v5384
  %v5387 = vtanh.pop %v5386
  %5389 = vrot.lane.b32.xlu0 %v5387, 64
  %v5390 = vpop.permute.xlu0 %5389
  %v5392 = vmul.f32 %v5374, %v5390
  %s5393 = scalar_lea.vmem %s72, 24
  %v5394 = vld [vmem:[%s5393] sm:$0xff]
  %5396 = vrot.lane.b32.xlu0 %v5394, 96
  %v5397 = vpop.permute.xlu0 %5396
  %v5399 = vadd.f32 %v5392, %v5397
  %5401 = vrot.lane.b32.xlu0 %v5399, 32
  %v5402 = vpop.permute.xlu0 %5401
  %s5404 = scalar_lea.vmem %s80, 24
  %5405 = vst.msk [vmem:[%s5404] sm:$0xff] %vm105, %v5402
  %s5406 = scalar_lea.vmem %s0, 40
  %v5407 = vld [vmem:[%s5406] sm:$0xff]
  %5409 = vrot.lane.b32.xlu0 %v4862, 32
  %v5410 = vpop.permute.xlu0 %5409
  %v5411 = vsel %vm105, %v5410, 0
  %5413 = vmatprep.subr.mxu0 0.0
  %v5414 = vand.u32 %v92, 4294901760
  %5415 = vmatpush1.msra.mxu0 %v5414
  %5416 = vmatprep.subr.mxu0 0.0
  %v5417 = vand.u32 %v93, 4294901760
  %5418 = vmatpush1.msra.mxu0 %v5417
  %5419 = vmatprep.subr.mxu0 0.0
  %v5420 = vand.u32 %v94, 4294901760
  %5421 = vmatpush1.msra.mxu0 %v5420
  %5422 = vmatprep.subr.mxu0 0.0
  %v5423 = vand.u32 %v95, 4294901760
  %5424 = vmatpush1.msra.mxu0 %v5423
  %5425 = vmatprep.subr.mxu0 0.0
  %5426 = vmatpush1.msra.mxu0 0.0
  %5427 = vmatprep.subr.mxu0 0.0
  %5428 = vmatpush1.msra.mxu0 0.0
  %5429 = vmatprep.subr.mxu0 0.0
  %5430 = vmatpush1.msra.mxu0 0.0
  %5431 = vmatprep.subr.mxu0 0.0
  %5432 = vmatpush1.msra.mxu0 0.0
  %5433 = vmatprep.subr.mxu0 0.0
  %5434 = vmatpush1.msra.mxu0 0.0
  %5435 = vmatprep.subr.mxu0 0.0
  %5436 = vmatpush1.msra.mxu0 0.0
  %5437 = vmatprep.subr.mxu0 0.0
  %5438 = vmatpush1.msra.mxu0 0.0
  %5439 = vmatprep.subr.mxu0 0.0
  %5440 = vmatpush1.msra.mxu0 0.0
  %5441 = vmatprep.subr.mxu0 0.0
  %5442 = vmatpush1.msra.mxu0 0.0
  %5443 = vmatprep.subr.mxu0 0.0
  %5444 = vmatpush1.msra.mxu0 0.0
  %5445 = vmatprep.subr.mxu0 0.0
  %5446 = vmatpush1.msra.mxu0 0.0
  %5447 = vmatprep.subr.mxu0 0.0
  %5448 = vmatpush1.msra.mxu0 0.0
  %5449 = vmatprep.subr.mxu0 0.0
  %5450 = vmatpush1.msra.mxu0 0.0
  %5451 = vmatprep.subr.mxu0 0.0
  %5452 = vmatpush1.msra.mxu0 0.0
  %5453 = vmatprep.subr.mxu0 0.0
  %5454 = vmatpush1.msra.mxu0 0.0
  %5455 = vmatprep.subr.mxu0 0.0
  %5456 = vmatpush1.msra.mxu0 0.0
  %5457 = vmatprep.subr.mxu0 0.0
  %5458 = vmatpush1.msra.mxu0 0.0
  %5459 = vmatprep.subr.mxu0 0.0
  %5460 = vmatpush1.msra.mxu0 0.0
  %5461 = vmatprep.subr.mxu0 0.0
  %5462 = vmatpush1.msra.mxu0 0.0
  %5463 = vmatprep.subr.mxu0 0.0
  %5464 = vmatpush1.msra.mxu0 0.0
  %5465 = vmatprep.subr.mxu0 0.0
  %5466 = vmatpush1.msra.mxu0 0.0
  %5467 = vmatprep.subr.mxu0 0.0
  %5468 = vmatpush1.msra.mxu0 0.0
  %5469 = vmatprep.subr.mxu0 0.0
  %5470 = vmatpush1.msra.mxu0 0.0
  %5471 = vmatprep.subr.mxu0 0.0
  %5472 = vmatpush1.msra.mxu0 0.0
  %5473 = vmatprep.subr.mxu0 0.0
  %5474 = vmatpush1.msra.mxu0 0.0
  %5475 = vmatprep.subr.mxu0 0.0
  %5476 = vmatpush1.msra.mxu0 0.0
  %5477 = vmatprep.subr.mxu0 0.0
  %5478 = vmatpush1.msra.mxu0 0.0
  %5479 = vmatprep.subr.mxu0 0.0
  %5480 = vmatpush1.msra.mxu0 0.0
  %5481 = vmatprep.mubr.f32.mxu0 0.0
  %v5482 = vand.u32 %v5411, 4294901760
  %v5483 = vsub.f32 %v5411, %v5482
  %v5484 = vand.u32 %v5483, 4294901760
  %v5485 = vsub.f32 %v5483, %v5484
  %v5486 = vand.u32 %v5485, 4294901760
  %5487 = vmatmul.mubr.f32.gmra.mrb[0].mxu0 %v5486
  %v5488 = vpop.f32.mrb[0].mxu0
  %v5489 = vadd.f32 0.0, %v5488
  %v5490 = vpop.f32.mrb[0].mxu0
  %5491 = vdwg.mxu0
  %5492 = vmatprep.subr.mxu0 0.0
  %v5493 = vand.u32 %v92, 4294901760
  %v5494 = vsub.f32 %v92, %v5493
  %v5495 = vand.u32 %v5494, 4294901760
  %v5496 = vsub.f32 %v5494, %v5495
  %v5497 = vand.u32 %v5496, 4294901760
  %5498 = vmatpush1.msra.mxu0 %v5497
  %5499 = vmatprep.subr.mxu0 0.0
  %v5500 = vand.u32 %v93, 4294901760
  %v5501 = vsub.f32 %v93, %v5500
  %v5502 = vand.u32 %v5501, 4294901760
  %v5503 = vsub.f32 %v5501, %v5502
  %v5504 = vand.u32 %v5503, 4294901760
  %5505 = vmatpush1.msra.mxu0 %v5504
  %5506 = vmatprep.subr.mxu0 0.0
  %v5507 = vand.u32 %v94, 4294901760
  %v5508 = vsub.f32 %v94, %v5507
  %v5509 = vand.u32 %v5508, 4294901760
  %v5510 = vsub.f32 %v5508, %v5509
  %v5511 = vand.u32 %v5510, 4294901760
  %5512 = vmatpush1.msra.mxu0 %v5511
  %5513 = vmatprep.subr.mxu0 0.0
  %v5514 = vand.u32 %v95, 4294901760
  %v5515 = vsub.f32 %v95, %v5514
  %v5516 = vand.u32 %v5515, 4294901760
  %v5517 = vsub.f32 %v5515, %v5516
  %v5518 = vand.u32 %v5517, 4294901760
  %5519 = vmatpush1.msra.mxu0 %v5518
  %5520 = vmatprep.subr.mxu0 0.0
  %5521 = vmatpush1.msra.mxu0 0.0
  %5522 = vmatprep.subr.mxu0 0.0
  %5523 = vmatpush1.msra.mxu0 0.0
  %5524 = vmatprep.subr.mxu0 0.0
  %5525 = vmatpush1.msra.mxu0 0.0
  %5526 = vmatprep.subr.mxu0 0.0
  %5527 = vmatpush1.msra.mxu0 0.0
  %5528 = vmatprep.subr.mxu0 0.0
  %5529 = vmatpush1.msra.mxu0 0.0
  %5530 = vmatprep.subr.mxu0 0.0
  %5531 = vmatpush1.msra.mxu0 0.0
  %5532 = vmatprep.subr.mxu0 0.0
  %5533 = vmatpush1.msra.mxu0 0.0
  %5534 = vmatprep.subr.mxu0 0.0
  %5535 = vmatpush1.msra.mxu0 0.0
  %5536 = vmatprep.subr.mxu0 0.0
  %5537 = vmatpush1.msra.mxu0 0.0
  %5538 = vmatprep.subr.mxu0 0.0
  %5539 = vmatpush1.msra.mxu0 0.0
  %5540 = vmatprep.subr.mxu0 0.0
  %5541 = vmatpush1.msra.mxu0 0.0
  %5542 = vmatprep.subr.mxu0 0.0
  %5543 = vmatpush1.msra.mxu0 0.0
  %5544 = vmatprep.subr.mxu0 0.0
  %5545 = vmatpush1.msra.mxu0 0.0
  %5546 = vmatprep.subr.mxu0 0.0
  %5547 = vmatpush1.msra.mxu0 0.0
  %5548 = vmatprep.subr.mxu0 0.0
  %5549 = vmatpush1.msra.mxu0 0.0
  %5550 = vmatprep.subr.mxu0 0.0
  %5551 = vmatpush1.msra.mxu0 0.0
  %5552 = vmatprep.subr.mxu0 0.0
  %5553 = vmatpush1.msra.mxu0 0.0
  %5554 = vmatprep.subr.mxu0 0.0
  %5555 = vmatpush1.msra.mxu0 0.0
  %5556 = vmatprep.subr.mxu0 0.0
  %5557 = vmatpush1.msra.mxu0 0.0
  %5558 = vmatprep.subr.mxu0 0.0
  %5559 = vmatpush1.msra.mxu0 0.0
  %5560 = vmatprep.subr.mxu0 0.0
  %5561 = vmatpush1.msra.mxu0 0.0
  %5562 = vmatprep.subr.mxu0 0.0
  %5563 = vmatpush1.msra.mxu0 0.0
  %5564 = vmatprep.subr.mxu0 0.0
  %5565 = vmatpush1.msra.mxu0 0.0
  %5566 = vmatprep.subr.mxu0 0.0
  %5567 = vmatpush1.msra.mxu0 0.0
  %5568 = vmatprep.subr.mxu0 0.0
  %5569 = vmatpush1.msra.mxu0 0.0
  %5570 = vmatprep.subr.mxu0 0.0
  %5571 = vmatpush1.msra.mxu0 0.0
  %5572 = vmatprep.subr.mxu0 0.0
  %5573 = vmatpush1.msra.mxu0 0.0
  %5574 = vmatprep.subr.mxu0 0.0
  %5575 = vmatpush1.msra.mxu0 0.0
  %5576 = vmatprep.mubr.f32.mxu0 0.0
  %v5577 = vand.u32 %v5411, 4294901760
  %5578 = vmatmul.mubr.f32.gmra.mrb[0].mxu0 %v5577
  %v5579 = vpop.f32.mrb[0].mxu0
  %v5580 = vadd.f32 %v5489, %v5579
  %v5581 = vpop.f32.mrb[0].mxu0
  %5582 = vdwg.mxu0
  %5583 = vmatprep.subr.mxu0 0.0
  %v5584 = vand.u32 %v92, 4294901760
  %v5585 = vsub.f32 %v92, %v5584
  %5586 = vmatpush1.msra.mxu0 %v5585
  %5587 = vmatprep.subr.mxu0 0.0
  %v5588 = vand.u32 %v93, 4294901760
  %v5589 = vsub.f32 %v93, %v5588
  %5590 = vmatpush1.msra.mxu0 %v5589
  %5591 = vmatprep.subr.mxu0 0.0
  %v5592 = vand.u32 %v94, 4294901760
  %v5593 = vsub.f32 %v94, %v5592
  %5594 = vmatpush1.msra.mxu0 %v5593
  %5595 = vmatprep.subr.mxu0 0.0
  %v5596 = vand.u32 %v95, 4294901760
  %v5597 = vsub.f32 %v95, %v5596
  %5598 = vmatpush1.msra.mxu0 %v5597
  %5599 = vmatprep.subr.mxu0 0.0
  %5600 = vmatpush1.msra.mxu0 0.0
  %5601 = vmatprep.subr.mxu0 0.0
  %5602 = vmatpush1.msra.mxu0 0.0
  %5603 = vmatprep.subr.mxu0 0.0
  %5604 = vmatpush1.msra.mxu0 0.0
  %5605 = vmatprep.subr.mxu0 0.0
  %5606 = vmatpush1.msra.mxu0 0.0
  %5607 = vmatprep.subr.mxu0 0.0
  %5608 = vmatpush1.msra.mxu0 0.0
  %5609 = vmatprep.subr.mxu0 0.0
  %5610 = vmatpush1.msra.mxu0 0.0
  %5611 = vmatprep.subr.mxu0 0.0
  %5612 = vmatpush1.msra.mxu0 0.0
  %5613 = vmatprep.subr.mxu0 0.0
  %5614 = vmatpush1.msra.mxu0 0.0
  %5615 = vmatprep.subr.mxu0 0.0
  %5616 = vmatpush1.msra.mxu0 0.0
  %5617 = vmatprep.subr.mxu0 0.0
  %5618 = vmatpush1.msra.mxu0 0.0
  %5619 = vmatprep.subr.mxu0 0.0
  %5620 = vmatpush1.msra.mxu0 0.0
  %5621 = vmatprep.subr.mxu0 0.0
  %5622 = vmatpush1.msra.mxu0 0.0
  %5623 = vmatprep.subr.mxu0 0.0
  %5624 = vmatpush1.msra.mxu0 0.0
  %5625 = vmatprep.subr.mxu0 0.0
  %5626 = vmatpush1.msra.mxu0 0.0
  %5627 = vmatprep.subr.mxu0 0.0
  %5628 = vmatpush1.msra.mxu0 0.0
  %5629 = vmatprep.subr.mxu0 0.0
  %5630 = vmatpush1.msra.mxu0 0.0
  %5631 = vmatprep.subr.mxu0 0.0
  %5632 = vmatpush1.msra.mxu0 0.0
  %5633 = vmatprep.subr.mxu0 0.0
  %5634 = vmatpush1.msra.mxu0 0.0
  %5635 = vmatprep.subr.mxu0 0.0
  %5636 = vmatpush1.msra.mxu0 0.0
  %5637 = vmatprep.subr.mxu0 0.0
  %5638 = vmatpush1.msra.mxu0 0.0
  %5639 = vmatprep.subr.mxu0 0.0
  %5640 = vmatpush1.msra.mxu0 0.0
  %5641 = vmatprep.subr.mxu0 0.0
  %5642 = vmatpush1.msra.mxu0 0.0
  %5643 = vmatprep.subr.mxu0 0.0
  %5644 = vmatpush1.msra.mxu0 0.0
  %5645 = vmatprep.subr.mxu0 0.0
  %5646 = vmatpush1.msra.mxu0 0.0
  %5647 = vmatprep.subr.mxu0 0.0
  %5648 = vmatpush1.msra.mxu0 0.0
  %5649 = vmatprep.subr.mxu0 0.0
  %5650 = vmatpush1.msra.mxu0 0.0
  %5651 = vmatprep.subr.mxu0 0.0
  %5652 = vmatpush1.msra.mxu0 0.0
  %5653 = vmatprep.subr.mxu0 0.0
  %5654 = vmatpush1.msra.mxu0 0.0
  %5655 = vmatprep.mubr.f32.mxu0 0.0
  %v5656 = vand.u32 %v5411, 4294901760
  %v5657 = vsub.f32 %v5411, %v5656
  %5658 = vmatmul.mubr.f32.gmra.mrb[0].mxu0 %v5657
  %v5659 = vpop.f32.mrb[0].mxu0
  %v5660 = vadd.f32 %v5580, %v5659
  %v5661 = vpop.f32.mrb[0].mxu0
  %5662 = vdwg.mxu0
  %5663 = vmatprep.subr.mxu0 0.0
  %v5664 = vand.u32 %v92, 4294901760
  %5665 = vmatpush1.msra.mxu0 %v5664
  %5666 = vmatprep.subr.mxu0 0.0
  %v5667 = vand.u32 %v93, 4294901760
  %5668 = vmatpush1.msra.mxu0 %v5667
  %5669 = vmatprep.subr.mxu0 0.0
  %v5670 = vand.u32 %v94, 4294901760
  %5671 = vmatpush1.msra.mxu0 %v5670
  %5672 = vmatprep.subr.mxu0 0.0
  %v5673 = vand.u32 %v95, 4294901760
  %5674 = vmatpush1.msra.mxu0 %v5673
  %5675 = vmatprep.subr.mxu0 0.0
  %5676 = vmatpush1.msra.mxu0 0.0
  %5677 = vmatprep.subr.mxu0 0.0
  %5678 = vmatpush1.msra.mxu0 0.0
  %5679 = vmatprep.subr.mxu0 0.0
  %5680 = vmatpush1.msra.mxu0 0.0
  %5681 = vmatprep.subr.mxu0 0.0
  %5682 = vmatpush1.msra.mxu0 0.0
  %5683 = vmatprep.subr.mxu0 0.0
  %5684 = vmatpush1.msra.mxu0 0.0
  %5685 = vmatprep.subr.mxu0 0.0
  %5686 = vmatpush1.msra.mxu0 0.0
  %5687 = vmatprep.subr.mxu0 0.0
  %5688 = vmatpush1.msra.mxu0 0.0
  %5689 = vmatprep.subr.mxu0 0.0
  %5690 = vmatpush1.msra.mxu0 0.0
  %5691 = vmatprep.subr.mxu0 0.0
  %5692 = vmatpush1.msra.mxu0 0.0
  %5693 = vmatprep.subr.mxu0 0.0
  %5694 = vmatpush1.msra.mxu0 0.0
  %5695 = vmatprep.subr.mxu0 0.0
  %5696 = vmatpush1.msra.mxu0 0.0
  %5697 = vmatprep.subr.mxu0 0.0
  %5698 = vmatpush1.msra.mxu0 0.0
  %5699 = vmatprep.subr.mxu0 0.0
  %5700 = vmatpush1.msra.mxu0 0.0
  %5701 = vmatprep.subr.mxu0 0.0
  %5702 = vmatpush1.msra.mxu0 0.0
  %5703 = vmatprep.subr.mxu0 0.0
  %5704 = vmatpush1.msra.mxu0 0.0
  %5705 = vmatprep.subr.mxu0 0.0
  %5706 = vmatpush1.msra.mxu0 0.0
  %5707 = vmatprep.subr.mxu0 0.0
  %5708 = vmatpush1.msra.mxu0 0.0
  %5709 = vmatprep.subr.mxu0 0.0
  %5710 = vmatpush1.msra.mxu0 0.0
  %5711 = vmatprep.subr.mxu0 0.0
  %5712 = vmatpush1.msra.mxu0 0.0
  %5713 = vmatprep.subr.mxu0 0.0
  %5714 = vmatpush1.msra.mxu0 0.0
  %5715 = vmatprep.subr.mxu0 0.0
  %5716 = vmatpush1.msra.mxu0 0.0
  %5717 = vmatprep.subr.mxu0 0.0
  %5718 = vmatpush1.msra.mxu0 0.0
  %5719 = vmatprep.subr.mxu0 0.0
  %5720 = vmatpush1.msra.mxu0 0.0
  %5721 = vmatprep.subr.mxu0 0.0
  %5722 = vmatpush1.msra.mxu0 0.0
  %5723 = vmatprep.subr.mxu0 0.0
  %5724 = vmatpush1.msra.mxu0 0.0
  %5725 = vmatprep.subr.mxu0 0.0
  %5726 = vmatpush1.msra.mxu0 0.0
  %5727 = vmatprep.subr.mxu0 0.0
  %5728 = vmatpush1.msra.mxu0 0.0
  %5729 = vmatprep.subr.mxu0 0.0
  %5730 = vmatpush1.msra.mxu0 0.0
  %5731 = vmatprep.mubr.f32.mxu0 0.0
  %v5732 = vand.u32 %v5411, 4294901760
  %v5733 = vsub.f32 %v5411, %v5732
  %v5734 = vand.u32 %v5733, 4294901760
  %5735 = vmatmul.mubr.f32.gmra.mrb[0].mxu0 %v5734
  %v5736 = vpop.f32.mrb[0].mxu0
  %v5737 = vadd.f32 %v5660, %v5736
  %v5738 = vpop.f32.mrb[0].mxu0
  %5739 = vdwg.mxu0
  %5740 = vmatprep.subr.mxu0 0.0
  %v5741 = vand.u32 %v92, 4294901760
  %v5742 = vsub.f32 %v92, %v5741
  %v5743 = vand.u32 %v5742, 4294901760
  %5744 = vmatpush1.msra.mxu0 %v5743
  %5745 = vmatprep.subr.mxu0 0.0
  %v5746 = vand.u32 %v93, 4294901760
  %v5747 = vsub.f32 %v93, %v5746
  %v5748 = vand.u32 %v5747, 4294901760
  %5749 = vmatpush1.msra.mxu0 %v5748
  %5750 = vmatprep.subr.mxu0 0.0
  %v5751 = vand.u32 %v94, 4294901760
  %v5752 = vsub.f32 %v94, %v5751
  %v5753 = vand.u32 %v5752, 4294901760
  %5754 = vmatpush1.msra.mxu0 %v5753
  %5755 = vmatprep.subr.mxu0 0.0
  %v5756 = vand.u32 %v95, 4294901760
  %v5757 = vsub.f32 %v95, %v5756
  %v5758 = vand.u32 %v5757, 4294901760
  %5759 = vmatpush1.msra.mxu0 %v5758
  %5760 = vmatprep.subr.mxu0 0.0
  %5761 = vmatpush1.msra.mxu0 0.0
  %5762 = vmatprep.subr.mxu0 0.0
  %5763 = vmatpush1.msra.mxu0 0.0
  %5764 = vmatprep.subr.mxu0 0.0
  %5765 = vmatpush1.msra.mxu0 0.0
  %5766 = vmatprep.subr.mxu0 0.0
  %5767 = vmatpush1.msra.mxu0 0.0
  %5768 = vmatprep.subr.mxu0 0.0
  %5769 = vmatpush1.msra.mxu0 0.0
  %5770 = vmatprep.subr.mxu0 0.0
  %5771 = vmatpush1.msra.mxu0 0.0
  %5772 = vmatprep.subr.mxu0 0.0
  %5773 = vmatpush1.msra.mxu0 0.0
  %5774 = vmatprep.subr.mxu0 0.0
  %5775 = vmatpush1.msra.mxu0 0.0
  %5776 = vmatprep.subr.mxu0 0.0
  %5777 = vmatpush1.msra.mxu0 0.0
  %5778 = vmatprep.subr.mxu0 0.0
  %5779 = vmatpush1.msra.mxu0 0.0
  %5780 = vmatprep.subr.mxu0 0.0
  %5781 = vmatpush1.msra.mxu0 0.0
  %5782 = vmatprep.subr.mxu0 0.0
  %5783 = vmatpush1.msra.mxu0 0.0
  %5784 = vmatprep.subr.mxu0 0.0
  %5785 = vmatpush1.msra.mxu0 0.0
  %5786 = vmatprep.subr.mxu0 0.0
  %5787 = vmatpush1.msra.mxu0 0.0
  %5788 = vmatprep.subr.mxu0 0.0
  %5789 = vmatpush1.msra.mxu0 0.0
  %5790 = vmatprep.subr.mxu0 0.0
  %5791 = vmatpush1.msra.mxu0 0.0
  %5792 = vmatprep.subr.mxu0 0.0
  %5793 = vmatpush1.msra.mxu0 0.0
  %5794 = vmatprep.subr.mxu0 0.0
  %5795 = vmatpush1.msra.mxu0 0.0
  %5796 = vmatprep.subr.mxu0 0.0
  %5797 = vmatpush1.msra.mxu0 0.0
  %5798 = vmatprep.subr.mxu0 0.0
  %5799 = vmatpush1.msra.mxu0 0.0
  %5800 = vmatprep.subr.mxu0 0.0
  %5801 = vmatpush1.msra.mxu0 0.0
  %5802 = vmatprep.subr.mxu0 0.0
  %5803 = vmatpush1.msra.mxu0 0.0
  %5804 = vmatprep.subr.mxu0 0.0
  %5805 = vmatpush1.msra.mxu0 0.0
  %5806 = vmatprep.subr.mxu0 0.0
  %5807 = vmatpush1.msra.mxu0 0.0
  %5808 = vmatprep.subr.mxu0 0.0
  %5809 = vmatpush1.msra.mxu0 0.0
  %5810 = vmatprep.subr.mxu0 0.0
  %5811 = vmatpush1.msra.mxu0 0.0
  %5812 = vmatprep.subr.mxu0 0.0
  %5813 = vmatpush1.msra.mxu0 0.0
  %5814 = vmatprep.subr.mxu0 0.0
  %5815 = vmatpush1.msra.mxu0 0.0
  %5816 = vmatprep.mubr.f32.mxu0 0.0
  %v5817 = vand.u32 %v5411, 4294901760
  %5818 = vmatmul.mubr.f32.gmra.mrb[0].mxu0 %v5817
  %v5819 = vpop.f32.mrb[0].mxu0
  %v5820 = vadd.f32 %v5737, %v5819
  %v5821 = vpop.f32.mrb[0].mxu0
  %5822 = vdwg.mxu0
  %5823 = vmatprep.subr.mxu0 0.0
  %v5824 = vand.u32 %v92, 4294901760
  %5825 = vmatpush1.msra.mxu0 %v5824
  %5826 = vmatprep.subr.mxu0 0.0
  %v5827 = vand.u32 %v93, 4294901760
  %5828 = vmatpush1.msra.mxu0 %v5827
  %5829 = vmatprep.subr.mxu0 0.0
  %v5830 = vand.u32 %v94, 4294901760
  %5831 = vmatpush1.msra.mxu0 %v5830
  %5832 = vmatprep.subr.mxu0 0.0
  %v5833 = vand.u32 %v95, 4294901760
  %5834 = vmatpush1.msra.mxu0 %v5833
  %5835 = vmatprep.subr.mxu0 0.0
  %5836 = vmatpush1.msra.mxu0 0.0
  %5837 = vmatprep.subr.mxu0 0.0
  %5838 = vmatpush1.msra.mxu0 0.0
  %5839 = vmatprep.subr.mxu0 0.0
  %5840 = vmatpush1.msra.mxu0 0.0
  %5841 = vmatprep.subr.mxu0 0.0
  %5842 = vmatpush1.msra.mxu0 0.0
  %5843 = vmatprep.subr.mxu0 0.0
  %5844 = vmatpush1.msra.mxu0 0.0
  %5845 = vmatprep.subr.mxu0 0.0
  %5846 = vmatpush1.msra.mxu0 0.0
  %5847 = vmatprep.subr.mxu0 0.0
  %5848 = vmatpush1.msra.mxu0 0.0
  %5849 = vmatprep.subr.mxu0 0.0
  %5850 = vmatpush1.msra.mxu0 0.0
  %5851 = vmatprep.subr.mxu0 0.0
  %5852 = vmatpush1.msra.mxu0 0.0
  %5853 = vmatprep.subr.mxu0 0.0
  %5854 = vmatpush1.msra.mxu0 0.0
  %5855 = vmatprep.subr.mxu0 0.0
  %5856 = vmatpush1.msra.mxu0 0.0
  %5857 = vmatprep.subr.mxu0 0.0
  %5858 = vmatpush1.msra.mxu0 0.0
  %5859 = vmatprep.subr.mxu0 0.0
  %5860 = vmatpush1.msra.mxu0 0.0
  %5861 = vmatprep.subr.mxu0 0.0
  %5862 = vmatpush1.msra.mxu0 0.0
  %5863 = vmatprep.subr.mxu0 0.0
  %5864 = vmatpush1.msra.mxu0 0.0
  %5865 = vmatprep.subr.mxu0 0.0
  %5866 = vmatpush1.msra.mxu0 0.0
  %5867 = vmatprep.subr.mxu0 0.0
  %5868 = vmatpush1.msra.mxu0 0.0
  %5869 = vmatprep.subr.mxu0 0.0
  %5870 = vmatpush1.msra.mxu0 0.0
  %5871 = vmatprep.subr.mxu0 0.0
  %5872 = vmatpush1.msra.mxu0 0.0
  %5873 = vmatprep.subr.mxu0 0.0
  %5874 = vmatpush1.msra.mxu0 0.0
  %5875 = vmatprep.subr.mxu0 0.0
  %5876 = vmatpush1.msra.mxu0 0.0
  %5877 = vmatprep.subr.mxu0 0.0
  %5878 = vmatpush1.msra.mxu0 0.0
  %5879 = vmatprep.subr.mxu0 0.0
  %5880 = vmatpush1.msra.mxu0 0.0
  %5881 = vmatprep.subr.mxu0 0.0
  %5882 = vmatpush1.msra.mxu0 0.0
  %5883 = vmatprep.subr.mxu0 0.0
  %5884 = vmatpush1.msra.mxu0 0.0
  %5885 = vmatprep.subr.mxu0 0.0
  %5886 = vmatpush1.msra.mxu0 0.0
  %5887 = vmatprep.subr.mxu0 0.0
  %5888 = vmatpush1.msra.mxu0 0.0
  %5889 = vmatprep.subr.mxu0 0.0
  %5890 = vmatpush1.msra.mxu0 0.0
  %5891 = vmatprep.mubr.f32.mxu0 0.0
  %v5892 = vand.u32 %v5411, 4294901760
  %5893 = vmatmul.mubr.f32.gmra.mrb[0].mxu0 %v5892
  %v5894 = vpop.f32.mrb[0].mxu0
  %v5895 = vadd.f32 %v5820, %v5894
  %v5896 = vpop.f32.mrb[0].mxu0
  %5897 = vdwg.mxu0
  %v5898 = vadd.f32 %v5407, %v5895
  %v5899 = vxor.u32 %v5898, 2147483648
  %v5900 = vmul.f32 %v5899, 1.442695
  %v5901 = vpow.pop %v5900
  %v5902 = vadd.f32 %v5901, 1.0
  %v5903 = vrcp.pop %v5902
  %v5904 = vmul.f32 1.0, %v5903
  %v5905 = vtanh.pop %v5898
  %v5906 = vmul.f32 %v5904, %v4856
  %5908 = vrot.lane.b32.xlu0 %v5905, 64
  %v5909 = vpop.permute.xlu0 %5908
  %v5911 = vmul.f32 %v5904, %v5909
  %5913 = vrot.lane.b32.xlu0 %v5911, 32
  %v5914 = vpop.permute.xlu0 %5913
  %v5916 = vadd.f32 %v5906, %v5914
  %v5917 = vtanh.pop %v5916
  %5919 = vrot.lane.b32.xlu0 %v5917, 64
  %v5920 = vpop.permute.xlu0 %5919
  %v5922 = vmul.f32 %v5904, %v5920
  %s5923 = scalar_lea.vmem %s4, 40
  %v5924 = vld [vmem:[%s5923] sm:$0xff]
  %5926 = vrot.lane.b32.xlu0 %v5924, 96
  %v5927 = vpop.permute.xlu0 %5926
  %v5929 = vadd.f32 %v5922, %v5927
  %5931 = vrot.lane.b32.xlu0 %v5929, 32
  %v5932 = vpop.permute.xlu0 %5931
  %s5934 = scalar_lea.vmem %s6, 40
  %5935 = vst.msk [vmem:[%s5934] sm:$0xff] %vm105, %v5932
  %s5936 = scalar_lea.vmem %s64, 16
  %v5937 = vld [vmem:[%s5936] sm:$0xff]
  %5939 = vrot.lane.b32.xlu0 %v5392, 32
  %v5940 = vpop.permute.xlu0 %5939
  %v5941 = vsel %vm105, %v5940, 0
  %5943 = vmatprep.subr.mxu0 0.0
  %v5944 = vand.u32 %v96, 4294901760
  %5945 = vmatpush1.msra.mxu0 %v5944
  %5946 = vmatprep.subr.mxu0 0.0
  %v5947 = vand.u32 %v97, 4294901760
  %5948 = vmatpush1.msra.mxu0 %v5947
  %5949 = vmatprep.subr.mxu0 0.0
  %v5950 = vand.u32 %v98, 4294901760
  %5951 = vmatpush1.msra.mxu0 %v5950
  %5952 = vmatprep.subr.mxu0 0.0
  %v5953 = vand.u32 %v99, 4294901760
  %5954 = vmatpush1.msra.mxu0 %v5953
  %5955 = vmatprep.subr.mxu0 0.0
  %5956 = vmatpush1.msra.mxu0 0.0
  %5957 = vmatprep.subr.mxu0 0.0
  %5958 = vmatpush1.msra.mxu0 0.0
  %5959 = vmatprep.subr.mxu0 0.0
  %5960 = vmatpush1.msra.mxu0 0.0
  %5961 = vmatprep.subr.mxu0 0.0
  %5962 = vmatpush1.msra.mxu0 0.0
  %5963 = vmatprep.subr.mxu0 0.0
  %5964 = vmatpush1.msra.mxu0 0.0
  %5965 = vmatprep.subr.mxu0 0.0
  %5966 = vmatpush1.msra.mxu0 0.0
  %5967 = vmatprep.subr.mxu0 0.0
  %5968 = vmatpush1.msra.mxu0 0.0
  %5969 = vmatprep.subr.mxu0 0.0
  %5970 = vmatpush1.msra.mxu0 0.0
  %5971 = vmatprep.subr.mxu0 0.0
  %5972 = vmatpush1.msra.mxu0 0.0
  %5973 = vmatprep.subr.mxu0 0.0
  %5974 = vmatpush1.msra.mxu0 0.0
  %5975 = vmatprep.subr.mxu0 0.0
  %5976 = vmatpush1.msra.mxu0 0.0
  %5977 = vmatprep.subr.mxu0 0.0
  %5978 = vmatpush1.msra.mxu0 0.0
  %5979 = vmatprep.subr.mxu0 0.0
  %5980 = vmatpush1.msra.mxu0 0.0
  %5981 = vmatprep.subr.mxu0 0.0
  %5982 = vmatpush1.msra.mxu0 0.0
  %5983 = vmatprep.subr.mxu0 0.0
  %5984 = vmatpush1.msra.mxu0 0.0
  %5985 = vmatprep.subr.mxu0 0.0
  %5986 = vmatpush1.msra.mxu0 0.0
  %5987 = vmatprep.subr.mxu0 0.0
  %5988 = vmatpush1.msra.mxu0 0.0
  %5989 = vmatprep.subr.mxu0 0.0
  %5990 = vmatpush1.msra.mxu0 0.0
  %5991 = vmatprep.subr.mxu0 0.0
  %5992 = vmatpush1.msra.mxu0 0.0
  %5993 = vmatprep.subr.mxu0 0.0
  %5994 = vmatpush1.msra.mxu0 0.0
  %5995 = vmatprep.subr.mxu0 0.0
  %5996 = vmatpush1.msra.mxu0 0.0
  %5997 = vmatprep.subr.mxu0 0.0
  %5998 = vmatpush1.msra.mxu0 0.0
  %5999 = vmatprep.subr.mxu0 0.0
  %6000 = vmatpush1.msra.mxu0 0.0
  %6001 = vmatprep.subr.mxu0 0.0
  %6002 = vmatpush1.msra.mxu0 0.0
  %6003 = vmatprep.subr.mxu0 0.0
  %6004 = vmatpush1.msra.mxu0 0.0
  %6005 = vmatprep.subr.mxu0 0.0
  %6006 = vmatpush1.msra.mxu0 0.0
  %6007 = vmatprep.subr.mxu0 0.0
  %6008 = vmatpush1.msra.mxu0 0.0
  %6009 = vmatprep.subr.mxu0 0.0
  %6010 = vmatpush1.msra.mxu0 0.0
  %6011 = vmatprep.mubr.f32.mxu0 0.0
  %v6012 = vand.u32 %v5941, 4294901760
  %v6013 = vsub.f32 %v5941, %v6012
  %v6014 = vand.u32 %v6013, 4294901760
  %v6015 = vsub.f32 %v6013, %v6014
  %v6016 = vand.u32 %v6015, 4294901760
  %6017 = vmatmul.mubr.f32.gmra.mrb[0].mxu0 %v6016
  %v6018 = vpop.f32.mrb[0].mxu0
  %v6019 = vadd.f32 0.0, %v6018
  %v6020 = vpop.f32.mrb[0].mxu0
  %6021 = vdwg.mxu0
  %6022 = vmatprep.subr.mxu0 0.0
  %v6023 = vand.u32 %v96, 4294901760
  %v6024 = vsub.f32 %v96, %v6023
  %v6025 = vand.u32 %v6024, 4294901760
  %v6026 = vsub.f32 %v6024, %v6025
  %v6027 = vand.u32 %v6026, 4294901760
  %6028 = vmatpush1.msra.mxu0 %v6027
  %6029 = vmatprep.subr.mxu0 0.0
  %v6030 = vand.u32 %v97, 4294901760
  %v6031 = vsub.f32 %v97, %v6030
  %v6032 = vand.u32 %v6031, 4294901760
  %v6033 = vsub.f32 %v6031, %v6032
  %v6034 = vand.u32 %v6033, 4294901760
  %6035 = vmatpush1.msra.mxu0 %v6034
  %6036 = vmatprep.subr.mxu0 0.0
  %v6037 = vand.u32 %v98, 4294901760
  %v6038 = vsub.f32 %v98, %v6037
  %v6039 = vand.u32 %v6038, 4294901760
  %v6040 = vsub.f32 %v6038, %v6039
  %v6041 = vand.u32 %v6040, 4294901760
  %6042 = vmatpush1.msra.mxu0 %v6041
  %6043 = vmatprep.subr.mxu0 0.0
  %v6044 = vand.u32 %v99, 4294901760
  %v6045 = vsub.f32 %v99, %v6044
  %v6046 = vand.u32 %v6045, 4294901760
  %v6047 = vsub.f32 %v6045, %v6046
  %v6048 = vand.u32 %v6047, 4294901760
  %6049 = vmatpush1.msra.mxu0 %v6048
  %6050 = vmatprep.subr.mxu0 0.0
  %6051 = vmatpush1.msra.mxu0 0.0
  %6052 = vmatprep.subr.mxu0 0.0
  %6053 = vmatpush1.msra.mxu0 0.0
  %6054 = vmatprep.subr.mxu0 0.0
  %6055 = vmatpush1.msra.mxu0 0.0
  %6056 = vmatprep.subr.mxu0 0.0
  %6057 = vmatpush1.msra.mxu0 0.0
  %6058 = vmatprep.subr.mxu0 0.0
  %6059 = vmatpush1.msra.mxu0 0.0
  %6060 = vmatprep.subr.mxu0 0.0
  %6061 = vmatpush1.msra.mxu0 0.0
  %6062 = vmatprep.subr.mxu0 0.0
  %6063 = vmatpush1.msra.mxu0 0.0
  %6064 = vmatprep.subr.mxu0 0.0
  %6065 = vmatpush1.msra.mxu0 0.0
  %6066 = vmatprep.subr.mxu0 0.0
  %6067 = vmatpush1.msra.mxu0 0.0
  %6068 = vmatprep.subr.mxu0 0.0
  %6069 = vmatpush1.msra.mxu0 0.0
  %6070 = vmatprep.subr.mxu0 0.0
  %6071 = vmatpush1.msra.mxu0 0.0
  %6072 = vmatprep.subr.mxu0 0.0
  %6073 = vmatpush1.msra.mxu0 0.0
  %6074 = vmatprep.subr.mxu0 0.0
  %6075 = vmatpush1.msra.mxu0 0.0
  %6076 = vmatprep.subr.mxu0 0.0
  %6077 = vmatpush1.msra.mxu0 0.0
  %6078 = vmatprep.subr.mxu0 0.0
  %6079 = vmatpush1.msra.mxu0 0.0
  %6080 = vmatprep.subr.mxu0 0.0
  %6081 = vmatpush1.msra.mxu0 0.0
  %6082 = vmatprep.subr.mxu0 0.0
  %6083 = vmatpush1.msra.mxu0 0.0
  %6084 = vmatprep.subr.mxu0 0.0
  %6085 = vmatpush1.msra.mxu0 0.0
  %6086 = vmatprep.subr.mxu0 0.0
  %6087 = vmatpush1.msra.mxu0 0.0
  %6088 = vmatprep.subr.mxu0 0.0
  %6089 = vmatpush1.msra.mxu0 0.0
  %6090 = vmatprep.subr.mxu0 0.0
  %6091 = vmatpush1.msra.mxu0 0.0
  %6092 = vmatprep.subr.mxu0 0.0
  %6093 = vmatpush1.msra.mxu0 0.0
  %6094 = vmatprep.subr.mxu0 0.0
  %6095 = vmatpush1.msra.mxu0 0.0
  %6096 = vmatprep.subr.mxu0 0.0
  %6097 = vmatpush1.msra.mxu0 0.0
  %6098 = vmatprep.subr.mxu0 0.0
  %6099 = vmatpush1.msra.mxu0 0.0
  %6100 = vmatprep.subr.mxu0 0.0
  %6101 = vmatpush1.msra.mxu0 0.0
  %6102 = vmatprep.subr.mxu0 0.0
  %6103 = vmatpush1.msra.mxu0 0.0
  %6104 = vmatprep.subr.mxu0 0.0
  %6105 = vmatpush1.msra.mxu0 0.0
  %6106 = vmatprep.mubr.f32.mxu0 0.0
  %v6107 = vand.u32 %v5941, 4294901760
  %6108 = vmatmul.mubr.f32.gmra.mrb[0].mxu0 %v6107
  %v6109 = vpop.f32.mrb[0].mxu0
  %v6110 = vadd.f32 %v6019, %v6109
  %v6111 = vpop.f32.mrb[0].mxu0
  %6112 = vdwg.mxu0
  %6113 = vmatprep.subr.mxu0 0.0
  %v6114 = vand.u32 %v96, 4294901760
  %v6115 = vsub.f32 %v96, %v6114
  %6116 = vmatpush1.msra.mxu0 %v6115
  %6117 = vmatprep.subr.mxu0 0.0
  %v6118 = vand.u32 %v97, 4294901760
  %v6119 = vsub.f32 %v97, %v6118
  %6120 = vmatpush1.msra.mxu0 %v6119
  %6121 = vmatprep.subr.mxu0 0.0
  %v6122 = vand.u32 %v98, 4294901760
  %v6123 = vsub.f32 %v98, %v6122
  %6124 = vmatpush1.msra.mxu0 %v6123
  %6125 = vmatprep.subr.mxu0 0.0
  %v6126 = vand.u32 %v99, 4294901760
  %v6127 = vsub.f32 %v99, %v6126
  %6128 = vmatpush1.msra.mxu0 %v6127
  %6129 = vmatprep.subr.mxu0 0.0
  %6130 = vmatpush1.msra.mxu0 0.0
  %6131 = vmatprep.subr.mxu0 0.0
  %6132 = vmatpush1.msra.mxu0 0.0
  %6133 = vmatprep.subr.mxu0 0.0
  %6134 = vmatpush1.msra.mxu0 0.0
  %6135 = vmatprep.subr.mxu0 0.0
  %6136 = vmatpush1.msra.mxu0 0.0
  %6137 = vmatprep.subr.mxu0 0.0
  %6138 = vmatpush1.msra.mxu0 0.0
  %6139 = vmatprep.subr.mxu0 0.0
  %6140 = vmatpush1.msra.mxu0 0.0
  %6141 = vmatprep.subr.mxu0 0.0
  %6142 = vmatpush1.msra.mxu0 0.0
  %6143 = vmatprep.subr.mxu0 0.0
  %6144 = vmatpush1.msra.mxu0 0.0
  %6145 = vmatprep.subr.mxu0 0.0
  %6146 = vmatpush1.msra.mxu0 0.0
  %6147 = vmatprep.subr.mxu0 0.0
  %6148 = vmatpush1.msra.mxu0 0.0
  %6149 = vmatprep.subr.mxu0 0.0
  %6150 = vmatpush1.msra.mxu0 0.0
  %6151 = vmatprep.subr.mxu0 0.0
  %6152 = vmatpush1.msra.mxu0 0.0
  %6153 = vmatprep.subr.mxu0 0.0
  %6154 = vmatpush1.msra.mxu0 0.0
  %6155 = vmatprep.subr.mxu0 0.0
  %6156 = vmatpush1.msra.mxu0 0.0
  %6157 = vmatprep.subr.mxu0 0.0
  %6158 = vmatpush1.msra.mxu0 0.0
  %6159 = vmatprep.subr.mxu0 0.0
  %6160 = vmatpush1.msra.mxu0 0.0
  %6161 = vmatprep.subr.mxu0 0.0
  %6162 = vmatpush1.msra.mxu0 0.0
  %6163 = vmatprep.subr.mxu0 0.0
  %6164 = vmatpush1.msra.mxu0 0.0
  %6165 = vmatprep.subr.mxu0 0.0
  %6166 = vmatpush1.msra.mxu0 0.0
  %6167 = vmatprep.subr.mxu0 0.0
  %6168 = vmatpush1.msra.mxu0 0.0
  %6169 = vmatprep.subr.mxu0 0.0
  %6170 = vmatpush1.msra.mxu0 0.0
  %6171 = vmatprep.subr.mxu0 0.0
  %6172 = vmatpush1.msra.mxu0 0.0
  %6173 = vmatprep.subr.mxu0 0.0
  %6174 = vmatpush1.msra.mxu0 0.0
  %6175 = vmatprep.subr.mxu0 0.0
  %6176 = vmatpush1.msra.mxu0 0.0
  %6177 = vmatprep.subr.mxu0 0.0
  %6178 = vmatpush1.msra.mxu0 0.0
  %6179 = vmatprep.subr.mxu0 0.0
  %6180 = vmatpush1.msra.mxu0 0.0
  %6181 = vmatprep.subr.mxu0 0.0
  %6182 = vmatpush1.msra.mxu0 0.0
  %6183 = vmatprep.subr.mxu0 0.0
  %6184 = vmatpush1.msra.mxu0 0.0
  %6185 = vmatprep.mubr.f32.mxu0 0.0
  %v6186 = vand.u32 %v5941, 4294901760
  %v6187 = vsub.f32 %v5941, %v6186
  %6188 = vmatmul.mubr.f32.gmra.mrb[0].mxu0 %v6187
  %v6189 = vpop.f32.mrb[0].mxu0
  %v6190 = vadd.f32 %v6110, %v6189
  %v6191 = vpop.f32.mrb[0].mxu0
  %6192 = vdwg.mxu0
  %6193 = vmatprep.subr.mxu0 0.0
  %v6194 = vand.u32 %v96, 4294901760
  %6195 = vmatpush1.msra.mxu0 %v6194
  %6196 = vmatprep.subr.mxu0 0.0
  %v6197 = vand.u32 %v97, 4294901760
  %6198 = vmatpush1.msra.mxu0 %v6197
  %6199 = vmatprep.subr.mxu0 0.0
  %v6200 = vand.u32 %v98, 4294901760
  %6201 = vmatpush1.msra.mxu0 %v6200
  %6202 = vmatprep.subr.mxu0 0.0
  %v6203 = vand.u32 %v99, 4294901760
  %6204 = vmatpush1.msra.mxu0 %v6203
  %6205 = vmatprep.subr.mxu0 0.0
  %6206 = vmatpush1.msra.mxu0 0.0
  %6207 = vmatprep.subr.mxu0 0.0
  %6208 = vmatpush1.msra.mxu0 0.0
  %6209 = vmatprep.subr.mxu0 0.0
  %6210 = vmatpush1.msra.mxu0 0.0
  %6211 = vmatprep.subr.mxu0 0.0
  %6212 = vmatpush1.msra.mxu0 0.0
  %6213 = vmatprep.subr.mxu0 0.0
  %6214 = vmatpush1.msra.mxu0 0.0
  %6215 = vmatprep.subr.mxu0 0.0
  %6216 = vmatpush1.msra.mxu0 0.0
  %6217 = vmatprep.subr.mxu0 0.0
  %6218 = vmatpush1.msra.mxu0 0.0
  %6219 = vmatprep.subr.mxu0 0.0
  %6220 = vmatpush1.msra.mxu0 0.0
  %6221 = vmatprep.subr.mxu0 0.0
  %6222 = vmatpush1.msra.mxu0 0.0
  %6223 = vmatprep.subr.mxu0 0.0
  %6224 = vmatpush1.msra.mxu0 0.0
  %6225 = vmatprep.subr.mxu0 0.0
  %6226 = vmatpush1.msra.mxu0 0.0
  %6227 = vmatprep.subr.mxu0 0.0
  %6228 = vmatpush1.msra.mxu0 0.0
  %6229 = vmatprep.subr.mxu0 0.0
  %6230 = vmatpush1.msra.mxu0 0.0
  %6231 = vmatprep.subr.mxu0 0.0
  %6232 = vmatpush1.msra.mxu0 0.0
  %6233 = vmatprep.subr.mxu0 0.0
  %6234 = vmatpush1.msra.mxu0 0.0
  %6235 = vmatprep.subr.mxu0 0.0
  %6236 = vmatpush1.msra.mxu0 0.0
  %6237 = vmatprep.subr.mxu0 0.0
  %6238 = vmatpush1.msra.mxu0 0.0
  %6239 = vmatprep.subr.mxu0 0.0
  %6240 = vmatpush1.msra.mxu0 0.0
  %6241 = vmatprep.subr.mxu0 0.0
  %6242 = vmatpush1.msra.mxu0 0.0
  %6243 = vmatprep.subr.mxu0 0.0
  %6244 = vmatpush1.msra.mxu0 0.0
  %6245 = vmatprep.subr.mxu0 0.0
  %6246 = vmatpush1.msra.mxu0 0.0
  %6247 = vmatprep.subr.mxu0 0.0
  %6248 = vmatpush1.msra.mxu0 0.0
  %6249 = vmatprep.subr.mxu0 0.0
  %6250 = vmatpush1.msra.mxu0 0.0
  %6251 = vmatprep.subr.mxu0 0.0
  %6252 = vmatpush1.msra.mxu0 0.0
  %6253 = vmatprep.subr.mxu0 0.0
  %6254 = vmatpush1.msra.mxu0 0.0
  %6255 = vmatprep.subr.mxu0 0.0
  %6256 = vmatpush1.msra.mxu0 0.0
  %6257 = vmatprep.subr.mxu0 0.0
  %6258 = vmatpush1.msra.mxu0 0.0
  %6259 = vmatprep.subr.mxu0 0.0
  %6260 = vmatpush1.msra.mxu0 0.0
  %6261 = vmatprep.mubr.f32.mxu0 0.0
  %v6262 = vand.u32 %v5941, 4294901760
  %v6263 = vsub.f32 %v5941, %v6262
  %v6264 = vand.u32 %v6263, 4294901760
  %6265 = vmatmul.mubr.f32.gmra.mrb[0].mxu0 %v6264
  %v6266 = vpop.f32.mrb[0].mxu0
  %v6267 = vadd.f32 %v6190, %v6266
  %v6268 = vpop.f32.mrb[0].mxu0
  %6269 = vdwg.mxu0
  %6270 = vmatprep.subr.mxu0 0.0
  %v6271 = vand.u32 %v96, 4294901760
  %v6272 = vsub.f32 %v96, %v6271
  %v6273 = vand.u32 %v6272, 4294901760
  %6274 = vmatpush1.msra.mxu0 %v6273
  %6275 = vmatprep.subr.mxu0 0.0
  %v6276 = vand.u32 %v97, 4294901760
  %v6277 = vsub.f32 %v97, %v6276
  %v6278 = vand.u32 %v6277, 4294901760
  %6279 = vmatpush1.msra.mxu0 %v6278
  %6280 = vmatprep.subr.mxu0 0.0
  %v6281 = vand.u32 %v98, 4294901760
  %v6282 = vsub.f32 %v98, %v6281
  %v6283 = vand.u32 %v6282, 4294901760
  %6284 = vmatpush1.msra.mxu0 %v6283
  %6285 = vmatprep.subr.mxu0 0.0
  %v6286 = vand.u32 %v99, 4294901760
  %v6287 = vsub.f32 %v99, %v6286
  %v6288 = vand.u32 %v6287, 4294901760
  %6289 = vmatpush1.msra.mxu0 %v6288
  %6290 = vmatprep.subr.mxu0 0.0
  %6291 = vmatpush1.msra.mxu0 0.0
  %6292 = vmatprep.subr.mxu0 0.0
  %6293 = vmatpush1.msra.mxu0 0.0
  %6294 = vmatprep.subr.mxu0 0.0
  %6295 = vmatpush1.msra.mxu0 0.0
  %6296 = vmatprep.subr.mxu0 0.0
  %6297 = vmatpush1.msra.mxu0 0.0
  %6298 = vmatprep.subr.mxu0 0.0
  %6299 = vmatpush1.msra.mxu0 0.0
  %6300 = vmatprep.subr.mxu0 0.0
  %6301 = vmatpush1.msra.mxu0 0.0
  %6302 = vmatprep.subr.mxu0 0.0
  %6303 = vmatpush1.msra.mxu0 0.0
  %6304 = vmatprep.subr.mxu0 0.0
  %6305 = vmatpush1.msra.mxu0 0.0
  %6306 = vmatprep.subr.mxu0 0.0
  %6307 = vmatpush1.msra.mxu0 0.0
  %6308 = vmatprep.subr.mxu0 0.0
  %6309 = vmatpush1.msra.mxu0 0.0
  %6310 = vmatprep.subr.mxu0 0.0
  %6311 = vmatpush1.msra.mxu0 0.0
  %6312 = vmatprep.subr.mxu0 0.0
  %6313 = vmatpush1.msra.mxu0 0.0
  %6314 = vmatprep.subr.mxu0 0.0
  %6315 = vmatpush1.msra.mxu0 0.0
  %6316 = vmatprep.subr.mxu0 0.0
  %6317 = vmatpush1.msra.mxu0 0.0
  %6318 = vmatprep.subr.mxu0 0.0
  %6319 = vmatpush1.msra.mxu0 0.0
  %6320 = vmatprep.subr.mxu0 0.0
  %6321 = vmatpush1.msra.mxu0 0.0
  %6322 = vmatprep.subr.mxu0 0.0
  %6323 = vmatpush1.msra.mxu0 0.0
  %6324 = vmatprep.subr.mxu0 0.0
  %6325 = vmatpush1.msra.mxu0 0.0
  %6326 = vmatprep.subr.mxu0 0.0
  %6327 = vmatpush1.msra.mxu0 0.0
  %6328 = vmatprep.subr.mxu0 0.0
  %6329 = vmatpush1.msra.mxu0 0.0
  %6330 = vmatprep.subr.mxu0 0.0
  %6331 = vmatpush1.msra.mxu0 0.0
  %6332 = vmatprep.subr.mxu0 0.0
  %6333 = vmatpush1.msra.mxu0 0.0
  %6334 = vmatprep.subr.mxu0 0.0
  %6335 = vmatpush1.msra.mxu0 0.0
  %6336 = vmatprep.subr.mxu0 0.0
  %6337 = vmatpush1.msra.mxu0 0.0
  %6338 = vmatprep.subr.mxu0 0.0
  %6339 = vmatpush1.msra.mxu0 0.0
  %6340 = vmatprep.subr.mxu0 0.0
  %6341 = vmatpush1.msra.mxu0 0.0
  %6342 = vmatprep.subr.mxu0 0.0
  %6343 = vmatpush1.msra.mxu0 0.0
  %6344 = vmatprep.subr.mxu0 0.0
  %6345 = vmatpush1.msra.mxu0 0.0
  %6346 = vmatprep.mubr.f32.mxu0 0.0
  %v6347 = vand.u32 %v5941, 4294901760
  %6348 = vmatmul.mubr.f32.gmra.mrb[0].mxu0 %v6347
  %v6349 = vpop.f32.mrb[0].mxu0
  %v6350 = vadd.f32 %v6267, %v6349
  %v6351 = vpop.f32.mrb[0].mxu0
  %6352 = vdwg.mxu0
  %6353 = vmatprep.subr.mxu0 0.0
  %v6354 = vand.u32 %v96, 4294901760
  %6355 = vmatpush1.msra.mxu0 %v6354
  %6356 = vmatprep.subr.mxu0 0.0
  %v6357 = vand.u32 %v97, 4294901760
  %6358 = vmatpush1.msra.mxu0 %v6357
  %6359 = vmatprep.subr.mxu0 0.0
  %v6360 = vand.u32 %v98, 4294901760
  %6361 = vmatpush1.msra.mxu0 %v6360
  %6362 = vmatprep.subr.mxu0 0.0
  %v6363 = vand.u32 %v99, 4294901760
  %6364 = vmatpush1.msra.mxu0 %v6363
  %6365 = vmatprep.subr.mxu0 0.0
  %6366 = vmatpush1.msra.mxu0 0.0
  %6367 = vmatprep.subr.mxu0 0.0
  %6368 = vmatpush1.msra.mxu0 0.0
  %6369 = vmatprep.subr.mxu0 0.0
  %6370 = vmatpush1.msra.mxu0 0.0
  %6371 = vmatprep.subr.mxu0 0.0
  %6372 = vmatpush1.msra.mxu0 0.0
  %6373 = vmatprep.subr.mxu0 0.0
  %6374 = vmatpush1.msra.mxu0 0.0
  %6375 = vmatprep.subr.mxu0 0.0
  %6376 = vmatpush1.msra.mxu0 0.0
  %6377 = vmatprep.subr.mxu0 0.0
  %6378 = vmatpush1.msra.mxu0 0.0
  %6379 = vmatprep.subr.mxu0 0.0
  %6380 = vmatpush1.msra.mxu0 0.0
  %6381 = vmatprep.subr.mxu0 0.0
  %6382 = vmatpush1.msra.mxu0 0.0
  %6383 = vmatprep.subr.mxu0 0.0
  %6384 = vmatpush1.msra.mxu0 0.0
  %6385 = vmatprep.subr.mxu0 0.0
  %6386 = vmatpush1.msra.mxu0 0.0
  %6387 = vmatprep.subr.mxu0 0.0
  %6388 = vmatpush1.msra.mxu0 0.0
  %6389 = vmatprep.subr.mxu0 0.0
  %6390 = vmatpush1.msra.mxu0 0.0
  %6391 = vmatprep.subr.mxu0 0.0
  %6392 = vmatpush1.msra.mxu0 0.0
  %6393 = vmatprep.subr.mxu0 0.0
  %6394 = vmatpush1.msra.mxu0 0.0
  %6395 = vmatprep.subr.mxu0 0.0
  %6396 = vmatpush1.msra.mxu0 0.0
  %6397 = vmatprep.subr.mxu0 0.0
  %6398 = vmatpush1.msra.mxu0 0.0
  %6399 = vmatprep.subr.mxu0 0.0
  %6400 = vmatpush1.msra.mxu0 0.0
  %6401 = vmatprep.subr.mxu0 0.0
  %6402 = vmatpush1.msra.mxu0 0.0
  %6403 = vmatprep.subr.mxu0 0.0
  %6404 = vmatpush1.msra.mxu0 0.0
  %6405 = vmatprep.subr.mxu0 0.0
  %6406 = vmatpush1.msra.mxu0 0.0
  %6407 = vmatprep.subr.mxu0 0.0
  %6408 = vmatpush1.msra.mxu0 0.0
  %6409 = vmatprep.subr.mxu0 0.0
  %6410 = vmatpush1.msra.mxu0 0.0
  %6411 = vmatprep.subr.mxu0 0.0
  %6412 = vmatpush1.msra.mxu0 0.0
  %6413 = vmatprep.subr.mxu0 0.0
  %6414 = vmatpush1.msra.mxu0 0.0
  %6415 = vmatprep.subr.mxu0 0.0
  %6416 = vmatpush1.msra.mxu0 0.0
  %6417 = vmatprep.subr.mxu0 0.0
  %6418 = vmatpush1.msra.mxu0 0.0
  %6419 = vmatprep.subr.mxu0 0.0
  %6420 = vmatpush1.msra.mxu0 0.0
  %6421 = vmatprep.mubr.f32.mxu0 0.0
  %v6422 = vand.u32 %v5941, 4294901760
  %6423 = vmatmul.mubr.f32.gmra.mrb[0].mxu0 %v6422
  %v6424 = vpop.f32.mrb[0].mxu0
  %v6425 = vadd.f32 %v6350, %v6424
  %v6426 = vpop.f32.mrb[0].mxu0
  %6427 = vdwg.mxu0
  %v6428 = vadd.f32 %v5937, %v6425
  %v6429 = vxor.u32 %v6428, 2147483648
  %v6430 = vmul.f32 %v6429, 1.442695
  %v6431 = vpow.pop %v6430
  %v6432 = vadd.f32 %v6431, 1.0
  %v6433 = vrcp.pop %v6432
  %v6434 = vmul.f32 1.0, %v6433
  %v6435 = vtanh.pop %v6428
  %v6436 = vmul.f32 %v6434, %v5386
  %6438 = vrot.lane.b32.xlu0 %v6435, 64
  %v6439 = vpop.permute.xlu0 %6438
  %v6441 = vmul.f32 %v6434, %v6439
  %6443 = vrot.lane.b32.xlu0 %v6441, 32
  %v6444 = vpop.permute.xlu0 %6443
  %v6446 = vadd.f32 %v6436, %v6444
  %v6447 = vtanh.pop %v6446
  %6449 = vrot.lane.b32.xlu0 %v6447, 64
  %v6450 = vpop.permute.xlu0 %6449
  %v6452 = vmul.f32 %v6434, %v6450
  %s6453 = scalar_lea.vmem %s72, 16
  %v6454 = vld [vmem:[%s6453] sm:$0xff]
  %6456 = vrot.lane.b32.xlu0 %v6454, 96
  %v6457 = vpop.permute.xlu0 %6456
  %v6459 = vadd.f32 %v6452, %v6457
  %6461 = vrot.lane.b32.xlu0 %v6459, 32
  %v6462 = vpop.permute.xlu0 %6461
  %s6464 = scalar_lea.vmem %s80, 16
  %6465 = vst.msk [vmem:[%s6464] sm:$0xff] %vm105, %v6462
  %s6466 = scalar_lea.vmem %s0, 48
  %v6467 = vld [vmem:[%s6466] sm:$0xff]
  %6469 = vrot.lane.b32.xlu0 %v5922, 32
  %v6470 = vpop.permute.xlu0 %6469
  %v6471 = vsel %vm105, %v6470, 0
  %6473 = vmatprep.subr.mxu0 0.0
  %v6474 = vand.u32 %v92, 4294901760
  %6475 = vmatpush1.msra.mxu0 %v6474
  %6476 = vmatprep.subr.mxu0 0.0
  %v6477 = vand.u32 %v93, 4294901760
  %6478 = vmatpush1.msra.mxu0 %v6477
  %6479 = vmatprep.subr.mxu0 0.0
  %v6480 = vand.u32 %v94, 4294901760
  %6481 = vmatpush1.msra.mxu0 %v6480
  %6482 = vmatprep.subr.mxu0 0.0
  %v6483 = vand.u32 %v95, 4294901760
  %6484 = vmatpush1.msra.mxu0 %v6483
  %6485 = vmatprep.subr.mxu0 0.0
  %6486 = vmatpush1.msra.mxu0 0.0
  %6487 = vmatprep.subr.mxu0 0.0
  %6488 = vmatpush1.msra.mxu0 0.0
  %6489 = vmatprep.subr.mxu0 0.0
  %6490 = vmatpush1.msra.mxu0 0.0
  %6491 = vmatprep.subr.mxu0 0.0
  %6492 = vmatpush1.msra.mxu0 0.0
  %6493 = vmatprep.subr.mxu0 0.0
  %6494 = vmatpush1.msra.mxu0 0.0
  %6495 = vmatprep.subr.mxu0 0.0
  %6496 = vmatpush1.msra.mxu0 0.0
  %6497 = vmatprep.subr.mxu0 0.0
  %6498 = vmatpush1.msra.mxu0 0.0
  %6499 = vmatprep.subr.mxu0 0.0
  %6500 = vmatpush1.msra.mxu0 0.0
  %6501 = vmatprep.subr.mxu0 0.0
  %6502 = vmatpush1.msra.mxu0 0.0
  %6503 = vmatprep.subr.mxu0 0.0
  %6504 = vmatpush1.msra.mxu0 0.0
  %6505 = vmatprep.subr.mxu0 0.0
  %6506 = vmatpush1.msra.mxu0 0.0
  %6507 = vmatprep.subr.mxu0 0.0
  %6508 = vmatpush1.msra.mxu0 0.0
  %6509 = vmatprep.subr.mxu0 0.0
  %6510 = vmatpush1.msra.mxu0 0.0
  %6511 = vmatprep.subr.mxu0 0.0
  %6512 = vmatpush1.msra.mxu0 0.0
  %6513 = vmatprep.subr.mxu0 0.0
  %6514 = vmatpush1.msra.mxu0 0.0
  %6515 = vmatprep.subr.mxu0 0.0
  %6516 = vmatpush1.msra.mxu0 0.0
  %6517 = vmatprep.subr.mxu0 0.0
  %6518 = vmatpush1.msra.mxu0 0.0
  %6519 = vmatprep.subr.mxu0 0.0
  %6520 = vmatpush1.msra.mxu0 0.0
  %6521 = vmatprep.subr.mxu0 0.0
  %6522 = vmatpush1.msra.mxu0 0.0
  %6523 = vmatprep.subr.mxu0 0.0
  %6524 = vmatpush1.msra.mxu0 0.0
  %6525 = vmatprep.subr.mxu0 0.0
  %6526 = vmatpush1.msra.mxu0 0.0
  %6527 = vmatprep.subr.mxu0 0.0
  %6528 = vmatpush1.msra.mxu0 0.0
  %6529 = vmatprep.subr.mxu0 0.0
  %6530 = vmatpush1.msra.mxu0 0.0
  %6531 = vmatprep.subr.mxu0 0.0
  %6532 = vmatpush1.msra.mxu0 0.0
  %6533 = vmatprep.subr.mxu0 0.0
  %6534 = vmatpush1.msra.mxu0 0.0
  %6535 = vmatprep.subr.mxu0 0.0
  %6536 = vmatpush1.msra.mxu0 0.0
  %6537 = vmatprep.subr.mxu0 0.0
  %6538 = vmatpush1.msra.mxu0 0.0
  %6539 = vmatprep.subr.mxu0 0.0
  %6540 = vmatpush1.msra.mxu0 0.0
  %6541 = vmatprep.mubr.f32.mxu0 0.0
  %v6542 = vand.u32 %v6471, 4294901760
  %v6543 = vsub.f32 %v6471, %v6542
  %v6544 = vand.u32 %v6543, 4294901760
  %v6545 = vsub.f32 %v6543, %v6544
  %v6546 = vand.u32 %v6545, 4294901760
  %6547 = vmatmul.mubr.f32.gmra.mrb[0].mxu0 %v6546
  %v6548 = vpop.f32.mrb[0].mxu0
  %v6549 = vadd.f32 0.0, %v6548
  %v6550 = vpop.f32.mrb[0].mxu0
  %6551 = vdwg.mxu0
  %6552 = vmatprep.subr.mxu0 0.0
  %v6553 = vand.u32 %v92, 4294901760
  %v6554 = vsub.f32 %v92, %v6553
  %v6555 = vand.u32 %v6554, 4294901760
  %v6556 = vsub.f32 %v6554, %v6555
  %v6557 = vand.u32 %v6556, 4294901760
  %6558 = vmatpush1.msra.mxu0 %v6557
  %6559 = vmatprep.subr.mxu0 0.0
  %v6560 = vand.u32 %v93, 4294901760
  %v6561 = vsub.f32 %v93, %v6560
  %v6562 = vand.u32 %v6561, 4294901760
  %v6563 = vsub.f32 %v6561, %v6562
  %v6564 = vand.u32 %v6563, 4294901760
  %6565 = vmatpush1.msra.mxu0 %v6564
  %6566 = vmatprep.subr.mxu0 0.0
  %v6567 = vand.u32 %v94, 4294901760
  %v6568 = vsub.f32 %v94, %v6567
  %v6569 = vand.u32 %v6568, 4294901760
  %v6570 = vsub.f32 %v6568, %v6569
  %v6571 = vand.u32 %v6570, 4294901760
  %6572 = vmatpush1.msra.mxu0 %v6571
  %6573 = vmatprep.subr.mxu0 0.0
  %v6574 = vand.u32 %v95, 4294901760
  %v6575 = vsub.f32 %v95, %v6574
  %v6576 = vand.u32 %v6575, 4294901760
  %v6577 = vsub.f32 %v6575, %v6576
  %v6578 = vand.u32 %v6577, 4294901760
  %6579 = vmatpush1.msra.mxu0 %v6578
  %6580 = vmatprep.subr.mxu0 0.0
  %6581 = vmatpush1.msra.mxu0 0.0
  %6582 = vmatprep.subr.mxu0 0.0
  %6583 = vmatpush1.msra.mxu0 0.0
  %6584 = vmatprep.subr.mxu0 0.0
  %6585 = vmatpush1.msra.mxu0 0.0
  %6586 = vmatprep.subr.mxu0 0.0
  %6587 = vmatpush1.msra.mxu0 0.0
  %6588 = vmatprep.subr.mxu0 0.0
  %6589 = vmatpush1.msra.mxu0 0.0
  %6590 = vmatprep.subr.mxu0 0.0
  %6591 = vmatpush1.msra.mxu0 0.0
  %6592 = vmatprep.subr.mxu0 0.0
  %6593 = vmatpush1.msra.mxu0 0.0
  %6594 = vmatprep.subr.mxu0 0.0
  %6595 = vmatpush1.msra.mxu0 0.0
  %6596 = vmatprep.subr.mxu0 0.0
  %6597 = vmatpush1.msra.mxu0 0.0
  %6598 = vmatprep.subr.mxu0 0.0
  %6599 = vmatpush1.msra.mxu0 0.0
  %6600 = vmatprep.subr.mxu0 0.0
  %6601 = vmatpush1.msra.mxu0 0.0
  %6602 = vmatprep.subr.mxu0 0.0
  %6603 = vmatpush1.msra.mxu0 0.0
  %6604 = vmatprep.subr.mxu0 0.0
  %6605 = vmatpush1.msra.mxu0 0.0
  %6606 = vmatprep.subr.mxu0 0.0
  %6607 = vmatpush1.msra.mxu0 0.0
  %6608 = vmatprep.subr.mxu0 0.0
  %6609 = vmatpush1.msra.mxu0 0.0
  %6610 = vmatprep.subr.mxu0 0.0
  %6611 = vmatpush1.msra.mxu0 0.0
  %6612 = vmatprep.subr.mxu0 0.0
  %6613 = vmatpush1.msra.mxu0 0.0
  %6614 = vmatprep.subr.mxu0 0.0
  %6615 = vmatpush1.msra.mxu0 0.0
  %6616 = vmatprep.subr.mxu0 0.0
  %6617 = vmatpush1.msra.mxu0 0.0
  %6618 = vmatprep.subr.mxu0 0.0
  %6619 = vmatpush1.msra.mxu0 0.0
  %6620 = vmatprep.subr.mxu0 0.0
  %6621 = vmatpush1.msra.mxu0 0.0
  %6622 = vmatprep.subr.mxu0 0.0
  %6623 = vmatpush1.msra.mxu0 0.0
  %6624 = vmatprep.subr.mxu0 0.0
  %6625 = vmatpush1.msra.mxu0 0.0
  %6626 = vmatprep.subr.mxu0 0.0
  %6627 = vmatpush1.msra.mxu0 0.0
  %6628 = vmatprep.subr.mxu0 0.0
  %6629 = vmatpush1.msra.mxu0 0.0
  %6630 = vmatprep.subr.mxu0 0.0
  %6631 = vmatpush1.msra.mxu0 0.0
  %6632 = vmatprep.subr.mxu0 0.0
  %6633 = vmatpush1.msra.mxu0 0.0
  %6634 = vmatprep.subr.mxu0 0.0
  %6635 = vmatpush1.msra.mxu0 0.0
  %6636 = vmatprep.mubr.f32.mxu0 0.0
  %v6637 = vand.u32 %v6471, 4294901760
  %6638 = vmatmul.mubr.f32.gmra.mrb[0].mxu0 %v6637
  %v6639 = vpop.f32.mrb[0].mxu0
  %v6640 = vadd.f32 %v6549, %v6639
  %v6641 = vpop.f32.mrb[0].mxu0
  %6642 = vdwg.mxu0
  %6643 = vmatprep.subr.mxu0 0.0
  %v6644 = vand.u32 %v92, 4294901760
  %v6645 = vsub.f32 %v92, %v6644
  %6646 = vmatpush1.msra.mxu0 %v6645
  %6647 = vmatprep.subr.mxu0 0.0
  %v6648 = vand.u32 %v93, 4294901760
  %v6649 = vsub.f32 %v93, %v6648
  %6650 = vmatpush1.msra.mxu0 %v6649
  %6651 = vmatprep.subr.mxu0 0.0
  %v6652 = vand.u32 %v94, 4294901760
  %v6653 = vsub.f32 %v94, %v6652
  %6654 = vmatpush1.msra.mxu0 %v6653
  %6655 = vmatprep.subr.mxu0 0.0
  %v6656 = vand.u32 %v95, 4294901760
  %v6657 = vsub.f32 %v95, %v6656
  %6658 = vmatpush1.msra.mxu0 %v6657
  %6659 = vmatprep.subr.mxu0 0.0
  %6660 = vmatpush1.msra.mxu0 0.0
  %6661 = vmatprep.subr.mxu0 0.0
  %6662 = vmatpush1.msra.mxu0 0.0
  %6663 = vmatprep.subr.mxu0 0.0
  %6664 = vmatpush1.msra.mxu0 0.0
  %6665 = vmatprep.subr.mxu0 0.0
  %6666 = vmatpush1.msra.mxu0 0.0
  %6667 = vmatprep.subr.mxu0 0.0
  %6668 = vmatpush1.msra.mxu0 0.0
  %6669 = vmatprep.subr.mxu0 0.0
  %6670 = vmatpush1.msra.mxu0 0.0
  %6671 = vmatprep.subr.mxu0 0.0
  %6672 = vmatpush1.msra.mxu0 0.0
  %6673 = vmatprep.subr.mxu0 0.0
  %6674 = vmatpush1.msra.mxu0 0.0
  %6675 = vmatprep.subr.mxu0 0.0
  %6676 = vmatpush1.msra.mxu0 0.0
  %6677 = vmatprep.subr.mxu0 0.0
  %6678 = vmatpush1.msra.mxu0 0.0
  %6679 = vmatprep.subr.mxu0 0.0
  %6680 = vmatpush1.msra.mxu0 0.0
  %6681 = vmatprep.subr.mxu0 0.0
  %6682 = vmatpush1.msra.mxu0 0.0
  %6683 = vmatprep.subr.mxu0 0.0
  %6684 = vmatpush1.msra.mxu0 0.0
  %6685 = vmatprep.subr.mxu0 0.0
  %6686 = vmatpush1.msra.mxu0 0.0
  %6687 = vmatprep.subr.mxu0 0.0
  %6688 = vmatpush1.msra.mxu0 0.0
  %6689 = vmatprep.subr.mxu0 0.0
  %6690 = vmatpush1.msra.mxu0 0.0
  %6691 = vmatprep.subr.mxu0 0.0
  %6692 = vmatpush1.msra.mxu0 0.0
  %6693 = vmatprep.subr.mxu0 0.0
  %6694 = vmatpush1.msra.mxu0 0.0
  %6695 = vmatprep.subr.mxu0 0.0
  %6696 = vmatpush1.msra.mxu0 0.0
  %6697 = vmatprep.subr.mxu0 0.0
  %6698 = vmatpush1.msra.mxu0 0.0
  %6699 = vmatprep.subr.mxu0 0.0
  %6700 = vmatpush1.msra.mxu0 0.0
  %6701 = vmatprep.subr.mxu0 0.0
  %6702 = vmatpush1.msra.mxu0 0.0
  %6703 = vmatprep.subr.mxu0 0.0
  %6704 = vmatpush1.msra.mxu0 0.0
  %6705 = vmatprep.subr.mxu0 0.0
  %6706 = vmatpush1.msra.mxu0 0.0
  %6707 = vmatprep.subr.mxu0 0.0
  %6708 = vmatpush1.msra.mxu0 0.0
  %6709 = vmatprep.subr.mxu0 0.0
  %6710 = vmatpush1.msra.mxu0 0.0
  %6711 = vmatprep.subr.mxu0 0.0
  %6712 = vmatpush1.msra.mxu0 0.0
  %6713 = vmatprep.subr.mxu0 0.0
  %6714 = vmatpush1.msra.mxu0 0.0
  %6715 = vmatprep.mubr.f32.mxu0 0.0
  %v6716 = vand.u32 %v6471, 4294901760
  %v6717 = vsub.f32 %v6471, %v6716
  %6718 = vmatmul.mubr.f32.gmra.mrb[0].mxu0 %v6717
  %v6719 = vpop.f32.mrb[0].mxu0
  %v6720 = vadd.f32 %v6640, %v6719
  %v6721 = vpop.f32.mrb[0].mxu0
  %6722 = vdwg.mxu0
  %6723 = vmatprep.subr.mxu0 0.0
  %v6724 = vand.u32 %v92, 4294901760
  %6725 = vmatpush1.msra.mxu0 %v6724
  %6726 = vmatprep.subr.mxu0 0.0
  %v6727 = vand.u32 %v93, 4294901760
  %6728 = vmatpush1.msra.mxu0 %v6727
  %6729 = vmatprep.subr.mxu0 0.0
  %v6730 = vand.u32 %v94, 4294901760
  %6731 = vmatpush1.msra.mxu0 %v6730
  %6732 = vmatprep.subr.mxu0 0.0
  %v6733 = vand.u32 %v95, 4294901760
  %6734 = vmatpush1.msra.mxu0 %v6733
  %6735 = vmatprep.subr.mxu0 0.0
  %6736 = vmatpush1.msra.mxu0 0.0
  %6737 = vmatprep.subr.mxu0 0.0
  %6738 = vmatpush1.msra.mxu0 0.0
  %6739 = vmatprep.subr.mxu0 0.0
  %6740 = vmatpush1.msra.mxu0 0.0
  %6741 = vmatprep.subr.mxu0 0.0
  %6742 = vmatpush1.msra.mxu0 0.0
  %6743 = vmatprep.subr.mxu0 0.0
  %6744 = vmatpush1.msra.mxu0 0.0
  %6745 = vmatprep.subr.mxu0 0.0
  %6746 = vmatpush1.msra.mxu0 0.0
  %6747 = vmatprep.subr.mxu0 0.0
  %6748 = vmatpush1.msra.mxu0 0.0
  %6749 = vmatprep.subr.mxu0 0.0
  %6750 = vmatpush1.msra.mxu0 0.0
  %6751 = vmatprep.subr.mxu0 0.0
  %6752 = vmatpush1.msra.mxu0 0.0
  %6753 = vmatprep.subr.mxu0 0.0
  %6754 = vmatpush1.msra.mxu0 0.0
  %6755 = vmatprep.subr.mxu0 0.0
  %6756 = vmatpush1.msra.mxu0 0.0
  %6757 = vmatprep.subr.mxu0 0.0
  %6758 = vmatpush1.msra.mxu0 0.0
  %6759 = vmatprep.subr.mxu0 0.0
  %6760 = vmatpush1.msra.mxu0 0.0
  %6761 = vmatprep.subr.mxu0 0.0
  %6762 = vmatpush1.msra.mxu0 0.0
  %6763 = vmatprep.subr.mxu0 0.0
  %6764 = vmatpush1.msra.mxu0 0.0
  %6765 = vmatprep.subr.mxu0 0.0
  %6766 = vmatpush1.msra.mxu0 0.0
  %6767 = vmatprep.subr.mxu0 0.0
  %6768 = vmatpush1.msra.mxu0 0.0
  %6769 = vmatprep.subr.mxu0 0.0
  %6770 = vmatpush1.msra.mxu0 0.0
  %6771 = vmatprep.subr.mxu0 0.0
  %6772 = vmatpush1.msra.mxu0 0.0
  %6773 = vmatprep.subr.mxu0 0.0
  %6774 = vmatpush1.msra.mxu0 0.0
  %6775 = vmatprep.subr.mxu0 0.0
  %6776 = vmatpush1.msra.mxu0 0.0
  %6777 = vmatprep.subr.mxu0 0.0
  %6778 = vmatpush1.msra.mxu0 0.0
  %6779 = vmatprep.subr.mxu0 0.0
  %6780 = vmatpush1.msra.mxu0 0.0
  %6781 = vmatprep.subr.mxu0 0.0
  %6782 = vmatpush1.msra.mxu0 0.0
  %6783 = vmatprep.subr.mxu0 0.0
  %6784 = vmatpush1.msra.mxu0 0.0
  %6785 = vmatprep.subr.mxu0 0.0
  %6786 = vmatpush1.msra.mxu0 0.0
  %6787 = vmatprep.subr.mxu0 0.0
  %6788 = vmatpush1.msra.mxu0 0.0
  %6789 = vmatprep.subr.mxu0 0.0
  %6790 = vmatpush1.msra.mxu0 0.0
  %6791 = vmatprep.mubr.f32.mxu0 0.0
  %v6792 = vand.u32 %v6471, 4294901760
  %v6793 = vsub.f32 %v6471, %v6792
  %v6794 = vand.u32 %v6793, 4294901760
  %6795 = vmatmul.mubr.f32.gmra.mrb[0].mxu0 %v6794
  %v6796 = vpop.f32.mrb[0].mxu0
  %v6797 = vadd.f32 %v6720, %v6796
  %v6798 = vpop.f32.mrb[0].mxu0
  %6799 = vdwg.mxu0
  %6800 = vmatprep.subr.mxu0 0.0
  %v6801 = vand.u32 %v92, 4294901760
  %v6802 = vsub.f32 %v92, %v6801
  %v6803 = vand.u32 %v6802, 4294901760
  %6804 = vmatpush1.msra.mxu0 %v6803
  %6805 = vmatprep.subr.mxu0 0.0
  %v6806 = vand.u32 %v93, 4294901760
  %v6807 = vsub.f32 %v93, %v6806
  %v6808 = vand.u32 %v6807, 4294901760
  %6809 = vmatpush1.msra.mxu0 %v6808
  %6810 = vmatprep.subr.mxu0 0.0
  %v6811 = vand.u32 %v94, 4294901760
  %v6812 = vsub.f32 %v94, %v6811
  %v6813 = vand.u32 %v6812, 4294901760
  %6814 = vmatpush1.msra.mxu0 %v6813
  %6815 = vmatprep.subr.mxu0 0.0
  %v6816 = vand.u32 %v95, 4294901760
  %v6817 = vsub.f32 %v95, %v6816
  %v6818 = vand.u32 %v6817, 4294901760
  %6819 = vmatpush1.msra.mxu0 %v6818
  %6820 = vmatprep.subr.mxu0 0.0
  %6821 = vmatpush1.msra.mxu0 0.0
  %6822 = vmatprep.subr.mxu0 0.0
  %6823 = vmatpush1.msra.mxu0 0.0
  %6824 = vmatprep.subr.mxu0 0.0
  %6825 = vmatpush1.msra.mxu0 0.0
  %6826 = vmatprep.subr.mxu0 0.0
  %6827 = vmatpush1.msra.mxu0 0.0
  %6828 = vmatprep.subr.mxu0 0.0
  %6829 = vmatpush1.msra.mxu0 0.0
  %6830 = vmatprep.subr.mxu0 0.0
  %6831 = vmatpush1.msra.mxu0 0.0
  %6832 = vmatprep.subr.mxu0 0.0
  %6833 = vmatpush1.msra.mxu0 0.0
  %6834 = vmatprep.subr.mxu0 0.0
  %6835 = vmatpush1.msra.mxu0 0.0
  %6836 = vmatprep.subr.mxu0 0.0
  %6837 = vmatpush1.msra.mxu0 0.0
  %6838 = vmatprep.subr.mxu0 0.0
  %6839 = vmatpush1.msra.mxu0 0.0
  %6840 = vmatprep.subr.mxu0 0.0
  %6841 = vmatpush1.msra.mxu0 0.0
  %6842 = vmatprep.subr.mxu0 0.0
  %6843 = vmatpush1.msra.mxu0 0.0
  %6844 = vmatprep.subr.mxu0 0.0
  %6845 = vmatpush1.msra.mxu0 0.0
  %6846 = vmatprep.subr.mxu0 0.0
  %6847 = vmatpush1.msra.mxu0 0.0
  %6848 = vmatprep.subr.mxu0 0.0
  %6849 = vmatpush1.msra.mxu0 0.0
  %6850 = vmatprep.subr.mxu0 0.0
  %6851 = vmatpush1.msra.mxu0 0.0
  %6852 = vmatprep.subr.mxu0 0.0
  %6853 = vmatpush1.msra.mxu0 0.0
  %6854 = vmatprep.subr.mxu0 0.0
  %6855 = vmatpush1.msra.mxu0 0.0
  %6856 = vmatprep.subr.mxu0 0.0
  %6857 = vmatpush1.msra.mxu0 0.0
  %6858 = vmatprep.subr.mxu0 0.0
  %6859 = vmatpush1.msra.mxu0 0.0
  %6860 = vmatprep.subr.mxu0 0.0
  %6861 = vmatpush1.msra.mxu0 0.0
  %6862 = vmatprep.subr.mxu0 0.0
  %6863 = vmatpush1.msra.mxu0 0.0
  %6864 = vmatprep.subr.mxu0 0.0
  %6865 = vmatpush1.msra.mxu0 0.0
  %6866 = vmatprep.subr.mxu0 0.0
  %6867 = vmatpush1.msra.mxu0 0.0
  %6868 = vmatprep.subr.mxu0 0.0
  %6869 = vmatpush1.msra.mxu0 0.0
  %6870 = vmatprep.subr.mxu0 0.0
  %6871 = vmatpush1.msra.mxu0 0.0
  %6872 = vmatprep.subr.mxu0 0.0
  %6873 = vmatpush1.msra.mxu0 0.0
  %6874 = vmatprep.subr.mxu0 0.0
  %6875 = vmatpush1.msra.mxu0 0.0
  %6876 = vmatprep.mubr.f32.mxu0 0.0
  %v6877 = vand.u32 %v6471, 4294901760
  %6878 = vmatmul.mubr.f32.gmra.mrb[0].mxu0 %v6877
  %v6879 = vpop.f32.mrb[0].mxu0
  %v6880 = vadd.f32 %v6797, %v6879
  %v6881 = vpop.f32.mrb[0].mxu0
  %6882 = vdwg.mxu0
  %6883 = vmatprep.subr.mxu0 0.0
  %v6884 = vand.u32 %v92, 4294901760
  %6885 = vmatpush1.msra.mxu0 %v6884
  %6886 = vmatprep.subr.mxu0 0.0
  %v6887 = vand.u32 %v93, 4294901760
  %6888 = vmatpush1.msra.mxu0 %v6887
  %6889 = vmatprep.subr.mxu0 0.0
  %v6890 = vand.u32 %v94, 4294901760
  %6891 = vmatpush1.msra.mxu0 %v6890
  %6892 = vmatprep.subr.mxu0 0.0
  %v6893 = vand.u32 %v95, 4294901760
  %6894 = vmatpush1.msra.mxu0 %v6893
  %6895 = vmatprep.subr.mxu0 0.0
  %6896 = vmatpush1.msra.mxu0 0.0
  %6897 = vmatprep.subr.mxu0 0.0
  %6898 = vmatpush1.msra.mxu0 0.0
  %6899 = vmatprep.subr.mxu0 0.0
  %6900 = vmatpush1.msra.mxu0 0.0
  %6901 = vmatprep.subr.mxu0 0.0
  %6902 = vmatpush1.msra.mxu0 0.0
  %6903 = vmatprep.subr.mxu0 0.0
  %6904 = vmatpush1.msra.mxu0 0.0
  %6905 = vmatprep.subr.mxu0 0.0
  %6906 = vmatpush1.msra.mxu0 0.0
  %6907 = vmatprep.subr.mxu0 0.0
  %6908 = vmatpush1.msra.mxu0 0.0
  %6909 = vmatprep.subr.mxu0 0.0
  %6910 = vmatpush1.msra.mxu0 0.0
  %6911 = vmatprep.subr.mxu0 0.0
  %6912 = vmatpush1.msra.mxu0 0.0
  %6913 = vmatprep.subr.mxu0 0.0
  %6914 = vmatpush1.msra.mxu0 0.0
  %6915 = vmatprep.subr.mxu0 0.0
  %6916 = vmatpush1.msra.mxu0 0.0
  %6917 = vmatprep.subr.mxu0 0.0
  %6918 = vmatpush1.msra.mxu0 0.0
  %6919 = vmatprep.subr.mxu0 0.0
  %6920 = vmatpush1.msra.mxu0 0.0
  %6921 = vmatprep.subr.mxu0 0.0
  %6922 = vmatpush1.msra.mxu0 0.0
  %6923 = vmatprep.subr.mxu0 0.0
  %6924 = vmatpush1.msra.mxu0 0.0
  %6925 = vmatprep.subr.mxu0 0.0
  %6926 = vmatpush1.msra.mxu0 0.0
  %6927 = vmatprep.subr.mxu0 0.0
  %6928 = vmatpush1.msra.mxu0 0.0
  %6929 = vmatprep.subr.mxu0 0.0
  %6930 = vmatpush1.msra.mxu0 0.0
  %6931 = vmatprep.subr.mxu0 0.0
  %6932 = vmatpush1.msra.mxu0 0.0
  %6933 = vmatprep.subr.mxu0 0.0
  %6934 = vmatpush1.msra.mxu0 0.0
  %6935 = vmatprep.subr.mxu0 0.0
  %6936 = vmatpush1.msra.mxu0 0.0
  %6937 = vmatprep.subr.mxu0 0.0
  %6938 = vmatpush1.msra.mxu0 0.0
  %6939 = vmatprep.subr.mxu0 0.0
  %6940 = vmatpush1.msra.mxu0 0.0
  %6941 = vmatprep.subr.mxu0 0.0
  %6942 = vmatpush1.msra.mxu0 0.0
  %6943 = vmatprep.subr.mxu0 0.0
  %6944 = vmatpush1.msra.mxu0 0.0
  %6945 = vmatprep.subr.mxu0 0.0
  %6946 = vmatpush1.msra.mxu0 0.0
  %6947 = vmatprep.subr.mxu0 0.0
  %6948 = vmatpush1.msra.mxu0 0.0
  %6949 = vmatprep.subr.mxu0 0.0
  %6950 = vmatpush1.msra.mxu0 0.0
  %6951 = vmatprep.mubr.f32.mxu0 0.0
  %v6952 = vand.u32 %v6471, 4294901760
  %6953 = vmatmul.mubr.f32.gmra.mrb[0].mxu0 %v6952
  %v6954 = vpop.f32.mrb[0].mxu0
  %v6955 = vadd.f32 %v6880, %v6954
  %v6956 = vpop.f32.mrb[0].mxu0
  %6957 = vdwg.mxu0
  %v6958 = vadd.f32 %v6467, %v6955
  %v6959 = vxor.u32 %v6958, 2147483648
  %v6960 = vmul.f32 %v6959, 1.442695
  %v6961 = vpow.pop %v6960
  %v6962 = vadd.f32 %v6961, 1.0
  %v6963 = vrcp.pop %v6962
  %v6964 = vmul.f32 1.0, %v6963
  %v6965 = vtanh.pop %v6958
  %v6966 = vmul.f32 %v6964, %v5916
  %6968 = vrot.lane.b32.xlu0 %v6965, 64
  %v6969 = vpop.permute.xlu0 %6968
  %v6971 = vmul.f32 %v6964, %v6969
  %6973 = vrot.lane.b32.xlu0 %v6971, 32
  %v6974 = vpop.permute.xlu0 %6973
  %v6976 = vadd.f32 %v6966, %v6974
  %v6977 = vtanh.pop %v6976
  %6979 = vrot.lane.b32.xlu0 %v6977, 64
  %v6980 = vpop.permute.xlu0 %6979
  %v6982 = vmul.f32 %v6964, %v6980
  %s6983 = scalar_lea.vmem %s4, 48
  %v6984 = vld [vmem:[%s6983] sm:$0xff]
  %6986 = vrot.lane.b32.xlu0 %v6984, 96
  %v6987 = vpop.permute.xlu0 %6986
  %v6989 = vadd.f32 %v6982, %v6987
  %6991 = vrot.lane.b32.xlu0 %v6989, 32
  %v6992 = vpop.permute.xlu0 %6991
  %s6994 = scalar_lea.vmem %s6, 48
  %6995 = vst.msk [vmem:[%s6994] sm:$0xff] %vm105, %v6992
  %s6996 = scalar_lea.vmem %s64, 8
  %v6997 = vld [vmem:[%s6996] sm:$0xff]
  %6999 = vrot.lane.b32.xlu0 %v6452, 32
  %v7000 = vpop.permute.xlu0 %6999
  %v7001 = vsel %vm105, %v7000, 0
  %7003 = vmatprep.subr.mxu0 0.0
  %v7004 = vand.u32 %v96, 4294901760
  %7005 = vmatpush1.msra.mxu0 %v7004
  %7006 = vmatprep.subr.mxu0 0.0
  %v7007 = vand.u32 %v97, 4294901760
  %7008 = vmatpush1.msra.mxu0 %v7007
  %7009 = vmatprep.subr.mxu0 0.0
  %v7010 = vand.u32 %v98, 4294901760
  %7011 = vmatpush1.msra.mxu0 %v7010
  %7012 = vmatprep.subr.mxu0 0.0
  %v7013 = vand.u32 %v99, 4294901760
  %7014 = vmatpush1.msra.mxu0 %v7013
  %7015 = vmatprep.subr.mxu0 0.0
  %7016 = vmatpush1.msra.mxu0 0.0
  %7017 = vmatprep.subr.mxu0 0.0
  %7018 = vmatpush1.msra.mxu0 0.0
  %7019 = vmatprep.subr.mxu0 0.0
  %7020 = vmatpush1.msra.mxu0 0.0
  %7021 = vmatprep.subr.mxu0 0.0
  %7022 = vmatpush1.msra.mxu0 0.0
  %7023 = vmatprep.subr.mxu0 0.0
  %7024 = vmatpush1.msra.mxu0 0.0
  %7025 = vmatprep.subr.mxu0 0.0
  %7026 = vmatpush1.msra.mxu0 0.0
  %7027 = vmatprep.subr.mxu0 0.0
  %7028 = vmatpush1.msra.mxu0 0.0
  %7029 = vmatprep.subr.mxu0 0.0
  %7030 = vmatpush1.msra.mxu0 0.0
  %7031 = vmatprep.subr.mxu0 0.0
  %7032 = vmatpush1.msra.mxu0 0.0
  %7033 = vmatprep.subr.mxu0 0.0
  %7034 = vmatpush1.msra.mxu0 0.0
  %7035 = vmatprep.subr.mxu0 0.0
  %7036 = vmatpush1.msra.mxu0 0.0
  %7037 = vmatprep.subr.mxu0 0.0
  %7038 = vmatpush1.msra.mxu0 0.0
  %7039 = vmatprep.subr.mxu0 0.0
  %7040 = vmatpush1.msra.mxu0 0.0
  %7041 = vmatprep.subr.mxu0 0.0
  %7042 = vmatpush1.msra.mxu0 0.0
  %7043 = vmatprep.subr.mxu0 0.0
  %7044 = vmatpush1.msra.mxu0 0.0
  %7045 = vmatprep.subr.mxu0 0.0
  %7046 = vmatpush1.msra.mxu0 0.0
  %7047 = vmatprep.subr.mxu0 0.0
  %7048 = vmatpush1.msra.mxu0 0.0
  %7049 = vmatprep.subr.mxu0 0.0
  %7050 = vmatpush1.msra.mxu0 0.0
  %7051 = vmatprep.subr.mxu0 0.0
  %7052 = vmatpush1.msra.mxu0 0.0
  %7053 = vmatprep.subr.mxu0 0.0
  %7054 = vmatpush1.msra.mxu0 0.0
  %7055 = vmatprep.subr.mxu0 0.0
  %7056 = vmatpush1.msra.mxu0 0.0
  %7057 = vmatprep.subr.mxu0 0.0
  %7058 = vmatpush1.msra.mxu0 0.0
  %7059 = vmatprep.subr.mxu0 0.0
  %7060 = vmatpush1.msra.mxu0 0.0
  %7061 = vmatprep.subr.mxu0 0.0
  %7062 = vmatpush1.msra.mxu0 0.0
  %7063 = vmatprep.subr.mxu0 0.0
  %7064 = vmatpush1.msra.mxu0 0.0
  %7065 = vmatprep.subr.mxu0 0.0
  %7066 = vmatpush1.msra.mxu0 0.0
  %7067 = vmatprep.subr.mxu0 0.0
  %7068 = vmatpush1.msra.mxu0 0.0
  %7069 = vmatprep.subr.mxu0 0.0
  %7070 = vmatpush1.msra.mxu0 0.0
  %7071 = vmatprep.mubr.f32.mxu0 0.0
  %v7072 = vand.u32 %v7001, 4294901760
  %v7073 = vsub.f32 %v7001, %v7072
  %v7074 = vand.u32 %v7073, 4294901760
  %v7075 = vsub.f32 %v7073, %v7074
  %v7076 = vand.u32 %v7075, 4294901760
  %7077 = vmatmul.mubr.f32.gmra.mrb[0].mxu0 %v7076
  %v7078 = vpop.f32.mrb[0].mxu0
  %v7079 = vadd.f32 0.0, %v7078
  %v7080 = vpop.f32.mrb[0].mxu0
  %7081 = vdwg.mxu0
  %7082 = vmatprep.subr.mxu0 0.0
  %v7083 = vand.u32 %v96, 4294901760
  %v7084 = vsub.f32 %v96, %v7083
  %v7085 = vand.u32 %v7084, 4294901760
  %v7086 = vsub.f32 %v7084, %v7085
  %v7087 = vand.u32 %v7086, 4294901760
  %7088 = vmatpush1.msra.mxu0 %v7087
  %7089 = vmatprep.subr.mxu0 0.0
  %v7090 = vand.u32 %v97, 4294901760
  %v7091 = vsub.f32 %v97, %v7090
  %v7092 = vand.u32 %v7091, 4294901760
  %v7093 = vsub.f32 %v7091, %v7092
  %v7094 = vand.u32 %v7093, 4294901760
  %7095 = vmatpush1.msra.mxu0 %v7094
  %7096 = vmatprep.subr.mxu0 0.0
  %v7097 = vand.u32 %v98, 4294901760
  %v7098 = vsub.f32 %v98, %v7097
  %v7099 = vand.u32 %v7098, 4294901760
  %v7100 = vsub.f32 %v7098, %v7099
  %v7101 = vand.u32 %v7100, 4294901760
  %7102 = vmatpush1.msra.mxu0 %v7101
  %7103 = vmatprep.subr.mxu0 0.0
  %v7104 = vand.u32 %v99, 4294901760
  %v7105 = vsub.f32 %v99, %v7104
  %v7106 = vand.u32 %v7105, 4294901760
  %v7107 = vsub.f32 %v7105, %v7106
  %v7108 = vand.u32 %v7107, 4294901760
  %7109 = vmatpush1.msra.mxu0 %v7108
  %7110 = vmatprep.subr.mxu0 0.0
  %7111 = vmatpush1.msra.mxu0 0.0
  %7112 = vmatprep.subr.mxu0 0.0
  %7113 = vmatpush1.msra.mxu0 0.0
  %7114 = vmatprep.subr.mxu0 0.0
  %7115 = vmatpush1.msra.mxu0 0.0
  %7116 = vmatprep.subr.mxu0 0.0
  %7117 = vmatpush1.msra.mxu0 0.0
  %7118 = vmatprep.subr.mxu0 0.0
  %7119 = vmatpush1.msra.mxu0 0.0
  %7120 = vmatprep.subr.mxu0 0.0
  %7121 = vmatpush1.msra.mxu0 0.0
  %7122 = vmatprep.subr.mxu0 0.0
  %7123 = vmatpush1.msra.mxu0 0.0
  %7124 = vmatprep.subr.mxu0 0.0
  %7125 = vmatpush1.msra.mxu0 0.0
  %7126 = vmatprep.subr.mxu0 0.0
  %7127 = vmatpush1.msra.mxu0 0.0
  %7128 = vmatprep.subr.mxu0 0.0
  %7129 = vmatpush1.msra.mxu0 0.0
  %7130 = vmatprep.subr.mxu0 0.0
  %7131 = vmatpush1.msra.mxu0 0.0
  %7132 = vmatprep.subr.mxu0 0.0
  %7133 = vmatpush1.msra.mxu0 0.0
  %7134 = vmatprep.subr.mxu0 0.0
  %7135 = vmatpush1.msra.mxu0 0.0
  %7136 = vmatprep.subr.mxu0 0.0
  %7137 = vmatpush1.msra.mxu0 0.0
  %7138 = vmatprep.subr.mxu0 0.0
  %7139 = vmatpush1.msra.mxu0 0.0
  %7140 = vmatprep.subr.mxu0 0.0
  %7141 = vmatpush1.msra.mxu0 0.0
  %7142 = vmatprep.subr.mxu0 0.0
  %7143 = vmatpush1.msra.mxu0 0.0
  %7144 = vmatprep.subr.mxu0 0.0
  %7145 = vmatpush1.msra.mxu0 0.0
  %7146 = vmatprep.subr.mxu0 0.0
  %7147 = vmatpush1.msra.mxu0 0.0
  %7148 = vmatprep.subr.mxu0 0.0
  %7149 = vmatpush1.msra.mxu0 0.0
  %7150 = vmatprep.subr.mxu0 0.0
  %7151 = vmatpush1.msra.mxu0 0.0
  %7152 = vmatprep.subr.mxu0 0.0
  %7153 = vmatpush1.msra.mxu0 0.0
  %7154 = vmatprep.subr.mxu0 0.0
  %7155 = vmatpush1.msra.mxu0 0.0
  %7156 = vmatprep.subr.mxu0 0.0
  %7157 = vmatpush1.msra.mxu0 0.0
  %7158 = vmatprep.subr.mxu0 0.0
  %7159 = vmatpush1.msra.mxu0 0.0
  %7160 = vmatprep.subr.mxu0 0.0
  %7161 = vmatpush1.msra.mxu0 0.0
  %7162 = vmatprep.subr.mxu0 0.0
  %7163 = vmatpush1.msra.mxu0 0.0
  %7164 = vmatprep.subr.mxu0 0.0
  %7165 = vmatpush1.msra.mxu0 0.0
  %7166 = vmatprep.mubr.f32.mxu0 0.0
  %v7167 = vand.u32 %v7001, 4294901760
  %7168 = vmatmul.mubr.f32.gmra.mrb[0].mxu0 %v7167
  %v7169 = vpop.f32.mrb[0].mxu0
  %v7170 = vadd.f32 %v7079, %v7169
  %v7171 = vpop.f32.mrb[0].mxu0
  %7172 = vdwg.mxu0
  %7173 = vmatprep.subr.mxu0 0.0
  %v7174 = vand.u32 %v96, 4294901760
  %v7175 = vsub.f32 %v96, %v7174
  %7176 = vmatpush1.msra.mxu0 %v7175
  %7177 = vmatprep.subr.mxu0 0.0
  %v7178 = vand.u32 %v97, 4294901760
  %v7179 = vsub.f32 %v97, %v7178
  %7180 = vmatpush1.msra.mxu0 %v7179
  %7181 = vmatprep.subr.mxu0 0.0
  %v7182 = vand.u32 %v98, 4294901760
  %v7183 = vsub.f32 %v98, %v7182
  %7184 = vmatpush1.msra.mxu0 %v7183
  %7185 = vmatprep.subr.mxu0 0.0
  %v7186 = vand.u32 %v99, 4294901760
  %v7187 = vsub.f32 %v99, %v7186
  %7188 = vmatpush1.msra.mxu0 %v7187
  %7189 = vmatprep.subr.mxu0 0.0
  %7190 = vmatpush1.msra.mxu0 0.0
  %7191 = vmatprep.subr.mxu0 0.0
  %7192 = vmatpush1.msra.mxu0 0.0
  %7193 = vmatprep.subr.mxu0 0.0
  %7194 = vmatpush1.msra.mxu0 0.0
  %7195 = vmatprep.subr.mxu0 0.0
  %7196 = vmatpush1.msra.mxu0 0.0
  %7197 = vmatprep.subr.mxu0 0.0
  %7198 = vmatpush1.msra.mxu0 0.0
  %7199 = vmatprep.subr.mxu0 0.0
  %7200 = vmatpush1.msra.mxu0 0.0
  %7201 = vmatprep.subr.mxu0 0.0
  %7202 = vmatpush1.msra.mxu0 0.0
  %7203 = vmatprep.subr.mxu0 0.0
  %7204 = vmatpush1.msra.mxu0 0.0
  %7205 = vmatprep.subr.mxu0 0.0
  %7206 = vmatpush1.msra.mxu0 0.0
  %7207 = vmatprep.subr.mxu0 0.0
  %7208 = vmatpush1.msra.mxu0 0.0
  %7209 = vmatprep.subr.mxu0 0.0
  %7210 = vmatpush1.msra.mxu0 0.0
  %7211 = vmatprep.subr.mxu0 0.0
  %7212 = vmatpush1.msra.mxu0 0.0
  %7213 = vmatprep.subr.mxu0 0.0
  %7214 = vmatpush1.msra.mxu0 0.0
  %7215 = vmatprep.subr.mxu0 0.0
  %7216 = vmatpush1.msra.mxu0 0.0
  %7217 = vmatprep.subr.mxu0 0.0
  %7218 = vmatpush1.msra.mxu0 0.0
  %7219 = vmatprep.subr.mxu0 0.0
  %7220 = vmatpush1.msra.mxu0 0.0
  %7221 = vmatprep.subr.mxu0 0.0
  %7222 = vmatpush1.msra.mxu0 0.0
  %7223 = vmatprep.subr.mxu0 0.0
  %7224 = vmatpush1.msra.mxu0 0.0
  %7225 = vmatprep.subr.mxu0 0.0
  %7226 = vmatpush1.msra.mxu0 0.0
  %7227 = vmatprep.subr.mxu0 0.0
  %7228 = vmatpush1.msra.mxu0 0.0
  %7229 = vmatprep.subr.mxu0 0.0
  %7230 = vmatpush1.msra.mxu0 0.0
  %7231 = vmatprep.subr.mxu0 0.0
  %7232 = vmatpush1.msra.mxu0 0.0
  %7233 = vmatprep.subr.mxu0 0.0
  %7234 = vmatpush1.msra.mxu0 0.0
  %7235 = vmatprep.subr.mxu0 0.0
  %7236 = vmatpush1.msra.mxu0 0.0
  %7237 = vmatprep.subr.mxu0 0.0
  %7238 = vmatpush1.msra.mxu0 0.0
  %7239 = vmatprep.subr.mxu0 0.0
  %7240 = vmatpush1.msra.mxu0 0.0
  %7241 = vmatprep.subr.mxu0 0.0
  %7242 = vmatpush1.msra.mxu0 0.0
  %7243 = vmatprep.subr.mxu0 0.0
  %7244 = vmatpush1.msra.mxu0 0.0
  %7245 = vmatprep.mubr.f32.mxu0 0.0
  %v7246 = vand.u32 %v7001, 4294901760
  %v7247 = vsub.f32 %v7001, %v7246
  %7248 = vmatmul.mubr.f32.gmra.mrb[0].mxu0 %v7247
  %v7249 = vpop.f32.mrb[0].mxu0
  %v7250 = vadd.f32 %v7170, %v7249
  %v7251 = vpop.f32.mrb[0].mxu0
  %7252 = vdwg.mxu0
  %7253 = vmatprep.subr.mxu0 0.0
  %v7254 = vand.u32 %v96, 4294901760
  %7255 = vmatpush1.msra.mxu0 %v7254
  %7256 = vmatprep.subr.mxu0 0.0
  %v7257 = vand.u32 %v97, 4294901760
  %7258 = vmatpush1.msra.mxu0 %v7257
  %7259 = vmatprep.subr.mxu0 0.0
  %v7260 = vand.u32 %v98, 4294901760
  %7261 = vmatpush1.msra.mxu0 %v7260
  %7262 = vmatprep.subr.mxu0 0.0
  %v7263 = vand.u32 %v99, 4294901760
  %7264 = vmatpush1.msra.mxu0 %v7263
  %7265 = vmatprep.subr.mxu0 0.0
  %7266 = vmatpush1.msra.mxu0 0.0
  %7267 = vmatprep.subr.mxu0 0.0
  %7268 = vmatpush1.msra.mxu0 0.0
  %7269 = vmatprep.subr.mxu0 0.0
  %7270 = vmatpush1.msra.mxu0 0.0
  %7271 = vmatprep.subr.mxu0 0.0
  %7272 = vmatpush1.msra.mxu0 0.0
  %7273 = vmatprep.subr.mxu0 0.0
  %7274 = vmatpush1.msra.mxu0 0.0
  %7275 = vmatprep.subr.mxu0 0.0
  %7276 = vmatpush1.msra.mxu0 0.0
  %7277 = vmatprep.subr.mxu0 0.0
  %7278 = vmatpush1.msra.mxu0 0.0
  %7279 = vmatprep.subr.mxu0 0.0
  %7280 = vmatpush1.msra.mxu0 0.0
  %7281 = vmatprep.subr.mxu0 0.0
  %7282 = vmatpush1.msra.mxu0 0.0
  %7283 = vmatprep.subr.mxu0 0.0
  %7284 = vmatpush1.msra.mxu0 0.0
  %7285 = vmatprep.subr.mxu0 0.0
  %7286 = vmatpush1.msra.mxu0 0.0
  %7287 = vmatprep.subr.mxu0 0.0
  %7288 = vmatpush1.msra.mxu0 0.0
  %7289 = vmatprep.subr.mxu0 0.0
  %7290 = vmatpush1.msra.mxu0 0.0
  %7291 = vmatprep.subr.mxu0 0.0
  %7292 = vmatpush1.msra.mxu0 0.0
  %7293 = vmatprep.subr.mxu0 0.0
  %7294 = vmatpush1.msra.mxu0 0.0
  %7295 = vmatprep.subr.mxu0 0.0
  %7296 = vmatpush1.msra.mxu0 0.0
  %7297 = vmatprep.subr.mxu0 0.0
  %7298 = vmatpush1.msra.mxu0 0.0
  %7299 = vmatprep.subr.mxu0 0.0
  %7300 = vmatpush1.msra.mxu0 0.0
  %7301 = vmatprep.subr.mxu0 0.0
  %7302 = vmatpush1.msra.mxu0 0.0
  %7303 = vmatprep.subr.mxu0 0.0
  %7304 = vmatpush1.msra.mxu0 0.0
  %7305 = vmatprep.subr.mxu0 0.0
  %7306 = vmatpush1.msra.mxu0 0.0
  %7307 = vmatprep.subr.mxu0 0.0
  %7308 = vmatpush1.msra.mxu0 0.0
  %7309 = vmatprep.subr.mxu0 0.0
  %7310 = vmatpush1.msra.mxu0 0.0
  %7311 = vmatprep.subr.mxu0 0.0
  %7312 = vmatpush1.msra.mxu0 0.0
  %7313 = vmatprep.subr.mxu0 0.0
  %7314 = vmatpush1.msra.mxu0 0.0
  %7315 = vmatprep.subr.mxu0 0.0
  %7316 = vmatpush1.msra.mxu0 0.0
  %7317 = vmatprep.subr.mxu0 0.0
  %7318 = vmatpush1.msra.mxu0 0.0
  %7319 = vmatprep.subr.mxu0 0.0
  %7320 = vmatpush1.msra.mxu0 0.0
  %7321 = vmatprep.mubr.f32.mxu0 0.0
  %v7322 = vand.u32 %v7001, 4294901760
  %v7323 = vsub.f32 %v7001, %v7322
  %v7324 = vand.u32 %v7323, 4294901760
  %7325 = vmatmul.mubr.f32.gmra.mrb[0].mxu0 %v7324
  %v7326 = vpop.f32.mrb[0].mxu0
  %v7327 = vadd.f32 %v7250, %v7326
  %v7328 = vpop.f32.mrb[0].mxu0
  %7329 = vdwg.mxu0
  %7330 = vmatprep.subr.mxu0 0.0
  %v7331 = vand.u32 %v96, 4294901760
  %v7332 = vsub.f32 %v96, %v7331
  %v7333 = vand.u32 %v7332, 4294901760
  %7334 = vmatpush1.msra.mxu0 %v7333
  %7335 = vmatprep.subr.mxu0 0.0
  %v7336 = vand.u32 %v97, 4294901760
  %v7337 = vsub.f32 %v97, %v7336
  %v7338 = vand.u32 %v7337, 4294901760
  %7339 = vmatpush1.msra.mxu0 %v7338
  %7340 = vmatprep.subr.mxu0 0.0
  %v7341 = vand.u32 %v98, 4294901760
  %v7342 = vsub.f32 %v98, %v7341
  %v7343 = vand.u32 %v7342, 4294901760
  %7344 = vmatpush1.msra.mxu0 %v7343
  %7345 = vmatprep.subr.mxu0 0.0
  %v7346 = vand.u32 %v99, 4294901760
  %v7347 = vsub.f32 %v99, %v7346
  %v7348 = vand.u32 %v7347, 4294901760
  %7349 = vmatpush1.msra.mxu0 %v7348
  %7350 = vmatprep.subr.mxu0 0.0
  %7351 = vmatpush1.msra.mxu0 0.0
  %7352 = vmatprep.subr.mxu0 0.0
  %7353 = vmatpush1.msra.mxu0 0.0
  %7354 = vmatprep.subr.mxu0 0.0
  %7355 = vmatpush1.msra.mxu0 0.0
  %7356 = vmatprep.subr.mxu0 0.0
  %7357 = vmatpush1.msra.mxu0 0.0
  %7358 = vmatprep.subr.mxu0 0.0
  %7359 = vmatpush1.msra.mxu0 0.0
  %7360 = vmatprep.subr.mxu0 0.0
  %7361 = vmatpush1.msra.mxu0 0.0
  %7362 = vmatprep.subr.mxu0 0.0
  %7363 = vmatpush1.msra.mxu0 0.0
  %7364 = vmatprep.subr.mxu0 0.0
  %7365 = vmatpush1.msra.mxu0 0.0
  %7366 = vmatprep.subr.mxu0 0.0
  %7367 = vmatpush1.msra.mxu0 0.0
  %7368 = vmatprep.subr.mxu0 0.0
  %7369 = vmatpush1.msra.mxu0 0.0
  %7370 = vmatprep.subr.mxu0 0.0
  %7371 = vmatpush1.msra.mxu0 0.0
  %7372 = vmatprep.subr.mxu0 0.0
  %7373 = vmatpush1.msra.mxu0 0.0
  %7374 = vmatprep.subr.mxu0 0.0
  %7375 = vmatpush1.msra.mxu0 0.0
  %7376 = vmatprep.subr.mxu0 0.0
  %7377 = vmatpush1.msra.mxu0 0.0
  %7378 = vmatprep.subr.mxu0 0.0
  %7379 = vmatpush1.msra.mxu0 0.0
  %7380 = vmatprep.subr.mxu0 0.0
  %7381 = vmatpush1.msra.mxu0 0.0
  %7382 = vmatprep.subr.mxu0 0.0
  %7383 = vmatpush1.msra.mxu0 0.0
  %7384 = vmatprep.subr.mxu0 0.0
  %7385 = vmatpush1.msra.mxu0 0.0
  %7386 = vmatprep.subr.mxu0 0.0
  %7387 = vmatpush1.msra.mxu0 0.0
  %7388 = vmatprep.subr.mxu0 0.0
  %7389 = vmatpush1.msra.mxu0 0.0
  %7390 = vmatprep.subr.mxu0 0.0
  %7391 = vmatpush1.msra.mxu0 0.0
  %7392 = vmatprep.subr.mxu0 0.0
  %7393 = vmatpush1.msra.mxu0 0.0
  %7394 = vmatprep.subr.mxu0 0.0
  %7395 = vmatpush1.msra.mxu0 0.0
  %7396 = vmatprep.subr.mxu0 0.0
  %7397 = vmatpush1.msra.mxu0 0.0
  %7398 = vmatprep.subr.mxu0 0.0
  %7399 = vmatpush1.msra.mxu0 0.0
  %7400 = vmatprep.subr.mxu0 0.0
  %7401 = vmatpush1.msra.mxu0 0.0
  %7402 = vmatprep.subr.mxu0 0.0
  %7403 = vmatpush1.msra.mxu0 0.0
  %7404 = vmatprep.subr.mxu0 0.0
  %7405 = vmatpush1.msra.mxu0 0.0
  %7406 = vmatprep.mubr.f32.mxu0 0.0
  %v7407 = vand.u32 %v7001, 4294901760
  %7408 = vmatmul.mubr.f32.gmra.mrb[0].mxu0 %v7407
  %v7409 = vpop.f32.mrb[0].mxu0
  %v7410 = vadd.f32 %v7327, %v7409
  %v7411 = vpop.f32.mrb[0].mxu0
  %7412 = vdwg.mxu0
  %7413 = vmatprep.subr.mxu0 0.0
  %v7414 = vand.u32 %v96, 4294901760
  %7415 = vmatpush1.msra.mxu0 %v7414
  %7416 = vmatprep.subr.mxu0 0.0
  %v7417 = vand.u32 %v97, 4294901760
  %7418 = vmatpush1.msra.mxu0 %v7417
  %7419 = vmatprep.subr.mxu0 0.0
  %v7420 = vand.u32 %v98, 4294901760
  %7421 = vmatpush1.msra.mxu0 %v7420
  %7422 = vmatprep.subr.mxu0 0.0
  %v7423 = vand.u32 %v99, 4294901760
  %7424 = vmatpush1.msra.mxu0 %v7423
  %7425 = vmatprep.subr.mxu0 0.0
  %7426 = vmatpush1.msra.mxu0 0.0
  %7427 = vmatprep.subr.mxu0 0.0
  %7428 = vmatpush1.msra.mxu0 0.0
  %7429 = vmatprep.subr.mxu0 0.0
  %7430 = vmatpush1.msra.mxu0 0.0
  %7431 = vmatprep.subr.mxu0 0.0
  %7432 = vmatpush1.msra.mxu0 0.0
  %7433 = vmatprep.subr.mxu0 0.0
  %7434 = vmatpush1.msra.mxu0 0.0
  %7435 = vmatprep.subr.mxu0 0.0
  %7436 = vmatpush1.msra.mxu0 0.0
  %7437 = vmatprep.subr.mxu0 0.0
  %7438 = vmatpush1.msra.mxu0 0.0
  %7439 = vmatprep.subr.mxu0 0.0
  %7440 = vmatpush1.msra.mxu0 0.0
  %7441 = vmatprep.subr.mxu0 0.0
  %7442 = vmatpush1.msra.mxu0 0.0
  %7443 = vmatprep.subr.mxu0 0.0
  %7444 = vmatpush1.msra.mxu0 0.0
  %7445 = vmatprep.subr.mxu0 0.0
  %7446 = vmatpush1.msra.mxu0 0.0
  %7447 = vmatprep.subr.mxu0 0.0
  %7448 = vmatpush1.msra.mxu0 0.0
  %7449 = vmatprep.subr.mxu0 0.0
  %7450 = vmatpush1.msra.mxu0 0.0
  %7451 = vmatprep.subr.mxu0 0.0
  %7452 = vmatpush1.msra.mxu0 0.0
  %7453 = vmatprep.subr.mxu0 0.0
  %7454 = vmatpush1.msra.mxu0 0.0
  %7455 = vmatprep.subr.mxu0 0.0
  %7456 = vmatpush1.msra.mxu0 0.0
  %7457 = vmatprep.subr.mxu0 0.0
  %7458 = vmatpush1.msra.mxu0 0.0
  %7459 = vmatprep.subr.mxu0 0.0
  %7460 = vmatpush1.msra.mxu0 0.0
  %7461 = vmatprep.subr.mxu0 0.0
  %7462 = vmatpush1.msra.mxu0 0.0
  %7463 = vmatprep.subr.mxu0 0.0
  %7464 = vmatpush1.msra.mxu0 0.0
  %7465 = vmatprep.subr.mxu0 0.0
  %7466 = vmatpush1.msra.mxu0 0.0
  %7467 = vmatprep.subr.mxu0 0.0
  %7468 = vmatpush1.msra.mxu0 0.0
  %7469 = vmatprep.subr.mxu0 0.0
  %7470 = vmatpush1.msra.mxu0 0.0
  %7471 = vmatprep.subr.mxu0 0.0
  %7472 = vmatpush1.msra.mxu0 0.0
  %7473 = vmatprep.subr.mxu0 0.0
  %7474 = vmatpush1.msra.mxu0 0.0
  %7475 = vmatprep.subr.mxu0 0.0
  %7476 = vmatpush1.msra.mxu0 0.0
  %7477 = vmatprep.subr.mxu0 0.0
  %7478 = vmatpush1.msra.mxu0 0.0
  %7479 = vmatprep.subr.mxu0 0.0
  %7480 = vmatpush1.msra.mxu0 0.0
  %7481 = vmatprep.mubr.f32.mxu0 0.0
  %v7482 = vand.u32 %v7001, 4294901760
  %7483 = vmatmul.mubr.f32.gmra.mrb[0].mxu0 %v7482
  %v7484 = vpop.f32.mrb[0].mxu0
  %v7485 = vadd.f32 %v7410, %v7484
  %v7486 = vpop.f32.mrb[0].mxu0
  %7487 = vdwg.mxu0
  %v7488 = vadd.f32 %v6997, %v7485
  %v7489 = vxor.u32 %v7488, 2147483648
  %v7490 = vmul.f32 %v7489, 1.442695
  %v7491 = vpow.pop %v7490
  %v7492 = vadd.f32 %v7491, 1.0
  %v7493 = vrcp.pop %v7492
  %v7494 = vmul.f32 1.0, %v7493
  %v7495 = vtanh.pop %v7488
  %v7496 = vmul.f32 %v7494, %v6446
  %7498 = vrot.lane.b32.xlu0 %v7495, 64
  %v7499 = vpop.permute.xlu0 %7498
  %v7501 = vmul.f32 %v7494, %v7499
  %7503 = vrot.lane.b32.xlu0 %v7501, 32
  %v7504 = vpop.permute.xlu0 %7503
  %v7506 = vadd.f32 %v7496, %v7504
  %v7507 = vtanh.pop %v7506
  %7509 = vrot.lane.b32.xlu0 %v7507, 64
  %v7510 = vpop.permute.xlu0 %7509
  %v7512 = vmul.f32 %v7494, %v7510
  %s7513 = scalar_lea.vmem %s72, 8
  %v7514 = vld [vmem:[%s7513] sm:$0xff]
  %7516 = vrot.lane.b32.xlu0 %v7514, 96
  %v7517 = vpop.permute.xlu0 %7516
  %v7519 = vadd.f32 %v7512, %v7517
  %7521 = vrot.lane.b32.xlu0 %v7519, 32
  %v7522 = vpop.permute.xlu0 %7521
  %s7524 = scalar_lea.vmem %s80, 8
  %7525 = vst.msk [vmem:[%s7524] sm:$0xff] %vm105, %v7522
  %s7526 = scalar_lea.vmem %s0, 56
  %v7527 = vld [vmem:[%s7526] sm:$0xff]
  %7529 = vrot.lane.b32.xlu0 %v6982, 32
  %v7530 = vpop.permute.xlu0 %7529
  %v7531 = vsel %vm105, %v7530, 0
  %7533 = vmatprep.subr.mxu0 0.0
  %v7534 = vand.u32 %v92, 4294901760
  %7535 = vmatpush1.msra.mxu0 %v7534
  %7536 = vmatprep.subr.mxu0 0.0
  %v7537 = vand.u32 %v93, 4294901760
  %7538 = vmatpush1.msra.mxu0 %v7537
  %7539 = vmatprep.subr.mxu0 0.0
  %v7540 = vand.u32 %v94, 4294901760
  %7541 = vmatpush1.msra.mxu0 %v7540
  %7542 = vmatprep.subr.mxu0 0.0
  %v7543 = vand.u32 %v95, 4294901760
  %7544 = vmatpush1.msra.mxu0 %v7543
  %7545 = vmatprep.subr.mxu0 0.0
  %7546 = vmatpush1.msra.mxu0 0.0
  %7547 = vmatprep.subr.mxu0 0.0
  %7548 = vmatpush1.msra.mxu0 0.0
  %7549 = vmatprep.subr.mxu0 0.0
  %7550 = vmatpush1.msra.mxu0 0.0
  %7551 = vmatprep.subr.mxu0 0.0
  %7552 = vmatpush1.msra.mxu0 0.0
  %7553 = vmatprep.subr.mxu0 0.0
  %7554 = vmatpush1.msra.mxu0 0.0
  %7555 = vmatprep.subr.mxu0 0.0
  %7556 = vmatpush1.msra.mxu0 0.0
  %7557 = vmatprep.subr.mxu0 0.0
  %7558 = vmatpush1.msra.mxu0 0.0
  %7559 = vmatprep.subr.mxu0 0.0
  %7560 = vmatpush1.msra.mxu0 0.0
  %7561 = vmatprep.subr.mxu0 0.0
  %7562 = vmatpush1.msra.mxu0 0.0
  %7563 = vmatprep.subr.mxu0 0.0
  %7564 = vmatpush1.msra.mxu0 0.0
  %7565 = vmatprep.subr.mxu0 0.0
  %7566 = vmatpush1.msra.mxu0 0.0
  %7567 = vmatprep.subr.mxu0 0.0
  %7568 = vmatpush1.msra.mxu0 0.0
  %7569 = vmatprep.subr.mxu0 0.0
  %7570 = vmatpush1.msra.mxu0 0.0
  %7571 = vmatprep.subr.mxu0 0.0
  %7572 = vmatpush1.msra.mxu0 0.0
  %7573 = vmatprep.subr.mxu0 0.0
  %7574 = vmatpush1.msra.mxu0 0.0
  %7575 = vmatprep.subr.mxu0 0.0
  %7576 = vmatpush1.msra.mxu0 0.0
  %7577 = vmatprep.subr.mxu0 0.0
  %7578 = vmatpush1.msra.mxu0 0.0
  %7579 = vmatprep.subr.mxu0 0.0
  %7580 = vmatpush1.msra.mxu0 0.0
  %7581 = vmatprep.subr.mxu0 0.0
  %7582 = vmatpush1.msra.mxu0 0.0
  %7583 = vmatprep.subr.mxu0 0.0
  %7584 = vmatpush1.msra.mxu0 0.0
  %7585 = vmatprep.subr.mxu0 0.0
  %7586 = vmatpush1.msra.mxu0 0.0
  %7587 = vmatprep.subr.mxu0 0.0
  %7588 = vmatpush1.msra.mxu0 0.0
  %7589 = vmatprep.subr.mxu0 0.0
  %7590 = vmatpush1.msra.mxu0 0.0
  %7591 = vmatprep.subr.mxu0 0.0
  %7592 = vmatpush1.msra.mxu0 0.0
  %7593 = vmatprep.subr.mxu0 0.0
  %7594 = vmatpush1.msra.mxu0 0.0
  %7595 = vmatprep.subr.mxu0 0.0
  %7596 = vmatpush1.msra.mxu0 0.0
  %7597 = vmatprep.subr.mxu0 0.0
  %7598 = vmatpush1.msra.mxu0 0.0
  %7599 = vmatprep.subr.mxu0 0.0
  %7600 = vmatpush1.msra.mxu0 0.0
  %7601 = vmatprep.mubr.f32.mxu0 0.0
  %v7602 = vand.u32 %v7531, 4294901760
  %v7603 = vsub.f32 %v7531, %v7602
  %v7604 = vand.u32 %v7603, 4294901760
  %v7605 = vsub.f32 %v7603, %v7604
  %v7606 = vand.u32 %v7605, 4294901760
  %7607 = vmatmul.mubr.f32.gmra.mrb[0].mxu0 %v7606
  %v7608 = vpop.f32.mrb[0].mxu0
  %v7609 = vadd.f32 0.0, %v7608
  %v7610 = vpop.f32.mrb[0].mxu0
  %7611 = vdwg.mxu0
  %7612 = vmatprep.subr.mxu0 0.0
  %v7613 = vand.u32 %v92, 4294901760
  %v7614 = vsub.f32 %v92, %v7613
  %v7615 = vand.u32 %v7614, 4294901760
  %v7616 = vsub.f32 %v7614, %v7615
  %v7617 = vand.u32 %v7616, 4294901760
  %7618 = vmatpush1.msra.mxu0 %v7617
  %7619 = vmatprep.subr.mxu0 0.0
  %v7620 = vand.u32 %v93, 4294901760
  %v7621 = vsub.f32 %v93, %v7620
  %v7622 = vand.u32 %v7621, 4294901760
  %v7623 = vsub.f32 %v7621, %v7622
  %v7624 = vand.u32 %v7623, 4294901760
  %7625 = vmatpush1.msra.mxu0 %v7624
  %7626 = vmatprep.subr.mxu0 0.0
  %v7627 = vand.u32 %v94, 4294901760
  %v7628 = vsub.f32 %v94, %v7627
  %v7629 = vand.u32 %v7628, 4294901760
  %v7630 = vsub.f32 %v7628, %v7629
  %v7631 = vand.u32 %v7630, 4294901760
  %7632 = vmatpush1.msra.mxu0 %v7631
  %7633 = vmatprep.subr.mxu0 0.0
  %v7634 = vand.u32 %v95, 4294901760
  %v7635 = vsub.f32 %v95, %v7634
  %v7636 = vand.u32 %v7635, 4294901760
  %v7637 = vsub.f32 %v7635, %v7636
  %v7638 = vand.u32 %v7637, 4294901760
  %7639 = vmatpush1.msra.mxu0 %v7638
  %7640 = vmatprep.subr.mxu0 0.0
  %7641 = vmatpush1.msra.mxu0 0.0
  %7642 = vmatprep.subr.mxu0 0.0
  %7643 = vmatpush1.msra.mxu0 0.0
  %7644 = vmatprep.subr.mxu0 0.0
  %7645 = vmatpush1.msra.mxu0 0.0
  %7646 = vmatprep.subr.mxu0 0.0
  %7647 = vmatpush1.msra.mxu0 0.0
  %7648 = vmatprep.subr.mxu0 0.0
  %7649 = vmatpush1.msra.mxu0 0.0
  %7650 = vmatprep.subr.mxu0 0.0
  %7651 = vmatpush1.msra.mxu0 0.0
  %7652 = vmatprep.subr.mxu0 0.0
  %7653 = vmatpush1.msra.mxu0 0.0
  %7654 = vmatprep.subr.mxu0 0.0
  %7655 = vmatpush1.msra.mxu0 0.0
  %7656 = vmatprep.subr.mxu0 0.0
  %7657 = vmatpush1.msra.mxu0 0.0
  %7658 = vmatprep.subr.mxu0 0.0
  %7659 = vmatpush1.msra.mxu0 0.0
  %7660 = vmatprep.subr.mxu0 0.0
  %7661 = vmatpush1.msra.mxu0 0.0
  %7662 = vmatprep.subr.mxu0 0.0
  %7663 = vmatpush1.msra.mxu0 0.0
  %7664 = vmatprep.subr.mxu0 0.0
  %7665 = vmatpush1.msra.mxu0 0.0
  %7666 = vmatprep.subr.mxu0 0.0
  %7667 = vmatpush1.msra.mxu0 0.0
  %7668 = vmatprep.subr.mxu0 0.0
  %7669 = vmatpush1.msra.mxu0 0.0
  %7670 = vmatprep.subr.mxu0 0.0
  %7671 = vmatpush1.msra.mxu0 0.0
  %7672 = vmatprep.subr.mxu0 0.0
  %7673 = vmatpush1.msra.mxu0 0.0
  %7674 = vmatprep.subr.mxu0 0.0
  %7675 = vmatpush1.msra.mxu0 0.0
  %7676 = vmatprep.subr.mxu0 0.0
  %7677 = vmatpush1.msra.mxu0 0.0
  %7678 = vmatprep.subr.mxu0 0.0
  %7679 = vmatpush1.msra.mxu0 0.0
  %7680 = vmatprep.subr.mxu0 0.0
  %7681 = vmatpush1.msra.mxu0 0.0
  %7682 = vmatprep.subr.mxu0 0.0
  %7683 = vmatpush1.msra.mxu0 0.0
  %7684 = vmatprep.subr.mxu0 0.0
  %7685 = vmatpush1.msra.mxu0 0.0
  %7686 = vmatprep.subr.mxu0 0.0
  %7687 = vmatpush1.msra.mxu0 0.0
  %7688 = vmatprep.subr.mxu0 0.0
  %7689 = vmatpush1.msra.mxu0 0.0
  %7690 = vmatprep.subr.mxu0 0.0
  %7691 = vmatpush1.msra.mxu0 0.0
  %7692 = vmatprep.subr.mxu0 0.0
  %7693 = vmatpush1.msra.mxu0 0.0
  %7694 = vmatprep.subr.mxu0 0.0
  %7695 = vmatpush1.msra.mxu0 0.0
  %7696 = vmatprep.mubr.f32.mxu0 0.0
  %v7697 = vand.u32 %v7531, 4294901760
  %7698 = vmatmul.mubr.f32.gmra.mrb[0].mxu0 %v7697
  %v7699 = vpop.f32.mrb[0].mxu0
  %v7700 = vadd.f32 %v7609, %v7699
  %v7701 = vpop.f32.mrb[0].mxu0
  %7702 = vdwg.mxu0
  %7703 = vmatprep.subr.mxu0 0.0
  %v7704 = vand.u32 %v92, 4294901760
  %v7705 = vsub.f32 %v92, %v7704
  %7706 = vmatpush1.msra.mxu0 %v7705
  %7707 = vmatprep.subr.mxu0 0.0
  %v7708 = vand.u32 %v93, 4294901760
  %v7709 = vsub.f32 %v93, %v7708
  %7710 = vmatpush1.msra.mxu0 %v7709
  %7711 = vmatprep.subr.mxu0 0.0
  %v7712 = vand.u32 %v94, 4294901760
  %v7713 = vsub.f32 %v94, %v7712
  %7714 = vmatpush1.msra.mxu0 %v7713
  %7715 = vmatprep.subr.mxu0 0.0
  %v7716 = vand.u32 %v95, 4294901760
  %v7717 = vsub.f32 %v95, %v7716
  %7718 = vmatpush1.msra.mxu0 %v7717
  %7719 = vmatprep.subr.mxu0 0.0
  %7720 = vmatpush1.msra.mxu0 0.0
  %7721 = vmatprep.subr.mxu0 0.0
  %7722 = vmatpush1.msra.mxu0 0.0
  %7723 = vmatprep.subr.mxu0 0.0
  %7724 = vmatpush1.msra.mxu0 0.0
  %7725 = vmatprep.subr.mxu0 0.0
  %7726 = vmatpush1.msra.mxu0 0.0
  %7727 = vmatprep.subr.mxu0 0.0
  %7728 = vmatpush1.msra.mxu0 0.0
  %7729 = vmatprep.subr.mxu0 0.0
  %7730 = vmatpush1.msra.mxu0 0.0
  %7731 = vmatprep.subr.mxu0 0.0
  %7732 = vmatpush1.msra.mxu0 0.0
  %7733 = vmatprep.subr.mxu0 0.0
  %7734 = vmatpush1.msra.mxu0 0.0
  %7735 = vmatprep.subr.mxu0 0.0
  %7736 = vmatpush1.msra.mxu0 0.0
  %7737 = vmatprep.subr.mxu0 0.0
  %7738 = vmatpush1.msra.mxu0 0.0
  %7739 = vmatprep.subr.mxu0 0.0
  %7740 = vmatpush1.msra.mxu0 0.0
  %7741 = vmatprep.subr.mxu0 0.0
  %7742 = vmatpush1.msra.mxu0 0.0
  %7743 = vmatprep.subr.mxu0 0.0
  %7744 = vmatpush1.msra.mxu0 0.0
  %7745 = vmatprep.subr.mxu0 0.0
  %7746 = vmatpush1.msra.mxu0 0.0
  %7747 = vmatprep.subr.mxu0 0.0
  %7748 = vmatpush1.msra.mxu0 0.0
  %7749 = vmatprep.subr.mxu0 0.0
  %7750 = vmatpush1.msra.mxu0 0.0
  %7751 = vmatprep.subr.mxu0 0.0
  %7752 = vmatpush1.msra.mxu0 0.0
  %7753 = vmatprep.subr.mxu0 0.0
  %7754 = vmatpush1.msra.mxu0 0.0
  %7755 = vmatprep.subr.mxu0 0.0
  %7756 = vmatpush1.msra.mxu0 0.0
  %7757 = vmatprep.subr.mxu0 0.0
  %7758 = vmatpush1.msra.mxu0 0.0
  %7759 = vmatprep.subr.mxu0 0.0
  %7760 = vmatpush1.msra.mxu0 0.0
  %7761 = vmatprep.subr.mxu0 0.0
  %7762 = vmatpush1.msra.mxu0 0.0
  %7763 = vmatprep.subr.mxu0 0.0
  %7764 = vmatpush1.msra.mxu0 0.0
  %7765 = vmatprep.subr.mxu0 0.0
  %7766 = vmatpush1.msra.mxu0 0.0
  %7767 = vmatprep.subr.mxu0 0.0
  %7768 = vmatpush1.msra.mxu0 0.0
  %7769 = vmatprep.subr.mxu0 0.0
  %7770 = vmatpush1.msra.mxu0 0.0
  %7771 = vmatprep.subr.mxu0 0.0
  %7772 = vmatpush1.msra.mxu0 0.0
  %7773 = vmatprep.subr.mxu0 0.0
  %7774 = vmatpush1.msra.mxu0 0.0
  %7775 = vmatprep.mubr.f32.mxu0 0.0
  %v7776 = vand.u32 %v7531, 4294901760
  %v7777 = vsub.f32 %v7531, %v7776
  %7778 = vmatmul.mubr.f32.gmra.mrb[0].mxu0 %v7777
  %v7779 = vpop.f32.mrb[0].mxu0
  %v7780 = vadd.f32 %v7700, %v7779
  %v7781 = vpop.f32.mrb[0].mxu0
  %7782 = vdwg.mxu0
  %7783 = vmatprep.subr.mxu0 0.0
  %v7784 = vand.u32 %v92, 4294901760
  %7785 = vmatpush1.msra.mxu0 %v7784
  %7786 = vmatprep.subr.mxu0 0.0
  %v7787 = vand.u32 %v93, 4294901760
  %7788 = vmatpush1.msra.mxu0 %v7787
  %7789 = vmatprep.subr.mxu0 0.0
  %v7790 = vand.u32 %v94, 4294901760
  %7791 = vmatpush1.msra.mxu0 %v7790
  %7792 = vmatprep.subr.mxu0 0.0
  %v7793 = vand.u32 %v95, 4294901760
  %7794 = vmatpush1.msra.mxu0 %v7793
  %7795 = vmatprep.subr.mxu0 0.0
  %7796 = vmatpush1.msra.mxu0 0.0
  %7797 = vmatprep.subr.mxu0 0.0
  %7798 = vmatpush1.msra.mxu0 0.0
  %7799 = vmatprep.subr.mxu0 0.0
  %7800 = vmatpush1.msra.mxu0 0.0
  %7801 = vmatprep.subr.mxu0 0.0
  %7802 = vmatpush1.msra.mxu0 0.0
  %7803 = vmatprep.subr.mxu0 0.0
  %7804 = vmatpush1.msra.mxu0 0.0
  %7805 = vmatprep.subr.mxu0 0.0
  %7806 = vmatpush1.msra.mxu0 0.0
  %7807 = vmatprep.subr.mxu0 0.0
  %7808 = vmatpush1.msra.mxu0 0.0
  %7809 = vmatprep.subr.mxu0 0.0
  %7810 = vmatpush1.msra.mxu0 0.0
  %7811 = vmatprep.subr.mxu0 0.0
  %7812 = vmatpush1.msra.mxu0 0.0
  %7813 = vmatprep.subr.mxu0 0.0
  %7814 = vmatpush1.msra.mxu0 0.0
  %7815 = vmatprep.subr.mxu0 0.0
  %7816 = vmatpush1.msra.mxu0 0.0
  %7817 = vmatprep.subr.mxu0 0.0
  %7818 = vmatpush1.msra.mxu0 0.0
  %7819 = vmatprep.subr.mxu0 0.0
  %7820 = vmatpush1.msra.mxu0 0.0
  %7821 = vmatprep.subr.mxu0 0.0
  %7822 = vmatpush1.msra.mxu0 0.0
  %7823 = vmatprep.subr.mxu0 0.0
  %7824 = vmatpush1.msra.mxu0 0.0
  %7825 = vmatprep.subr.mxu0 0.0
  %7826 = vmatpush1.msra.mxu0 0.0
  %7827 = vmatprep.subr.mxu0 0.0
  %7828 = vmatpush1.msra.mxu0 0.0
  %7829 = vmatprep.subr.mxu0 0.0
  %7830 = vmatpush1.msra.mxu0 0.0
  %7831 = vmatprep.subr.mxu0 0.0
  %7832 = vmatpush1.msra.mxu0 0.0
  %7833 = vmatprep.subr.mxu0 0.0
  %7834 = vmatpush1.msra.mxu0 0.0
  %7835 = vmatprep.subr.mxu0 0.0
  %7836 = vmatpush1.msra.mxu0 0.0
  %7837 = vmatprep.subr.mxu0 0.0
  %7838 = vmatpush1.msra.mxu0 0.0
  %7839 = vmatprep.subr.mxu0 0.0
  %7840 = vmatpush1.msra.mxu0 0.0
  %7841 = vmatprep.subr.mxu0 0.0
  %7842 = vmatpush1.msra.mxu0 0.0
  %7843 = vmatprep.subr.mxu0 0.0
  %7844 = vmatpush1.msra.mxu0 0.0
  %7845 = vmatprep.subr.mxu0 0.0
  %7846 = vmatpush1.msra.mxu0 0.0
  %7847 = vmatprep.subr.mxu0 0.0
  %7848 = vmatpush1.msra.mxu0 0.0
  %7849 = vmatprep.subr.mxu0 0.0
  %7850 = vmatpush1.msra.mxu0 0.0
  %7851 = vmatprep.mubr.f32.mxu0 0.0
  %v7852 = vand.u32 %v7531, 4294901760
  %v7853 = vsub.f32 %v7531, %v7852
  %v7854 = vand.u32 %v7853, 4294901760
  %7855 = vmatmul.mubr.f32.gmra.mrb[0].mxu0 %v7854
  %v7856 = vpop.f32.mrb[0].mxu0
  %v7857 = vadd.f32 %v7780, %v7856
  %v7858 = vpop.f32.mrb[0].mxu0
  %7859 = vdwg.mxu0
  %7860 = vmatprep.subr.mxu0 0.0
  %v7861 = vand.u32 %v92, 4294901760
  %v7862 = vsub.f32 %v92, %v7861
  %v7863 = vand.u32 %v7862, 4294901760
  %7864 = vmatpush1.msra.mxu0 %v7863
  %7865 = vmatprep.subr.mxu0 0.0
  %v7866 = vand.u32 %v93, 4294901760
  %v7867 = vsub.f32 %v93, %v7866
  %v7868 = vand.u32 %v7867, 4294901760
  %7869 = vmatpush1.msra.mxu0 %v7868
  %7870 = vmatprep.subr.mxu0 0.0
  %v7871 = vand.u32 %v94, 4294901760
  %v7872 = vsub.f32 %v94, %v7871
  %v7873 = vand.u32 %v7872, 4294901760
  %7874 = vmatpush1.msra.mxu0 %v7873
  %7875 = vmatprep.subr.mxu0 0.0
  %v7876 = vand.u32 %v95, 4294901760
  %v7877 = vsub.f32 %v95, %v7876
  %v7878 = vand.u32 %v7877, 4294901760
  %7879 = vmatpush1.msra.mxu0 %v7878
  %7880 = vmatprep.subr.mxu0 0.0
  %7881 = vmatpush1.msra.mxu0 0.0
  %7882 = vmatprep.subr.mxu0 0.0
  %7883 = vmatpush1.msra.mxu0 0.0
  %7884 = vmatprep.subr.mxu0 0.0
  %7885 = vmatpush1.msra.mxu0 0.0
  %7886 = vmatprep.subr.mxu0 0.0
  %7887 = vmatpush1.msra.mxu0 0.0
  %7888 = vmatprep.subr.mxu0 0.0
  %7889 = vmatpush1.msra.mxu0 0.0
  %7890 = vmatprep.subr.mxu0 0.0
  %7891 = vmatpush1.msra.mxu0 0.0
  %7892 = vmatprep.subr.mxu0 0.0
  %7893 = vmatpush1.msra.mxu0 0.0
  %7894 = vmatprep.subr.mxu0 0.0
  %7895 = vmatpush1.msra.mxu0 0.0
  %7896 = vmatprep.subr.mxu0 0.0
  %7897 = vmatpush1.msra.mxu0 0.0
  %7898 = vmatprep.subr.mxu0 0.0
  %7899 = vmatpush1.msra.mxu0 0.0
  %7900 = vmatprep.subr.mxu0 0.0
  %7901 = vmatpush1.msra.mxu0 0.0
  %7902 = vmatprep.subr.mxu0 0.0
  %7903 = vmatpush1.msra.mxu0 0.0
  %7904 = vmatprep.subr.mxu0 0.0
  %7905 = vmatpush1.msra.mxu0 0.0
  %7906 = vmatprep.subr.mxu0 0.0
  %7907 = vmatpush1.msra.mxu0 0.0
  %7908 = vmatprep.subr.mxu0 0.0
  %7909 = vmatpush1.msra.mxu0 0.0
  %7910 = vmatprep.subr.mxu0 0.0
  %7911 = vmatpush1.msra.mxu0 0.0
  %7912 = vmatprep.subr.mxu0 0.0
  %7913 = vmatpush1.msra.mxu0 0.0
  %7914 = vmatprep.subr.mxu0 0.0
  %7915 = vmatpush1.msra.mxu0 0.0
  %7916 = vmatprep.subr.mxu0 0.0
  %7917 = vmatpush1.msra.mxu0 0.0
  %7918 = vmatprep.subr.mxu0 0.0
  %7919 = vmatpush1.msra.mxu0 0.0
  %7920 = vmatprep.subr.mxu0 0.0
  %7921 = vmatpush1.msra.mxu0 0.0
  %7922 = vmatprep.subr.mxu0 0.0
  %7923 = vmatpush1.msra.mxu0 0.0
  %7924 = vmatprep.subr.mxu0 0.0
  %7925 = vmatpush1.msra.mxu0 0.0
  %7926 = vmatprep.subr.mxu0 0.0
  %7927 = vmatpush1.msra.mxu0 0.0
  %7928 = vmatprep.subr.mxu0 0.0
  %7929 = vmatpush1.msra.mxu0 0.0
  %7930 = vmatprep.subr.mxu0 0.0
  %7931 = vmatpush1.msra.mxu0 0.0
  %7932 = vmatprep.subr.mxu0 0.0
  %7933 = vmatpush1.msra.mxu0 0.0
  %7934 = vmatprep.subr.mxu0 0.0
  %7935 = vmatpush1.msra.mxu0 0.0
  %7936 = vmatprep.mubr.f32.mxu0 0.0
  %v7937 = vand.u32 %v7531, 4294901760
  %7938 = vmatmul.mubr.f32.gmra.mrb[0].mxu0 %v7937
  %v7939 = vpop.f32.mrb[0].mxu0
  %v7940 = vadd.f32 %v7857, %v7939
  %v7941 = vpop.f32.mrb[0].mxu0
  %7942 = vdwg.mxu0
  %7943 = vmatprep.subr.mxu0 0.0
  %v7944 = vand.u32 %v92, 4294901760
  %7945 = vmatpush1.msra.mxu0 %v7944
  %7946 = vmatprep.subr.mxu0 0.0
  %v7947 = vand.u32 %v93, 4294901760
  %7948 = vmatpush1.msra.mxu0 %v7947
  %7949 = vmatprep.subr.mxu0 0.0
  %v7950 = vand.u32 %v94, 4294901760
  %7951 = vmatpush1.msra.mxu0 %v7950
  %7952 = vmatprep.subr.mxu0 0.0
  %v7953 = vand.u32 %v95, 4294901760
  %7954 = vmatpush1.msra.mxu0 %v7953
  %7955 = vmatprep.subr.mxu0 0.0
  %7956 = vmatpush1.msra.mxu0 0.0
  %7957 = vmatprep.subr.mxu0 0.0
  %7958 = vmatpush1.msra.mxu0 0.0
  %7959 = vmatprep.subr.mxu0 0.0
  %7960 = vmatpush1.msra.mxu0 0.0
  %7961 = vmatprep.subr.mxu0 0.0
  %7962 = vmatpush1.msra.mxu0 0.0
  %7963 = vmatprep.subr.mxu0 0.0
  %7964 = vmatpush1.msra.mxu0 0.0
  %7965 = vmatprep.subr.mxu0 0.0
  %7966 = vmatpush1.msra.mxu0 0.0
  %7967 = vmatprep.subr.mxu0 0.0
  %7968 = vmatpush1.msra.mxu0 0.0
  %7969 = vmatprep.subr.mxu0 0.0
  %7970 = vmatpush1.msra.mxu0 0.0
  %7971 = vmatprep.subr.mxu0 0.0
  %7972 = vmatpush1.msra.mxu0 0.0
  %7973 = vmatprep.subr.mxu0 0.0
  %7974 = vmatpush1.msra.mxu0 0.0
  %7975 = vmatprep.subr.mxu0 0.0
  %7976 = vmatpush1.msra.mxu0 0.0
  %7977 = vmatprep.subr.mxu0 0.0
  %7978 = vmatpush1.msra.mxu0 0.0
  %7979 = vmatprep.subr.mxu0 0.0
  %7980 = vmatpush1.msra.mxu0 0.0
  %7981 = vmatprep.subr.mxu0 0.0
  %7982 = vmatpush1.msra.mxu0 0.0
  %7983 = vmatprep.subr.mxu0 0.0
  %7984 = vmatpush1.msra.mxu0 0.0
  %7985 = vmatprep.subr.mxu0 0.0
  %7986 = vmatpush1.msra.mxu0 0.0
  %7987 = vmatprep.subr.mxu0 0.0
  %7988 = vmatpush1.msra.mxu0 0.0
  %7989 = vmatprep.subr.mxu0 0.0
  %7990 = vmatpush1.msra.mxu0 0.0
  %7991 = vmatprep.subr.mxu0 0.0
  %7992 = vmatpush1.msra.mxu0 0.0
  %7993 = vmatprep.subr.mxu0 0.0
  %7994 = vmatpush1.msra.mxu0 0.0
  %7995 = vmatprep.subr.mxu0 0.0
  %7996 = vmatpush1.msra.mxu0 0.0
  %7997 = vmatprep.subr.mxu0 0.0
  %7998 = vmatpush1.msra.mxu0 0.0
  %7999 = vmatprep.subr.mxu0 0.0
  %8000 = vmatpush1.msra.mxu0 0.0
  %8001 = vmatprep.subr.mxu0 0.0
  %8002 = vmatpush1.msra.mxu0 0.0
  %8003 = vmatprep.subr.mxu0 0.0
  %8004 = vmatpush1.msra.mxu0 0.0
  %8005 = vmatprep.subr.mxu0 0.0
  %8006 = vmatpush1.msra.mxu0 0.0
  %8007 = vmatprep.subr.mxu0 0.0
  %8008 = vmatpush1.msra.mxu0 0.0
  %8009 = vmatprep.subr.mxu0 0.0
  %8010 = vmatpush1.msra.mxu0 0.0
  %8011 = vmatprep.mubr.f32.mxu0 0.0
  %v8012 = vand.u32 %v7531, 4294901760
  %8013 = vmatmul.mubr.f32.gmra.mrb[0].mxu0 %v8012
  %v8014 = vpop.f32.mrb[0].mxu0
  %v8015 = vadd.f32 %v7940, %v8014
  %v8016 = vpop.f32.mrb[0].mxu0
  %8017 = vdwg.mxu0
  %v8018 = vadd.f32 %v7527, %v8015
  %v8019 = vxor.u32 %v8018, 2147483648
  %v8020 = vmul.f32 %v8019, 1.442695
  %v8021 = vpow.pop %v8020
  %v8022 = vadd.f32 %v8021, 1.0
  %v8023 = vrcp.pop %v8022
  %v8024 = vmul.f32 1.0, %v8023
  %v8025 = vtanh.pop %v8018
  %v8026 = vmul.f32 %v8024, %v6976
  %8028 = vrot.lane.b32.xlu0 %v8025, 64
  %v8029 = vpop.permute.xlu0 %8028
  %v8031 = vmul.f32 %v8024, %v8029
  %8033 = vrot.lane.b32.xlu0 %v8031, 32
  %v8034 = vpop.permute.xlu0 %8033
  %v8036 = vadd.f32 %v8026, %v8034
  %v8037 = vtanh.pop %v8036
  %8039 = vrot.lane.b32.xlu0 %v8037, 64
  %v8040 = vpop.permute.xlu0 %8039
  %v8042 = vmul.f32 %v8024, %v8040
  %s8043 = scalar_lea.vmem %s4, 56
  %v8044 = vld [vmem:[%s8043] sm:$0xff]
  %8046 = vrot.lane.b32.xlu0 %v8044, 96
  %v8047 = vpop.permute.xlu0 %8046
  %v8049 = vadd.f32 %v8042, %v8047
  %8051 = vrot.lane.b32.xlu0 %v8049, 32
  %v8052 = vpop.permute.xlu0 %8051
  %s8054 = scalar_lea.vmem %s6, 56
  %8055 = vst.msk [vmem:[%s8054] sm:$0xff] %vm105, %v8052
  %v8056 = vld [vmem:[%s64] sm:$0xff]
  %8058 = vrot.lane.b32.xlu0 %v7512, 32
  %v8059 = vpop.permute.xlu0 %8058
  %v8060 = vsel %vm105, %v8059, 0
  %8062 = vmatprep.subr.mxu0 0.0
  %v8063 = vand.u32 %v96, 4294901760
  %8064 = vmatpush1.msra.mxu0 %v8063
  %8065 = vmatprep.subr.mxu0 0.0
  %v8066 = vand.u32 %v97, 4294901760
  %8067 = vmatpush1.msra.mxu0 %v8066
  %8068 = vmatprep.subr.mxu0 0.0
  %v8069 = vand.u32 %v98, 4294901760
  %8070 = vmatpush1.msra.mxu0 %v8069
  %8071 = vmatprep.subr.mxu0 0.0
  %v8072 = vand.u32 %v99, 4294901760
  %8073 = vmatpush1.msra.mxu0 %v8072
  %8074 = vmatprep.subr.mxu0 0.0
  %8075 = vmatpush1.msra.mxu0 0.0
  %8076 = vmatprep.subr.mxu0 0.0
  %8077 = vmatpush1.msra.mxu0 0.0
  %8078 = vmatprep.subr.mxu0 0.0
  %8079 = vmatpush1.msra.mxu0 0.0
  %8080 = vmatprep.subr.mxu0 0.0
  %8081 = vmatpush1.msra.mxu0 0.0
  %8082 = vmatprep.subr.mxu0 0.0
  %8083 = vmatpush1.msra.mxu0 0.0
  %8084 = vmatprep.subr.mxu0 0.0
  %8085 = vmatpush1.msra.mxu0 0.0
  %8086 = vmatprep.subr.mxu0 0.0
  %8087 = vmatpush1.msra.mxu0 0.0
  %8088 = vmatprep.subr.mxu0 0.0
  %8089 = vmatpush1.msra.mxu0 0.0
  %8090 = vmatprep.subr.mxu0 0.0
  %8091 = vmatpush1.msra.mxu0 0.0
  %8092 = vmatprep.subr.mxu0 0.0
  %8093 = vmatpush1.msra.mxu0 0.0
  %8094 = vmatprep.subr.mxu0 0.0
  %8095 = vmatpush1.msra.mxu0 0.0
  %8096 = vmatprep.subr.mxu0 0.0
  %8097 = vmatpush1.msra.mxu0 0.0
  %8098 = vmatprep.subr.mxu0 0.0
  %8099 = vmatpush1.msra.mxu0 0.0
  %8100 = vmatprep.subr.mxu0 0.0
  %8101 = vmatpush1.msra.mxu0 0.0
  %8102 = vmatprep.subr.mxu0 0.0
  %8103 = vmatpush1.msra.mxu0 0.0
  %8104 = vmatprep.subr.mxu0 0.0
  %8105 = vmatpush1.msra.mxu0 0.0
  %8106 = vmatprep.subr.mxu0 0.0
  %8107 = vmatpush1.msra.mxu0 0.0
  %8108 = vmatprep.subr.mxu0 0.0
  %8109 = vmatpush1.msra.mxu0 0.0
  %8110 = vmatprep.subr.mxu0 0.0
  %8111 = vmatpush1.msra.mxu0 0.0
  %8112 = vmatprep.subr.mxu0 0.0
  %8113 = vmatpush1.msra.mxu0 0.0
  %8114 = vmatprep.subr.mxu0 0.0
  %8115 = vmatpush1.msra.mxu0 0.0
  %8116 = vmatprep.subr.mxu0 0.0
  %8117 = vmatpush1.msra.mxu0 0.0
  %8118 = vmatprep.subr.mxu0 0.0
  %8119 = vmatpush1.msra.mxu0 0.0
  %8120 = vmatprep.subr.mxu0 0.0
  %8121 = vmatpush1.msra.mxu0 0.0
  %8122 = vmatprep.subr.mxu0 0.0
  %8123 = vmatpush1.msra.mxu0 0.0
  %8124 = vmatprep.subr.mxu0 0.0
  %8125 = vmatpush1.msra.mxu0 0.0
  %8126 = vmatprep.subr.mxu0 0.0
  %8127 = vmatpush1.msra.mxu0 0.0
  %8128 = vmatprep.subr.mxu0 0.0
  %8129 = vmatpush1.msra.mxu0 0.0
  %8130 = vmatprep.mubr.f32.mxu0 0.0
  %v8131 = vand.u32 %v8060, 4294901760
  %v8132 = vsub.f32 %v8060, %v8131
  %v8133 = vand.u32 %v8132, 4294901760
  %v8134 = vsub.f32 %v8132, %v8133
  %v8135 = vand.u32 %v8134, 4294901760
  %8136 = vmatmul.mubr.f32.gmra.mrb[0].mxu0 %v8135
  %v8137 = vpop.f32.mrb[0].mxu0
  %v8138 = vadd.f32 0.0, %v8137
  %v8139 = vpop.f32.mrb[0].mxu0
  %8140 = vdwg.mxu0
  %8141 = vmatprep.subr.mxu0 0.0
  %v8142 = vand.u32 %v96, 4294901760
  %v8143 = vsub.f32 %v96, %v8142
  %v8144 = vand.u32 %v8143, 4294901760
  %v8145 = vsub.f32 %v8143, %v8144
  %v8146 = vand.u32 %v8145, 4294901760
  %8147 = vmatpush1.msra.mxu0 %v8146
  %8148 = vmatprep.subr.mxu0 0.0
  %v8149 = vand.u32 %v97, 4294901760
  %v8150 = vsub.f32 %v97, %v8149
  %v8151 = vand.u32 %v8150, 4294901760
  %v8152 = vsub.f32 %v8150, %v8151
  %v8153 = vand.u32 %v8152, 4294901760
  %8154 = vmatpush1.msra.mxu0 %v8153
  %8155 = vmatprep.subr.mxu0 0.0
  %v8156 = vand.u32 %v98, 4294901760
  %v8157 = vsub.f32 %v98, %v8156
  %v8158 = vand.u32 %v8157, 4294901760
  %v8159 = vsub.f32 %v8157, %v8158
  %v8160 = vand.u32 %v8159, 4294901760
  %8161 = vmatpush1.msra.mxu0 %v8160
  %8162 = vmatprep.subr.mxu0 0.0
  %v8163 = vand.u32 %v99, 4294901760
  %v8164 = vsub.f32 %v99, %v8163
  %v8165 = vand.u32 %v8164, 4294901760
  %v8166 = vsub.f32 %v8164, %v8165
  %v8167 = vand.u32 %v8166, 4294901760
  %8168 = vmatpush1.msra.mxu0 %v8167
  %8169 = vmatprep.subr.mxu0 0.0
  %8170 = vmatpush1.msra.mxu0 0.0
  %8171 = vmatprep.subr.mxu0 0.0
  %8172 = vmatpush1.msra.mxu0 0.0
  %8173 = vmatprep.subr.mxu0 0.0
  %8174 = vmatpush1.msra.mxu0 0.0
  %8175 = vmatprep.subr.mxu0 0.0
  %8176 = vmatpush1.msra.mxu0 0.0
  %8177 = vmatprep.subr.mxu0 0.0
  %8178 = vmatpush1.msra.mxu0 0.0
  %8179 = vmatprep.subr.mxu0 0.0
  %8180 = vmatpush1.msra.mxu0 0.0
  %8181 = vmatprep.subr.mxu0 0.0
  %8182 = vmatpush1.msra.mxu0 0.0
  %8183 = vmatprep.subr.mxu0 0.0
  %8184 = vmatpush1.msra.mxu0 0.0
  %8185 = vmatprep.subr.mxu0 0.0
  %8186 = vmatpush1.msra.mxu0 0.0
  %8187 = vmatprep.subr.mxu0 0.0
  %8188 = vmatpush1.msra.mxu0 0.0
  %8189 = vmatprep.subr.mxu0 0.0
  %8190 = vmatpush1.msra.mxu0 0.0
  %8191 = vmatprep.subr.mxu0 0.0
  %8192 = vmatpush1.msra.mxu0 0.0
  %8193 = vmatprep.subr.mxu0 0.0
  %8194 = vmatpush1.msra.mxu0 0.0
  %8195 = vmatprep.subr.mxu0 0.0
  %8196 = vmatpush1.msra.mxu0 0.0
  %8197 = vmatprep.subr.mxu0 0.0
  %8198 = vmatpush1.msra.mxu0 0.0
  %8199 = vmatprep.subr.mxu0 0.0
  %8200 = vmatpush1.msra.mxu0 0.0
  %8201 = vmatprep.subr.mxu0 0.0
  %8202 = vmatpush1.msra.mxu0 0.0
  %8203 = vmatprep.subr.mxu0 0.0
  %8204 = vmatpush1.msra.mxu0 0.0
  %8205 = vmatprep.subr.mxu0 0.0
  %8206 = vmatpush1.msra.mxu0 0.0
  %8207 = vmatprep.subr.mxu0 0.0
  %8208 = vmatpush1.msra.mxu0 0.0
  %8209 = vmatprep.subr.mxu0 0.0
  %8210 = vmatpush1.msra.mxu0 0.0
  %8211 = vmatprep.subr.mxu0 0.0
  %8212 = vmatpush1.msra.mxu0 0.0
  %8213 = vmatprep.subr.mxu0 0.0
  %8214 = vmatpush1.msra.mxu0 0.0
  %8215 = vmatprep.subr.mxu0 0.0
  %8216 = vmatpush1.msra.mxu0 0.0
  %8217 = vmatprep.subr.mxu0 0.0
  %8218 = vmatpush1.msra.mxu0 0.0
  %8219 = vmatprep.subr.mxu0 0.0
  %8220 = vmatpush1.msra.mxu0 0.0
  %8221 = vmatprep.subr.mxu0 0.0
  %8222 = vmatpush1.msra.mxu0 0.0
  %8223 = vmatprep.subr.mxu0 0.0
  %8224 = vmatpush1.msra.mxu0 0.0
  %8225 = vmatprep.mubr.f32.mxu0 0.0
  %v8226 = vand.u32 %v8060, 4294901760
  %8227 = vmatmul.mubr.f32.gmra.mrb[0].mxu0 %v8226
  %v8228 = vpop.f32.mrb[0].mxu0
  %v8229 = vadd.f32 %v8138, %v8228
  %v8230 = vpop.f32.mrb[0].mxu0
  %8231 = vdwg.mxu0
  %8232 = vmatprep.subr.mxu0 0.0
  %v8233 = vand.u32 %v96, 4294901760
  %v8234 = vsub.f32 %v96, %v8233
  %8235 = vmatpush1.msra.mxu0 %v8234
  %8236 = vmatprep.subr.mxu0 0.0
  %v8237 = vand.u32 %v97, 4294901760
  %v8238 = vsub.f32 %v97, %v8237
  %8239 = vmatpush1.msra.mxu0 %v8238
  %8240 = vmatprep.subr.mxu0 0.0
  %v8241 = vand.u32 %v98, 4294901760
  %v8242 = vsub.f32 %v98, %v8241
  %8243 = vmatpush1.msra.mxu0 %v8242
  %8244 = vmatprep.subr.mxu0 0.0
  %v8245 = vand.u32 %v99, 4294901760
  %v8246 = vsub.f32 %v99, %v8245
  %8247 = vmatpush1.msra.mxu0 %v8246
  %8248 = vmatprep.subr.mxu0 0.0
  %8249 = vmatpush1.msra.mxu0 0.0
  %8250 = vmatprep.subr.mxu0 0.0
  %8251 = vmatpush1.msra.mxu0 0.0
  %8252 = vmatprep.subr.mxu0 0.0
  %8253 = vmatpush1.msra.mxu0 0.0
  %8254 = vmatprep.subr.mxu0 0.0
  %8255 = vmatpush1.msra.mxu0 0.0
  %8256 = vmatprep.subr.mxu0 0.0
  %8257 = vmatpush1.msra.mxu0 0.0
  %8258 = vmatprep.subr.mxu0 0.0
  %8259 = vmatpush1.msra.mxu0 0.0
  %8260 = vmatprep.subr.mxu0 0.0
  %8261 = vmatpush1.msra.mxu0 0.0
  %8262 = vmatprep.subr.mxu0 0.0
  %8263 = vmatpush1.msra.mxu0 0.0
  %8264 = vmatprep.subr.mxu0 0.0
  %8265 = vmatpush1.msra.mxu0 0.0
  %8266 = vmatprep.subr.mxu0 0.0
  %8267 = vmatpush1.msra.mxu0 0.0
  %8268 = vmatprep.subr.mxu0 0.0
  %8269 = vmatpush1.msra.mxu0 0.0
  %8270 = vmatprep.subr.mxu0 0.0
  %8271 = vmatpush1.msra.mxu0 0.0
  %8272 = vmatprep.subr.mxu0 0.0
  %8273 = vmatpush1.msra.mxu0 0.0
  %8274 = vmatprep.subr.mxu0 0.0
  %8275 = vmatpush1.msra.mxu0 0.0
  %8276 = vmatprep.subr.mxu0 0.0
  %8277 = vmatpush1.msra.mxu0 0.0
  %8278 = vmatprep.subr.mxu0 0.0
  %8279 = vmatpush1.msra.mxu0 0.0
  %8280 = vmatprep.subr.mxu0 0.0
  %8281 = vmatpush1.msra.mxu0 0.0
  %8282 = vmatprep.subr.mxu0 0.0
  %8283 = vmatpush1.msra.mxu0 0.0
  %8284 = vmatprep.subr.mxu0 0.0
  %8285 = vmatpush1.msra.mxu0 0.0
  %8286 = vmatprep.subr.mxu0 0.0
  %8287 = vmatpush1.msra.mxu0 0.0
  %8288 = vmatprep.subr.mxu0 0.0
  %8289 = vmatpush1.msra.mxu0 0.0
  %8290 = vmatprep.subr.mxu0 0.0
  %8291 = vmatpush1.msra.mxu0 0.0
  %8292 = vmatprep.subr.mxu0 0.0
  %8293 = vmatpush1.msra.mxu0 0.0
  %8294 = vmatprep.subr.mxu0 0.0
  %8295 = vmatpush1.msra.mxu0 0.0
  %8296 = vmatprep.subr.mxu0 0.0
  %8297 = vmatpush1.msra.mxu0 0.0
  %8298 = vmatprep.subr.mxu0 0.0
  %8299 = vmatpush1.msra.mxu0 0.0
  %8300 = vmatprep.subr.mxu0 0.0
  %8301 = vmatpush1.msra.mxu0 0.0
  %8302 = vmatprep.subr.mxu0 0.0
  %8303 = vmatpush1.msra.mxu0 0.0
  %8304 = vmatprep.mubr.f32.mxu0 0.0
  %v8305 = vand.u32 %v8060, 4294901760
  %v8306 = vsub.f32 %v8060, %v8305
  %8307 = vmatmul.mubr.f32.gmra.mrb[0].mxu0 %v8306
  %v8308 = vpop.f32.mrb[0].mxu0
  %v8309 = vadd.f32 %v8229, %v8308
  %v8310 = vpop.f32.mrb[0].mxu0
  %8311 = vdwg.mxu0
  %8312 = vmatprep.subr.mxu0 0.0
  %v8313 = vand.u32 %v96, 4294901760
  %8314 = vmatpush1.msra.mxu0 %v8313
  %8315 = vmatprep.subr.mxu0 0.0
  %v8316 = vand.u32 %v97, 4294901760
  %8317 = vmatpush1.msra.mxu0 %v8316
  %8318 = vmatprep.subr.mxu0 0.0
  %v8319 = vand.u32 %v98, 4294901760
  %8320 = vmatpush1.msra.mxu0 %v8319
  %8321 = vmatprep.subr.mxu0 0.0
  %v8322 = vand.u32 %v99, 4294901760
  %8323 = vmatpush1.msra.mxu0 %v8322
  %8324 = vmatprep.subr.mxu0 0.0
  %8325 = vmatpush1.msra.mxu0 0.0
  %8326 = vmatprep.subr.mxu0 0.0
  %8327 = vmatpush1.msra.mxu0 0.0
  %8328 = vmatprep.subr.mxu0 0.0
  %8329 = vmatpush1.msra.mxu0 0.0
  %8330 = vmatprep.subr.mxu0 0.0
  %8331 = vmatpush1.msra.mxu0 0.0
  %8332 = vmatprep.subr.mxu0 0.0
  %8333 = vmatpush1.msra.mxu0 0.0
  %8334 = vmatprep.subr.mxu0 0.0
  %8335 = vmatpush1.msra.mxu0 0.0
  %8336 = vmatprep.subr.mxu0 0.0
  %8337 = vmatpush1.msra.mxu0 0.0
  %8338 = vmatprep.subr.mxu0 0.0
  %8339 = vmatpush1.msra.mxu0 0.0
  %8340 = vmatprep.subr.mxu0 0.0
  %8341 = vmatpush1.msra.mxu0 0.0
  %8342 = vmatprep.subr.mxu0 0.0
  %8343 = vmatpush1.msra.mxu0 0.0
  %8344 = vmatprep.subr.mxu0 0.0
  %8345 = vmatpush1.msra.mxu0 0.0
  %8346 = vmatprep.subr.mxu0 0.0
  %8347 = vmatpush1.msra.mxu0 0.0
  %8348 = vmatprep.subr.mxu0 0.0
  %8349 = vmatpush1.msra.mxu0 0.0
  %8350 = vmatprep.subr.mxu0 0.0
  %8351 = vmatpush1.msra.mxu0 0.0
  %8352 = vmatprep.subr.mxu0 0.0
  %8353 = vmatpush1.msra.mxu0 0.0
  %8354 = vmatprep.subr.mxu0 0.0
  %8355 = vmatpush1.msra.mxu0 0.0
  %8356 = vmatprep.subr.mxu0 0.0
  %8357 = vmatpush1.msra.mxu0 0.0
  %8358 = vmatprep.subr.mxu0 0.0
  %8359 = vmatpush1.msra.mxu0 0.0
  %8360 = vmatprep.subr.mxu0 0.0
  %8361 = vmatpush1.msra.mxu0 0.0
  %8362 = vmatprep.subr.mxu0 0.0
  %8363 = vmatpush1.msra.mxu0 0.0
  %8364 = vmatprep.subr.mxu0 0.0
  %8365 = vmatpush1.msra.mxu0 0.0
  %8366 = vmatprep.subr.mxu0 0.0
  %8367 = vmatpush1.msra.mxu0 0.0
  %8368 = vmatprep.subr.mxu0 0.0
  %8369 = vmatpush1.msra.mxu0 0.0
  %8370 = vmatprep.subr.mxu0 0.0
  %8371 = vmatpush1.msra.mxu0 0.0
  %8372 = vmatprep.subr.mxu0 0.0
  %8373 = vmatpush1.msra.mxu0 0.0
  %8374 = vmatprep.subr.mxu0 0.0
  %8375 = vmatpush1.msra.mxu0 0.0
  %8376 = vmatprep.subr.mxu0 0.0
  %8377 = vmatpush1.msra.mxu0 0.0
  %8378 = vmatprep.subr.mxu0 0.0
  %8379 = vmatpush1.msra.mxu0 0.0
  %8380 = vmatprep.mubr.f32.mxu0 0.0
  %v8381 = vand.u32 %v8060, 4294901760
  %v8382 = vsub.f32 %v8060, %v8381
  %v8383 = vand.u32 %v8382, 4294901760
  %8384 = vmatmul.mubr.f32.gmra.mrb[0].mxu0 %v8383
  %v8385 = vpop.f32.mrb[0].mxu0
  %v8386 = vadd.f32 %v8309, %v8385
  %v8387 = vpop.f32.mrb[0].mxu0
  %8388 = vdwg.mxu0
  %8389 = vmatprep.subr.mxu0 0.0
  %v8390 = vand.u32 %v96, 4294901760
  %v8391 = vsub.f32 %v96, %v8390
  %v8392 = vand.u32 %v8391, 4294901760
  %8393 = vmatpush1.msra.mxu0 %v8392
  %8394 = vmatprep.subr.mxu0 0.0
  %v8395 = vand.u32 %v97, 4294901760
  %v8396 = vsub.f32 %v97, %v8395
  %v8397 = vand.u32 %v8396, 4294901760
  %8398 = vmatpush1.msra.mxu0 %v8397
  %8399 = vmatprep.subr.mxu0 0.0
  %v8400 = vand.u32 %v98, 4294901760
  %v8401 = vsub.f32 %v98, %v8400
  %v8402 = vand.u32 %v8401, 4294901760
  %8403 = vmatpush1.msra.mxu0 %v8402
  %8404 = vmatprep.subr.mxu0 0.0
  %v8405 = vand.u32 %v99, 4294901760
  %v8406 = vsub.f32 %v99, %v8405
  %v8407 = vand.u32 %v8406, 4294901760
  %8408 = vmatpush1.msra.mxu0 %v8407
  %8409 = vmatprep.subr.mxu0 0.0
  %8410 = vmatpush1.msra.mxu0 0.0
  %8411 = vmatprep.subr.mxu0 0.0
  %8412 = vmatpush1.msra.mxu0 0.0
  %8413 = vmatprep.subr.mxu0 0.0
  %8414 = vmatpush1.msra.mxu0 0.0
  %8415 = vmatprep.subr.mxu0 0.0
  %8416 = vmatpush1.msra.mxu0 0.0
  %8417 = vmatprep.subr.mxu0 0.0
  %8418 = vmatpush1.msra.mxu0 0.0
  %8419 = vmatprep.subr.mxu0 0.0
  %8420 = vmatpush1.msra.mxu0 0.0
  %8421 = vmatprep.subr.mxu0 0.0
  %8422 = vmatpush1.msra.mxu0 0.0
  %8423 = vmatprep.subr.mxu0 0.0
  %8424 = vmatpush1.msra.mxu0 0.0
  %8425 = vmatprep.subr.mxu0 0.0
  %8426 = vmatpush1.msra.mxu0 0.0
  %8427 = vmatprep.subr.mxu0 0.0
  %8428 = vmatpush1.msra.mxu0 0.0
  %8429 = vmatprep.subr.mxu0 0.0
  %8430 = vmatpush1.msra.mxu0 0.0
  %8431 = vmatprep.subr.mxu0 0.0
  %8432 = vmatpush1.msra.mxu0 0.0
  %8433 = vmatprep.subr.mxu0 0.0
  %8434 = vmatpush1.msra.mxu0 0.0
  %8435 = vmatprep.subr.mxu0 0.0
  %8436 = vmatpush1.msra.mxu0 0.0
  %8437 = vmatprep.subr.mxu0 0.0
  %8438 = vmatpush1.msra.mxu0 0.0
  %8439 = vmatprep.subr.mxu0 0.0
  %8440 = vmatpush1.msra.mxu0 0.0
  %8441 = vmatprep.subr.mxu0 0.0
  %8442 = vmatpush1.msra.mxu0 0.0
  %8443 = vmatprep.subr.mxu0 0.0
  %8444 = vmatpush1.msra.mxu0 0.0
  %8445 = vmatprep.subr.mxu0 0.0
  %8446 = vmatpush1.msra.mxu0 0.0
  %8447 = vmatprep.subr.mxu0 0.0
  %8448 = vmatpush1.msra.mxu0 0.0
  %8449 = vmatprep.subr.mxu0 0.0
  %8450 = vmatpush1.msra.mxu0 0.0
  %8451 = vmatprep.subr.mxu0 0.0
  %8452 = vmatpush1.msra.mxu0 0.0
  %8453 = vmatprep.subr.mxu0 0.0
  %8454 = vmatpush1.msra.mxu0 0.0
  %8455 = vmatprep.subr.mxu0 0.0
  %8456 = vmatpush1.msra.mxu0 0.0
  %8457 = vmatprep.subr.mxu0 0.0
  %8458 = vmatpush1.msra.mxu0 0.0
  %8459 = vmatprep.subr.mxu0 0.0
  %8460 = vmatpush1.msra.mxu0 0.0
  %8461 = vmatprep.subr.mxu0 0.0
  %8462 = vmatpush1.msra.mxu0 0.0
  %8463 = vmatprep.subr.mxu0 0.0
  %8464 = vmatpush1.msra.mxu0 0.0
  %8465 = vmatprep.mubr.f32.mxu0 0.0
  %v8466 = vand.u32 %v8060, 4294901760
  %8467 = vmatmul.mubr.f32.gmra.mrb[0].mxu0 %v8466
  %v8468 = vpop.f32.mrb[0].mxu0
  %v8469 = vadd.f32 %v8386, %v8468
  %v8470 = vpop.f32.mrb[0].mxu0
  %8471 = vdwg.mxu0
  %8472 = vmatprep.subr.mxu0 0.0
  %v8473 = vand.u32 %v96, 4294901760
  %8474 = vmatpush1.msra.mxu0 %v8473
  %8475 = vmatprep.subr.mxu0 0.0
  %v8476 = vand.u32 %v97, 4294901760
  %8477 = vmatpush1.msra.mxu0 %v8476
  %8478 = vmatprep.subr.mxu0 0.0
  %v8479 = vand.u32 %v98, 4294901760
  %8480 = vmatpush1.msra.mxu0 %v8479
  %8481 = vmatprep.subr.mxu0 0.0
  %v8482 = vand.u32 %v99, 4294901760
  %8483 = vmatpush1.msra.mxu0 %v8482
  %8484 = vmatprep.subr.mxu0 0.0
  %8485 = vmatpush1.msra.mxu0 0.0
  %8486 = vmatprep.subr.mxu0 0.0
  %8487 = vmatpush1.msra.mxu0 0.0
  %8488 = vmatprep.subr.mxu0 0.0
  %8489 = vmatpush1.msra.mxu0 0.0
  %8490 = vmatprep.subr.mxu0 0.0
  %8491 = vmatpush1.msra.mxu0 0.0
  %8492 = vmatprep.subr.mxu0 0.0
  %8493 = vmatpush1.msra.mxu0 0.0
  %8494 = vmatprep.subr.mxu0 0.0
  %8495 = vmatpush1.msra.mxu0 0.0
  %8496 = vmatprep.subr.mxu0 0.0
  %8497 = vmatpush1.msra.mxu0 0.0
  %8498 = vmatprep.subr.mxu0 0.0
  %8499 = vmatpush1.msra.mxu0 0.0
  %8500 = vmatprep.subr.mxu0 0.0
  %8501 = vmatpush1.msra.mxu0 0.0
  %8502 = vmatprep.subr.mxu0 0.0
  %8503 = vmatpush1.msra.mxu0 0.0
  %8504 = vmatprep.subr.mxu0 0.0
  %8505 = vmatpush1.msra.mxu0 0.0
  %8506 = vmatprep.subr.mxu0 0.0
  %8507 = vmatpush1.msra.mxu0 0.0
  %8508 = vmatprep.subr.mxu0 0.0
  %8509 = vmatpush1.msra.mxu0 0.0
  %8510 = vmatprep.subr.mxu0 0.0
  %8511 = vmatpush1.msra.mxu0 0.0
  %8512 = vmatprep.subr.mxu0 0.0
  %8513 = vmatpush1.msra.mxu0 0.0
  %8514 = vmatprep.subr.mxu0 0.0
  %8515 = vmatpush1.msra.mxu0 0.0
  %8516 = vmatprep.subr.mxu0 0.0
  %8517 = vmatpush1.msra.mxu0 0.0
  %8518 = vmatprep.subr.mxu0 0.0
  %8519 = vmatpush1.msra.mxu0 0.0
  %8520 = vmatprep.subr.mxu0 0.0
  %8521 = vmatpush1.msra.mxu0 0.0
  %8522 = vmatprep.subr.mxu0 0.0
  %8523 = vmatpush1.msra.mxu0 0.0
  %8524 = vmatprep.subr.mxu0 0.0
  %8525 = vmatpush1.msra.mxu0 0.0
  %8526 = vmatprep.subr.mxu0 0.0
  %8527 = vmatpush1.msra.mxu0 0.0
  %8528 = vmatprep.subr.mxu0 0.0
  %8529 = vmatpush1.msra.mxu0 0.0
  %8530 = vmatprep.subr.mxu0 0.0
  %8531 = vmatpush1.msra.mxu0 0.0
  %8532 = vmatprep.subr.mxu0 0.0
  %8533 = vmatpush1.msra.mxu0 0.0
  %8534 = vmatprep.subr.mxu0 0.0
  %8535 = vmatpush1.msra.mxu0 0.0
  %8536 = vmatprep.subr.mxu0 0.0
  %8537 = vmatpush1.msra.mxu0 0.0
  %8538 = vmatprep.subr.mxu0 0.0
  %8539 = vmatpush1.msra.mxu0 0.0
  %8540 = vmatprep.mubr.f32.mxu0 0.0
  %v8541 = vand.u32 %v8060, 4294901760
  %8542 = vmatmul.mubr.f32.gmra.mrb[0].mxu0 %v8541
  %v8543 = vpop.f32.mrb[0].mxu0
  %v8544 = vadd.f32 %v8469, %v8543
  %v8545 = vpop.f32.mrb[0].mxu0
  %8546 = vdwg.mxu0
  %v8547 = vadd.f32 %v8056, %v8544
  %v8548 = vxor.u32 %v8547, 2147483648
  %v8549 = vmul.f32 %v8548, 1.442695
  %v8550 = vpow.pop %v8549
  %v8551 = vadd.f32 %v8550, 1.0
  %v8552 = vrcp.pop %v8551
  %v8553 = vmul.f32 1.0, %v8552
  %v8554 = vtanh.pop %v8547
  %v8555 = vmul.f32 %v8553, %v7506
  %8557 = vrot.lane.b32.xlu0 %v8554, 64
  %v8558 = vpop.permute.xlu0 %8557
  %v8560 = vmul.f32 %v8553, %v8558
  %8562 = vrot.lane.b32.xlu0 %v8560, 32
  %v8563 = vpop.permute.xlu0 %8562
  %v8565 = vadd.f32 %v8555, %v8563
  %v8566 = vtanh.pop %v8565
  %8568 = vrot.lane.b32.xlu0 %v8566, 64
  %v8569 = vpop.permute.xlu0 %8568
  %v8571 = vmul.f32 %v8553, %v8569
  %v8572 = vld [vmem:[%s72] sm:$0xff]
  %8574 = vrot.lane.b32.xlu0 %v8572, 96
  %v8575 = vpop.permute.xlu0 %8574
  %v8577 = vadd.f32 %v8571, %v8575
  %8579 = vrot.lane.b32.xlu0 %v8577, 32
  %v8580 = vpop.permute.xlu0 %8579
  %8582 = vst.msk [vmem:[%s80] sm:$0xff] %vm105, %v8580
  %8584 = vrot.lane.b32.xlu0 %v8042, 32
  %v8585 = vpop.permute.xlu0 %8584
  %8587 = vst.msk [vmem:[#allocation2] sm:$0xff] %vm105, %v8585
  %8589 = vrot.lane.b32.xlu0 %v8036, 96
  %v8590 = vpop.permute.xlu0 %8589
  %8592 = vst.msk [vmem:[#allocation4] sm:$0xff] %vm105, %v8590
  %8594 = vrot.lane.b32.xlu0 %v8571, 32
  %v8595 = vpop.permute.xlu0 %8594
  %8597 = vst.msk [vmem:[#allocation3] sm:$0xff] %vm105, %v8595
  %8599 = vrot.lane.b32.xlu0 %v8565, 96
  %v8600 = vpop.permute.xlu0 %8599
  %8602 = vst.msk [vmem:[#allocation5] sm:$0xff] %vm105, %v8600
  %s8603 = ssub.s32 0, 0
  %s8604 = smul.u32 8, %s8603
  %p8605 = scmp.lt.s32.totalorder %s8604, 7
  %s8606 = scalar_select %p8605, %s8604, 7
  %s8607 = smul.addr %s8606, 8
  %s8608 = scalar_lea.vmem %s7, %s8607
  // Predicated region
  $region30: #{residual_lstm_block.1} parent=0 // pred_check
    _
  $region31: #{residual_lstm_block.1} parent=0 // pred_check_branch
    %8610 = sbr.rel (0) target = $region33
  $region32: #{residual_lstm_block.1} parent=0 // pred_region
    _
  $region33: #{residual_lstm_block.1} parent=0 // pred_fallthru
    _
  // Predicated region
  $region34: #{residual_lstm_block.1} parent=0 // pred_check
    _
  $region35: #{residual_lstm_block.1} parent=0 // pred_check_branch
    %8612 = sbr.rel (0) target = $region37
  $region36: #{residual_lstm_block.1} parent=0 // pred_region
    %s8613 = ssub.s32 0, 0
    %s8614 = smul.u32 8, %s8613
  $region37: #{residual_lstm_block.1} parent=0 // pred_fallthru
    _
  // Predicated region
  $region38: #{residual_lstm_block.1} parent=0 // pred_check
    _
  $region39: #{residual_lstm_block.1} parent=0 // pred_check_branch
    %8616 = sbr.rel (0) target = $region41
  $region40: #{residual_lstm_block.1} parent=0 // pred_region
    _
  $region41: #{residual_lstm_block.1} parent=0 // pred_fallthru
    _
  // Predicated region
  $region42: #{residual_lstm_block.1} parent=0 // pred_check
    _
  $region43: #{residual_lstm_block.1} parent=0 // pred_check_branch
    %8618 = sbr.rel (0) target = $region45
  $region44: #{residual_lstm_block.1} parent=0 // pred_region
    %s8619 = ssub.s32 0, 0
    %s8620 = smul.u32 8, %s8619
    %p8621 = scmp.lt.s32.totalorder %s8620, 7
    %s8622 = scalar_select %p8621, %s8620, 7
    %s8623 = smul.addr %s8622, 8
    %s8624 = scalar_lea.vmem %s7, %s8623
  $region45: #{residual_lstm_block.1} parent=0 // pred_fallthru
    _

</llo_original>
